<compile_context>
chip_gen: v7x
topology: tpu7x:2x2x1
jax: 0.10.0
libtpu: 0.0.40
codegen_flags: <defaults>
</compile_context>

<pallas_src>
import functools
import math

import jax
import jax.numpy as jnp
from jax.experimental import pallas as pl
from jax.experimental.pallas import tpu as pltpu

VMEM = pltpu.MemorySpace.VMEM
_MXU_DTYPE = jnp.bfloat16  # MXU operand dtype (f32 accumulation); elementwise stays f32.


def _vmem_specs(n):
    return [pl.BlockSpec(memory_space=VMEM) for _ in range(n)]


def _round_up(x, m):
    return ((x + m - 1) // m) * m


def _pick_row_tile(n, align=16, max_tile=512):
    """Largest row tile that divides n, is a multiple of `align`, and (when
    possible) yields >=2 row blocks so the 'parallel' axis can shard across TCs."""
    if n <= align:
        return n
    target = min(max_tile, max(align, ((n // 2) // align) * align))
    t = target
    while t >= align:
        if n % t == 0:
            return t
        t -= align
    return n


def _pick_k_tile(n, align=128, max_tile=1024):
    """Largest contraction tile <= max_tile that divides n and is lane-aligned."""
    if n <= max_tile:
        return n
    t = max_tile - (max_tile % align)
    while t >= align:
        if n % t == 0:
            return t
        t -= align
    return n


# ----------------------------------------------------------------------------
# Pallas kernels
# ----------------------------------------------------------------------------
def _prologue_kernel(x_ref, w0_ref, b0_ref, wsrc_ref, h0_ref, xcat_ref, *, H, PAD):
    """mlp0 + one-time construction of the lane-padded aggregation operand xcat."""
    h0 = jnp.dot(x_ref[...].astype(_MXU_DTYPE), w0_ref[...],
                 preferred_element_type=jnp.float32) + b0_ref[...]
    h0_ref[...] = h0
    b = jnp.dot(h0.astype(_MXU_DTYPE), wsrc_ref[...],
                preferred_element_type=jnp.float32)
    parts = [h0, b, b * b]
    if PAD > 3 * H:
        parts.append(jnp.zeros((h0.shape[0], PAD - 3 * H), jnp.float32))
    xcat_ref[...] = jnp.concatenate(parts, axis=1).astype(_MXU_DTYPE)


def _chain_kernel(*refs, ops, n_params):
    """Fused dense chain: sequence of {lin, bn, relu}, whole batch in VMEM."""
    x_ref = refs[0]
    params = refs[1:1 + n_params]
    o_ref = refs[1 + n_params]
    h = x_ref[...]
    pi = 0
    for op in ops:
        if op == "lin":
            w, b = params[pi], params[pi + 1]
            pi += 2
            h = jnp.dot(h.astype(_MXU_DTYPE), w[...],
                        preferred_element_type=jnp.float32) + b[...]
        elif op == "bn":
            g, b = params[pi], params[pi + 1]
            pi += 2
            mu = jnp.mean(h, axis=0, keepdims=True)
            var = jnp.mean((h - mu) ** 2, axis=0, keepdims=True)
            h = (h - mu) * jax.lax.rsqrt(var + 1e-5) * g[...] + b[...]
        else:  # relu
            h = jnp.maximum(h, 0.0)
    o_ref[...] = h


def _heads_kernel(*refs, specs, n_params):
    """Four fused heads sharing one read of l1: degree, feature(+MSE), mean, sigma."""
    l1 = refs[0][...]
    tgt = refs[1][...]
    params = refs[2:2 + n_params]
    outs = refs[2 + n_params:]
    p_off = 0
    for idx, (ops, np_i, mse) in enumerate(specs):
        ps = params[p_off:p_off + np_i]
        p_off += np_i
        h = l1
        pi = 0
        for op in ops:
            if op == "lin":
                w, b = ps[pi], ps[pi + 1]
                pi += 2
                h = jnp.dot(h.astype(_MXU_DTYPE), w[...],
                            preferred_element_type=jnp.float32) + b[...]
            elif op == "bn":
                g, b = ps[pi], ps[pi + 1]
                pi += 2
                mu = jnp.mean(h, axis=0, keepdims=True)
                var = jnp.mean((h - mu) ** 2, axis=0, keepdims=True)
                h = (h - mu) * jax.lax.rsqrt(var + 1e-5) * g[...] + b[...]
            else:
                h = jnp.maximum(h, 0.0)
        if mse:
            d = h - tgt
            outs[idx][...] = jnp.mean(d * d, axis=1, keepdims=True)
        else:
            outs[idx][...] = h


def _agg_kernel(a_ref, xcat_ref, h0i_ref, deg_ref,
                wl_ref, bl_ref, wr_ref,
                wp1_ref, wp2_ref, bp_ref, wlin_ref, blin_ref,
                out_ref, acc_ref, *, H, PAD):
    """Tiled A @ xcat accumulate; epilogue builds [gin | SAGE mean | PNA std] slab."""
    k = pl.program_id(1)

    @pl.when(k == 0)
    def _():
        acc_ref[...] = jnp.zeros_like(acc_ref)

    # inner loop: one DMA'd A tile (cast in-kernel) + one lane-dense MXU dot
    acc_ref[...] += jnp.dot(a_ref[...].astype(_MXU_DTYPE), xcat_ref[...],
                            preferred_element_type=jnp.float32)

    @pl.when(k == pl.num_programs(1) - 1)
    def _():
        acc = acc_ref[...]
        h0 = h0i_ref[...]
        deg = deg_ref[...]                              # (tm, 1), clamped >= 1
        inv_deg = pl.reciprocal(deg, approx=True)       # approx OK for SAGE mean
        inv_deg_exact = 1.0 / deg                       # exact for the std path
        s_h = acc[:, :H]
        s_b = acc[:, H:2 * H]
        s_b2 = acc[:, 2 * H:3 * H]

        # GINConv (eps=0): sum_{j->i} h0_j + h0_i
        gin = s_h + h0

        # SAGEConv(aggr='mean'): lin_l(mean_agg) + lin_r(h0)
        h0_mx = h0.astype(_MXU_DTYPE)
        mean_agg = s_h * inv_deg
        mean_h = (jnp.dot(mean_agg.astype(_MXU_DTYPE), wl_ref[...],
                          preferred_element_type=jnp.float32)
                  + bl_ref[...]
                  + jnp.dot(h0_mx, wr_ref[...], preferred_element_type=jnp.float32))

        # PNAConv(aggregators=['std'], scalers=['identity']) + post + lin.
        # The x_i part / bias of the (purely linear) pre-layer is constant per
        # destination node and cancels exactly inside the std aggregator.
        m1 = s_b * inv_deg_exact
        m2 = s_b2 * inv_deg_exact
        std_agg = jnp.sqrt(jnp.maximum(m2 - m1 * m1, 0.0) + 1e-5)
        post = (jnp.dot(h0_mx, wp1_ref[...], preferred_element_type=jnp.float32)
                + jnp.dot(std_agg.astype(_MXU_DTYPE), wp2_ref[...],
                          preferred_element_type=jnp.float32)
                + bp_ref[...])
        std_h = (jnp.dot(post.astype(_MXU_DTYPE), wlin_ref[...],
                         preferred_element_type=jnp.float32)
                 + blin_ref[...])

        parts = [gin, mean_h, std_h]
        if PAD > 3 * H:
            parts.append(jnp.zeros((gin.shape[0], PAD - 3 * H), jnp.float32))
        out_ref[...] = jnp.concatenate(parts, axis=1)   # one lane-dense store


def _gen_stats_kernel(mean_ref, sigma_ref, z_ref,
                      w1, b1, w2, b2, w3, b3, w4, b4,
                      gm_ref, gstd_ref, sum_ref, sq_ref, *, S, S_BLK):
    """Reparameterize + MLP_generator on S_BLK samples at once + running stats."""
    s = pl.program_id(2)

    @pl.when(s == 0)
    def _():
        sum_ref[...] = jnp.zeros_like(sum_ref)
        sq_ref[...] = jnp.zeros_like(sq_ref)

    mean = mean_ref[...]                                 # (Nb, H)
    sig = jnp.exp(sigma_ref[...])
    z = z_ref[0]                                         # (S_BLK, Nb, H)
    nb, hd = mean.shape
    h = (mean[None] + sig[None] * z).reshape(S_BLK * nb, hd)   # big MXU M dim
    for (w, b) in ((w1, b1), (w2, b2), (w3, b3)):
        h = jnp.maximum(
            jnp.dot(h.astype(_MXU_DTYPE), w[...],
                    preferred_element_type=jnp.float32) + b[...], 0.0)
    h = jnp.dot(h.astype(_MXU_DTYPE), w4[...],
                preferred_element_type=jnp.float32) + b4[...]
    h = h.reshape(S_BLK, nb, hd)

    sum_ref[...] += jnp.sum(h, axis=0)
    sq_ref[...] += jnp.sum(h * h, axis=0)

    @pl.when(s == pl.num_programs(2) - 1)
    def _():
        m = sum_ref[...] / S
        # TODO(synk): sum-of-squares variance is cancellation-prone at scale (Welford).
        v = jnp.maximum(sq_ref[...] - S * m * m, 0.0) / (S - 1)   # unbiased, torch.std
        gm_ref[...] = m[None]
        gstd_ref[...] = jnp.sqrt(v)[None]


def _kl_kernel(mn_ref, sn_ref, gm_ref, gs_ref, o_ref, *, S, H):
    """Exact closed-form KL: both covariances are I + rank-1 in the reference
    (target = I + s s^T, generated = I + g g^T / S), so the det / inverse reduce
    via the matrix-determinant lemma / Sherman-Morrison.  The log-det direction
    log(det_target / det_generated) matches the reference code verbatim."""
    s = sn_ref[...]                                   # (N, H)
    mn = mn_ref[...]                                  # (N, H)
    gm = gm_ref[...]                                  # (T, N, H)
    gs = gs_ref[...]                                  # (T, N, H)

    s2 = jnp.sum(s * s, axis=-1)                      # (N,)
    g2 = jnp.sum(gs * gs, axis=-1)                    # (T, N)
    gsd = jnp.sum(gs * s[None], axis=-1)              # (T, N)
    d = gm - mn[None]
    d2 = jnp.sum(d * d, axis=-1)
    gd = jnp.sum(gs * d, axis=-1)

    denom = S + g2                                    # Sherman-Morrison denominator
    logdet = jnp.log((1.0 + s2)[None] / (1.0 + g2 / S))
    tr = H + s2[None] - (g2 + gsd * gsd) / denom
    zq = d2 - gd * gd / denom
    o_ref[...] = 0.5 * (logdet - H + tr + zq)


# ----------------------------------------------------------------------------
# Pallas wrappers
# ----------------------------------------------------------------------------
def encoder_prologue(x, mlp0_params, wsrc, H, PAD):
    # TODO(synk): row-grid this kernel for very large N (no BN -> trivially tileable).
    N = x.shape[0]
    w0, b0 = mlp0_params
    return pl.pallas_call(
        functools.partial(_prologue_kernel, H=H, PAD=PAD),
        out_shape=(jax.ShapeDtypeStruct((N, H), jnp.float32),
                   jax.ShapeDtypeStruct((N, PAD), _MXU_DTYPE)),
        in_specs=_vmem_specs(4),
        out_specs=(pl.BlockSpec(memory_space=VMEM),
                   pl.BlockSpec(memory_space=VMEM)),
    )(x, w0, b0, wsrc)


def run_chain(x, ops, flat):
    M = x.shape[0]
    out_cols = flat[-2].shape[1]
    args = [x] + list(flat)
    return pl.pallas_call(
        functools.partial(_chain_kernel, ops=tuple(ops), n_params=len(flat)),
        out_shape=jax.ShapeDtypeStruct((M, out_cols), jnp.float32),
        in_specs=_vmem_specs(len(args)),
        out_specs=pl.BlockSpec(memory_space=VMEM),
    )(*args)


def run_heads(l1, h0, head_defs):
    """head_defs: list of (ops, flat_params, mse, out_cols) — one fused pallas_call."""
    M = l1.shape[0]
    specs = tuple((tuple(ops), len(flat), mse) for ops, flat, mse, _ in head_defs)
    flat_all = []
    for _, flat, _, _ in head_defs:
        flat_all += list(flat)
    out_shapes = tuple(jax.ShapeDtypeStruct((M, oc), jnp.float32)
                       for _, _, _, oc in head_defs)
    args = [l1, h0] + flat_all
    return pl.pallas_call(
        functools.partial(_heads_kernel, specs=specs, n_params=len(flat_all)),
        out_shape=out_shapes,
        in_specs=_vmem_specs(len(args)),
        out_specs=tuple(pl.BlockSpec(memory_space=VMEM) for _ in head_defs),
    )(*args)


def fused_aggregate(A, xcat, h0, deg, agg_params, H, PAD):
    N = h0.shape[0]
    tm = _pick_row_tile(N, align=16)
    tk = _pick_k_tile(N, align=128, max_tile=1024)
    grid = (N // tm, N // tk)
    wl, bl, wr, wp1, wp2, bp, wlin, blin = agg_params

    def weight_spec(a):
        return pl.BlockSpec(a.shape, lambda i, k: (0, 0))

    if grid[1] >= 3:  # deepen A buffering only when the k-pipeline is long enough
        a_spec = pl.BlockSpec((tm, tk), lambda i, k: (i, k),
                              pipeline_mode=pl.Buffered(3))
    else:
        a_spec = pl.BlockSpec((tm, tk), lambda i, k: (i, k))

    flops = int(2 * N * N * PAD + 10 * N * H * H)
    bytes_accessed = int(N * N * 4 + N * PAD * 2 + N * PAD * 4 + N * (H + 1) * 4)
    return pl.pallas_call(
        functools.partial(_agg_kernel, H=H, PAD=PAD),
        out_shape=jax.ShapeDtypeStruct((N, PAD), jnp.float32),
        grid=grid,
        in_specs=[
            a_spec,                                            # A (f32, cast in-kernel)
            pl.BlockSpec((tk, PAD), lambda i, k: (k, 0)),      # precomputed xcat (bf16)
            pl.BlockSpec((tm, H), lambda i, k: (i, 0)),        # h0, i rows
            pl.BlockSpec((tm, 1), lambda i, k: (i, 0)),        # clamped in-degree
            weight_spec(wl), weight_spec(bl), weight_spec(wr),
            weight_spec(wp1), weight_spec(wp2), weight_spec(bp),
            weight_spec(wlin), weight_spec(blin),
        ],
        out_specs=pl.BlockSpec((tm, PAD), lambda i, k: (i, 0)),
        scratch_shapes=[pltpu.VMEM((tm, PAD), jnp.float32)],
        compiler_params=pltpu.CompilerParams(
            dimension_semantics=("parallel", "arbitrary"),
            vmem_limit_bytes=48 * 1024 * 1024),
        cost_estimate=pl.CostEstimate(flops=flops, transcendentals=int(N * H),
                                      bytes_accessed=bytes_accessed),
    )(A, xcat, h0, deg, wl, bl, wr, wp1, wp2, bp, wlin, blin)


def generator_stats(gen_mean, gen_sigma, std_z, gen_params, S):
    T = std_z.shape[0]
    N, H = gen_mean.shape
    w1, b1, w2, b2, w3, b3, w4, b4 = gen_params

    nb = _pick_row_tile(N, align=8)                 # >=2 row blocks when possible (v7x)
    s_blk = S
    while s_blk > 1 and (s_blk * nb > 1024 or S % s_blk != 0):
        s_blk -= 1
    grid = (T, N // nb, S // s_blk)

    def weight_spec(a):
        return pl.BlockSpec(a.shape, lambda t, r, s: (0, 0))

    out_sds = jax.ShapeDtypeStruct((T, N, H), jnp.float32)
    flops = int(8 * T * S * N * H * H)
    bytes_accessed = int(T * S * N * H * 4 + 2 * T * N * H * 4 + 2 * N * H * 4)
    return pl.pallas_call(
        functools.partial(_gen_stats_kernel, S=S, S_BLK=s_blk),
        out_shape=(out_sds, out_sds),
        grid=grid,
        in_specs=[
            pl.BlockSpec((nb, H), lambda t, r, s: (r, 0)),           # generated mean head
            pl.BlockSpec((nb, H), lambda t, r, s: (r, 0)),           # generated log-sigma
            pl.BlockSpec((1, s_blk, nb, H), lambda t, r, s: (t, s, r, 0)),  # std-normal z
            weight_spec(w1), weight_spec(b1), weight_spec(w2), weight_spec(b2),
            weight_spec(w3), weight_spec(b3), weight_spec(w4), weight_spec(b4),
        ],
        out_specs=(pl.BlockSpec((1, nb, H), lambda t, r, s: (t, r, 0)),) * 2,
        scratch_shapes=[pltpu.VMEM((nb, H), jnp.float32),
                        pltpu.VMEM((nb, H), jnp.float32)],
        compiler_params=pltpu.CompilerParams(
            dimension_semantics=("parallel", "parallel", "arbitrary"),
            vmem_limit_bytes=48 * 1024 * 1024),
        cost_estimate=pl.CostEstimate(flops=flops,
                                      transcendentals=int(T * S * N * H + T * N * H),
                                      bytes_accessed=bytes_accessed),
    )(gen_mean, gen_sigma, std_z, w1, b1, w2, b2, w3, b3, w4, b4)


def kl_rank1(mean_neigh, std_neigh, gm, gstd, S):
    # TODO(synk): tile over N (and move to a row grid) for very large node counts.
    T, N, _ = gm.shape
    return pl.pallas_call(
        functools.partial(_kl_kernel, S=float(S), H=float(gm.shape[-1])),
        out_shape=jax.ShapeDtypeStruct((T, N), jnp.float32),
        in_specs=_vmem_specs(4),
        out_specs=pl.BlockSpec(memory_space=VMEM),
    )(mean_neigh, std_neigh, gm, gstd)


# ----------------------------------------------------------------------------
# Parameter preparation (pre-transpose / pre-cast, done once outside the forward)
# ----------------------------------------------------------------------------
def _prep_linear(p):
    return (p["w"].T.astype(_MXU_DTYPE),
            p["b"].reshape(1, -1).astype(jnp.float32))


def _mlp_chain(p):
    ops, flat = [], []
    lins, bns = p["lin"], p["bn"]
    if len(lins) == 1:
        ops.append("lin")
        flat += list(_prep_linear(lins[0]))
        return ops, flat
    for i in range(len(lins) - 1):
        ops.append("lin")
        flat += list(_prep_linear(lins[i]))
        ops.append("bn")
        flat += [bns[i]["g"].reshape(1, -1).astype(jnp.float32),
                 bns[i]["b"].reshape(1, -1).astype(jnp.float32)]
        ops.append("relu")
    ops.append("lin")
    flat += list(_prep_linear(lins[-1]))
    return ops, flat


def _fnn_chain(p):
    ops, flat = _mlp_chain(p["mlp"])
    ops += ["relu", "lin", "relu"]          # FNN: lin2(relu(mlp(x))) then relu
    flat += list(_prep_linear(p["lin2"]))
    return ops, flat


def prepare(params, hidden_dim):
    H = hidden_dim
    prep, opspecs = {}, {}

    prep["mlp0"] = tuple(_prep_linear(params["mlp0"]))

    for name, chain in [
        ("gin", _mlp_chain(params["gin1"]["mlp"])),
        ("deg", _fnn_chain(params["degree_decoder"])),
        ("feat", _fnn_chain(params["feature_decoder"])),
        ("mean", _fnn_chain(params["mlp_mean"])),
        ("sigma", _fnn_chain(params["mlp_sigma"])),
    ]:
        ops, flat = chain
        opspecs[name] = tuple(ops)
        prep[name] = tuple(flat)

    g = params["layer1_generator"]
    gen = []
    for k in ("l1", "l2", "l3", "l4"):
        gen += list(_prep_linear(g[k]))
    prep["gen"] = tuple(gen)

    sa, ma = params["std_agg"], params["mean_agg"]
    wp = sa["post"]["w"]                                   # (H, 2H)
    prep["agg"] = (
        sa["pre"]["w"][:, H:].T.astype(_MXU_DTYPE),        # W_src (x_j part of pre-layer)
        ma["lin_l"]["w"].T.astype(_MXU_DTYPE),
        ma["lin_l"]["b"].reshape(1, -1).astype(jnp.float32),
        ma["lin_r"]["w"].T.astype(_MXU_DTYPE),
        wp[:, :H].T.astype(_MXU_DTYPE),
        wp[:, H:].T.astype(_MXU_DTYPE),
        sa["post"]["b"].reshape(1, -1).astype(jnp.float32),
        sa["lin"]["w"].T.astype(_MXU_DTYPE),
        sa["lin"]["b"].reshape(1, -1).astype(jnp.float32),
    )
    return prep, opspecs


# ----------------------------------------------------------------------------
# GNNStructEncoder forward
# ----------------------------------------------------------------------------
def gadnr_forward(prep, x, A, deg_in, gt_degree, std_z, *, opspecs, sample_size,
                  hidden_dim, lambda_loss1, lambda_loss2, lambda_loss3):
    N = x.shape[0]
    H = hidden_dim
    S = sample_size
    PAD = _round_up(3 * H, 128)                                    # lane-dense width

    deg_clamped = jnp.maximum(deg_in, 1.0).reshape(N, 1).astype(jnp.float32)

    # ---- encoder prologue: h0 = mlp0(x); xcat = [h0, h0@Wsrc, (h0@Wsrc)^2, 0pad] ----
    wsrc = prep["agg"][0]
    h0, xcat = encoder_prologue(x, prep["mlp0"], wsrc, H, PAD)

    # ---- one tiled A @ xcat pass -> lane-dense [gin | SAGE mean | PNA std] slab ----
    agg_slab = fused_aggregate(A.astype(jnp.float32), xcat, h0, deg_clamped,
                               prep["agg"][1:], H, PAD)
    gin_in = agg_slab[:, :H]
    mean_neigh = agg_slab[:, H:2 * H]
    std_neigh = agg_slab[:, 2 * H:3 * H]

    # ---- GIN MLP -> l1 (separate call: BatchNorm needs full-batch statistics) ----
    l1 = run_chain(gin_in, opspecs["gin"], prep["gin"])

    # ---- four fused heads reading l1 once (all loop-invariant across the 3 iters) ----
    degree_logits, feat_pn, gen_mean, gen_sigma = run_heads(
        l1, h0,
        [(opspecs["deg"], prep["deg"], False, 1),
         (opspecs["feat"], prep["feat"], True, 1),
         (opspecs["mean"], prep["mean"], False, H),
         (opspecs["sigma"], prep["sigma"], False, H)])

    gt = gt_degree.reshape(N, 1).astype(jnp.float32)
    degree_loss_per_node = (degree_logits - gt) ** 2
    degree_loss = jnp.mean(degree_loss_per_node)

    feature_loss_per_node = feat_pn
    feature_loss = jnp.mean(feat_pn)

    # ---- generator + per-iteration sample stats (3 iterations batched in-grid) ----
    gm, gstd = generator_stats(gen_mean, gen_sigma, std_z, prep["gen"], S)  # (3,N,H)

    # ---- exact closed-form KL for the rank-1 + identity covariances ----
    kl = kl_rank1(mean_neigh, std_neigh, gm, gstd, S)              # (3, N)

    h_loss = jnp.mean(kl)
    h_loss_per_node = jnp.mean(kl, axis=0).reshape(N, 1)

    loss = (lambda_loss1 * h_loss + degree_loss * lambda_loss3
            + lambda_loss2 * feature_loss)
    loss_per_node = (lambda_loss1 * h_loss_per_node
                     + degree_loss_per_node * lambda_loss3
                     + lambda_loss2 * feature_loss_per_node)
    return loss, loss_per_node, h_loss_per_node, degree_loss_per_node, feature_loss_per_node


# ----------------------------------------------------------------------------
# Deterministic parameter initialization (shapes follow the torch __init__)
# ----------------------------------------------------------------------------
def init_linear(key, fin, fout, bias=True):
    kw, kb = jax.random.split(key)
    bound = 1.0 / math.sqrt(fin)
    w = jax.random.uniform(kw, (fout, fin), jnp.float32, -bound, bound)
    b = (jax.random.uniform(kb, (fout,), jnp.float32, -bound, bound)
         if bias else jnp.zeros((fout,), jnp.float32))
    return {"w": w, "b": b}


def init_mlp(key, num_layers, fin, hid, fout):
    keys = jax.random.split(key, max(num_layers, 1))
    if num_layers == 1:
        return {"lin": [init_linear(keys[0], fin, fout)], "bn": []}
    lins = [init_linear(keys[0], fin, hid)]
    for i in range(num_layers - 2):
        lins.append(init_linear(keys[1 + i], hid, hid))
    lins.append(init_linear(keys[num_layers - 1], hid, fout))
    bns = [{"g": jnp.ones((hid,), jnp.float32), "b": jnp.zeros((hid,), jnp.float32)}
           for _ in range(num_layers - 1)]
    return {"lin": lins, "bn": bns}


def init_fnn(key, fin, hid, fout, num_layers):
    k1, k2 = jax.random.split(key)
    return {"mlp": init_mlp(k1, num_layers, fin, hid, fout),
            "lin2": init_linear(k2, fout, fout)}


def init_mlp_generator(key, fin, fout):
    ks = jax.random.split(key, 4)
    return {"l1": init_linear(ks[0], fin, fout), "l2": init_linear(ks[1], fout, fout),
            "l3": init_linear(ks[2], fout, fout), "l4": init_linear(ks[3], fout, fout)}


def init_params(key, in_dim0, in_dim, hidden, layer_num):
    ks = jax.random.split(key, 14)
    return {
        "mlp0": init_linear(ks[0], in_dim0, hidden),
        "gin1": {"mlp": init_mlp(ks[1], layer_num, hidden, hidden, hidden)},
        "mlp_mean": init_fnn(ks[2], hidden, hidden, hidden, 3),
        "mlp_sigma": init_fnn(ks[3], hidden, hidden, hidden, 3),
        "mean_agg": {"lin_l": init_linear(ks[4], hidden, hidden),
                     "lin_r": init_linear(ks[5], hidden, hidden, bias=False)},
        "std_agg": {"pre": init_linear(ks[6], 2 * hidden, hidden),
                    "post": init_linear(ks[7], 2 * hidden, hidden),
                    "lin": init_linear(ks[8], hidden, hidden)},
        "layer1_generator": init_mlp_generator(ks[9], hidden, hidden),
        "degree_decoder": init_fnn(ks[10], hidden, hidden, 1, 4),
        "feature_decoder": init_fnn(ks[11], hidden, hidden, in_dim, 3),
    }


# ----------------------------------------------------------------------------
if __name__ == "__main__":
    N, IN_DIM0, HID, S, LAYER_NUM = 16, 24, 32, 4, 2
    IN_DIM = HID  # feature_decoder output is compared against h0 (hidden_dim)

    key = jax.random.PRNGKey(0)
    k_x, k_z, k_params = jax.random.split(key, 3)

    # node features
    x = jax.random.normal(k_x, (N, IN_DIM0), dtype=jnp.float32)

    # deterministic graph: two directed rings -> dense adjacency A[dst, src]
    idx = jnp.arange(N)
    src = jnp.concatenate([idx, idx])
    dst = jnp.concatenate([(idx + 1) % N, (idx + 3) % N])
    A = jnp.zeros((N, N), jnp.float32).at[dst, src].add(1.0)
    deg_in = jnp.sum(A, axis=1)            # in-degree (neighbor_num_list)
    gt_degree = deg_in                     # ground_truth_degree_matrix

    # standard-normal samples for the 3 reconstruction iterations (m_batched.sample())
    std_z = jax.random.normal(k_z, (3, S, N, HID), dtype=jnp.float32)

    params = init_params(k_params, IN_DIM0, IN_DIM, HID, LAYER_NUM)
    prep, opspecs = prepare(params, HID)   # pre-transpose / pre-cast weights once

    fwd = jax.jit(functools.partial(
        gadnr_forward, opspecs=opspecs, sample_size=S, hidden_dim=HID,
        lambda_loss1=0.01, lambda_loss2=0.001, lambda_loss3=0.0001))

    out = fwd(prep, x, A, deg_in, gt_degree, std_z)
    jax.block_until_ready(out)
    loss, loss_per_node, h_loss_pn, degree_loss_pn, feature_loss_pn = out
    assert loss_per_node.shape == (N, 1) and h_loss_pn.shape == (N, 1)
    assert degree_loss_pn.shape == (N, 1) and feature_loss_pn.shape == (N, 1)
    assert bool(jnp.isfinite(loss))
    print("KERNEL_OK")
</pallas_src>

<mosaic_0001>
module attributes {stable_mosaic.version = 11 : i64} {
  func.func @_prologue_kernel(%arg0: memref<16x24xf32, #tpu.memory_space<vmem>>, %arg1: memref<24x32xbf16, #tpu.memory_space<vmem>>, %arg2: memref<1x32xf32, #tpu.memory_space<vmem>>, %arg3: memref<32x32xbf16, #tpu.memory_space<vmem>>, %arg4: memref<16x32xf32, #tpu.memory_space<vmem>>, %arg5: memref<16x128xbf16, #tpu.memory_space<vmem>>) attributes {dimension_semantics = [], scalar_prefetch = 0 : i64, scratch_operands = 0 : i64, tpu.core_type = #tpu.core_type<tc>} {
    %c0 = arith.constant 0 : index
    %c0_0 = arith.constant 0 : index
    %0 = vector.load %arg0[%c0, %c0_0] : memref<16x24xf32, #tpu.memory_space<vmem>>, vector<16x24xf32>
    %1 = arith.truncf %0 : vector<16x24xf32> to vector<16x24xbf16>
    %c0_1 = arith.constant 0 : index
    %c0_2 = arith.constant 0 : index
    %2 = vector.load %arg1[%c0_1, %c0_2] : memref<24x32xbf16, #tpu.memory_space<vmem>>, vector<24x32xbf16>
    %cst = arith.constant dense<0.000000e+00> : vector<16x32xf32>
    %3 = tpu.matmul %1, %2, %cst {dimension_numbers = #tpu.dot_dimension_numbers<[1], [0], [0], [1], [0, 0, 1, 1], [], []>} : vector<16x24xbf16>, vector<24x32xbf16>, vector<16x32xf32> -> vector<16x32xf32>
    %c0_3 = arith.constant 0 : index
    %c0_4 = arith.constant 0 : index
    %4 = vector.load %arg2[%c0_3, %c0_4] : memref<1x32xf32, #tpu.memory_space<vmem>>, vector<1x32xf32>
    %5 = vector.broadcast %4 : vector<1x32xf32> to vector<16x32xf32>
    %6 = arith.addf %3, %5 : vector<16x32xf32>
    %c0_5 = arith.constant 0 : index
    %c0_6 = arith.constant 0 : index
    %7 = vector.load %arg4[%c0_5, %c0_6] : memref<16x32xf32, #tpu.memory_space<vmem>>, vector<16x32xf32>
    tpu.vector_store %arg4[%c0_5, %c0_6], %6 {strides = array<i32>} : memref<16x32xf32, #tpu.memory_space<vmem>>, vector<16x32xf32>,
    %8 = arith.truncf %6 : vector<16x32xf32> to vector<16x32xbf16>
    %c0_7 = arith.constant 0 : index
    %c0_8 = arith.constant 0 : index
    %9 = vector.load %arg3[%c0_7, %c0_8] : memref<32x32xbf16, #tpu.memory_space<vmem>>, vector<32x32xbf16>
    %cst_9 = arith.constant dense<0.000000e+00> : vector<16x32xf32>
    %10 = tpu.matmul %8, %9, %cst_9 {dimension_numbers = #tpu.dot_dimension_numbers<[1], [0], [0], [1], [0, 0, 1, 1], [], []>} : vector<16x32xbf16>, vector<32x32xbf16>, vector<16x32xf32> -> vector<16x32xf32>
    %11 = arith.mulf %10, %10 : vector<16x32xf32>
    %cst_10 = arith.constant 0.000000e+00 : f32
    %12 = vector.broadcast %cst_10 : f32 to vector<16x32xf32>
    %13 = tpu.concatenate %6, %10, %11, %12 in 1 : vector<16x32xf32>, vector<16x32xf32>, vector<16x32xf32>, vector<16x32xf32> -> vector<16x128xf32>
    %14 = arith.truncf %13 : vector<16x128xf32> to vector<16x128xbf16>
    %c0_11 = arith.constant 0 : index
    %c0_12 = arith.constant 0 : index
    %15 = vector.load %arg5[%c0_11, %c0_12] : memref<16x128xbf16, #tpu.memory_space<vmem>>, vector<16x128xbf16>
    tpu.vector_store %arg5[%c0_11, %c0_12], %14 {strides = array<i32>} : memref<16x128xbf16, #tpu.memory_space<vmem>>, vector<16x128xbf16>,
    return
  }
}

module attributes {stable_mosaic.version = 11 : i64} {
  func.func @_agg_kernel(%arg0: i32, %arg1: i32, %arg2: memref<16x16xf32, #tpu.memory_space<vmem>>, %arg3: memref<16x128xbf16, #tpu.memory_space<vmem>>, %arg4: memref<16x32xf32, #tpu.memory_space<vmem>>, %arg5: memref<16x1xf32, #tpu.memory_space<vmem>>, %arg6: memref<32x32xbf16, #tpu.memory_space<vmem>>, %arg7: memref<1x32xf32, #tpu.memory_space<vmem>>, %arg8: memref<32x32xbf16, #tpu.memory_space<vmem>>, %arg9: memref<32x32xbf16, #tpu.memory_space<vmem>>, %arg10: memref<32x32xbf16, #tpu.memory_space<vmem>>, %arg11: memref<1x32xf32, #tpu.memory_space<vmem>>, %arg12: memref<32x32xbf16, #tpu.memory_space<vmem>>, %arg13: memref<1x32xf32, #tpu.memory_space<vmem>>, %arg14: memref<16x128xf32, #tpu.memory_space<vmem>>, %arg15: memref<16x128xf32, #tpu.memory_space<vmem>>) attributes {dimension_semantics = [#tpu.dimension_semantics<parallel>, #tpu.dimension_semantics<arbitrary>], iteration_bounds = array<i64: 1, 1>, scalar_prefetch = 0 : i64, scratch_operands = 1 : i64, tpu.core_type = #tpu.core_type<tc>, window_params = [{transform_indices = @transform_0, window_bounds = array<i64: 16, 16>}, {transform_indices = @transform_1, window_bounds = array<i64: 16, 128>}, {transform_indices = @transform_2, window_bounds = array<i64: 16, 32>}, {transform_indices = @transform_3, window_bounds = array<i64: 16, 1>}, {pipeline_mode = #tpu.pipeline_mode<synchronous>, transform_indices = @transform_4, window_bounds = array<i64: 32, 32>}, {pipeline_mode = #tpu.pipeline_mode<synchronous>, transform_indices = @transform_5, window_bounds = array<i64: 1, 32>}, {pipeline_mode = #tpu.pipeline_mode<synchronous>, transform_indices = @transform_6, window_bounds = array<i64: 32, 32>}, {pipeline_mode = #tpu.pipeline_mode<synchronous>, transform_indices = @transform_7, window_bounds = array<i64: 32, 32>}, {pipeline_mode = #tpu.pipeline_mode<synchronous>, transform_indices = @transform_8, window_bounds = array<i64: 32, 32>}, {pipeline_mode = #tpu.pipeline_mode<synchronous>, transform_indices = @transform_9, window_bounds = array<i64: 1, 32>}, {pipeline_mode = #tpu.pipeline_mode<synchronous>, transform_indices = @transform_10, window_bounds = array<i64: 32, 32>}, {pipeline_mode = #tpu.pipeline_mode<synchronous>, transform_indices = @transform_11, window_bounds = array<i64: 1, 32>}, {transform_indices = @transform_12, window_bounds = array<i64: 16, 128>}]} {
    %c0_i32 = arith.constant 0 : i32
    %0 = arith.cmpi eq, %arg1, %c0_i32 : i32
    %1 = arith.extui %0 : i1 to i32
    %c0_i32_0 = arith.constant 0 : i32
    %2 = arith.cmpi ne, %1, %c0_i32_0 : i32
    scf.if %2 {
      %cst_10 = arith.constant 0.000000e+00 : f32
      %13 = vector.broadcast %cst_10 : f32 to vector<16x128xf32>
      %c0_11 = arith.constant 0 : index
      %c0_12 = arith.constant 0 : index
      %14 = vector.load %arg15[%c0_11, %c0_12] : memref<16x128xf32, #tpu.memory_space<vmem>>, vector<16x128xf32>
      tpu.vector_store %arg15[%c0_11, %c0_12], %13 {strides = array<i32>} : memref<16x128xf32, #tpu.memory_space<vmem>>, vector<16x128xf32>,
    } else {
    }
    %c0 = arith.constant 0 : index
    %c0_1 = arith.constant 0 : index
    %3 = vector.load %arg15[%c0, %c0_1] : memref<16x128xf32, #tpu.memory_space<vmem>>, vector<16x128xf32>
    %c0_2 = arith.constant 0 : index
    %c0_3 = arith.constant 0 : index
    %4 = vector.load %arg2[%c0_2, %c0_3] : memref<16x16xf32, #tpu.memory_space<vmem>>, vector<16x16xf32>
    %5 = arith.truncf %4 : vector<16x16xf32> to vector<16x16xbf16>
    %c0_4 = arith.constant 0 : index
    %c0_5 = arith.constant 0 : index
    %6 = vector.load %arg3[%c0_4, %c0_5] : memref<16x128xbf16, #tpu.memory_space<vmem>>, vector<16x128xbf16>
    %cst = arith.constant dense<0.000000e+00> : vector<16x128xf32>
    %7 = tpu.matmul %5, %6, %cst {dimension_numbers = #tpu.dot_dimension_numbers<[1], [0], [0], [1], [0, 0, 1, 1], [], []>} : vector<16x16xbf16>, vector<16x128xbf16>, vector<16x128xf32> -> vector<16x128xf32>
    %8 = arith.addf %3, %7 : vector<16x128xf32>
    %c0_6 = arith.constant 0 : index
    %c0_7 = arith.constant 0 : index
    %9 = vector.load %arg15[%c0_6, %c0_7] : memref<16x128xf32, #tpu.memory_space<vmem>>, vector<16x128xf32>
    tpu.vector_store %arg15[%c0_6, %c0_7], %8 {strides = array<i32>} : memref<16x128xf32, #tpu.memory_space<vmem>>, vector<16x128xf32>,
    %c0_i32_8 = arith.constant 0 : i32
    %10 = arith.cmpi eq, %arg1, %c0_i32_8 : i32
    %11 = arith.extui %10 : i1 to i32
    %c0_i32_9 = arith.constant 0 : i32
    %12 = arith.cmpi ne, %11, %c0_i32_9 : i32
    scf.if %12 {
      %c0_10 = arith.constant 0 : index
      %c0_11 = arith.constant 0 : index
      %13 = vector.load %arg15[%c0_10, %c0_11] : memref<16x128xf32, #tpu.memory_space<vmem>>, vector<16x128xf32>
      %c0_12 = arith.constant 0 : index
      %c0_13 = arith.constant 0 : index
      %14 = vector.load %arg4[%c0_12, %c0_13] : memref<16x32xf32, #tpu.memory_space<vmem>>, vector<16x32xf32>
      %c0_14 = arith.constant 0 : index
      %c0_15 = arith.constant 0 : index
      %15 = vector.load %arg5[%c0_14, %c0_15] : memref<16x1xf32, #tpu.memory_space<vmem>>, vector<16x1xf32>
      %16 = tpu.reciprocal %15 {approx = true} : vector<16x1xf32> -> vector<16x1xf32>
      %cst_16 = arith.constant 1.000000e+00 : f32
      %17 = vector.broadcast %cst_16 : f32 to vector<16x1xf32>
      %18 = arith.divf %17, %15 : vector<16x1xf32>
      %19 = vector.extract_strided_slice %13 {offsets = [0, 0], sizes = [16, 32], strides = [1, 1]} : vector<16x128xf32> to vector<16x32xf32>
      %20 = vector.extract_strided_slice %13 {offsets = [0, 32], sizes = [16, 32], strides = [1, 1]} : vector<16x128xf32> to vector<16x32xf32>
      %21 = vector.extract_strided_slice %13 {offsets = [0, 64], sizes = [16, 32], strides = [1, 1]} : vector<16x128xf32> to vector<16x32xf32>
      %22 = arith.addf %19, %14 : vector<16x32xf32>
      %23 = arith.truncf %14 : vector<16x32xf32> to vector<16x32xbf16>
      %24 = vector.broadcast %16 : vector<16x1xf32> to vector<16x32xf32>
      %25 = arith.mulf %19, %24 : vector<16x32xf32>
      %26 = arith.truncf %25 : vector<16x32xf32> to vector<16x32xbf16>
      %c0_17 = arith.constant 0 : index
      %c0_18 = arith.constant 0 : index
      %27 = vector.load %arg6[%c0_17, %c0_18] : memref<32x32xbf16, #tpu.memory_space<vmem>>, vector<32x32xbf16>
      %cst_19 = arith.constant dense<0.000000e+00> : vector<16x32xf32>
      %28 = tpu.matmul %26, %27, %cst_19 {dimension_numbers = #tpu.dot_dimension_numbers<[1], [0], [0], [1], [0, 0, 1, 1], [], []>} : vector<16x32xbf16>, vector<32x32xbf16>, vector<16x32xf32> -> vector<16x32xf32>
      %c0_20 = arith.constant 0 : index
      %c0_21 = arith.constant 0 : index
      %29 = vector.load %arg7[%c0_20, %c0_21] : memref<1x32xf32, #tpu.memory_space<vmem>>, vector<1x32xf32>
      %30 = vector.broadcast %29 : vector<1x32xf32> to vector<16x32xf32>
      %31 = arith.addf %28, %30 : vector<16x32xf32>
      %c0_22 = arith.constant 0 : index
      %c0_23 = arith.constant 0 : index
      %32 = vector.load %arg8[%c0_22, %c0_23] : memref<32x32xbf16, #tpu.memory_space<vmem>>, vector<32x32xbf16>
      %cst_24 = arith.constant dense<0.000000e+00> : vector<16x32xf32>
      %33 = tpu.matmul %23, %32, %cst_24 {dimension_numbers = #tpu.dot_dimension_numbers<[1], [0], [0], [1], [0, 0, 1, 1], [], []>} : vector<16x32xbf16>, vector<32x32xbf16>, vector<16x32xf32> -> vector<16x32xf32>
      %34 = arith.addf %31, %33 : vector<16x32xf32>
      %35 = vector.broadcast %18 : vector<16x1xf32> to vector<16x32xf32>
      %36 = arith.mulf %20, %35 : vector<16x32xf32>
      %37 = vector.broadcast %18 : vector<16x1xf32> to vector<16x32xf32>
      %38 = arith.mulf %21, %37 : vector<16x32xf32>
      %39 = arith.mulf %36, %36 : vector<16x32xf32>
      %40 = arith.subf %38, %39 : vector<16x32xf32>
      %cst_25 = arith.constant 0.000000e+00 : f32
      %41 = vector.broadcast %cst_25 : f32 to vector<16x32xf32>
      %42 = arith.maximumf %40, %41 : vector<16x32xf32>
      %cst_26 = arith.constant 9.99999974E-6 : f32
      %43 = vector.broadcast %cst_26 : f32 to vector<16x32xf32>
      %44 = arith.addf %42, %43 : vector<16x32xf32>
      %45 = math.sqrt %44 : vector<16x32xf32>
      %c0_27 = arith.constant 0 : index
      %c0_28 = arith.constant 0 : index
      %46 = vector.load %arg9[%c0_27, %c0_28] : memref<32x32xbf16, #tpu.memory_space<vmem>>, vector<32x32xbf16>
      %cst_29 = arith.constant dense<0.000000e+00> : vector<16x32xf32>
      %47 = tpu.matmul %23, %46, %cst_29 {dimension_numbers = #tpu.dot_dimension_numbers<[1], [0], [0], [1], [0, 0, 1, 1], [], []>} : vector<16x32xbf16>, vector<32x32xbf16>, vector<16x32xf32> -> vector<16x32xf32>
      %48 = arith.truncf %45 : vector<16x32xf32> to vector<16x32xbf16>
      %c0_30 = arith.constant 0 : index
      %c0_31 = arith.constant 0 : index
      %49 = vector.load %arg10[%c0_30, %c0_31] : memref<32x32xbf16, #tpu.memory_space<vmem>>, vector<32x32xbf16>
      %cst_32 = arith.constant dense<0.000000e+00> : vector<16x32xf32>
      %50 = tpu.matmul %48, %49, %cst_32 {dimension_numbers = #tpu.dot_dimension_numbers<[1], [0], [0], [1], [0, 0, 1, 1], [], []>} : vector<16x32xbf16>, vector<32x32xbf16>, vector<16x32xf32> -> vector<16x32xf32>
      %51 = arith.addf %47, %50 : vector<16x32xf32>
      %c0_33 = arith.constant 0 : index
      %c0_34 = arith.constant 0 : index
      %52 = vector.load %arg11[%c0_33, %c0_34] : memref<1x32xf32, #tpu.memory_space<vmem>>, vector<1x32xf32>
      %53 = vector.broadcast %52 : vector<1x32xf32> to vector<16x32xf32>
      %54 = arith.addf %51, %53 : vector<16x32xf32>
      %55 = arith.truncf %54 : vector<16x32xf32> to vector<16x32xbf16>
      %c0_35 = arith.constant 0 : index
      %c0_36 = arith.constant 0 : index
      %56 = vector.load %arg12[%c0_35, %c0_36] : memref<32x32xbf16, #tpu.memory_space<vmem>>, vector<32x32xbf16>
      %cst_37 = arith.constant dense<0.000000e+00> : vector<16x32xf32>
      %57 = tpu.matmul %55, %56, %cst_37 {dimension_numbers = #tpu.dot_dimension_numbers<[1], [0], [0], [1], [0, 0, 1, 1], [], []>} : vector<16x32xbf16>, vector<32x32xbf16>, vector<16x32xf32> -> vector<16x32xf32>
      %c0_38 = arith.constant 0 : index
      %c0_39 = arith.constant 0 : index
      %58 = vector.load %arg13[%c0_38, %c0_39] : memref<1x32xf32, #tpu.memory_space<vmem>>, vector<1x32xf32>
      %59 = vector.broadcast %58 : vector<1x32xf32> to vector<16x32xf32>
      %60 = arith.addf %57, %59 : vector<16x32xf32>
      %cst_40 = arith.constant 0.000000e+00 : f32
      %61 = vector.broadcast %cst_40 : f32 to vector<16x32xf32>
      %62 = tpu.concatenate %22, %34, %60, %61 in 1 : vector<16x32xf32>, vector<16x32xf32>, vector<16x32xf32>, vector<16x32xf32> -> vector<16x128xf32>
      %c0_41 = arith.constant 0 : index
      %c0_42 = arith.constant 0 : index
      %63 = vector.load %arg14[%c0_41, %c0_42] : memref<16x128xf32, #tpu.memory_space<vmem>>, vector<16x128xf32>
      tpu.vector_store %arg14[%c0_41, %c0_42], %62 {strides = array<i32>} : memref<16x128xf32, #tpu.memory_space<vmem>>, vector<16x128xf32>,
    } else {
    }
    return
  }
  func.func @transform_0(%arg0: i32, %arg1: i32) -> (i32, i32) {
    %c0_i32 = arith.constant 0 : i32
    return %arg0, %arg1 : i32, i32
  }
  func.func @transform_1(%arg0: i32, %arg1: i32) -> (i32, i32) {
    %c0_i32 = arith.constant 0 : i32
    %c0_i32_0 = arith.constant 0 : i32
    return %arg1, %c0_i32 : i32, i32
  }
  func.func @transform_2(%arg0: i32, %arg1: i32) -> (i32, i32) {
    %c0_i32 = arith.constant 0 : i32
    %c0_i32_0 = arith.constant 0 : i32
    return %arg0, %c0_i32 : i32, i32
  }
  func.func @transform_3(%arg0: i32, %arg1: i32) -> (i32, i32) {
    %c0_i32 = arith.constant 0 : i32
    %c0_i32_0 = arith.constant 0 : i32
    return %arg0, %c0_i32 : i32, i32
  }
  func.func @transform_4(%arg0: i32, %arg1: i32) -> (i32, i32) {
    %c0_i32 = arith.constant 0 : i32
    %c0_i32_0 = arith.constant 0 : i32
    %c0_i32_1 = arith.constant 0 : i32
    return %c0_i32, %c0_i32_0 : i32, i32
  }
  func.func @transform_5(%arg0: i32, %arg1: i32) -> (i32, i32) {
    %c0_i32 = arith.constant 0 : i32
    %c0_i32_0 = arith.constant 0 : i32
    %c0_i32_1 = arith.constant 0 : i32
    return %c0_i32, %c0_i32_0 : i32, i32
  }
  func.func @transform_6(%arg0: i32, %arg1: i32) -> (i32, i32) {
    %c0_i32 = arith.constant 0 : i32
    %c0_i32_0 = arith.constant 0 : i32
    %c0_i32_1 = arith.constant 0 : i32
    return %c0_i32, %c0_i32_0 : i32, i32
  }
  func.func @transform_7(%arg0: i32, %arg1: i32) -> (i32, i32) {
    %c0_i32 = arith.constant 0 : i32
    %c0_i32_0 = arith.constant 0 : i32
    %c0_i32_1 = arith.constant 0 : i32
    return %c0_i32, %c0_i32_0 : i32, i32
  }
  func.func @transform_8(%arg0: i32, %arg1: i32) -> (i32, i32) {
    %c0_i32 = arith.constant 0 : i32
    %c0_i32_0 = arith.constant 0 : i32
    %c0_i32_1 = arith.constant 0 : i32
    return %c0_i32, %c0_i32_0 : i32, i32
  }
  func.func @transform_9(%arg0: i32, %arg1: i32) -> (i32, i32) {
    %c0_i32 = arith.constant 0 : i32
    %c0_i32_0 = arith.constant 0 : i32
    %c0_i32_1 = arith.constant 0 : i32
    return %c0_i32, %c0_i32_0 : i32, i32
  }
  func.func @transform_10(%arg0: i32, %arg1: i32) -> (i32, i32) {
    %c0_i32 = arith.constant 0 : i32
    %c0_i32_0 = arith.constant 0 : i32
    %c0_i32_1 = arith.constant 0 : i32
    return %c0_i32, %c0_i32_0 : i32, i32
  }
  func.func @transform_11(%arg0: i32, %arg1: i32) -> (i32, i32) {
    %c0_i32 = arith.constant 0 : i32
    %c0_i32_0 = arith.constant 0 : i32
    %c0_i32_1 = arith.constant 0 : i32
    return %c0_i32, %c0_i32_0 : i32, i32
  }
  func.func @transform_12(%arg0: i32, %arg1: i32) -> (i32, i32) {
    %c0_i32 = arith.constant 0 : i32
    %c0_i32_0 = arith.constant 0 : i32
    return %arg0, %c0_i32 : i32, i32
  }
}

module attributes {stable_mosaic.version = 11 : i64} {
  func.func @_chain_kernel(%arg0: memref<16x32xf32, #tpu.memory_space<vmem>>, %arg1: memref<32x32xbf16, #tpu.memory_space<vmem>>, %arg2: memref<1x32xf32, #tpu.memory_space<vmem>>, %arg3: memref<1x32xf32, #tpu.memory_space<vmem>>, %arg4: memref<1x32xf32, #tpu.memory_space<vmem>>, %arg5: memref<32x32xbf16, #tpu.memory_space<vmem>>, %arg6: memref<1x32xf32, #tpu.memory_space<vmem>>, %arg7: memref<16x32xf32, #tpu.memory_space<vmem>>) attributes {dimension_semantics = [], scalar_prefetch = 0 : i64, scratch_operands = 0 : i64, tpu.core_type = #tpu.core_type<tc>} {
    %c0 = arith.constant 0 : index
    %c0_0 = arith.constant 0 : index
    %0 = vector.load %arg0[%c0, %c0_0] : memref<16x32xf32, #tpu.memory_space<vmem>>, vector<16x32xf32>
    %1 = arith.truncf %0 : vector<16x32xf32> to vector<16x32xbf16>
    %c0_1 = arith.constant 0 : index
    %c0_2 = arith.constant 0 : index
    %2 = vector.load %arg1[%c0_1, %c0_2] : memref<32x32xbf16, #tpu.memory_space<vmem>>, vector<32x32xbf16>
    %cst = arith.constant dense<0.000000e+00> : vector<16x32xf32>
    %3 = tpu.matmul %1, %2, %cst {dimension_numbers = #tpu.dot_dimension_numbers<[1], [0], [0], [1], [0, 0, 1, 1], [], []>} : vector<16x32xbf16>, vector<32x32xbf16>, vector<16x32xf32> -> vector<16x32xf32>
    %c0_3 = arith.constant 0 : index
    %c0_4 = arith.constant 0 : index
    %4 = vector.load %arg2[%c0_3, %c0_4] : memref<1x32xf32, #tpu.memory_space<vmem>>, vector<1x32xf32>
    %5 = vector.broadcast %4 : vector<1x32xf32> to vector<16x32xf32>
    %6 = arith.addf %3, %5 : vector<16x32xf32>
    %cst_5 = arith.constant dense<0.000000e+00> : vector<32xf32>
    %7 = vector.multi_reduction <add>, %6, %cst_5 [0] : vector<16x32xf32> to vector<32xf32>
    %8 = vector.shape_cast %7 : vector<32xf32> to vector<1x32xf32>
    %cst_6 = arith.constant 1.600000e+01 : f32
    %9 = vector.broadcast %cst_6 : f32 to vector<1x32xf32>
    %10 = arith.divf %8, %9 : vector<1x32xf32>
    %11 = vector.broadcast %10 : vector<1x32xf32> to vector<16x32xf32>
    %12 = arith.subf %6, %11 : vector<16x32xf32>
    %13 = arith.mulf %12, %12 : vector<16x32xf32>
    %cst_7 = arith.constant dense<0.000000e+00> : vector<32xf32>
    %14 = vector.multi_reduction <add>, %13, %cst_7 [0] : vector<16x32xf32> to vector<32xf32>
    %15 = vector.shape_cast %14 : vector<32xf32> to vector<1x32xf32>
    %cst_8 = arith.constant 1.600000e+01 : f32
    %16 = vector.broadcast %cst_8 : f32 to vector<1x32xf32>
    %17 = arith.divf %15, %16 : vector<1x32xf32>
    %18 = vector.broadcast %10 : vector<1x32xf32> to vector<16x32xf32>
    %19 = arith.subf %6, %18 : vector<16x32xf32>
    %cst_9 = arith.constant 9.99999974E-6 : f32
    %20 = vector.broadcast %cst_9 : f32 to vector<1x32xf32>
    %21 = arith.addf %17, %20 : vector<1x32xf32>
    %22 = math.rsqrt %21 : vector<1x32xf32>
    %23 = vector.broadcast %22 : vector<1x32xf32> to vector<16x32xf32>
    %24 = arith.mulf %19, %23 : vector<16x32xf32>
    %c0_10 = arith.constant 0 : index
    %c0_11 = arith.constant 0 : index
    %25 = vector.load %arg3[%c0_10, %c0_11] : memref<1x32xf32, #tpu.memory_space<vmem>>, vector<1x32xf32>
    %26 = vector.broadcast %25 : vector<1x32xf32> to vector<16x32xf32>
    %27 = arith.mulf %24, %26 : vector<16x32xf32>
    %c0_12 = arith.constant 0 : index
    %c0_13 = arith.constant 0 : index
    %28 = vector.load %arg4[%c0_12, %c0_13] : memref<1x32xf32, #tpu.memory_space<vmem>>, vector<1x32xf32>
    %29 = vector.broadcast %28 : vector<1x32xf32> to vector<16x32xf32>
    %30 = arith.addf %27, %29 : vector<16x32xf32>
    %cst_14 = arith.constant 0.000000e+00 : f32
    %31 = vector.broadcast %cst_14 : f32 to vector<16x32xf32>
    %32 = arith.maximumf %30, %31 : vector<16x32xf32>
    %33 = arith.truncf %32 : vector<16x32xf32> to vector<16x32xbf16>
    %c0_15 = arith.constant 0 : index
    %c0_16 = arith.constant 0 : index
    %34 = vector.load %arg5[%c0_15, %c0_16] : memref<32x32xbf16, #tpu.memory_space<vmem>>, vector<32x32xbf16>
    %cst_17 = arith.constant dense<0.000000e+00> : vector<16x32xf32>
    %35 = tpu.matmul %33, %34, %cst_17 {dimension_numbers = #tpu.dot_dimension_numbers<[1], [0], [0], [1], [0, 0, 1, 1], [], []>} : vector<16x32xbf16>, vector<32x32xbf16>, vector<16x32xf32> -> vector<16x32xf32>
    %c0_18 = arith.constant 0 : index
    %c0_19 = arith.constant 0 : index
    %36 = vector.load %arg6[%c0_18, %c0_19] : memref<1x32xf32, #tpu.memory_space<vmem>>, vector<1x32xf32>
    %37 = vector.broadcast %36 : vector<1x32xf32> to vector<16x32xf32>
    %38 = arith.addf %35, %37 : vector<16x32xf32>
    %c0_20 = arith.constant 0 : index
    %c0_21 = arith.constant 0 : index
    %39 = vector.load %arg7[%c0_20, %c0_21] : memref<16x32xf32, #tpu.memory_space<vmem>>, vector<16x32xf32>
    tpu.vector_store %arg7[%c0_20, %c0_21], %38 {strides = array<i32>} : memref<16x32xf32, #tpu.memory_space<vmem>>, vector<16x32xf32>,
    return
  }
}

module attributes {stable_mosaic.version = 11 : i64} {
  func.func @_heads_kernel(%arg0: memref<16x32xf32, #tpu.memory_space<vmem>>, %arg1: memref<16x32xf32, #tpu.memory_space<vmem>>, %arg2: memref<32x32xbf16, #tpu.memory_space<vmem>>, %arg3: memref<1x32xf32, #tpu.memory_space<vmem>>, %arg4: memref<1x32xf32, #tpu.memory_space<vmem>>, %arg5: memref<1x32xf32, #tpu.memory_space<vmem>>, %arg6: memref<32x32xbf16, #tpu.memory_space<vmem>>, %arg7: memref<1x32xf32, #tpu.memory_space<vmem>>, %arg8: memref<1x32xf32, #tpu.memory_space<vmem>>, %arg9: memref<1x32xf32, #tpu.memory_space<vmem>>, %arg10: memref<32x32xbf16, #tpu.memory_space<vmem>>, %arg11: memref<1x32xf32, #tpu.memory_space<vmem>>, %arg12: memref<1x32xf32, #tpu.memory_space<vmem>>, %arg13: memref<1x32xf32, #tpu.memory_space<vmem>>, %arg14: memref<32x1xbf16, #tpu.memory_space<vmem>>, %arg15: memref<1x1xf32, #tpu.memory_space<vmem>>, %arg16: memref<1x1xbf16, #tpu.memory_space<vmem>>, %arg17: memref<1x1xf32, #tpu.memory_space<vmem>>, %arg18: memref<32x32xbf16, #tpu.memory_space<vmem>>, %arg19: memref<1x32xf32, #tpu.memory_space<vmem>>, %arg20: memref<1x32xf32, #tpu.memory_space<vmem>>, %arg21: memref<1x32xf32, #tpu.memory_space<vmem>>, %arg22: memref<32x32xbf16, #tpu.memory_space<vmem>>, %arg23: memref<1x32xf32, #tpu.memory_space<vmem>>, %arg24: memref<1x32xf32, #tpu.memory_space<vmem>>, %arg25: memref<1x32xf32, #tpu.memory_space<vmem>>, %arg26: memref<32x32xbf16, #tpu.memory_space<vmem>>, %arg27: memref<1x32xf32, #tpu.memory_space<vmem>>, %arg28: memref<32x32xbf16, #tpu.memory_space<vmem>>, %arg29: memref<1x32xf32, #tpu.memory_space<vmem>>, %arg30: memref<32x32xbf16, #tpu.memory_space<vmem>>, %arg31: memref<1x32xf32, #tpu.memory_space<vmem>>, %arg32: memref<1x32xf32, #tpu.memory_space<vmem>>, %arg33: memref<1x32xf32, #tpu.memory_space<vmem>>, %arg34: memref<32x32xbf16, #tpu.memory_space<vmem>>, %arg35: memref<1x32xf32, #tpu.memory_space<vmem>>, %arg36: memref<1x32xf32, #tpu.memory_space<vmem>>, %arg37: memref<1x32xf32, #tpu.memory_space<vmem>>, %arg38: memref<32x32xbf16, #tpu.memory_space<vmem>>, %arg39: memref<1x32xf32, #tpu.memory_space<vmem>>, %arg40: memref<32x32xbf16, #tpu.memory_space<vmem>>, %arg41: memref<1x32xf32, #tpu.memory_space<vmem>>, %arg42: memref<32x32xbf16, #tpu.memory_space<vmem>>, %arg43: memref<1x32xf32, #tpu.memory_space<vmem>>, %arg44: memref<1x32xf32, #tpu.memory_space<vmem>>, %arg45: memref<1x32xf32, #tpu.memory_space<vmem>>, %arg46: memref<32x32xbf16, #tpu.memory_space<vmem>>, %arg47: memref<1x32xf32, #tpu.memory_space<vmem>>, %arg48: memref<1x32xf32, #tpu.memory_space<vmem>>, %arg49: memref<1x32xf32, #tpu.memory_space<vmem>>, %arg50: memref<32x32xbf16, #tpu.memory_space<vmem>>, %arg51: memref<1x32xf32, #tpu.memory_space<vmem>>, %arg52: memref<32x32xbf16, #tpu.memory_space<vmem>>, %arg53: memref<1x32xf32, #tpu.memory_space<vmem>>, %arg54: memref<16x1xf32, #tpu.memory_space<vmem>>, %arg55: memref<16x1xf32, #tpu.memory_space<vmem>>, %arg56: memref<16x32xf32, #tpu.memory_space<vmem>>, %arg57: memref<16x32xf32, #tpu.memory_space<vmem>>) attributes {dimension_semantics = [], scalar_prefetch = 0 : i64, scratch_operands = 0 : i64, tpu.core_type = #tpu.core_type<tc>} {
    %c0 = arith.constant 0 : index
    %c0_0 = arith.constant 0 : index
    %0 = vector.load %arg0[%c0, %c0_0] : memref<16x32xf32, #tpu.memory_space<vmem>>, vector<16x32xf32>
    %c0_1 = arith.constant 0 : index
    %c0_2 = arith.constant 0 : index
    %1 = vector.load %arg1[%c0_1, %c0_2] : memref<16x32xf32, #tpu.memory_space<vmem>>, vector<16x32xf32>
    %2 = arith.truncf %0 : vector<16x32xf32> to vector<16x32xbf16>
    %c0_3 = arith.constant 0 : index
    %c0_4 = arith.constant 0 : index
    %3 = vector.load %arg2[%c0_3, %c0_4] : memref<32x32xbf16, #tpu.memory_space<vmem>>, vector<32x32xbf16>
    %cst = arith.constant dense<0.000000e+00> : vector<16x32xf32>
    %4 = tpu.matmul %2, %3, %cst {dimension_numbers = #tpu.dot_dimension_numbers<[1], [0], [0], [1], [0, 0, 1, 1], [], []>} : vector<16x32xbf16>, vector<32x32xbf16>, vector<16x32xf32> -> vector<16x32xf32>
    %c0_5 = arith.constant 0 : index
    %c0_6 = arith.constant 0 : index
    %5 = vector.load %arg3[%c0_5, %c0_6] : memref<1x32xf32, #tpu.memory_space<vmem>>, vector<1x32xf32>
    %6 = vector.broadcast %5 : vector<1x32xf32> to vector<16x32xf32>
    %7 = arith.addf %4, %6 : vector<16x32xf32>
    %cst_7 = arith.constant dense<0.000000e+00> : vector<32xf32>
    %8 = vector.multi_reduction <add>, %7, %cst_7 [0] : vector<16x32xf32> to vector<32xf32>
    %9 = vector.shape_cast %8 : vector<32xf32> to vector<1x32xf32>
    %cst_8 = arith.constant 1.600000e+01 : f32
    %10 = vector.broadcast %cst_8 : f32 to vector<1x32xf32>
    %11 = arith.divf %9, %10 : vector<1x32xf32>
    %12 = vector.broadcast %11 : vector<1x32xf32> to vector<16x32xf32>
    %13 = arith.subf %7, %12 : vector<16x32xf32>
    %14 = arith.mulf %13, %13 : vector<16x32xf32>
    %cst_9 = arith.constant dense<0.000000e+00> : vector<32xf32>
    %15 = vector.multi_reduction <add>, %14, %cst_9 [0] : vector<16x32xf32> to vector<32xf32>
    %16 = vector.shape_cast %15 : vector<32xf32> to vector<1x32xf32>
    %cst_10 = arith.constant 1.600000e+01 : f32
    %17 = vector.broadcast %cst_10 : f32 to vector<1x32xf32>
    %18 = arith.divf %16, %17 : vector<1x32xf32>
    %19 = vector.broadcast %11 : vector<1x32xf32> to vector<16x32xf32>
    %20 = arith.subf %7, %19 : vector<16x32xf32>
    %cst_11 = arith.constant 9.99999974E-6 : f32
    %21 = vector.broadcast %cst_11 : f32 to vector<1x32xf32>
    %22 = arith.addf %18, %21 : vector<1x32xf32>
    %23 = math.rsqrt %22 : vector<1x32xf32>
    %24 = vector.broadcast %23 : vector<1x32xf32> to vector<16x32xf32>
    %25 = arith.mulf %20, %24 : vector<16x32xf32>
    %c0_12 = arith.constant 0 : index
    %c0_13 = arith.constant 0 : index
    %26 = vector.load %arg4[%c0_12, %c0_13] : memref<1x32xf32, #tpu.memory_space<vmem>>, vector<1x32xf32>
    %27 = vector.broadcast %26 : vector<1x32xf32> to vector<16x32xf32>
    %28 = arith.mulf %25, %27 : vector<16x32xf32>
    %c0_14 = arith.constant 0 : index
    %c0_15 = arith.constant 0 : index
    %29 = vector.load %arg5[%c0_14, %c0_15] : memref<1x32xf32, #tpu.memory_space<vmem>>, vector<1x32xf32>
    %30 = vector.broadcast %29 : vector<1x32xf32> to vector<16x32xf32>
    %31 = arith.addf %28, %30 : vector<16x32xf32>
    %cst_16 = arith.constant 0.000000e+00 : f32
    %32 = vector.broadcast %cst_16 : f32 to vector<16x32xf32>
    %33 = arith.maximumf %31, %32 : vector<16x32xf32>
    %34 = arith.truncf %33 : vector<16x32xf32> to vector<16x32xbf16>
    %c0_17 = arith.constant 0 : index
    %c0_18 = arith.constant 0 : index
    %35 = vector.load %arg6[%c0_17, %c0_18] : memref<32x32xbf16, #tpu.memory_space<vmem>>, vector<32x32xbf16>
    %cst_19 = arith.constant dense<0.000000e+00> : vector<16x32xf32>
    %36 = tpu.matmul %34, %35, %cst_19 {dimension_numbers = #tpu.dot_dimension_numbers<[1], [0], [0], [1], [0, 0, 1, 1], [], []>} : vector<16x32xbf16>, vector<32x32xbf16>, vector<16x32xf32> -> vector<16x32xf32>
    %c0_20 = arith.constant 0 : index
    %c0_21 = arith.constant 0 : index
    %37 = vector.load %arg7[%c0_20, %c0_21] : memref<1x32xf32, #tpu.memory_space<vmem>>, vector<1x32xf32>
    %38 = vector.broadcast %37 : vector<1x32xf32> to vector<16x32xf32>
    %39 = arith.addf %36, %38 : vector<16x32xf32>
    %cst_22 = arith.constant dense<0.000000e+00> : vector<32xf32>
    %40 = vector.multi_reduction <add>, %39, %cst_22 [0] : vector<16x32xf32> to vector<32xf32>
    %41 = vector.shape_cast %40 : vector<32xf32> to vector<1x32xf32>
    %cst_23 = arith.constant 1.600000e+01 : f32
    %42 = vector.broadcast %cst_23 : f32 to vector<1x32xf32>
    %43 = arith.divf %41, %42 : vector<1x32xf32>
    %44 = vector.broadcast %43 : vector<1x32xf32> to vector<16x32xf32>
    %45 = arith.subf %39, %44 : vector<16x32xf32>
    %46 = arith.mulf %45, %45 : vector<16x32xf32>
    %cst_24 = arith.constant dense<0.000000e+00> : vector<32xf32>
    %47 = vector.multi_reduction <add>, %46, %cst_24 [0] : vector<16x32xf32> to vector<32xf32>
    %48 = vector.shape_cast %47 : vector<32xf32> to vector<1x32xf32>
    %cst_25 = arith.constant 1.600000e+01 : f32
    %49 = vector.broadcast %cst_25 : f32 to vector<1x32xf32>
    %50 = arith.divf %48, %49 : vector<1x32xf32>
    %51 = vector.broadcast %43 : vector<1x32xf32> to vector<16x32xf32>
    %52 = arith.subf %39, %51 : vector<16x32xf32>
    %cst_26 = arith.constant 9.99999974E-6 : f32
    %53 = vector.broadcast %cst_26 : f32 to vector<1x32xf32>
    %54 = arith.addf %50, %53 : vector<1x32xf32>
    %55 = math.rsqrt %54 : vector<1x32xf32>
    %56 = vector.broadcast %55 : vector<1x32xf32> to vector<16x32xf32>
    %57 = arith.mulf %52, %56 : vector<16x32xf32>
    %c0_27 = arith.constant 0 : index
    %c0_28 = arith.constant 0 : index
    %58 = vector.load %arg8[%c0_27, %c0_28] : memref<1x32xf32, #tpu.memory_space<vmem>>, vector<1x32xf32>
    %59 = vector.broadcast %58 : vector<1x32xf32> to vector<16x32xf32>
    %60 = arith.mulf %57, %59 : vector<16x32xf32>
    %c0_29 = arith.constant 0 : index
    %c0_30 = arith.constant 0 : index
    %61 = vector.load %arg9[%c0_29, %c0_30] : memref<1x32xf32, #tpu.memory_space<vmem>>, vector<1x32xf32>
    %62 = vector.broadcast %61 : vector<1x32xf32> to vector<16x32xf32>
    %63 = arith.addf %60, %62 : vector<16x32xf32>
    %cst_31 = arith.constant 0.000000e+00 : f32
    %64 = vector.broadcast %cst_31 : f32 to vector<16x32xf32>
    %65 = arith.maximumf %63, %64 : vector<16x32xf32>
    %66 = arith.truncf %65 : vector<16x32xf32> to vector<16x32xbf16>
    %c0_32 = arith.constant 0 : index
    %c0_33 = arith.constant 0 : index
    %67 = vector.load %arg10[%c0_32, %c0_33] : memref<32x32xbf16, #tpu.memory_space<vmem>>, vector<32x32xbf16>
    %cst_34 = arith.constant dense<0.000000e+00> : vector<16x32xf32>
    %68 = tpu.matmul %66, %67, %cst_34 {dimension_numbers = #tpu.dot_dimension_numbers<[1], [0], [0], [1], [0, 0, 1, 1], [], []>} : vector<16x32xbf16>, vector<32x32xbf16>, vector<16x32xf32> -> vector<16x32xf32>
    %c0_35 = arith.constant 0 : index
    %c0_36 = arith.constant 0 : index
    %69 = vector.load %arg11[%c0_35, %c0_36] : memref<1x32xf32, #tpu.memory_space<vmem>>, vector<1x32xf32>
    %70 = vector.broadcast %69 : vector<1x32xf32> to vector<16x32xf32>
    %71 = arith.addf %68, %70 : vector<16x32xf32>
    %cst_37 = arith.constant dense<0.000000e+00> : vector<32xf32>
    %72 = vector.multi_reduction <add>, %71, %cst_37 [0] : vector<16x32xf32> to vector<32xf32>
    %73 = vector.shape_cast %72 : vector<32xf32> to vector<1x32xf32>
    %cst_38 = arith.constant 1.600000e+01 : f32
    %74 = vector.broadcast %cst_38 : f32 to vector<1x32xf32>
    %75 = arith.divf %73, %74 : vector<1x32xf32>
    %76 = vector.broadcast %75 : vector<1x32xf32> to vector<16x32xf32>
    %77 = arith.subf %71, %76 : vector<16x32xf32>
    %78 = arith.mulf %77, %77 : vector<16x32xf32>
    %cst_39 = arith.constant dense<0.000000e+00> : vector<32xf32>
    %79 = vector.multi_reduction <add>, %78, %cst_39 [0] : vector<16x32xf32> to vector<32xf32>
    %80 = vector.shape_cast %79 : vector<32xf32> to vector<1x32xf32>
    %cst_40 = arith.constant 1.600000e+01 : f32
    %81 = vector.broadcast %cst_40 : f32 to vector<1x32xf32>
    %82 = arith.divf %80, %81 : vector<1x32xf32>
    %83 = vector.broadcast %75 : vector<1x32xf32> to vector<16x32xf32>
    %84 = arith.subf %71, %83 : vector<16x32xf32>
    %cst_41 = arith.constant 9.99999974E-6 : f32
    %85 = vector.broadcast %cst_41 : f32 to vector<1x32xf32>
    %86 = arith.addf %82, %85 : vector<1x32xf32>
    %87 = math.rsqrt %86 : vector<1x32xf32>
    %88 = vector.broadcast %87 : vector<1x32xf32> to vector<16x32xf32>
    %89 = arith.mulf %84, %88 : vector<16x32xf32>
    %c0_42 = arith.constant 0 : index
    %c0_43 = arith.constant 0 : index
    %90 = vector.load %arg12[%c0_42, %c0_43] : memref<1x32xf32, #tpu.memory_space<vmem>>, vector<1x32xf32>
    %91 = vector.broadcast %90 : vector<1x32xf32> to vector<16x32xf32>
    %92 = arith.mulf %89, %91 : vector<16x32xf32>
    %c0_44 = arith.constant 0 : index
    %c0_45 = arith.constant 0 : index
    %93 = vector.load %arg13[%c0_44, %c0_45] : memref<1x32xf32, #tpu.memory_space<vmem>>, vector<1x32xf32>
    %94 = vector.broadcast %93 : vector<1x32xf32> to vector<16x32xf32>
    %95 = arith.addf %92, %94 : vector<16x32xf32>
    %cst_46 = arith.constant 0.000000e+00 : f32
    %96 = vector.broadcast %cst_46 : f32 to vector<16x32xf32>
    %97 = arith.maximumf %95, %96 : vector<16x32xf32>
    %98 = arith.truncf %97 : vector<16x32xf32> to vector<16x32xbf16>
    %c0_47 = arith.constant 0 : index
    %c0_48 = arith.constant 0 : index
    %99 = vector.load %arg14[%c0_47, %c0_48] : memref<32x1xbf16, #tpu.memory_space<vmem>>, vector<32x1xbf16>
    %cst_49 = arith.constant dense<0.000000e+00> : vector<16x1xf32>
    %100 = tpu.matmul %98, %99, %cst_49 {dimension_numbers = #tpu.dot_dimension_numbers<[1], [0], [0], [1], [0, 0, 1, 1], [], []>} : vector<16x32xbf16>, vector<32x1xbf16>, vector<16x1xf32> -> vector<16x1xf32>
    %c0_50 = arith.constant 0 : index
    %c0_51 = arith.constant 0 : index
    %101 = vector.load %arg15[%c0_50, %c0_51] : memref<1x1xf32, #tpu.memory_space<vmem>>, vector<1x1xf32>
    %102 = vector.broadcast %101 : vector<1x1xf32> to vector<16x1xf32>
    %103 = arith.addf %100, %102 : vector<16x1xf32>
    %cst_52 = arith.constant 0.000000e+00 : f32
    %104 = vector.broadcast %cst_52 : f32 to vector<16x1xf32>
    %105 = arith.maximumf %103, %104 : vector<16x1xf32>
    %106 = arith.truncf %105 : vector<16x1xf32> to vector<16x1xbf16>
    %c0_53 = arith.constant 0 : index
    %c0_54 = arith.constant 0 : index
    %107 = vector.load %arg16[%c0_53, %c0_54] : memref<1x1xbf16, #tpu.memory_space<vmem>>, vector<1x1xbf16>
    %cst_55 = arith.constant dense<0.000000e+00> : vector<16x1xf32>
    %108 = tpu.matmul %106, %107, %cst_55 {dimension_numbers = #tpu.dot_dimension_numbers<[1], [0], [0], [1], [0, 0, 1, 1], [], []>} : vector<16x1xbf16>, vector<1x1xbf16>, vector<16x1xf32> -> vector<16x1xf32>
    %c0_56 = arith.constant 0 : index
    %c0_57 = arith.constant 0 : index
    %109 = vector.load %arg17[%c0_56, %c0_57] : memref<1x1xf32, #tpu.memory_space<vmem>>, vector<1x1xf32>
    %110 = vector.broadcast %109 : vector<1x1xf32> to vector<16x1xf32>
    %111 = arith.addf %108, %110 : vector<16x1xf32>
    %cst_58 = arith.constant 0.000000e+00 : f32
    %112 = vector.broadcast %cst_58 : f32 to vector<16x1xf32>
    %113 = arith.maximumf %111, %112 : vector<16x1xf32>
    %c0_59 = arith.constant 0 : index
    %c0_60 = arith.constant 0 : index
    %114 = vector.load %arg54[%c0_59, %c0_60] : memref<16x1xf32, #tpu.memory_space<vmem>>, vector<16x1xf32>
    tpu.vector_store %arg54[%c0_59, %c0_60], %113 {strides = array<i32>} : memref<16x1xf32, #tpu.memory_space<vmem>>, vector<16x1xf32>,
    %115 = arith.truncf %0 : vector<16x32xf32> to vector<16x32xbf16>
    %c0_61 = arith.constant 0 : index
    %c0_62 = arith.constant 0 : index
    %116 = vector.load %arg18[%c0_61, %c0_62] : memref<32x32xbf16, #tpu.memory_space<vmem>>, vector<32x32xbf16>
    %cst_63 = arith.constant dense<0.000000e+00> : vector<16x32xf32>
    %117 = tpu.matmul %115, %116, %cst_63 {dimension_numbers = #tpu.dot_dimension_numbers<[1], [0], [0], [1], [0, 0, 1, 1], [], []>} : vector<16x32xbf16>, vector<32x32xbf16>, vector<16x32xf32> -> vector<16x32xf32>
    %c0_64 = arith.constant 0 : index
    %c0_65 = arith.constant 0 : index
    %118 = vector.load %arg19[%c0_64, %c0_65] : memref<1x32xf32, #tpu.memory_space<vmem>>, vector<1x32xf32>
    %119 = vector.broadcast %118 : vector<1x32xf32> to vector<16x32xf32>
    %120 = arith.addf %117, %119 : vector<16x32xf32>
    %cst_66 = arith.constant dense<0.000000e+00> : vector<32xf32>
    %121 = vector.multi_reduction <add>, %120, %cst_66 [0] : vector<16x32xf32> to vector<32xf32>
    %122 = vector.shape_cast %121 : vector<32xf32> to vector<1x32xf32>
    %cst_67 = arith.constant 1.600000e+01 : f32
    %123 = vector.broadcast %cst_67 : f32 to vector<1x32xf32>
    %124 = arith.divf %122, %123 : vector<1x32xf32>
    %125 = vector.broadcast %124 : vector<1x32xf32> to vector<16x32xf32>
    %126 = arith.subf %120, %125 : vector<16x32xf32>
    %127 = arith.mulf %126, %126 : vector<16x32xf32>
    %cst_68 = arith.constant dense<0.000000e+00> : vector<32xf32>
    %128 = vector.multi_reduction <add>, %127, %cst_68 [0] : vector<16x32xf32> to vector<32xf32>
    %129 = vector.shape_cast %128 : vector<32xf32> to vector<1x32xf32>
    %cst_69 = arith.constant 1.600000e+01 : f32
    %130 = vector.broadcast %cst_69 : f32 to vector<1x32xf32>
    %131 = arith.divf %129, %130 : vector<1x32xf32>
    %132 = vector.broadcast %124 : vector<1x32xf32> to vector<16x32xf32>
    %133 = arith.subf %120, %132 : vector<16x32xf32>
    %cst_70 = arith.constant 9.99999974E-6 : f32
    %134 = vector.broadcast %cst_70 : f32 to vector<1x32xf32>
    %135 = arith.addf %131, %134 : vector<1x32xf32>
    %136 = math.rsqrt %135 : vector<1x32xf32>
    %137 = vector.broadcast %136 : vector<1x32xf32> to vector<16x32xf32>
    %138 = arith.mulf %133, %137 : vector<16x32xf32>
    %c0_71 = arith.constant 0 : index
    %c0_72 = arith.constant 0 : index
    %139 = vector.load %arg20[%c0_71, %c0_72] : memref<1x32xf32, #tpu.memory_space<vmem>>, vector<1x32xf32>
    %140 = vector.broadcast %139 : vector<1x32xf32> to vector<16x32xf32>
    %141 = arith.mulf %138, %140 : vector<16x32xf32>
    %c0_73 = arith.constant 0 : index
    %c0_74 = arith.constant 0 : index
    %142 = vector.load %arg21[%c0_73, %c0_74] : memref<1x32xf32, #tpu.memory_space<vmem>>, vector<1x32xf32>
    %143 = vector.broadcast %142 : vector<1x32xf32> to vector<16x32xf32>
    %144 = arith.addf %141, %143 : vector<16x32xf32>
    %cst_75 = arith.constant 0.000000e+00 : f32
    %145 = vector.broadcast %cst_75 : f32 to vector<16x32xf32>
    %146 = arith.maximumf %144, %145 : vector<16x32xf32>
    %147 = arith.truncf %146 : vector<16x32xf32> to vector<16x32xbf16>
    %c0_76 = arith.constant 0 : index
    %c0_77 = arith.constant 0 : index
    %148 = vector.load %arg22[%c0_76, %c0_77] : memref<32x32xbf16, #tpu.memory_space<vmem>>, vector<32x32xbf16>
    %cst_78 = arith.constant dense<0.000000e+00> : vector<16x32xf32>
    %149 = tpu.matmul %147, %148, %cst_78 {dimension_numbers = #tpu.dot_dimension_numbers<[1], [0], [0], [1], [0, 0, 1, 1], [], []>} : vector<16x32xbf16>, vector<32x32xbf16>, vector<16x32xf32> -> vector<16x32xf32>
    %c0_79 = arith.constant 0 : index
    %c0_80 = arith.constant 0 : index
    %150 = vector.load %arg23[%c0_79, %c0_80] : memref<1x32xf32, #tpu.memory_space<vmem>>, vector<1x32xf32>
    %151 = vector.broadcast %150 : vector<1x32xf32> to vector<16x32xf32>
    %152 = arith.addf %149, %151 : vector<16x32xf32>
    %cst_81 = arith.constant dense<0.000000e+00> : vector<32xf32>
    %153 = vector.multi_reduction <add>, %152, %cst_81 [0] : vector<16x32xf32> to vector<32xf32>
    %154 = vector.shape_cast %153 : vector<32xf32> to vector<1x32xf32>
    %cst_82 = arith.constant 1.600000e+01 : f32
    %155 = vector.broadcast %cst_82 : f32 to vector<1x32xf32>
    %156 = arith.divf %154, %155 : vector<1x32xf32>
    %157 = vector.broadcast %156 : vector<1x32xf32> to vector<16x32xf32>
    %158 = arith.subf %152, %157 : vector<16x32xf32>
    %159 = arith.mulf %158, %158 : vector<16x32xf32>
    %cst_83 = arith.constant dense<0.000000e+00> : vector<32xf32>
    %160 = vector.multi_reduction <add>, %159, %cst_83 [0] : vector<16x32xf32> to vector<32xf32>
    %161 = vector.shape_cast %160 : vector<32xf32> to vector<1x32xf32>
    %cst_84 = arith.constant 1.600000e+01 : f32
    %162 = vector.broadcast %cst_84 : f32 to vector<1x32xf32>
    %163 = arith.divf %161, %162 : vector<1x32xf32>
    %164 = vector.broadcast %156 : vector<1x32xf32> to vector<16x32xf32>
    %165 = arith.subf %152, %164 : vector<16x32xf32>
    %cst_85 = arith.constant 9.99999974E-6 : f32
    %166 = vector.broadcast %cst_85 : f32 to vector<1x32xf32>
    %167 = arith.addf %163, %166 : vector<1x32xf32>
    %168 = math.rsqrt %167 : vector<1x32xf32>
    %169 = vector.broadcast %168 : vector<1x32xf32> to vector<16x32xf32>
    %170 = arith.mulf %165, %169 : vector<16x32xf32>
    %c0_86 = arith.constant 0 : index
    %c0_87 = arith.constant 0 : index
    %171 = vector.load %arg24[%c0_86, %c0_87] : memref<1x32xf32, #tpu.memory_space<vmem>>, vector<1x32xf32>
    %172 = vector.broadcast %171 : vector<1x32xf32> to vector<16x32xf32>
    %173 = arith.mulf %170, %172 : vector<16x32xf32>
    %c0_88 = arith.constant 0 : index
    %c0_89 = arith.constant 0 : index
    %174 = vector.load %arg25[%c0_88, %c0_89] : memref<1x32xf32, #tpu.memory_space<vmem>>, vector<1x32xf32>
    %175 = vector.broadcast %174 : vector<1x32xf32> to vector<16x32xf32>
    %176 = arith.addf %173, %175 : vector<16x32xf32>
    %cst_90 = arith.constant 0.000000e+00 : f32
    %177 = vector.broadcast %cst_90 : f32 to vector<16x32xf32>
    %178 = arith.maximumf %176, %177 : vector<16x32xf32>
    %179 = arith.truncf %178 : vector<16x32xf32> to vector<16x32xbf16>
    %c0_91 = arith.constant 0 : index
    %c0_92 = arith.constant 0 : index
    %180 = vector.load %arg26[%c0_91, %c0_92] : memref<32x32xbf16, #tpu.memory_space<vmem>>, vector<32x32xbf16>
    %cst_93 = arith.constant dense<0.000000e+00> : vector<16x32xf32>
    %181 = tpu.matmul %179, %180, %cst_93 {dimension_numbers = #tpu.dot_dimension_numbers<[1], [0], [0], [1], [0, 0, 1, 1], [], []>} : vector<16x32xbf16>, vector<32x32xbf16>, vector<16x32xf32> -> vector<16x32xf32>
    %c0_94 = arith.constant 0 : index
    %c0_95 = arith.constant 0 : index
    %182 = vector.load %arg27[%c0_94, %c0_95] : memref<1x32xf32, #tpu.memory_space<vmem>>, vector<1x32xf32>
    %183 = vector.broadcast %182 : vector<1x32xf32> to vector<16x32xf32>
    %184 = arith.addf %181, %183 : vector<16x32xf32>
    %cst_96 = arith.constant 0.000000e+00 : f32
    %185 = vector.broadcast %cst_96 : f32 to vector<16x32xf32>
    %186 = arith.maximumf %184, %185 : vector<16x32xf32>
    %187 = arith.truncf %186 : vector<16x32xf32> to vector<16x32xbf16>
    %c0_97 = arith.constant 0 : index
    %c0_98 = arith.constant 0 : index
    %188 = vector.load %arg28[%c0_97, %c0_98] : memref<32x32xbf16, #tpu.memory_space<vmem>>, vector<32x32xbf16>
    %cst_99 = arith.constant dense<0.000000e+00> : vector<16x32xf32>
    %189 = tpu.matmul %187, %188, %cst_99 {dimension_numbers = #tpu.dot_dimension_numbers<[1], [0], [0], [1], [0, 0, 1, 1], [], []>} : vector<16x32xbf16>, vector<32x32xbf16>, vector<16x32xf32> -> vector<16x32xf32>
    %c0_100 = arith.constant 0 : index
    %c0_101 = arith.constant 0 : index
    %190 = vector.load %arg29[%c0_100, %c0_101] : memref<1x32xf32, #tpu.memory_space<vmem>>, vector<1x32xf32>
    %191 = vector.broadcast %190 : vector<1x32xf32> to vector<16x32xf32>
    %192 = arith.addf %189, %191 : vector<16x32xf32>
    %cst_102 = arith.constant 0.000000e+00 : f32
    %193 = vector.broadcast %cst_102 : f32 to vector<16x32xf32>
    %194 = arith.maximumf %192, %193 : vector<16x32xf32>
    %195 = arith.subf %194, %1 : vector<16x32xf32>
    %196 = arith.mulf %195, %195 : vector<16x32xf32>
    %cst_103 = arith.constant dense<0.000000e+00> : vector<16xf32>
    %197 = vector.multi_reduction <add>, %196, %cst_103 [1] : vector<16x32xf32> to vector<16xf32>
    %198 = vector.shape_cast %197 : vector<16xf32> to vector<16x1xf32>
    %cst_104 = arith.constant 3.200000e+01 : f32
    %199 = vector.broadcast %cst_104 : f32 to vector<16x1xf32>
    %200 = arith.divf %198, %199 : vector<16x1xf32>
    %c0_105 = arith.constant 0 : index
    %c0_106 = arith.constant 0 : index
    %201 = vector.load %arg55[%c0_105, %c0_106] : memref<16x1xf32, #tpu.memory_space<vmem>>, vector<16x1xf32>
    tpu.vector_store %arg55[%c0_105, %c0_106], %200 {strides = array<i32>} : memref<16x1xf32, #tpu.memory_space<vmem>>, vector<16x1xf32>,
    %202 = arith.truncf %0 : vector<16x32xf32> to vector<16x32xbf16>
    %c0_107 = arith.constant 0 : index
    %c0_108 = arith.constant 0 : index
    %203 = vector.load %arg30[%c0_107, %c0_108] : memref<32x32xbf16, #tpu.memory_space<vmem>>, vector<32x32xbf16>
    %cst_109 = arith.constant dense<0.000000e+00> : vector<16x32xf32>
    %204 = tpu.matmul %202, %203, %cst_109 {dimension_numbers = #tpu.dot_dimension_numbers<[1], [0], [0], [1], [0, 0, 1, 1], [], []>} : vector<16x32xbf16>, vector<32x32xbf16>, vector<16x32xf32> -> vector<16x32xf32>
    %c0_110 = arith.constant 0 : index
    %c0_111 = arith.constant 0 : index
    %205 = vector.load %arg31[%c0_110, %c0_111] : memref<1x32xf32, #tpu.memory_space<vmem>>, vector<1x32xf32>
    %206 = vector.broadcast %205 : vector<1x32xf32> to vector<16x32xf32>
    %207 = arith.addf %204, %206 : vector<16x32xf32>
    %cst_112 = arith.constant dense<0.000000e+00> : vector<32xf32>
    %208 = vector.multi_reduction <add>, %207, %cst_112 [0] : vector<16x32xf32> to vector<32xf32>
    %209 = vector.shape_cast %208 : vector<32xf32> to vector<1x32xf32>
    %cst_113 = arith.constant 1.600000e+01 : f32
    %210 = vector.broadcast %cst_113 : f32 to vector<1x32xf32>
    %211 = arith.divf %209, %210 : vector<1x32xf32>
    %212 = vector.broadcast %211 : vector<1x32xf32> to vector<16x32xf32>
    %213 = arith.subf %207, %212 : vector<16x32xf32>
    %214 = arith.mulf %213, %213 : vector<16x32xf32>
    %cst_114 = arith.constant dense<0.000000e+00> : vector<32xf32>
    %215 = vector.multi_reduction <add>, %214, %cst_114 [0] : vector<16x32xf32> to vector<32xf32>
    %216 = vector.shape_cast %215 : vector<32xf32> to vector<1x32xf32>
    %cst_115 = arith.constant 1.600000e+01 : f32
    %217 = vector.broadcast %cst_115 : f32 to vector<1x32xf32>
    %218 = arith.divf %216, %217 : vector<1x32xf32>
    %219 = vector.broadcast %211 : vector<1x32xf32> to vector<16x32xf32>
    %220 = arith.subf %207, %219 : vector<16x32xf32>
    %cst_116 = arith.constant 9.99999974E-6 : f32
    %221 = vector.broadcast %cst_116 : f32 to vector<1x32xf32>
    %222 = arith.addf %218, %221 : vector<1x32xf32>
    %223 = math.rsqrt %222 : vector<1x32xf32>
    %224 = vector.broadcast %223 : vector<1x32xf32> to vector<16x32xf32>
    %225 = arith.mulf %220, %224 : vector<16x32xf32>
    %c0_117 = arith.constant 0 : index
    %c0_118 = arith.constant 0 : index
    %226 = vector.load %arg32[%c0_117, %c0_118] : memref<1x32xf32, #tpu.memory_space<vmem>>, vector<1x32xf32>
    %227 = vector.broadcast %226 : vector<1x32xf32> to vector<16x32xf32>
    %228 = arith.mulf %225, %227 : vector<16x32xf32>
    %c0_119 = arith.constant 0 : index
    %c0_120 = arith.constant 0 : index
    %229 = vector.load %arg33[%c0_119, %c0_120] : memref<1x32xf32, #tpu.memory_space<vmem>>, vector<1x32xf32>
    %230 = vector.broadcast %229 : vector<1x32xf32> to vector<16x32xf32>
    %231 = arith.addf %228, %230 : vector<16x32xf32>
    %cst_121 = arith.constant 0.000000e+00 : f32
    %232 = vector.broadcast %cst_121 : f32 to vector<16x32xf32>
    %233 = arith.maximumf %231, %232 : vector<16x32xf32>
    %234 = arith.truncf %233 : vector<16x32xf32> to vector<16x32xbf16>
    %c0_122 = arith.constant 0 : index
    %c0_123 = arith.constant 0 : index
    %235 = vector.load %arg34[%c0_122, %c0_123] : memref<32x32xbf16, #tpu.memory_space<vmem>>, vector<32x32xbf16>
    %cst_124 = arith.constant dense<0.000000e+00> : vector<16x32xf32>
    %236 = tpu.matmul %234, %235, %cst_124 {dimension_numbers = #tpu.dot_dimension_numbers<[1], [0], [0], [1], [0, 0, 1, 1], [], []>} : vector<16x32xbf16>, vector<32x32xbf16>, vector<16x32xf32> -> vector<16x32xf32>
    %c0_125 = arith.constant 0 : index
    %c0_126 = arith.constant 0 : index
    %237 = vector.load %arg35[%c0_125, %c0_126] : memref<1x32xf32, #tpu.memory_space<vmem>>, vector<1x32xf32>
    %238 = vector.broadcast %237 : vector<1x32xf32> to vector<16x32xf32>
    %239 = arith.addf %236, %238 : vector<16x32xf32>
    %cst_127 = arith.constant dense<0.000000e+00> : vector<32xf32>
    %240 = vector.multi_reduction <add>, %239, %cst_127 [0] : vector<16x32xf32> to vector<32xf32>
    %241 = vector.shape_cast %240 : vector<32xf32> to vector<1x32xf32>
    %cst_128 = arith.constant 1.600000e+01 : f32
    %242 = vector.broadcast %cst_128 : f32 to vector<1x32xf32>
    %243 = arith.divf %241, %242 : vector<1x32xf32>
    %244 = vector.broadcast %243 : vector<1x32xf32> to vector<16x32xf32>
    %245 = arith.subf %239, %244 : vector<16x32xf32>
    %246 = arith.mulf %245, %245 : vector<16x32xf32>
    %cst_129 = arith.constant dense<0.000000e+00> : vector<32xf32>
    %247 = vector.multi_reduction <add>, %246, %cst_129 [0] : vector<16x32xf32> to vector<32xf32>
    %248 = vector.shape_cast %247 : vector<32xf32> to vector<1x32xf32>
    %cst_130 = arith.constant 1.600000e+01 : f32
    %249 = vector.broadcast %cst_130 : f32 to vector<1x32xf32>
    %250 = arith.divf %248, %249 : vector<1x32xf32>
    %251 = vector.broadcast %243 : vector<1x32xf32> to vector<16x32xf32>
    %252 = arith.subf %239, %251 : vector<16x32xf32>
    %cst_131 = arith.constant 9.99999974E-6 : f32
    %253 = vector.broadcast %cst_131 : f32 to vector<1x32xf32>
    %254 = arith.addf %250, %253 : vector<1x32xf32>
    %255 = math.rsqrt %254 : vector<1x32xf32>
    %256 = vector.broadcast %255 : vector<1x32xf32> to vector<16x32xf32>
    %257 = arith.mulf %252, %256 : vector<16x32xf32>
    %c0_132 = arith.constant 0 : index
    %c0_133 = arith.constant 0 : index
    %258 = vector.load %arg36[%c0_132, %c0_133] : memref<1x32xf32, #tpu.memory_space<vmem>>, vector<1x32xf32>
    %259 = vector.broadcast %258 : vector<1x32xf32> to vector<16x32xf32>
    %260 = arith.mulf %257, %259 : vector<16x32xf32>
    %c0_134 = arith.constant 0 : index
    %c0_135 = arith.constant 0 : index
    %261 = vector.load %arg37[%c0_134, %c0_135] : memref<1x32xf32, #tpu.memory_space<vmem>>, vector<1x32xf32>
    %262 = vector.broadcast %261 : vector<1x32xf32> to vector<16x32xf32>
    %263 = arith.addf %260, %262 : vector<16x32xf32>
    %cst_136 = arith.constant 0.000000e+00 : f32
    %264 = vector.broadcast %cst_136 : f32 to vector<16x32xf32>
    %265 = arith.maximumf %263, %264 : vector<16x32xf32>
    %266 = arith.truncf %265 : vector<16x32xf32> to vector<16x32xbf16>
    %c0_137 = arith.constant 0 : index
    %c0_138 = arith.constant 0 : index
    %267 = vector.load %arg38[%c0_137, %c0_138] : memref<32x32xbf16, #tpu.memory_space<vmem>>, vector<32x32xbf16>
    %cst_139 = arith.constant dense<0.000000e+00> : vector<16x32xf32>
    %268 = tpu.matmul %266, %267, %cst_139 {dimension_numbers = #tpu.dot_dimension_numbers<[1], [0], [0], [1], [0, 0, 1, 1], [], []>} : vector<16x32xbf16>, vector<32x32xbf16>, vector<16x32xf32> -> vector<16x32xf32>
    %c0_140 = arith.constant 0 : index
    %c0_141 = arith.constant 0 : index
    %269 = vector.load %arg39[%c0_140, %c0_141] : memref<1x32xf32, #tpu.memory_space<vmem>>, vector<1x32xf32>
    %270 = vector.broadcast %269 : vector<1x32xf32> to vector<16x32xf32>
    %271 = arith.addf %268, %270 : vector<16x32xf32>
    %cst_142 = arith.constant 0.000000e+00 : f32
    %272 = vector.broadcast %cst_142 : f32 to vector<16x32xf32>
    %273 = arith.maximumf %271, %272 : vector<16x32xf32>
    %274 = arith.truncf %273 : vector<16x32xf32> to vector<16x32xbf16>
    %c0_143 = arith.constant 0 : index
    %c0_144 = arith.constant 0 : index
    %275 = vector.load %arg40[%c0_143, %c0_144] : memref<32x32xbf16, #tpu.memory_space<vmem>>, vector<32x32xbf16>
    %cst_145 = arith.constant dense<0.000000e+00> : vector<16x32xf32>
    %276 = tpu.matmul %274, %275, %cst_145 {dimension_numbers = #tpu.dot_dimension_numbers<[1], [0], [0], [1], [0, 0, 1, 1], [], []>} : vector<16x32xbf16>, vector<32x32xbf16>, vector<16x32xf32> -> vector<16x32xf32>
    %c0_146 = arith.constant 0 : index
    %c0_147 = arith.constant 0 : index
    %277 = vector.load %arg41[%c0_146, %c0_147] : memref<1x32xf32, #tpu.memory_space<vmem>>, vector<1x32xf32>
    %278 = vector.broadcast %277 : vector<1x32xf32> to vector<16x32xf32>
    %279 = arith.addf %276, %278 : vector<16x32xf32>
    %cst_148 = arith.constant 0.000000e+00 : f32
    %280 = vector.broadcast %cst_148 : f32 to vector<16x32xf32>
    %281 = arith.maximumf %279, %280 : vector<16x32xf32>
    %c0_149 = arith.constant 0 : index
    %c0_150 = arith.constant 0 : index
    %282 = vector.load %arg56[%c0_149, %c0_150] : memref<16x32xf32, #tpu.memory_space<vmem>>, vector<16x32xf32>
    tpu.vector_store %arg56[%c0_149, %c0_150], %281 {strides = array<i32>} : memref<16x32xf32, #tpu.memory_space<vmem>>, vector<16x32xf32>,
    %283 = arith.truncf %0 : vector<16x32xf32> to vector<16x32xbf16>
    %c0_151 = arith.constant 0 : index
    %c0_152 = arith.constant 0 : index
    %284 = vector.load %arg42[%c0_151, %c0_152] : memref<32x32xbf16, #tpu.memory_space<vmem>>, vector<32x32xbf16>
    %cst_153 = arith.constant dense<0.000000e+00> : vector<16x32xf32>
    %285 = tpu.matmul %283, %284, %cst_153 {dimension_numbers = #tpu.dot_dimension_numbers<[1], [0], [0], [1], [0, 0, 1, 1], [], []>} : vector<16x32xbf16>, vector<32x32xbf16>, vector<16x32xf32> -> vector<16x32xf32>
    %c0_154 = arith.constant 0 : index
    %c0_155 = arith.constant 0 : index
    %286 = vector.load %arg43[%c0_154, %c0_155] : memref<1x32xf32, #tpu.memory_space<vmem>>, vector<1x32xf32>
    %287 = vector.broadcast %286 : vector<1x32xf32> to vector<16x32xf32>
    %288 = arith.addf %285, %287 : vector<16x32xf32>
    %cst_156 = arith.constant dense<0.000000e+00> : vector<32xf32>
    %289 = vector.multi_reduction <add>, %288, %cst_156 [0] : vector<16x32xf32> to vector<32xf32>
    %290 = vector.shape_cast %289 : vector<32xf32> to vector<1x32xf32>
    %cst_157 = arith.constant 1.600000e+01 : f32
    %291 = vector.broadcast %cst_157 : f32 to vector<1x32xf32>
    %292 = arith.divf %290, %291 : vector<1x32xf32>
    %293 = vector.broadcast %292 : vector<1x32xf32> to vector<16x32xf32>
    %294 = arith.subf %288, %293 : vector<16x32xf32>
    %295 = arith.mulf %294, %294 : vector<16x32xf32>
    %cst_158 = arith.constant dense<0.000000e+00> : vector<32xf32>
    %296 = vector.multi_reduction <add>, %295, %cst_158 [0] : vector<16x32xf32> to vector<32xf32>
    %297 = vector.shape_cast %296 : vector<32xf32> to vector<1x32xf32>
    %cst_159 = arith.constant 1.600000e+01 : f32
    %298 = vector.broadcast %cst_159 : f32 to vector<1x32xf32>
    %299 = arith.divf %297, %298 : vector<1x32xf32>
    %300 = vector.broadcast %292 : vector<1x32xf32> to vector<16x32xf32>
    %301 = arith.subf %288, %300 : vector<16x32xf32>
    %cst_160 = arith.constant 9.99999974E-6 : f32
    %302 = vector.broadcast %cst_160 : f32 to vector<1x32xf32>
    %303 = arith.addf %299, %302 : vector<1x32xf32>
    %304 = math.rsqrt %303 : vector<1x32xf32>
    %305 = vector.broadcast %304 : vector<1x32xf32> to vector<16x32xf32>
    %306 = arith.mulf %301, %305 : vector<16x32xf32>
    %c0_161 = arith.constant 0 : index
    %c0_162 = arith.constant 0 : index
    %307 = vector.load %arg44[%c0_161, %c0_162] : memref<1x32xf32, #tpu.memory_space<vmem>>, vector<1x32xf32>
    %308 = vector.broadcast %307 : vector<1x32xf32> to vector<16x32xf32>
    %309 = arith.mulf %306, %308 : vector<16x32xf32>
    %c0_163 = arith.constant 0 : index
    %c0_164 = arith.constant 0 : index
    %310 = vector.load %arg45[%c0_163, %c0_164] : memref<1x32xf32, #tpu.memory_space<vmem>>, vector<1x32xf32>
    %311 = vector.broadcast %310 : vector<1x32xf32> to vector<16x32xf32>
    %312 = arith.addf %309, %311 : vector<16x32xf32>
    %cst_165 = arith.constant 0.000000e+00 : f32
    %313 = vector.broadcast %cst_165 : f32 to vector<16x32xf32>
    %314 = arith.maximumf %312, %313 : vector<16x32xf32>
    %315 = arith.truncf %314 : vector<16x32xf32> to vector<16x32xbf16>
    %c0_166 = arith.constant 0 : index
    %c0_167 = arith.constant 0 : index
    %316 = vector.load %arg46[%c0_166, %c0_167] : memref<32x32xbf16, #tpu.memory_space<vmem>>, vector<32x32xbf16>
    %cst_168 = arith.constant dense<0.000000e+00> : vector<16x32xf32>
    %317 = tpu.matmul %315, %316, %cst_168 {dimension_numbers = #tpu.dot_dimension_numbers<[1], [0], [0], [1], [0, 0, 1, 1], [], []>} : vector<16x32xbf16>, vector<32x32xbf16>, vector<16x32xf32> -> vector<16x32xf32>
    %c0_169 = arith.constant 0 : index
    %c0_170 = arith.constant 0 : index
    %318 = vector.load %arg47[%c0_169, %c0_170] : memref<1x32xf32, #tpu.memory_space<vmem>>, vector<1x32xf32>
    %319 = vector.broadcast %318 : vector<1x32xf32> to vector<16x32xf32>
    %320 = arith.addf %317, %319 : vector<16x32xf32>
    %cst_171 = arith.constant dense<0.000000e+00> : vector<32xf32>
    %321 = vector.multi_reduction <add>, %320, %cst_171 [0] : vector<16x32xf32> to vector<32xf32>
    %322 = vector.shape_cast %321 : vector<32xf32> to vector<1x32xf32>
    %cst_172 = arith.constant 1.600000e+01 : f32
    %323 = vector.broadcast %cst_172 : f32 to vector<1x32xf32>
    %324 = arith.divf %322, %323 : vector<1x32xf32>
    %325 = vector.broadcast %324 : vector<1x32xf32> to vector<16x32xf32>
    %326 = arith.subf %320, %325 : vector<16x32xf32>
    %327 = arith.mulf %326, %326 : vector<16x32xf32>
    %cst_173 = arith.constant dense<0.000000e+00> : vector<32xf32>
    %328 = vector.multi_reduction <add>, %327, %cst_173 [0] : vector<16x32xf32> to vector<32xf32>
    %329 = vector.shape_cast %328 : vector<32xf32> to vector<1x32xf32>
    %cst_174 = arith.constant 1.600000e+01 : f32
    %330 = vector.broadcast %cst_174 : f32 to vector<1x32xf32>
    %331 = arith.divf %329, %330 : vector<1x32xf32>
    %332 = vector.broadcast %324 : vector<1x32xf32> to vector<16x32xf32>
    %333 = arith.subf %320, %332 : vector<16x32xf32>
    %cst_175 = arith.constant 9.99999974E-6 : f32
    %334 = vector.broadcast %cst_175 : f32 to vector<1x32xf32>
    %335 = arith.addf %331, %334 : vector<1x32xf32>
    %336 = math.rsqrt %335 : vector<1x32xf32>
    %337 = vector.broadcast %336 : vector<1x32xf32> to vector<16x32xf32>
    %338 = arith.mulf %333, %337 : vector<16x32xf32>
    %c0_176 = arith.constant 0 : index
    %c0_177 = arith.constant 0 : index
    %339 = vector.load %arg48[%c0_176, %c0_177] : memref<1x32xf32, #tpu.memory_space<vmem>>, vector<1x32xf32>
    %340 = vector.broadcast %339 : vector<1x32xf32> to vector<16x32xf32>
    %341 = arith.mulf %338, %340 : vector<16x32xf32>
    %c0_178 = arith.constant 0 : index
    %c0_179 = arith.constant 0 : index
    %342 = vector.load %arg49[%c0_178, %c0_179] : memref<1x32xf32, #tpu.memory_space<vmem>>, vector<1x32xf32>
    %343 = vector.broadcast %342 : vector<1x32xf32> to vector<16x32xf32>
    %344 = arith.addf %341, %343 : vector<16x32xf32>
    %cst_180 = arith.constant 0.000000e+00 : f32
    %345 = vector.broadcast %cst_180 : f32 to vector<16x32xf32>
    %346 = arith.maximumf %344, %345 : vector<16x32xf32>
    %347 = arith.truncf %346 : vector<16x32xf32> to vector<16x32xbf16>
    %c0_181 = arith.constant 0 : index
    %c0_182 = arith.constant 0 : index
    %348 = vector.load %arg50[%c0_181, %c0_182] : memref<32x32xbf16, #tpu.memory_space<vmem>>, vector<32x32xbf16>
    %cst_183 = arith.constant dense<0.000000e+00> : vector<16x32xf32>
    %349 = tpu.matmul %347, %348, %cst_183 {dimension_numbers = #tpu.dot_dimension_numbers<[1], [0], [0], [1], [0, 0, 1, 1], [], []>} : vector<16x32xbf16>, vector<32x32xbf16>, vector<16x32xf32> -> vector<16x32xf32>
    %c0_184 = arith.constant 0 : index
    %c0_185 = arith.constant 0 : index
    %350 = vector.load %arg51[%c0_184, %c0_185] : memref<1x32xf32, #tpu.memory_space<vmem>>, vector<1x32xf32>
    %351 = vector.broadcast %350 : vector<1x32xf32> to vector<16x32xf32>
    %352 = arith.addf %349, %351 : vector<16x32xf32>
    %cst_186 = arith.constant 0.000000e+00 : f32
    %353 = vector.broadcast %cst_186 : f32 to vector<16x32xf32>
    %354 = arith.maximumf %352, %353 : vector<16x32xf32>
    %355 = arith.truncf %354 : vector<16x32xf32> to vector<16x32xbf16>
    %c0_187 = arith.constant 0 : index
    %c0_188 = arith.constant 0 : index
    %356 = vector.load %arg52[%c0_187, %c0_188] : memref<32x32xbf16, #tpu.memory_space<vmem>>, vector<32x32xbf16>
    %cst_189 = arith.constant dense<0.000000e+00> : vector<16x32xf32>
    %357 = tpu.matmul %355, %356, %cst_189 {dimension_numbers = #tpu.dot_dimension_numbers<[1], [0], [0], [1], [0, 0, 1, 1], [], []>} : vector<16x32xbf16>, vector<32x32xbf16>, vector<16x32xf32> -> vector<16x32xf32>
    %c0_190 = arith.constant 0 : index
    %c0_191 = arith.constant 0 : index
    %358 = vector.load %arg53[%c0_190, %c0_191] : memref<1x32xf32, #tpu.memory_space<vmem>>, vector<1x32xf32>
    %359 = vector.broadcast %358 : vector<1x32xf32> to vector<16x32xf32>
    %360 = arith.addf %357, %359 : vector<16x32xf32>
    %cst_192 = arith.constant 0.000000e+00 : f32
    %361 = vector.broadcast %cst_192 : f32 to vector<16x32xf32>
    %362 = arith.maximumf %360, %361 : vector<16x32xf32>
    %c0_193 = arith.constant 0 : index
    %c0_194 = arith.constant 0 : index
    %363 = vector.load %arg57[%c0_193, %c0_194] : memref<16x32xf32, #tpu.memory_space<vmem>>, vector<16x32xf32>
    tpu.vector_store %arg57[%c0_193, %c0_194], %362 {strides = array<i32>} : memref<16x32xf32, #tpu.memory_space<vmem>>, vector<16x32xf32>,
    return
  }
}

module attributes {stable_mosaic.version = 11 : i64} {
  func.func @_gen_stats_kernel(%arg0: i32, %arg1: i32, %arg2: i32, %arg3: memref<8x32xf32, #tpu.memory_space<vmem>>, %arg4: memref<8x32xf32, #tpu.memory_space<vmem>>, %arg5: memref<1x4x8x32xf32, #tpu.memory_space<vmem>>, %arg6: memref<32x32xbf16, #tpu.memory_space<vmem>>, %arg7: memref<1x32xf32, #tpu.memory_space<vmem>>, %arg8: memref<32x32xbf16, #tpu.memory_space<vmem>>, %arg9: memref<1x32xf32, #tpu.memory_space<vmem>>, %arg10: memref<32x32xbf16, #tpu.memory_space<vmem>>, %arg11: memref<1x32xf32, #tpu.memory_space<vmem>>, %arg12: memref<32x32xbf16, #tpu.memory_space<vmem>>, %arg13: memref<1x32xf32, #tpu.memory_space<vmem>>, %arg14: memref<1x8x32xf32, #tpu.memory_space<vmem>>, %arg15: memref<1x8x32xf32, #tpu.memory_space<vmem>>, %arg16: memref<8x32xf32, #tpu.memory_space<vmem>>, %arg17: memref<8x32xf32, #tpu.memory_space<vmem>>) attributes {dimension_semantics = [#tpu.dimension_semantics<parallel>, #tpu.dimension_semantics<parallel>, #tpu.dimension_semantics<arbitrary>], iteration_bounds = array<i64: 3, 2, 1>, scalar_prefetch = 0 : i64, scratch_operands = 2 : i64, tpu.core_type = #tpu.core_type<tc>, window_params = [{transform_indices = @transform_0, window_bounds = array<i64: 8, 32>}, {transform_indices = @transform_1, window_bounds = array<i64: 8, 32>}, {transform_indices = @transform_2, window_bounds = array<i64: 1, 4, 8, 32>}, {pipeline_mode = #tpu.pipeline_mode<synchronous>, transform_indices = @transform_3, window_bounds = array<i64: 32, 32>}, {pipeline_mode = #tpu.pipeline_mode<synchronous>, transform_indices = @transform_4, window_bounds = array<i64: 1, 32>}, {pipeline_mode = #tpu.pipeline_mode<synchronous>, transform_indices = @transform_5, window_bounds = array<i64: 32, 32>}, {pipeline_mode = #tpu.pipeline_mode<synchronous>, transform_indices = @transform_6, window_bounds = array<i64: 1, 32>}, {pipeline_mode = #tpu.pipeline_mode<synchronous>, transform_indices = @transform_7, window_bounds = array<i64: 32, 32>}, {pipeline_mode = #tpu.pipeline_mode<synchronous>, transform_indices = @transform_8, window_bounds = array<i64: 1, 32>}, {pipeline_mode = #tpu.pipeline_mode<synchronous>, transform_indices = @transform_9, window_bounds = array<i64: 32, 32>}, {pipeline_mode = #tpu.pipeline_mode<synchronous>, transform_indices = @transform_10, window_bounds = array<i64: 1, 32>}, {transform_indices = @transform_11, window_bounds = array<i64: 1, 8, 32>}, {transform_indices = @transform_12, window_bounds = array<i64: 1, 8, 32>}]} {
    %c0_i32 = arith.constant 0 : i32
    %0 = arith.cmpi eq, %arg2, %c0_i32 : i32
    %1 = arith.extui %0 : i1 to i32
    %c0_i32_0 = arith.constant 0 : i32
    %2 = arith.cmpi ne, %1, %c0_i32_0 : i32
    scf.if %2 {
      %cst_42 = arith.constant 0.000000e+00 : f32
      %58 = vector.broadcast %cst_42 : f32 to vector<8x32xf32>
      %c0_43 = arith.constant 0 : index
      %c0_44 = arith.constant 0 : index
      %59 = vector.load %arg16[%c0_43, %c0_44] : memref<8x32xf32, #tpu.memory_space<vmem>>, vector<8x32xf32>
      tpu.vector_store %arg16[%c0_43, %c0_44], %58 {strides = array<i32>} : memref<8x32xf32, #tpu.memory_space<vmem>>, vector<8x32xf32>,
      %cst_45 = arith.constant 0.000000e+00 : f32
      %60 = vector.broadcast %cst_45 : f32 to vector<8x32xf32>
      %c0_46 = arith.constant 0 : index
      %c0_47 = arith.constant 0 : index
      %61 = vector.load %arg17[%c0_46, %c0_47] : memref<8x32xf32, #tpu.memory_space<vmem>>, vector<8x32xf32>
      tpu.vector_store %arg17[%c0_46, %c0_47], %60 {strides = array<i32>} : memref<8x32xf32, #tpu.memory_space<vmem>>, vector<8x32xf32>,
    } else {
    }
    %c0 = arith.constant 0 : index
    %c0_1 = arith.constant 0 : index
    %3 = vector.load %arg3[%c0, %c0_1] : memref<8x32xf32, #tpu.memory_space<vmem>>, vector<8x32xf32>
    %c0_2 = arith.constant 0 : index
    %c0_3 = arith.constant 0 : index
    %4 = vector.load %arg4[%c0_2, %c0_3] : memref<8x32xf32, #tpu.memory_space<vmem>>, vector<8x32xf32>
    %5 = math.exp %4 : vector<8x32xf32>
    %c0_4 = arith.constant 0 : index
    %c0_5 = arith.constant 0 : index
    %c0_6 = arith.constant 0 : index
    %c0_7 = arith.constant 0 : index
    %6 = vector.load %arg5[%c0_4, %c0_5, %c0_6, %c0_7] : memref<1x4x8x32xf32, #tpu.memory_space<vmem>>, vector<1x4x8x32xf32>
    %7 = vector.shape_cast %6 : vector<1x4x8x32xf32> to vector<4x8x32xf32>
    %8 = vector.shape_cast %3 : vector<8x32xf32> to vector<1x8x32xf32>
    %9 = vector.shape_cast %5 : vector<8x32xf32> to vector<1x8x32xf32>
    %10 = vector.broadcast %9 : vector<1x8x32xf32> to vector<4x8x32xf32>
    %11 = arith.mulf %10, %7 : vector<4x8x32xf32>
    %12 = vector.broadcast %8 : vector<1x8x32xf32> to vector<4x8x32xf32>
    %13 = arith.addf %12, %11 : vector<4x8x32xf32>
    %14 = vector.shape_cast %13 : vector<4x8x32xf32> to vector<32x32xf32>
    %15 = arith.truncf %14 : vector<32x32xf32> to vector<32x32xbf16>
    %c0_8 = arith.constant 0 : index
    %c0_9 = arith.constant 0 : index
    %16 = vector.load %arg6[%c0_8, %c0_9] : memref<32x32xbf16, #tpu.memory_space<vmem>>, vector<32x32xbf16>
    %cst = arith.constant dense<0.000000e+00> : vector<32x32xf32>
    %17 = tpu.matmul %15, %16, %cst {dimension_numbers = #tpu.dot_dimension_numbers<[1], [0], [0], [1], [0, 0, 1, 1], [], []>} : vector<32x32xbf16>, vector<32x32xbf16>, vector<32x32xf32> -> vector<32x32xf32>
    %c0_10 = arith.constant 0 : index
    %c0_11 = arith.constant 0 : index
    %18 = vector.load %arg7[%c0_10, %c0_11] : memref<1x32xf32, #tpu.memory_space<vmem>>, vector<1x32xf32>
    %19 = vector.broadcast %18 : vector<1x32xf32> to vector<32x32xf32>
    %20 = arith.addf %17, %19 : vector<32x32xf32>
    %cst_12 = arith.constant 0.000000e+00 : f32
    %21 = vector.broadcast %cst_12 : f32 to vector<32x32xf32>
    %22 = arith.maximumf %20, %21 : vector<32x32xf32>
    %23 = arith.truncf %22 : vector<32x32xf32> to vector<32x32xbf16>
    %c0_13 = arith.constant 0 : index
    %c0_14 = arith.constant 0 : index
    %24 = vector.load %arg8[%c0_13, %c0_14] : memref<32x32xbf16, #tpu.memory_space<vmem>>, vector<32x32xbf16>
    %cst_15 = arith.constant dense<0.000000e+00> : vector<32x32xf32>
    %25 = tpu.matmul %23, %24, %cst_15 {dimension_numbers = #tpu.dot_dimension_numbers<[1], [0], [0], [1], [0, 0, 1, 1], [], []>} : vector<32x32xbf16>, vector<32x32xbf16>, vector<32x32xf32> -> vector<32x32xf32>
    %c0_16 = arith.constant 0 : index
    %c0_17 = arith.constant 0 : index
    %26 = vector.load %arg9[%c0_16, %c0_17] : memref<1x32xf32, #tpu.memory_space<vmem>>, vector<1x32xf32>
    %27 = vector.broadcast %26 : vector<1x32xf32> to vector<32x32xf32>
    %28 = arith.addf %25, %27 : vector<32x32xf32>
    %cst_18 = arith.constant 0.000000e+00 : f32
    %29 = vector.broadcast %cst_18 : f32 to vector<32x32xf32>
    %30 = arith.maximumf %28, %29 : vector<32x32xf32>
    %31 = arith.truncf %30 : vector<32x32xf32> to vector<32x32xbf16>
    %c0_19 = arith.constant 0 : index
    %c0_20 = arith.constant 0 : index
    %32 = vector.load %arg10[%c0_19, %c0_20] : memref<32x32xbf16, #tpu.memory_space<vmem>>, vector<32x32xbf16>
    %cst_21 = arith.constant dense<0.000000e+00> : vector<32x32xf32>
    %33 = tpu.matmul %31, %32, %cst_21 {dimension_numbers = #tpu.dot_dimension_numbers<[1], [0], [0], [1], [0, 0, 1, 1], [], []>} : vector<32x32xbf16>, vector<32x32xbf16>, vector<32x32xf32> -> vector<32x32xf32>
    %c0_22 = arith.constant 0 : index
    %c0_23 = arith.constant 0 : index
    %34 = vector.load %arg11[%c0_22, %c0_23] : memref<1x32xf32, #tpu.memory_space<vmem>>, vector<1x32xf32>
    %35 = vector.broadcast %34 : vector<1x32xf32> to vector<32x32xf32>
    %36 = arith.addf %33, %35 : vector<32x32xf32>
    %cst_24 = arith.constant 0.000000e+00 : f32
    %37 = vector.broadcast %cst_24 : f32 to vector<32x32xf32>
    %38 = arith.maximumf %36, %37 : vector<32x32xf32>
    %39 = arith.truncf %38 : vector<32x32xf32> to vector<32x32xbf16>
    %c0_25 = arith.constant 0 : index
    %c0_26 = arith.constant 0 : index
    %40 = vector.load %arg12[%c0_25, %c0_26] : memref<32x32xbf16, #tpu.memory_space<vmem>>, vector<32x32xbf16>
    %cst_27 = arith.constant dense<0.000000e+00> : vector<32x32xf32>
    %41 = tpu.matmul %39, %40, %cst_27 {dimension_numbers = #tpu.dot_dimension_numbers<[1], [0], [0], [1], [0, 0, 1, 1], [], []>} : vector<32x32xbf16>, vector<32x32xbf16>, vector<32x32xf32> -> vector<32x32xf32>
    %c0_28 = arith.constant 0 : index
    %c0_29 = arith.constant 0 : index
    %42 = vector.load %arg13[%c0_28, %c0_29] : memref<1x32xf32, #tpu.memory_space<vmem>>, vector<1x32xf32>
    %43 = vector.broadcast %42 : vector<1x32xf32> to vector<32x32xf32>
    %44 = arith.addf %41, %43 : vector<32x32xf32>
    %45 = vector.shape_cast %44 : vector<32x32xf32> to vector<4x8x32xf32>
    %c0_30 = arith.constant 0 : index
    %c0_31 = arith.constant 0 : index
    %46 = vector.load %arg16[%c0_30, %c0_31] : memref<8x32xf32, #tpu.memory_space<vmem>>, vector<8x32xf32>
    %cst_32 = arith.constant dense<0.000000e+00> : vector<8x32xf32>
    %47 = vector.multi_reduction <add>, %45, %cst_32 [0] : vector<4x8x32xf32> to vector<8x32xf32>
    %48 = arith.addf %46, %47 : vector<8x32xf32>
    %c0_33 = arith.constant 0 : index
    %c0_34 = arith.constant 0 : index
    %49 = vector.load %arg16[%c0_33, %c0_34] : memref<8x32xf32, #tpu.memory_space<vmem>>, vector<8x32xf32>
    tpu.vector_store %arg16[%c0_33, %c0_34], %48 {strides = array<i32>} : memref<8x32xf32, #tpu.memory_space<vmem>>, vector<8x32xf32>,
    %c0_35 = arith.constant 0 : index
    %c0_36 = arith.constant 0 : index
    %50 = vector.load %arg17[%c0_35, %c0_36] : memref<8x32xf32, #tpu.memory_space<vmem>>, vector<8x32xf32>
    %51 = arith.mulf %45, %45 : vector<4x8x32xf32>
    %cst_37 = arith.constant dense<0.000000e+00> : vector<8x32xf32>
    %52 = vector.multi_reduction <add>, %51, %cst_37 [0] : vector<4x8x32xf32> to vector<8x32xf32>
    %53 = arith.addf %50, %52 : vector<8x32xf32>
    %c0_38 = arith.constant 0 : index
    %c0_39 = arith.constant 0 : index
    %54 = vector.load %arg17[%c0_38, %c0_39] : memref<8x32xf32, #tpu.memory_space<vmem>>, vector<8x32xf32>
    tpu.vector_store %arg17[%c0_38, %c0_39], %53 {strides = array<i32>} : memref<8x32xf32, #tpu.memory_space<vmem>>, vector<8x32xf32>,
    %c0_i32_40 = arith.constant 0 : i32
    %55 = arith.cmpi eq, %arg2, %c0_i32_40 : i32
    %56 = arith.extui %55 : i1 to i32
    %c0_i32_41 = arith.constant 0 : i32
    %57 = arith.cmpi ne, %56, %c0_i32_41 : i32
    scf.if %57 {
      %c0_42 = arith.constant 0 : index
      %c0_43 = arith.constant 0 : index
      %58 = vector.load %arg16[%c0_42, %c0_43] : memref<8x32xf32, #tpu.memory_space<vmem>>, vector<8x32xf32>
      %cst_44 = arith.constant 4.000000e+00 : f32
      %59 = vector.broadcast %cst_44 : f32 to vector<8x32xf32>
      %60 = arith.divf %58, %59 : vector<8x32xf32>
      %c0_45 = arith.constant 0 : index
      %c0_46 = arith.constant 0 : index
      %61 = vector.load %arg17[%c0_45, %c0_46] : memref<8x32xf32, #tpu.memory_space<vmem>>, vector<8x32xf32>
      %cst_47 = arith.constant 4.000000e+00 : f32
      %62 = vector.broadcast %cst_47 : f32 to vector<8x32xf32>
      %63 = arith.mulf %62, %60 : vector<8x32xf32>
      %64 = arith.mulf %63, %60 : vector<8x32xf32>
      %65 = arith.subf %61, %64 : vector<8x32xf32>
      %cst_48 = arith.constant 0.000000e+00 : f32
      %66 = vector.broadcast %cst_48 : f32 to vector<8x32xf32>
      %67 = arith.maximumf %65, %66 : vector<8x32xf32>
      %cst_49 = arith.constant 3.000000e+00 : f32
      %68 = vector.broadcast %cst_49 : f32 to vector<8x32xf32>
      %69 = arith.divf %67, %68 : vector<8x32xf32>
      %70 = vector.shape_cast %60 : vector<8x32xf32> to vector<1x8x32xf32>
      %c0_50 = arith.constant 0 : index
      %c0_51 = arith.constant 0 : index
      %c0_52 = arith.constant 0 : index
      %71 = vector.load %arg14[%c0_50, %c0_51, %c0_52] : memref<1x8x32xf32, #tpu.memory_space<vmem>>, vector<1x8x32xf32>
      tpu.vector_store %arg14[%c0_50, %c0_51, %c0_52], %70 {strides = array<i32>} : memref<1x8x32xf32, #tpu.memory_space<vmem>>, vector<1x8x32xf32>,
      %72 = math.sqrt %69 : vector<8x32xf32>
      %73 = vector.shape_cast %72 : vector<8x32xf32> to vector<1x8x32xf32>
      %c0_53 = arith.constant 0 : index
      %c0_54 = arith.constant 0 : index
      %c0_55 = arith.constant 0 : index
      %74 = vector.load %arg15[%c0_53, %c0_54, %c0_55] : memref<1x8x32xf32, #tpu.memory_space<vmem>>, vector<1x8x32xf32>
      tpu.vector_store %arg15[%c0_53, %c0_54, %c0_55], %73 {strides = array<i32>} : memref<1x8x32xf32, #tpu.memory_space<vmem>>, vector<1x8x32xf32>,
    } else {
    }
    return
  }
  func.func @transform_0(%arg0: i32, %arg1: i32, %arg2: i32) -> (i32, i32) {
    %c0_i32 = arith.constant 0 : i32
    %c0_i32_0 = arith.constant 0 : i32
    return %arg1, %c0_i32 : i32, i32
  }
  func.func @transform_1(%arg0: i32, %arg1: i32, %arg2: i32) -> (i32, i32) {
    %c0_i32 = arith.constant 0 : i32
    %c0_i32_0 = arith.constant 0 : i32
    return %arg1, %c0_i32 : i32, i32
  }
  func.func @transform_2(%arg0: i32, %arg1: i32, %arg2: i32) -> (i32, i32, i32, i32) {
    %c0_i32 = arith.constant 0 : i32
    %c0_i32_0 = arith.constant 0 : i32
    return %arg0, %arg2, %arg1, %c0_i32 : i32, i32, i32, i32
  }
  func.func @transform_3(%arg0: i32, %arg1: i32, %arg2: i32) -> (i32, i32) {
    %c0_i32 = arith.constant 0 : i32
    %c0_i32_0 = arith.constant 0 : i32
    %c0_i32_1 = arith.constant 0 : i32
    return %c0_i32, %c0_i32_0 : i32, i32
  }
  func.func @transform_4(%arg0: i32, %arg1: i32, %arg2: i32) -> (i32, i32) {
    %c0_i32 = arith.constant 0 : i32
    %c0_i32_0 = arith.constant 0 : i32
    %c0_i32_1 = arith.constant 0 : i32
    return %c0_i32, %c0_i32_0 : i32, i32
  }
  func.func @transform_5(%arg0: i32, %arg1: i32, %arg2: i32) -> (i32, i32) {
    %c0_i32 = arith.constant 0 : i32
    %c0_i32_0 = arith.constant 0 : i32
    %c0_i32_1 = arith.constant 0 : i32
    return %c0_i32, %c0_i32_0 : i32, i32
  }
  func.func @transform_6(%arg0: i32, %arg1: i32, %arg2: i32) -> (i32, i32) {
    %c0_i32 = arith.constant 0 : i32
    %c0_i32_0 = arith.constant 0 : i32
    %c0_i32_1 = arith.constant 0 : i32
    return %c0_i32, %c0_i32_0 : i32, i32
  }
  func.func @transform_7(%arg0: i32, %arg1: i32, %arg2: i32) -> (i32, i32) {
    %c0_i32 = arith.constant 0 : i32
    %c0_i32_0 = arith.constant 0 : i32
    %c0_i32_1 = arith.constant 0 : i32
    return %c0_i32, %c0_i32_0 : i32, i32
  }
  func.func @transform_8(%arg0: i32, %arg1: i32, %arg2: i32) -> (i32, i32) {
    %c0_i32 = arith.constant 0 : i32
    %c0_i32_0 = arith.constant 0 : i32
    %c0_i32_1 = arith.constant 0 : i32
    return %c0_i32, %c0_i32_0 : i32, i32
  }
  func.func @transform_9(%arg0: i32, %arg1: i32, %arg2: i32) -> (i32, i32) {
    %c0_i32 = arith.constant 0 : i32
    %c0_i32_0 = arith.constant 0 : i32
    %c0_i32_1 = arith.constant 0 : i32
    return %c0_i32, %c0_i32_0 : i32, i32
  }
  func.func @transform_10(%arg0: i32, %arg1: i32, %arg2: i32) -> (i32, i32) {
    %c0_i32 = arith.constant 0 : i32
    %c0_i32_0 = arith.constant 0 : i32
    %c0_i32_1 = arith.constant 0 : i32
    return %c0_i32, %c0_i32_0 : i32, i32
  }
  func.func @transform_11(%arg0: i32, %arg1: i32, %arg2: i32) -> (i32, i32, i32) {
    %c0_i32 = arith.constant 0 : i32
    %c0_i32_0 = arith.constant 0 : i32
    return %arg0, %arg1, %c0_i32 : i32, i32, i32
  }
  func.func @transform_12(%arg0: i32, %arg1: i32, %arg2: i32) -> (i32, i32, i32) {
    %c0_i32 = arith.constant 0 : i32
    %c0_i32_0 = arith.constant 0 : i32
    return %arg0, %arg1, %c0_i32 : i32, i32, i32
  }
}

module attributes {stable_mosaic.version = 11 : i64} {
  func.func @_kl_kernel(%arg0: memref<16x32xf32, #tpu.memory_space<vmem>>, %arg1: memref<16x32xf32, #tpu.memory_space<vmem>>, %arg2: memref<3x16x32xf32, #tpu.memory_space<vmem>>, %arg3: memref<3x16x32xf32, #tpu.memory_space<vmem>>, %arg4: memref<3x16xf32, #tpu.memory_space<vmem>>) attributes {dimension_semantics = [], scalar_prefetch = 0 : i64, scratch_operands = 0 : i64, tpu.core_type = #tpu.core_type<tc>} {
    %c0 = arith.constant 0 : index
    %c0_0 = arith.constant 0 : index
    %0 = vector.load %arg1[%c0, %c0_0] : memref<16x32xf32, #tpu.memory_space<vmem>>, vector<16x32xf32>
    %c0_1 = arith.constant 0 : index
    %c0_2 = arith.constant 0 : index
    %1 = vector.load %arg0[%c0_1, %c0_2] : memref<16x32xf32, #tpu.memory_space<vmem>>, vector<16x32xf32>
    %c0_3 = arith.constant 0 : index
    %c0_4 = arith.constant 0 : index
    %c0_5 = arith.constant 0 : index
    %2 = vector.load %arg2[%c0_3, %c0_4, %c0_5] : memref<3x16x32xf32, #tpu.memory_space<vmem>>, vector<3x16x32xf32>
    %c0_6 = arith.constant 0 : index
    %c0_7 = arith.constant 0 : index
    %c0_8 = arith.constant 0 : index
    %3 = vector.load %arg3[%c0_6, %c0_7, %c0_8] : memref<3x16x32xf32, #tpu.memory_space<vmem>>, vector<3x16x32xf32>
    %4 = arith.mulf %0, %0 : vector<16x32xf32>
    %cst = arith.constant dense<0.000000e+00> : vector<16xf32>
    %5 = vector.multi_reduction <add>, %4, %cst [1] : vector<16x32xf32> to vector<16xf32>
    %6 = arith.mulf %3, %3 : vector<3x16x32xf32>
    %cst_9 = arith.constant dense<0.000000e+00> : vector<3x16xf32>
    %7 = vector.multi_reduction <add>, %6, %cst_9 [2] : vector<3x16x32xf32> to vector<3x16xf32>
    %8 = vector.shape_cast %0 : vector<16x32xf32> to vector<1x16x32xf32>
    %9 = vector.broadcast %8 : vector<1x16x32xf32> to vector<3x16x32xf32>
    %10 = arith.mulf %3, %9 : vector<3x16x32xf32>
    %cst_10 = arith.constant dense<0.000000e+00> : vector<3x16xf32>
    %11 = vector.multi_reduction <add>, %10, %cst_10 [2] : vector<3x16x32xf32> to vector<3x16xf32>
    %12 = vector.shape_cast %1 : vector<16x32xf32> to vector<1x16x32xf32>
    %13 = vector.broadcast %12 : vector<1x16x32xf32> to vector<3x16x32xf32>
    %14 = arith.subf %2, %13 : vector<3x16x32xf32>
    %15 = arith.mulf %14, %14 : vector<3x16x32xf32>
    %cst_11 = arith.constant dense<0.000000e+00> : vector<3x16xf32>
    %16 = vector.multi_reduction <add>, %15, %cst_11 [2] : vector<3x16x32xf32> to vector<3x16xf32>
    %17 = arith.mulf %3, %14 : vector<3x16x32xf32>
    %cst_12 = arith.constant dense<0.000000e+00> : vector<3x16xf32>
    %18 = vector.multi_reduction <add>, %17, %cst_12 [2] : vector<3x16x32xf32> to vector<3x16xf32>
    %cst_13 = arith.constant 4.000000e+00 : f32
    %19 = vector.broadcast %cst_13 : f32 to vector<3x16xf32>
    %20 = arith.addf %19, %7 : vector<3x16xf32>
    %cst_14 = arith.constant 1.000000e+00 : f32
    %21 = vector.broadcast %cst_14 : f32 to vector<16xf32>
    %22 = arith.addf %21, %5 : vector<16xf32>
    %23 = vector.shape_cast %22 : vector<16xf32> to vector<1x16xf32>
    %cst_15 = arith.constant 4.000000e+00 : f32
    %24 = vector.broadcast %cst_15 : f32 to vector<3x16xf32>
    %25 = arith.divf %7, %24 : vector<3x16xf32>
    %cst_16 = arith.constant 1.000000e+00 : f32
    %26 = vector.broadcast %cst_16 : f32 to vector<3x16xf32>
    %27 = arith.addf %26, %25 : vector<3x16xf32>
    %28 = vector.broadcast %23 : vector<1x16xf32> to vector<3x16xf32>
    %29 = arith.divf %28, %27 : vector<3x16xf32>
    %30 = math.log %29 : vector<3x16xf32>
    %31 = vector.shape_cast %5 : vector<16xf32> to vector<1x16xf32>
    %cst_17 = arith.constant 3.200000e+01 : f32
    %32 = vector.broadcast %cst_17 : f32 to vector<1x16xf32>
    %33 = arith.addf %32, %31 : vector<1x16xf32>
    %34 = arith.mulf %11, %11 : vector<3x16xf32>
    %35 = arith.addf %7, %34 : vector<3x16xf32>
    %36 = arith.divf %35, %20 : vector<3x16xf32>
    %37 = vector.broadcast %33 : vector<1x16xf32> to vector<3x16xf32>
    %38 = arith.subf %37, %36 : vector<3x16xf32>
    %39 = arith.mulf %18, %18 : vector<3x16xf32>
    %40 = arith.divf %39, %20 : vector<3x16xf32>
    %41 = arith.subf %16, %40 : vector<3x16xf32>
    %cst_18 = arith.constant 3.200000e+01 : f32
    %42 = vector.broadcast %cst_18 : f32 to vector<3x16xf32>
    %43 = arith.subf %30, %42 : vector<3x16xf32>
    %44 = arith.addf %43, %38 : vector<3x16xf32>
    %45 = arith.addf %44, %41 : vector<3x16xf32>
    %cst_19 = arith.constant 5.000000e-01 : f32
    %46 = vector.broadcast %cst_19 : f32 to vector<3x16xf32>
    %47 = arith.mulf %46, %45 : vector<3x16xf32>
    %c0_20 = arith.constant 0 : index
    %c0_21 = arith.constant 0 : index
    %48 = vector.load %arg4[%c0_20, %c0_21] : memref<3x16xf32, #tpu.memory_space<vmem>>, vector<3x16xf32>
    tpu.vector_store %arg4[%c0_20, %c0_21], %47 {strides = array<i32>} : memref<3x16xf32, #tpu.memory_space<vmem>>, vector<3x16xf32>,
    return
  }
}

</mosaic_0001>

<llo_original>
// kernel: gadnr_forward.6
$region0: #{gadnr_forward.6}
  #allocation0 [shape = 'u32[]', space=smem, size = 0x4, offset = 0x4, fixed_abs, tag = 'smem constant byte address 0x4 - core index']
  #allocation1 [shape = 'u32[144,128]{1,0:T(1,128)}', space=vmem, size = 0x12000, scoped, tag = 'internal scratch']
  %s0 = inlined_call_operand.vmem [shape: f32[16,24], index: 0, kind: input, shape index: {}]
  %s1 = inlined_call_operand.vmem [shape: bf16[24,32], index: 1, kind: input, shape index: {}]
  %s2 = inlined_call_operand.vmem [shape: f32[1,32], index: 2, kind: input, shape index: {}]
  %s3 = inlined_call_operand.vmem [shape: bf16[32,32], index: 3, kind: input, shape index: {}]
  %s4 = inlined_call_operand.vmem [shape: f32[16,32], index: 4, kind: output, shape index: {0}]
  %s5 = inlined_call_operand.vmem [shape: bf16[16,128], index: 5, kind: output, shape index: {1}]
  %6 = xla_tuple %s4, %s5
  %s7 = sld [smem:[#allocation0]]
  $region34: #{gadnr_forward.6} parent=0
    _
  %s9 = ssub.s32 1, %s7
  %s10 = scalar_select 0, %s9, %s7
  // Predicated region
  $region2: #{gadnr_forward.6} parent=0 // pred_check
    _
  $region3: #{gadnr_forward.6} parent=0 // pred_check_branch
    %12 = sbr.rel (0) target = $region5
  $region4: #{gadnr_forward.6} parent=0 // pred_region
    _
  $region5: #{gadnr_forward.6} parent=0 // pred_fallthru
    _
  // Predicated region
  $region6: #{gadnr_forward.6} parent=0 // pred_check
    _
  $region7: #{gadnr_forward.6} parent=0 // pred_check_branch
    %14 = sbr.rel (0) target = $region9
  $region8: #{gadnr_forward.6} parent=0 // pred_region
    _
  $region9: #{gadnr_forward.6} parent=0 // pred_fallthru
    _
  // Predicated region
  $region10: #{gadnr_forward.6} parent=0 // pred_check
    _
  $region11: #{gadnr_forward.6} parent=0 // pred_check_branch
    %16 = sbr.rel (0) target = $region13
  $region12: #{gadnr_forward.6} parent=0 // pred_region
    _
  $region13: #{gadnr_forward.6} parent=0 // pred_fallthru
    _
  // Predicated region
  $region14: #{gadnr_forward.6} parent=0 // pred_check
    _
  $region15: #{gadnr_forward.6} parent=0 // pred_check_branch
    %18 = sbr.rel (0) target = $region17
  $region16: #{gadnr_forward.6} parent=0 // pred_region
    _
  $region17: #{gadnr_forward.6} parent=0 // pred_fallthru
    _
  %v20 = vld [vmem:[%s0] sm:$0xff]
  %v21 = vld [vmem:[%s0 + $0x8] sm:$0xff]
  %v22 = vpack.c.bf16 %v21, %v20
  %v23 = vld [vmem:[%s1] sm:$0xf]
  %v24 = vld [vmem:[%s1 + $0x4] sm:$0xf]
  %v25 = vld [vmem:[%s1 + $0x8] sm:$0xf]
  %v26 = vld [vmem:[%s2] sm:$0x1]
  %v28 = vlaneseq
  %v29 = vshrl.u32 %v28, 7
  %v30 = vsub.s32 0, %v29
  %v31 = vrot.slane %v26, %v30
  %v36 = vunpack.c.l.b16 %v23
  %v37 = vunpack.c.l.b16 %v24
  %v38 = vunpack.c.l.b16 %v25
  %v39 = vpack.c.b16 %v37, %v36
  %v40 = vpack.c.b16 %v38, %v38
  %vm42 = vcmask 195584
  %v44 = vsel %vm42, %v22, 0
  %vm46 = vcmask 1043456
  %v48 = vsel %vm46, %v40, 0
  %50 = vmatprep.subr.bf16.mxu0 0
  %51 = vmatpush1.bf16.msra.mxu0 %v39
  %52 = vmatprep.subr.bf16.mxu0 0
  %53 = vmatpush1.bf16.msra.mxu0 %v48
  %54 = vmatprep.subr.bf16.mxu0 0
  %55 = vmatpush1.bf16.msra.mxu0 0
  %56 = vmatprep.subr.bf16.mxu0 0
  %57 = vmatpush1.bf16.msra.mxu0 0
  %58 = vmatprep.subr.bf16.mxu0 0
  %59 = vmatpush1.bf16.msra.mxu0 0
  %60 = vmatprep.subr.bf16.mxu0 0
  %61 = vmatpush1.bf16.msra.mxu0 0
  %62 = vmatprep.subr.bf16.mxu0 0
  %63 = vmatpush1.bf16.msra.mxu0 0
  %64 = vmatprep.subr.bf16.mxu0 0
  %65 = vmatpush1.bf16.msra.mxu0 0
  %66 = vmatprep.subr.bf16.mxu0 0
  %67 = vmatpush1.bf16.msra.mxu0 0
  %68 = vmatprep.subr.bf16.mxu0 0
  %69 = vmatpush1.bf16.msra.mxu0 0
  %70 = vmatprep.subr.bf16.mxu0 0
  %71 = vmatpush1.bf16.msra.mxu0 0
  %72 = vmatprep.subr.bf16.mxu0 0
  %73 = vmatpush1.bf16.msra.mxu0 0
  %74 = vmatprep.subr.bf16.mxu0 0
  %75 = vmatpush1.bf16.msra.mxu0 0
  %76 = vmatprep.subr.bf16.mxu0 0
  %77 = vmatpush1.bf16.msra.mxu0 0
  %78 = vmatprep.subr.bf16.mxu0 0
  %79 = vmatpush1.bf16.msra.mxu0 0
  %80 = vmatprep.subr.bf16.mxu0 0
  %81 = vmatpush1.bf16.msra.mxu0 0
  %82 = vmatprep.mubr.bf16.mxu0 0
  %83 = vmatmul.mubr.bf16.gmra.mrb[0].mxu0 %v44
  %v84 = vpop.f32.mrb[0].mxu0
  %v85 = vadd.f32 %v31, %v84
  %v86 = vpop.f32.mrb[0].mxu0
  %v87 = vpop.f32.mrb[0].mxu0
  %v88 = vadd.f32 %v31, %v87
  %v89 = vpop.f32.mrb[0].mxu0
  %90 = vdwg.mxu0
  %vm91 = vcmask 261120
  %92 = vst.msk [vmem:[%s4] sm:$0xff] %vm91, %v85
  %93 = vst.msk [vmem:[%s4 + $0x8] sm:$0xff] %vm91, %v88
  %v94 = vpack.c.bf16 %v88, %v85
  %v95 = vld [vmem:[%s3] sm:$0xf]
  %v96 = vld [vmem:[%s3 + $0x4] sm:$0xf]
  %v97 = vld [vmem:[%s3 + $0x8] sm:$0xf]
  %v98 = vld [vmem:[%s3 + $0xc] sm:$0xf]
  %v103 = vunpack.c.l.b16 %v95
  %v104 = vunpack.c.l.b16 %v96
  %v105 = vunpack.c.l.b16 %v97
  %v106 = vunpack.c.l.b16 %v98
  %v107 = vpack.c.b16 %v104, %v103
  %v108 = vpack.c.b16 %v106, %v105
  %v112 = vsel %vm91, %v94, 0
  %114 = vmatprep.subr.bf16.mxu0 0
  %115 = vmatpush1.bf16.msra.mxu0 %v107
  %116 = vmatprep.subr.bf16.mxu0 0
  %117 = vmatpush1.bf16.msra.mxu0 %v108
  %118 = vmatprep.subr.bf16.mxu0 0
  %119 = vmatpush1.bf16.msra.mxu0 0
  %120 = vmatprep.subr.bf16.mxu0 0
  %121 = vmatpush1.bf16.msra.mxu0 0
  %122 = vmatprep.subr.bf16.mxu0 0
  %123 = vmatpush1.bf16.msra.mxu0 0
  %124 = vmatprep.subr.bf16.mxu0 0
  %125 = vmatpush1.bf16.msra.mxu0 0
  %126 = vmatprep.subr.bf16.mxu0 0
  %127 = vmatpush1.bf16.msra.mxu0 0
  %128 = vmatprep.subr.bf16.mxu0 0
  %129 = vmatpush1.bf16.msra.mxu0 0
  %130 = vmatprep.subr.bf16.mxu0 0
  %131 = vmatpush1.bf16.msra.mxu0 0
  %132 = vmatprep.subr.bf16.mxu0 0
  %133 = vmatpush1.bf16.msra.mxu0 0
  %134 = vmatprep.subr.bf16.mxu0 0
  %135 = vmatpush1.bf16.msra.mxu0 0
  %136 = vmatprep.subr.bf16.mxu0 0
  %137 = vmatpush1.bf16.msra.mxu0 0
  %138 = vmatprep.subr.bf16.mxu0 0
  %139 = vmatpush1.bf16.msra.mxu0 0
  %140 = vmatprep.subr.bf16.mxu0 0
  %141 = vmatpush1.bf16.msra.mxu0 0
  %142 = vmatprep.subr.bf16.mxu0 0
  %143 = vmatpush1.bf16.msra.mxu0 0
  %144 = vmatprep.subr.bf16.mxu0 0
  %145 = vmatpush1.bf16.msra.mxu0 0
  %146 = vmatprep.mubr.bf16.mxu0 0
  %147 = vmatmul.mubr.bf16.gmra.mrb[0].mxu0 %v112
  %v148 = vpop.f32.mrb[0].mxu0
  %v149 = vadd.f32 0.0, %v148
  %v150 = vpop.f32.mrb[0].mxu0
  %v151 = vpop.f32.mrb[0].mxu0
  %v152 = vadd.f32 0.0, %v151
  %v153 = vpop.f32.mrb[0].mxu0
  %154 = vdwg.mxu0
  %v155 = vmul.f32 %v149, %v149
  %v156 = vmul.f32 %v152, %v152
  %159 = vrot.lane.b32.xlu0 %v149, 32
  %v160 = vpop.permute.xlu0 %159
  %161 = vrot.lane.b32.xlu0 %v152, 32
  %v162 = vpop.permute.xlu0 %161
  %167 = vrot.lane.b32.xlu0 %v155, 64
  %v168 = vpop.permute.xlu0 %167
  %169 = vrot.lane.b32.xlu0 %v156, 64
  %v170 = vpop.permute.xlu0 %169
  %v173 = vsel %vm91, %v85, %v160
  %v174 = vsel %vm91, %v88, %v162
  %vm175 = vcmask 523264
  %v176 = vsel %vm175, %v173, %v168
  %v177 = vsel %vm175, %v174, %v170
  %vm178 = vcmask 785408
  %v179 = vsel %vm178, %v176, 0.0
  %v180 = vsel %vm178, %v177, 0.0
  %v181 = vpack.c.bf16 %v180, %v179
  %v183 = vunpack.c.l.b16 %v181
  %v184 = vunpack.c.h.b16 %v181
  %v185 = vpack.c.b16 %v183, %v183
  %v186 = vpack.c.b16 %v184, %v184
  %189 = vst [vmem:[%s5] sm:$0xf] %v185
  %190 = vst [vmem:[%s5 + $0x4] sm:$0xf] %v186
  // Predicated region
  $region18: #{gadnr_forward.6} parent=0 // pred_check
    _
  $region19: #{gadnr_forward.6} parent=0 // pred_check_branch
    %192 = sbr.rel (0) target = $region21
  $region20: #{gadnr_forward.6} parent=0 // pred_region
    _
  $region21: #{gadnr_forward.6} parent=0 // pred_fallthru
    _
  // Predicated region
  $region22: #{gadnr_forward.6} parent=0 // pred_check
    _
  $region23: #{gadnr_forward.6} parent=0 // pred_check_branch
    %194 = sbr.rel (0) target = $region25
  $region24: #{gadnr_forward.6} parent=0 // pred_region
    _
  $region25: #{gadnr_forward.6} parent=0 // pred_fallthru
    _
  // Predicated region
  $region26: #{gadnr_forward.6} parent=0 // pred_check
    _
  $region27: #{gadnr_forward.6} parent=0 // pred_check_branch
    %196 = sbr.rel (0) target = $region29
  $region28: #{gadnr_forward.6} parent=0 // pred_region
    _
  $region29: #{gadnr_forward.6} parent=0 // pred_fallthru
    _
  // Predicated region
  $region30: #{gadnr_forward.6} parent=0 // pred_check
    _
  $region31: #{gadnr_forward.6} parent=0 // pred_check_branch
    %198 = sbr.rel (0) target = $region33
  $region32: #{gadnr_forward.6} parent=0 // pred_region
    _
  $region33: #{gadnr_forward.6} parent=0 // pred_fallthru
    _

// kernel: gadnr_forward.8
$region0: #{gadnr_forward.8}
  #allocation0 [shape = 'u32[]', space=smem, size = 0x4, offset = 0x4, fixed_abs, tag = 'smem constant byte address 0x4 - core index']
  #allocation1 [shape = 'u32[144,128]{1,0:T(1,128)}', space=vmem, size = 0x12000, scoped, tag = 'internal scratch']
  %s0 = inlined_call_operand.vmem [shape: f32[16,32], index: 0, kind: input, shape index: {}]
  %s1 = inlined_call_operand.vmem [shape: bf16[32,32], index: 1, kind: input, shape index: {}]
  %s2 = inlined_call_operand.vmem [shape: f32[1,32], index: 2, kind: input, shape index: {}]
  %s3 = inlined_call_operand.vmem [shape: f32[1,32], index: 3, kind: input, shape index: {}]
  %s4 = inlined_call_operand.vmem [shape: f32[1,32], index: 4, kind: input, shape index: {}]
  %s5 = inlined_call_operand.vmem [shape: bf16[32,32], index: 5, kind: input, shape index: {}]
  %s6 = inlined_call_operand.vmem [shape: f32[1,32], index: 6, kind: input, shape index: {}]
  %s7 = inlined_call_operand.vmem [shape: f32[16,32], index: 7, kind: output, shape index: {}]
  %s8 = sld [smem:[#allocation0]]
  $region38: #{gadnr_forward.8} parent=0
    _
  %s10 = ssub.s32 1, %s8
  %s11 = scalar_select 0, %s10, %s8
  // Predicated region
  $region2: #{gadnr_forward.8} parent=0 // pred_check
    _
  $region3: #{gadnr_forward.8} parent=0 // pred_check_branch
    %13 = sbr.rel (0) target = $region5
  $region4: #{gadnr_forward.8} parent=0 // pred_region
    _
  $region5: #{gadnr_forward.8} parent=0 // pred_fallthru
    _
  // Predicated region
  $region6: #{gadnr_forward.8} parent=0 // pred_check
    _
  $region7: #{gadnr_forward.8} parent=0 // pred_check_branch
    %15 = sbr.rel (0) target = $region9
  $region8: #{gadnr_forward.8} parent=0 // pred_region
    _
  $region9: #{gadnr_forward.8} parent=0 // pred_fallthru
    _
  // Predicated region
  $region10: #{gadnr_forward.8} parent=0 // pred_check
    _
  $region11: #{gadnr_forward.8} parent=0 // pred_check_branch
    %17 = sbr.rel (0) target = $region13
  $region12: #{gadnr_forward.8} parent=0 // pred_region
    _
  $region13: #{gadnr_forward.8} parent=0 // pred_fallthru
    _
  // Predicated region
  $region14: #{gadnr_forward.8} parent=0 // pred_check
    _
  $region15: #{gadnr_forward.8} parent=0 // pred_check_branch
    %19 = sbr.rel (0) target = $region17
  $region16: #{gadnr_forward.8} parent=0 // pred_region
    _
  $region17: #{gadnr_forward.8} parent=0 // pred_fallthru
    _
  // Predicated region
  $region18: #{gadnr_forward.8} parent=0 // pred_check
    _
  $region19: #{gadnr_forward.8} parent=0 // pred_check_branch
    %21 = sbr.rel (0) target = $region21
  $region20: #{gadnr_forward.8} parent=0 // pred_region
    _
  $region21: #{gadnr_forward.8} parent=0 // pred_fallthru
    _
  // Predicated region
  $region22: #{gadnr_forward.8} parent=0 // pred_check
    _
  $region23: #{gadnr_forward.8} parent=0 // pred_check_branch
    %23 = sbr.rel (0) target = $region25
  $region24: #{gadnr_forward.8} parent=0 // pred_region
    _
  $region25: #{gadnr_forward.8} parent=0 // pred_fallthru
    _
  // Predicated region
  $region26: #{gadnr_forward.8} parent=0 // pred_check
    _
  $region27: #{gadnr_forward.8} parent=0 // pred_check_branch
    %25 = sbr.rel (0) target = $region29
  $region28: #{gadnr_forward.8} parent=0 // pred_region
    _
  $region29: #{gadnr_forward.8} parent=0 // pred_fallthru
    _
  %v27 = vld [vmem:[%s0] sm:$0xff]
  %v28 = vld [vmem:[%s0 + $0x8] sm:$0xff]
  %v29 = vpack.c.bf16 %v28, %v27
  %v30 = vld [vmem:[%s1] sm:$0xf]
  %v31 = vld [vmem:[%s1 + $0x4] sm:$0xf]
  %v32 = vld [vmem:[%s1 + $0x8] sm:$0xf]
  %v33 = vld [vmem:[%s1 + $0xc] sm:$0xf]
  %v34 = vld [vmem:[%s2] sm:$0x1]
  %v36 = vlaneseq
  %v37 = vshrl.u32 %v36, 7
  %v38 = vsub.s32 0, %v37
  %v39 = vrot.slane %v34, %v38
  %v45 = vunpack.c.l.b16 %v30
  %v46 = vunpack.c.l.b16 %v31
  %v47 = vunpack.c.l.b16 %v32
  %v48 = vunpack.c.l.b16 %v33
  %v49 = vpack.c.b16 %v46, %v45
  %v50 = vpack.c.b16 %v48, %v47
  %vm53 = vcmask 261120
  %v55 = vsel %vm53, %v29, 0
  %57 = vmatprep.subr.bf16.mxu0 0
  %58 = vmatpush1.bf16.msra.mxu0 %v49
  %59 = vmatprep.subr.bf16.mxu0 0
  %60 = vmatpush1.bf16.msra.mxu0 %v50
  %61 = vmatprep.subr.bf16.mxu0 0
  %62 = vmatpush1.bf16.msra.mxu0 0
  %63 = vmatprep.subr.bf16.mxu0 0
  %64 = vmatpush1.bf16.msra.mxu0 0
  %65 = vmatprep.subr.bf16.mxu0 0
  %66 = vmatpush1.bf16.msra.mxu0 0
  %67 = vmatprep.subr.bf16.mxu0 0
  %68 = vmatpush1.bf16.msra.mxu0 0
  %69 = vmatprep.subr.bf16.mxu0 0
  %70 = vmatpush1.bf16.msra.mxu0 0
  %71 = vmatprep.subr.bf16.mxu0 0
  %72 = vmatpush1.bf16.msra.mxu0 0
  %73 = vmatprep.subr.bf16.mxu0 0
  %74 = vmatpush1.bf16.msra.mxu0 0
  %75 = vmatprep.subr.bf16.mxu0 0
  %76 = vmatpush1.bf16.msra.mxu0 0
  %77 = vmatprep.subr.bf16.mxu0 0
  %78 = vmatpush1.bf16.msra.mxu0 0
  %79 = vmatprep.subr.bf16.mxu0 0
  %80 = vmatpush1.bf16.msra.mxu0 0
  %81 = vmatprep.subr.bf16.mxu0 0
  %82 = vmatpush1.bf16.msra.mxu0 0
  %83 = vmatprep.subr.bf16.mxu0 0
  %84 = vmatpush1.bf16.msra.mxu0 0
  %85 = vmatprep.subr.bf16.mxu0 0
  %86 = vmatpush1.bf16.msra.mxu0 0
  %87 = vmatprep.subr.bf16.mxu0 0
  %88 = vmatpush1.bf16.msra.mxu0 0
  %89 = vmatprep.mubr.bf16.mxu0 0
  %90 = vmatmul.mubr.bf16.gmra.mrb[0].mxu0 %v55
  %v91 = vpop.f32.mrb[0].mxu0
  %v92 = vadd.f32 %v39, %v91
  %v93 = vpop.f32.mrb[0].mxu0
  %v94 = vpop.f32.mrb[0].mxu0
  %v95 = vadd.f32 %v39, %v94
  %v96 = vpop.f32.mrb[0].mxu0
  %97 = vdwg.mxu0
  %v98 = vsel %vm53, %v92, 0.0
  %v99 = vsel %vm53, %v95, 0.0
  %v100 = vadd.f32 %v98, %v99
  %v101 = vrot.slane %v100, 4
  %v102 = vadd.f32 %v100, %v101
  %v103 = vrot.slane %v102, 2
  %v104 = vadd.f32 %v102, %v103
  %v105 = vrot.slane %v104, 1
  %v106 = vadd.f32 %v104, %v105
  %v107 = vrcp.pop 16.0
  %v108 = vmul.f32 %v106, %v107
  %v109 = vsub.f32 %v92, %v108
  %v110 = vsub.f32 %v95, %v108
  %v111 = vmul.f32 %v109, %v109
  %v112 = vmul.f32 %v110, %v110
  %v113 = vsel %vm53, %v111, 0.0
  %v114 = vsel %vm53, %v112, 0.0
  %v115 = vadd.f32 %v113, %v114
  %v116 = vrot.slane %v115, 4
  %v117 = vadd.f32 %v115, %v116
  %v118 = vrot.slane %v117, 2
  %v119 = vadd.f32 %v117, %v118
  %v120 = vrot.slane %v119, 1
  %v121 = vadd.f32 %v119, %v120
  %v122 = vmul.f32 %v121, %v107
  %v123 = vadd.f32 %v122, 1e-05
  %v124 = vrsqrt.pop %v123
  %v125 = vmul.f32 %v109, %v124
  %v126 = vmul.f32 %v110, %v124
  %v127 = vld [vmem:[%s3] sm:$0x1]
  %v129 = vlaneseq
  %v130 = vshrl.u32 %v129, 7
  %v131 = vsub.s32 0, %v130
  %v132 = vrot.slane %v127, %v131
  %v134 = vmul.f32 %v125, %v132
  %v135 = vmul.f32 %v126, %v132
  %v136 = vld [vmem:[%s4] sm:$0x1]
  %v138 = vlaneseq
  %v139 = vshrl.u32 %v138, 7
  %v140 = vsub.s32 0, %v139
  %v141 = vrot.slane %v136, %v140
  %v143 = vadd.f32 %v134, %v141
  %v144 = vadd.f32 %v135, %v141
  %v145 = vmax.f32 %v143, 0.0
  %v146 = vmax.f32 %v144, 0.0
  %v147 = vpack.c.bf16 %v146, %v145
  %v148 = vld [vmem:[%s5] sm:$0xf]
  %v149 = vld [vmem:[%s5 + $0x4] sm:$0xf]
  %v150 = vld [vmem:[%s5 + $0x8] sm:$0xf]
  %v151 = vld [vmem:[%s5 + $0xc] sm:$0xf]
  %v152 = vld [vmem:[%s6] sm:$0x1]
  %v154 = vlaneseq
  %v155 = vshrl.u32 %v154, 7
  %v156 = vsub.s32 0, %v155
  %v157 = vrot.slane %v152, %v156
  %v163 = vunpack.c.l.b16 %v148
  %v164 = vunpack.c.l.b16 %v149
  %v165 = vunpack.c.l.b16 %v150
  %v166 = vunpack.c.l.b16 %v151
  %v167 = vpack.c.b16 %v164, %v163
  %v168 = vpack.c.b16 %v166, %v165
  %v172 = vsel %vm53, %v147, 0
  %174 = vmatprep.subr.bf16.mxu0 0
  %175 = vmatpush1.bf16.msra.mxu0 %v167
  %176 = vmatprep.subr.bf16.mxu0 0
  %177 = vmatpush1.bf16.msra.mxu0 %v168
  %178 = vmatprep.subr.bf16.mxu0 0
  %179 = vmatpush1.bf16.msra.mxu0 0
  %180 = vmatprep.subr.bf16.mxu0 0
  %181 = vmatpush1.bf16.msra.mxu0 0
  %182 = vmatprep.subr.bf16.mxu0 0
  %183 = vmatpush1.bf16.msra.mxu0 0
  %184 = vmatprep.subr.bf16.mxu0 0
  %185 = vmatpush1.bf16.msra.mxu0 0
  %186 = vmatprep.subr.bf16.mxu0 0
  %187 = vmatpush1.bf16.msra.mxu0 0
  %188 = vmatprep.subr.bf16.mxu0 0
  %189 = vmatpush1.bf16.msra.mxu0 0
  %190 = vmatprep.subr.bf16.mxu0 0
  %191 = vmatpush1.bf16.msra.mxu0 0
  %192 = vmatprep.subr.bf16.mxu0 0
  %193 = vmatpush1.bf16.msra.mxu0 0
  %194 = vmatprep.subr.bf16.mxu0 0
  %195 = vmatpush1.bf16.msra.mxu0 0
  %196 = vmatprep.subr.bf16.mxu0 0
  %197 = vmatpush1.bf16.msra.mxu0 0
  %198 = vmatprep.subr.bf16.mxu0 0
  %199 = vmatpush1.bf16.msra.mxu0 0
  %200 = vmatprep.subr.bf16.mxu0 0
  %201 = vmatpush1.bf16.msra.mxu0 0
  %202 = vmatprep.subr.bf16.mxu0 0
  %203 = vmatpush1.bf16.msra.mxu0 0
  %204 = vmatprep.subr.bf16.mxu0 0
  %205 = vmatpush1.bf16.msra.mxu0 0
  %206 = vmatprep.mubr.bf16.mxu0 0
  %207 = vmatmul.mubr.bf16.gmra.mrb[0].mxu0 %v172
  %v208 = vpop.f32.mrb[0].mxu0
  %v209 = vadd.f32 %v157, %v208
  %v210 = vpop.f32.mrb[0].mxu0
  %v211 = vpop.f32.mrb[0].mxu0
  %v212 = vadd.f32 %v157, %v211
  %v213 = vpop.f32.mrb[0].mxu0
  %214 = vdwg.mxu0
  %215 = vst.msk [vmem:[%s7] sm:$0xff] %vm53, %v209
  %216 = vst.msk [vmem:[%s7 + $0x8] sm:$0xff] %vm53, %v212
  // Predicated region
  $region30: #{gadnr_forward.8} parent=0 // pred_check
    _
  $region31: #{gadnr_forward.8} parent=0 // pred_check_branch
    %218 = sbr.rel (0) target = $region33
  $region32: #{gadnr_forward.8} parent=0 // pred_region
    _
  $region33: #{gadnr_forward.8} parent=0 // pred_fallthru
    _
  // Predicated region
  $region34: #{gadnr_forward.8} parent=0 // pred_check
    _
  $region35: #{gadnr_forward.8} parent=0 // pred_check_branch
    %220 = sbr.rel (0) target = $region37
  $region36: #{gadnr_forward.8} parent=0 // pred_region
    _
  $region37: #{gadnr_forward.8} parent=0 // pred_fallthru
    _

// kernel: gadnr_forward.7
$region0: #{gadnr_forward.7}
  #allocation0 [shape = 'u32[]', space=smem, size = 0x4, offset = 0x4, fixed_abs, tag = 'smem constant byte address 0x4 - core index']
  #allocation1 [shape = 'u32[144,128]{1,0:T(1,128)}', space=vmem, size = 0x12000, scoped, tag = 'internal scratch']
  #allocation2 [shape = 'f32[16,128]{1,0:T(8,128)}', space=vmem, size = 0x2000, scoped, tag = 'scratch operand']
  %s0 = inlined_call_operand.vmem [shape: f32[16,16], index: 0, kind: input, shape index: {}]
  %s1 = inlined_call_operand.vmem [shape: bf16[16,128], index: 1, kind: input, shape index: {}]
  %s2 = inlined_call_operand.vmem [shape: f32[16,32], index: 2, kind: input, shape index: {}]
  %s3 = inlined_call_operand.vmem [shape: f32[16,1], index: 3, kind: input, shape index: {}]
  %s4 = inlined_call_operand.vmem [shape: bf16[32,32], index: 4, kind: input, shape index: {}]
  %s5 = inlined_call_operand.vmem [shape: f32[1,32], index: 5, kind: input, shape index: {}]
  %s6 = inlined_call_operand.vmem [shape: bf16[32,32], index: 6, kind: input, shape index: {}]
  %s7 = inlined_call_operand.vmem [shape: bf16[32,32], index: 7, kind: input, shape index: {}]
  %s8 = inlined_call_operand.vmem [shape: bf16[32,32], index: 8, kind: input, shape index: {}]
  %s9 = inlined_call_operand.vmem [shape: f32[1,32], index: 9, kind: input, shape index: {}]
  %s10 = inlined_call_operand.vmem [shape: bf16[32,32], index: 10, kind: input, shape index: {}]
  %s11 = inlined_call_operand.vmem [shape: f32[1,32], index: 11, kind: input, shape index: {}]
  %s12 = inlined_call_operand.vmem [shape: f32[16,128], index: 12, kind: output, shape index: {}]
  %s13 = sld [smem:[#allocation0]]
  $region66: #{gadnr_forward.7} parent=0
    _
  %s15 = ssub.s32 1, %s13
  %s16 = scalar_select 0, %s15, %s13
  // Predicated region
  $region2: #{gadnr_forward.7} parent=0 // pred_check
    _
  $region3: #{gadnr_forward.7} parent=0 // pred_check_branch
    %18 = sbr.rel (0) target = $region5
  $region4: #{gadnr_forward.7} parent=0 // pred_region
    _
  $region5: #{gadnr_forward.7} parent=0 // pred_fallthru
    _
  // Predicated region
  $region6: #{gadnr_forward.7} parent=0 // pred_check
    _
  $region7: #{gadnr_forward.7} parent=0 // pred_check_branch
    %20 = sbr.rel (0) target = $region9
  $region8: #{gadnr_forward.7} parent=0 // pred_region
    _
  $region9: #{gadnr_forward.7} parent=0 // pred_fallthru
    _
  // Predicated region
  $region10: #{gadnr_forward.7} parent=0 // pred_check
    _
  $region11: #{gadnr_forward.7} parent=0 // pred_check_branch
    %22 = sbr.rel (0) target = $region13
  $region12: #{gadnr_forward.7} parent=0 // pred_region
    _
  $region13: #{gadnr_forward.7} parent=0 // pred_fallthru
    _
  // Predicated region
  $region14: #{gadnr_forward.7} parent=0 // pred_check
    _
  $region15: #{gadnr_forward.7} parent=0 // pred_check_branch
    %24 = sbr.rel (0) target = $region17
  $region16: #{gadnr_forward.7} parent=0 // pred_region
    _
  $region17: #{gadnr_forward.7} parent=0 // pred_fallthru
    _
  // Predicated region
  $region18: #{gadnr_forward.7} parent=0 // pred_check
    _
  $region19: #{gadnr_forward.7} parent=0 // pred_check_branch
    %26 = sbr.rel (0) target = $region21
  $region20: #{gadnr_forward.7} parent=0 // pred_region
    _
  $region21: #{gadnr_forward.7} parent=0 // pred_fallthru
    _
  // Predicated region
  $region22: #{gadnr_forward.7} parent=0 // pred_check
    _
  $region23: #{gadnr_forward.7} parent=0 // pred_check_branch
    %28 = sbr.rel (0) target = $region25
  $region24: #{gadnr_forward.7} parent=0 // pred_region
    _
  $region25: #{gadnr_forward.7} parent=0 // pred_fallthru
    _
  // Predicated region
  $region26: #{gadnr_forward.7} parent=0 // pred_check
    _
  $region27: #{gadnr_forward.7} parent=0 // pred_check_branch
    %30 = sbr.rel (0) target = $region29
  $region28: #{gadnr_forward.7} parent=0 // pred_region
    _
  $region29: #{gadnr_forward.7} parent=0 // pred_fallthru
    _
  // Predicated region
  $region30: #{gadnr_forward.7} parent=0 // pred_check
    _
  $region31: #{gadnr_forward.7} parent=0 // pred_check_branch
    %32 = sbr.rel (0) target = $region33
  $region32: #{gadnr_forward.7} parent=0 // pred_region
    _
  $region33: #{gadnr_forward.7} parent=0 // pred_fallthru
    _
  // Predicated region
  $region34: #{gadnr_forward.7} parent=0 // pred_check
    _
  $region35: #{gadnr_forward.7} parent=0 // pred_check_branch
    %34 = sbr.rel (0) target = $region37
  $region36: #{gadnr_forward.7} parent=0 // pred_region
    _
  $region37: #{gadnr_forward.7} parent=0 // pred_fallthru
    _
  // Predicated region
  $region38: #{gadnr_forward.7} parent=0 // pred_check
    _
  $region39: #{gadnr_forward.7} parent=0 // pred_check_branch
    %36 = sbr.rel (0) target = $region41
  $region40: #{gadnr_forward.7} parent=0 // pred_region
    _
  $region41: #{gadnr_forward.7} parent=0 // pred_fallthru
    _
  // Predicated region
  $region42: #{gadnr_forward.7} parent=0 // pred_check
    _
  $region43: #{gadnr_forward.7} parent=0 // pred_check_branch
    %38 = sbr.rel (0) target = $region45
  $region44: #{gadnr_forward.7} parent=0 // pred_region
    _
  $region45: #{gadnr_forward.7} parent=0 // pred_fallthru
    _
  // Predicated region
  $region46: #{gadnr_forward.7} parent=0 // pred_check
    _
  $region47: #{gadnr_forward.7} parent=0 // pred_check_branch
    %40 = sbr.rel (0) target = $region49
  $region48: #{gadnr_forward.7} parent=0 // pred_region
    _
  $region49: #{gadnr_forward.7} parent=0 // pred_fallthru
    _
  %p42 = scmp.eq.s32.totalorder 0, 0
  // Predicated region
  $region50: #{gadnr_forward.7} parent=0 // pred_check
    %p43 = pneg %p42
  $region51: #{gadnr_forward.7} parent=0 // pred_check_branch
    %45 = sbr.rel (%p43) target = $region53
  $region52: #{gadnr_forward.7} parent=0 // pred_region
    %46 = vst [vmem:[#allocation2] sm:$0xff] 0.0
    %47 = vst [vmem:[#allocation2 + $0x8] sm:$0xff] 0.0
  $region53: #{gadnr_forward.7} parent=0 // pred_fallthru
    _
  %v48 = vld [vmem:[#allocation2] sm:$0xff]
  %v49 = vld [vmem:[#allocation2 + $0x8] sm:$0xff]
  %v50 = vld [vmem:[%s0] sm:$0xff]
  %v51 = vld [vmem:[%s0 + $0x8] sm:$0xff]
  %v52 = vpack.c.bf16 %v51, %v50
  %v53 = vld [vmem:[%s1] sm:$0xf]
  %v54 = vld [vmem:[%s1 + $0x4] sm:$0xf]
  %v57 = vunpack.c.l.b16 %v53
  %v58 = vunpack.c.l.b16 %v54
  %v59 = vpack.c.b16 %v58, %v57
  %vm61 = vcmask 130048
  %v63 = vsel %vm61, %v52, 0
  %65 = vmatprep.subr.bf16.mxu0 0
  %66 = vmatpush1.bf16.msra.mxu0 %v59
  %67 = vmatprep.subr.bf16.mxu0 0
  %68 = vmatpush1.bf16.msra.mxu0 0
  %69 = vmatprep.subr.bf16.mxu0 0
  %70 = vmatpush1.bf16.msra.mxu0 0
  %71 = vmatprep.subr.bf16.mxu0 0
  %72 = vmatpush1.bf16.msra.mxu0 0
  %73 = vmatprep.subr.bf16.mxu0 0
  %74 = vmatpush1.bf16.msra.mxu0 0
  %75 = vmatprep.subr.bf16.mxu0 0
  %76 = vmatpush1.bf16.msra.mxu0 0
  %77 = vmatprep.subr.bf16.mxu0 0
  %78 = vmatpush1.bf16.msra.mxu0 0
  %79 = vmatprep.subr.bf16.mxu0 0
  %80 = vmatpush1.bf16.msra.mxu0 0
  %81 = vmatprep.subr.bf16.mxu0 0
  %82 = vmatpush1.bf16.msra.mxu0 0
  %83 = vmatprep.subr.bf16.mxu0 0
  %84 = vmatpush1.bf16.msra.mxu0 0
  %85 = vmatprep.subr.bf16.mxu0 0
  %86 = vmatpush1.bf16.msra.mxu0 0
  %87 = vmatprep.subr.bf16.mxu0 0
  %88 = vmatpush1.bf16.msra.mxu0 0
  %89 = vmatprep.subr.bf16.mxu0 0
  %90 = vmatpush1.bf16.msra.mxu0 0
  %91 = vmatprep.subr.bf16.mxu0 0
  %92 = vmatpush1.bf16.msra.mxu0 0
  %93 = vmatprep.subr.bf16.mxu0 0
  %94 = vmatpush1.bf16.msra.mxu0 0
  %95 = vmatprep.subr.bf16.mxu0 0
  %96 = vmatpush1.bf16.msra.mxu0 0
  %97 = vmatprep.mubr.bf16.mxu0 0
  %98 = vmatmul.mubr.bf16.gmra.mrb[0].mxu0 %v63
  %v99 = vpop.f32.mrb[0].mxu0
  %v100 = vadd.f32 0.0, %v99
  %v101 = vpop.f32.mrb[0].mxu0
  %v102 = vpop.f32.mrb[0].mxu0
  %v103 = vadd.f32 0.0, %v102
  %v104 = vpop.f32.mrb[0].mxu0
  %105 = vdwg.mxu0
  %v106 = vadd.f32 %v48, %v100
  %v107 = vadd.f32 %v49, %v103
  %108 = vst [vmem:[#allocation2] sm:$0xff] %v106
  %109 = vst [vmem:[#allocation2 + $0x8] sm:$0xff] %v107
  // Predicated region
  $region54: #{gadnr_forward.7} parent=0 // pred_check
    %p110 = pneg %p42
  $region55: #{gadnr_forward.7} parent=0 // pred_check_branch
    %112 = sbr.rel (%p110) target = $region57
  $region56: #{gadnr_forward.7} parent=0 // pred_region
    %v113 = vld [vmem:[#allocation2] sm:$0xff]
    %v114 = vld [vmem:[#allocation2 + $0x8] sm:$0xff]
    %v115 = vld [vmem:[%s2] sm:$0xff]
    %v116 = vld [vmem:[%s2 + $0x8] sm:$0xff]
    %v117 = vld [vmem:[%s3] sm:$0xff]
    %v118 = vld [vmem:[%s3 + $0x8] sm:$0xff]
    %v119 = vrcp.pop %v117
    %v120 = vrcp.pop %v118
    %v121 = vrcp.pop %v117
    %v122 = vmul.f32 1.0, %v121
    %v123 = vrcp.pop %v118
    %v124 = vmul.f32 1.0, %v123
    %v125 = vadd.f32 %v113, %v115
    %v126 = vadd.f32 %v114, %v116
    %v127 = vpack.c.bf16 %v116, %v115
    %129 = vset.pattern.permute.xlu0 0
    %130 = vperm.xlu0 %129, %v119
    %v131 = vpop.permute.xlu0 %130
    %134 = vset.pattern.permute.xlu0 0
    %135 = vperm.xlu0 %134, %v120
    %v136 = vpop.permute.xlu0 %135
    %v138 = vmul.f32 %v113, %v131
    %v139 = vmul.f32 %v114, %v136
    %v140 = vpack.c.bf16 %v139, %v138
    %v141 = vld [vmem:[%s4] sm:$0xf]
    %v142 = vld [vmem:[%s4 + $0x4] sm:$0xf]
    %v143 = vld [vmem:[%s4 + $0x8] sm:$0xf]
    %v144 = vld [vmem:[%s4 + $0xc] sm:$0xf]
    %v145 = vld [vmem:[%s5] sm:$0x1]
    %v147 = vlaneseq
    %v148 = vshrl.u32 %v147, 7
    %v149 = vsub.s32 0, %v148
    %v150 = vrot.slane %v145, %v149
    %v156 = vunpack.c.l.b16 %v141
    %v157 = vunpack.c.l.b16 %v142
    %v158 = vunpack.c.l.b16 %v143
    %v159 = vunpack.c.l.b16 %v144
    %v160 = vpack.c.b16 %v157, %v156
    %v161 = vpack.c.b16 %v159, %v158
    %vm164 = vcmask 261120
    %v166 = vsel %vm164, %v140, 0
    %168 = vmatprep.subr.bf16.mxu0 0
    %169 = vmatpush1.bf16.msra.mxu0 %v160
    %170 = vmatprep.subr.bf16.mxu0 0
    %171 = vmatpush1.bf16.msra.mxu0 %v161
    %172 = vmatprep.subr.bf16.mxu0 0
    %173 = vmatpush1.bf16.msra.mxu0 0
    %174 = vmatprep.subr.bf16.mxu0 0
    %175 = vmatpush1.bf16.msra.mxu0 0
    %176 = vmatprep.subr.bf16.mxu0 0
    %177 = vmatpush1.bf16.msra.mxu0 0
    %178 = vmatprep.subr.bf16.mxu0 0
    %179 = vmatpush1.bf16.msra.mxu0 0
    %180 = vmatprep.subr.bf16.mxu0 0
    %181 = vmatpush1.bf16.msra.mxu0 0
    %182 = vmatprep.subr.bf16.mxu0 0
    %183 = vmatpush1.bf16.msra.mxu0 0
    %184 = vmatprep.subr.bf16.mxu0 0
    %185 = vmatpush1.bf16.msra.mxu0 0
    %186 = vmatprep.subr.bf16.mxu0 0
    %187 = vmatpush1.bf16.msra.mxu0 0
    %188 = vmatprep.subr.bf16.mxu0 0
    %189 = vmatpush1.bf16.msra.mxu0 0
    %190 = vmatprep.subr.bf16.mxu0 0
    %191 = vmatpush1.bf16.msra.mxu0 0
    %192 = vmatprep.subr.bf16.mxu0 0
    %193 = vmatpush1.bf16.msra.mxu0 0
    %194 = vmatprep.subr.bf16.mxu0 0
    %195 = vmatpush1.bf16.msra.mxu0 0
    %196 = vmatprep.subr.bf16.mxu0 0
    %197 = vmatpush1.bf16.msra.mxu0 0
    %198 = vmatprep.subr.bf16.mxu0 0
    %199 = vmatpush1.bf16.msra.mxu0 0
    %200 = vmatprep.mubr.bf16.mxu0 0
    %201 = vmatmul.mubr.bf16.gmra.mrb[0].mxu0 %v166
    %v202 = vpop.f32.mrb[0].mxu0
    %v203 = vadd.f32 %v150, %v202
    %v204 = vpop.f32.mrb[0].mxu0
    %v205 = vpop.f32.mrb[0].mxu0
    %v206 = vadd.f32 %v150, %v205
    %v207 = vpop.f32.mrb[0].mxu0
    %208 = vdwg.mxu0
    %v209 = vld [vmem:[%s6] sm:$0xf]
    %v210 = vld [vmem:[%s6 + $0x4] sm:$0xf]
    %v211 = vld [vmem:[%s6 + $0x8] sm:$0xf]
    %v212 = vld [vmem:[%s6 + $0xc] sm:$0xf]
    %v217 = vunpack.c.l.b16 %v209
    %v218 = vunpack.c.l.b16 %v210
    %v219 = vunpack.c.l.b16 %v211
    %v220 = vunpack.c.l.b16 %v212
    %v221 = vpack.c.b16 %v218, %v217
    %v222 = vpack.c.b16 %v220, %v219
    %v226 = vsel %vm164, %v127, 0
    %228 = vmatprep.subr.bf16.mxu0 0
    %229 = vmatpush1.bf16.msra.mxu0 %v221
    %230 = vmatprep.subr.bf16.mxu0 0
    %231 = vmatpush1.bf16.msra.mxu0 %v222
    %232 = vmatprep.subr.bf16.mxu0 0
    %233 = vmatpush1.bf16.msra.mxu0 0
    %234 = vmatprep.subr.bf16.mxu0 0
    %235 = vmatpush1.bf16.msra.mxu0 0
    %236 = vmatprep.subr.bf16.mxu0 0
    %237 = vmatpush1.bf16.msra.mxu0 0
    %238 = vmatprep.subr.bf16.mxu0 0
    %239 = vmatpush1.bf16.msra.mxu0 0
    %240 = vmatprep.subr.bf16.mxu0 0
    %241 = vmatpush1.bf16.msra.mxu0 0
    %242 = vmatprep.subr.bf16.mxu0 0
    %243 = vmatpush1.bf16.msra.mxu0 0
    %244 = vmatprep.subr.bf16.mxu0 0
    %245 = vmatpush1.bf16.msra.mxu0 0
    %246 = vmatprep.subr.bf16.mxu0 0
    %247 = vmatpush1.bf16.msra.mxu0 0
    %248 = vmatprep.subr.bf16.mxu0 0
    %249 = vmatpush1.bf16.msra.mxu0 0
    %250 = vmatprep.subr.bf16.mxu0 0
    %251 = vmatpush1.bf16.msra.mxu0 0
    %252 = vmatprep.subr.bf16.mxu0 0
    %253 = vmatpush1.bf16.msra.mxu0 0
    %254 = vmatprep.subr.bf16.mxu0 0
    %255 = vmatpush1.bf16.msra.mxu0 0
    %256 = vmatprep.subr.bf16.mxu0 0
    %257 = vmatpush1.bf16.msra.mxu0 0
    %258 = vmatprep.subr.bf16.mxu0 0
    %259 = vmatpush1.bf16.msra.mxu0 0
    %260 = vmatprep.mubr.bf16.mxu0 0
    %261 = vmatmul.mubr.bf16.gmra.mrb[0].mxu0 %v226
    %v262 = vpop.f32.mrb[0].mxu0
    %v263 = vadd.f32 0.0, %v262
    %v264 = vpop.f32.mrb[0].mxu0
    %v265 = vpop.f32.mrb[0].mxu0
    %v266 = vadd.f32 0.0, %v265
    %v267 = vpop.f32.mrb[0].mxu0
    %268 = vdwg.mxu0
    %v269 = vadd.f32 %v203, %v263
    %v270 = vadd.f32 %v206, %v266
    %272 = vset.pattern.permute.xlu0 0
    %273 = vperm.xlu0 %272, %v122
    %v274 = vpop.permute.xlu0 %273
    %277 = vset.pattern.permute.xlu0 0
    %278 = vperm.xlu0 %277, %v124
    %v279 = vpop.permute.xlu0 %278
    %v281 = vmul.f32 %v113, %v274
    %v282 = vmul.f32 %v114, %v279
    %v283 = vmul.f32 %v281, %v281
    %v284 = vmul.f32 %v282, %v282
    %287 = vrot.lane.b32.xlu0 %v283, 32
    %v288 = vpop.permute.xlu0 %287
    %289 = vrot.lane.b32.xlu0 %v284, 32
    %v290 = vpop.permute.xlu0 %289
    %v293 = vsub.f32 %v281, %v288
    %v294 = vsub.f32 %v282, %v290
    %v295 = vmax.f32 %v293, 0.0
    %v296 = vmax.f32 %v294, 0.0
    %v297 = vadd.f32 %v295, 1e-05
    %v298 = vadd.f32 %v296, 1e-05
    %v299 = vrsqrt.pop %v297
    %v300 = vmul.f32 %v297, %v299
    %vm301 = vcmp.eq.f32.partialorder %v297, inf
    %v302 = vsel %vm301, %v297, %v300
    %vm303 = vcmp.eq.f32.partialorder %v297, 0.0
    %v304 = vand.u32 %v297, 2147483648
    %v305 = vsel %vm303, %v304, %v302
    %v306 = vrsqrt.pop %v298
    %v307 = vmul.f32 %v298, %v306
    %vm308 = vcmp.eq.f32.partialorder %v298, inf
    %v309 = vsel %vm308, %v298, %v307
    %vm310 = vcmp.eq.f32.partialorder %v298, 0.0
    %v311 = vand.u32 %v298, 2147483648
    %v312 = vsel %vm310, %v311, %v309
    %v313 = vld [vmem:[%s7] sm:$0xf]
    %v314 = vld [vmem:[%s7 + $0x4] sm:$0xf]
    %v315 = vld [vmem:[%s7 + $0x8] sm:$0xf]
    %v316 = vld [vmem:[%s7 + $0xc] sm:$0xf]
    %v317 = vpack.c.bf16 %v312, %v305
    %v318 = vld [vmem:[%s8] sm:$0xf]
    %v319 = vld [vmem:[%s8 + $0x4] sm:$0xf]
    %v320 = vld [vmem:[%s8 + $0x8] sm:$0xf]
    %v321 = vld [vmem:[%s8 + $0xc] sm:$0xf]
    %323 = vrot.lane.b32.xlu0 %v317, 64
    %v324 = vpop.permute.xlu0 %323
    %v329 = vunpack.c.l.b16 %v318
    %v330 = vunpack.c.l.b16 %v319
    %v331 = vunpack.c.l.b16 %v320
    %v332 = vunpack.c.l.b16 %v321
    %v333 = vpack.c.b16 %v330, %v329
    %v334 = vpack.c.b16 %v332, %v331
    %v338 = vsel %vm164, %v324, 0
    %340 = vmatprep.subr.bf16.mxu0 0
    %341 = vmatpush1.bf16.msra.mxu0 %v333
    %342 = vmatprep.subr.bf16.mxu0 0
    %343 = vmatpush1.bf16.msra.mxu0 %v334
    %344 = vmatprep.subr.bf16.mxu0 0
    %345 = vmatpush1.bf16.msra.mxu0 0
    %346 = vmatprep.subr.bf16.mxu0 0
    %347 = vmatpush1.bf16.msra.mxu0 0
    %348 = vmatprep.subr.bf16.mxu0 0
    %349 = vmatpush1.bf16.msra.mxu0 0
    %350 = vmatprep.subr.bf16.mxu0 0
    %351 = vmatpush1.bf16.msra.mxu0 0
    %352 = vmatprep.subr.bf16.mxu0 0
    %353 = vmatpush1.bf16.msra.mxu0 0
    %354 = vmatprep.subr.bf16.mxu0 0
    %355 = vmatpush1.bf16.msra.mxu0 0
    %356 = vmatprep.subr.bf16.mxu0 0
    %357 = vmatpush1.bf16.msra.mxu0 0
    %358 = vmatprep.subr.bf16.mxu0 0
    %359 = vmatpush1.bf16.msra.mxu0 0
    %360 = vmatprep.subr.bf16.mxu0 0
    %361 = vmatpush1.bf16.msra.mxu0 0
    %362 = vmatprep.subr.bf16.mxu0 0
    %363 = vmatpush1.bf16.msra.mxu0 0
    %364 = vmatprep.subr.bf16.mxu0 0
    %365 = vmatpush1.bf16.msra.mxu0 0
    %366 = vmatprep.subr.bf16.mxu0 0
    %367 = vmatpush1.bf16.msra.mxu0 0
    %368 = vmatprep.subr.bf16.mxu0 0
    %369 = vmatpush1.bf16.msra.mxu0 0
    %370 = vmatprep.subr.bf16.mxu0 0
    %371 = vmatpush1.bf16.msra.mxu0 0
    %372 = vmatprep.mubr.bf16.mxu0 0
    %373 = vmatmul.mubr.bf16.gmra.mrb[0].mxu0 %v338
    %v374 = vpop.f32.mrb[0].mxu0
    %v375 = vadd.f32 0.0, %v374
    %v376 = vpop.f32.mrb[0].mxu0
    %v377 = vpop.f32.mrb[0].mxu0
    %v378 = vadd.f32 0.0, %v377
    %v379 = vpop.f32.mrb[0].mxu0
    %380 = vdwg.mxu0
    %v385 = vunpack.c.l.b16 %v313
    %v386 = vunpack.c.l.b16 %v314
    %v387 = vunpack.c.l.b16 %v315
    %v388 = vunpack.c.l.b16 %v316
    %v389 = vpack.c.b16 %v386, %v385
    %v390 = vpack.c.b16 %v388, %v387
    %393 = vmatprep.subr.bf16.mxu0 0
    %394 = vmatpush1.bf16.msra.mxu0 %v389
    %395 = vmatprep.subr.bf16.mxu0 0
    %396 = vmatpush1.bf16.msra.mxu0 %v390
    %397 = vmatprep.subr.bf16.mxu0 0
    %398 = vmatpush1.bf16.msra.mxu0 0
    %399 = vmatprep.subr.bf16.mxu0 0
    %400 = vmatpush1.bf16.msra.mxu0 0
    %401 = vmatprep.subr.bf16.mxu0 0
    %402 = vmatpush1.bf16.msra.mxu0 0
    %403 = vmatprep.subr.bf16.mxu0 0
    %404 = vmatpush1.bf16.msra.mxu0 0
    %405 = vmatprep.subr.bf16.mxu0 0
    %406 = vmatpush1.bf16.msra.mxu0 0
    %407 = vmatprep.subr.bf16.mxu0 0
    %408 = vmatpush1.bf16.msra.mxu0 0
    %409 = vmatprep.subr.bf16.mxu0 0
    %410 = vmatpush1.bf16.msra.mxu0 0
    %411 = vmatprep.subr.bf16.mxu0 0
    %412 = vmatpush1.bf16.msra.mxu0 0
    %413 = vmatprep.subr.bf16.mxu0 0
    %414 = vmatpush1.bf16.msra.mxu0 0
    %415 = vmatprep.subr.bf16.mxu0 0
    %416 = vmatpush1.bf16.msra.mxu0 0
    %417 = vmatprep.subr.bf16.mxu0 0
    %418 = vmatpush1.bf16.msra.mxu0 0
    %419 = vmatprep.subr.bf16.mxu0 0
    %420 = vmatpush1.bf16.msra.mxu0 0
    %421 = vmatprep.subr.bf16.mxu0 0
    %422 = vmatpush1.bf16.msra.mxu0 0
    %423 = vmatprep.subr.bf16.mxu0 0
    %424 = vmatpush1.bf16.msra.mxu0 0
    %425 = vmatprep.mubr.bf16.mxu0 0
    %426 = vmatmul.mubr.bf16.gmra.mrb[0].mxu0 %v226
    %v427 = vpop.f32.mrb[0].mxu0
    %v428 = vadd.f32 %v375, %v427
    %v429 = vpop.f32.mrb[0].mxu0
    %v430 = vpop.f32.mrb[0].mxu0
    %v431 = vadd.f32 %v378, %v430
    %v432 = vpop.f32.mrb[0].mxu0
    %433 = vdwg.mxu0
    %v434 = vld [vmem:[%s9] sm:$0x1]
    %v436 = vlaneseq
    %v437 = vshrl.u32 %v436, 7
    %v438 = vsub.s32 0, %v437
    %v439 = vrot.slane %v434, %v438
    %v441 = vadd.f32 %v428, %v439
    %v442 = vadd.f32 %v431, %v439
    %v443 = vpack.c.bf16 %v442, %v441
    %v444 = vld [vmem:[%s10] sm:$0xf]
    %v445 = vld [vmem:[%s10 + $0x4] sm:$0xf]
    %v446 = vld [vmem:[%s10 + $0x8] sm:$0xf]
    %v447 = vld [vmem:[%s10 + $0xc] sm:$0xf]
    %v448 = vld [vmem:[%s11] sm:$0x1]
    %v450 = vlaneseq
    %v451 = vshrl.u32 %v450, 7
    %v452 = vsub.s32 0, %v451
    %v453 = vrot.slane %v448, %v452
    %v459 = vunpack.c.l.b16 %v444
    %v460 = vunpack.c.l.b16 %v445
    %v461 = vunpack.c.l.b16 %v446
    %v462 = vunpack.c.l.b16 %v447
    %v463 = vpack.c.b16 %v460, %v459
    %v464 = vpack.c.b16 %v462, %v461
    %v468 = vsel %vm164, %v443, 0
    %470 = vmatprep.subr.bf16.mxu0 0
    %471 = vmatpush1.bf16.msra.mxu0 %v463
    %472 = vmatprep.subr.bf16.mxu0 0
    %473 = vmatpush1.bf16.msra.mxu0 %v464
    %474 = vmatprep.subr.bf16.mxu0 0
    %475 = vmatpush1.bf16.msra.mxu0 0
    %476 = vmatprep.subr.bf16.mxu0 0
    %477 = vmatpush1.bf16.msra.mxu0 0
    %478 = vmatprep.subr.bf16.mxu0 0
    %479 = vmatpush1.bf16.msra.mxu0 0
    %480 = vmatprep.subr.bf16.mxu0 0
    %481 = vmatpush1.bf16.msra.mxu0 0
    %482 = vmatprep.subr.bf16.mxu0 0
    %483 = vmatpush1.bf16.msra.mxu0 0
    %484 = vmatprep.subr.bf16.mxu0 0
    %485 = vmatpush1.bf16.msra.mxu0 0
    %486 = vmatprep.subr.bf16.mxu0 0
    %487 = vmatpush1.bf16.msra.mxu0 0
    %488 = vmatprep.subr.bf16.mxu0 0
    %489 = vmatpush1.bf16.msra.mxu0 0
    %490 = vmatprep.subr.bf16.mxu0 0
    %491 = vmatpush1.bf16.msra.mxu0 0
    %492 = vmatprep.subr.bf16.mxu0 0
    %493 = vmatpush1.bf16.msra.mxu0 0
    %494 = vmatprep.subr.bf16.mxu0 0
    %495 = vmatpush1.bf16.msra.mxu0 0
    %496 = vmatprep.subr.bf16.mxu0 0
    %497 = vmatpush1.bf16.msra.mxu0 0
    %498 = vmatprep.subr.bf16.mxu0 0
    %499 = vmatpush1.bf16.msra.mxu0 0
    %500 = vmatprep.subr.bf16.mxu0 0
    %501 = vmatpush1.bf16.msra.mxu0 0
    %502 = vmatprep.mubr.bf16.mxu0 0
    %503 = vmatmul.mubr.bf16.gmra.mrb[0].mxu0 %v468
    %v504 = vpop.f32.mrb[0].mxu0
    %v505 = vadd.f32 %v453, %v504
    %v506 = vpop.f32.mrb[0].mxu0
    %v507 = vpop.f32.mrb[0].mxu0
    %v508 = vadd.f32 %v453, %v507
    %v509 = vpop.f32.mrb[0].mxu0
    %510 = vdwg.mxu0
    %513 = vrot.lane.b32.xlu0 %v269, 32
    %v514 = vpop.permute.xlu0 %513
    %515 = vrot.lane.b32.xlu0 %v270, 32
    %v516 = vpop.permute.xlu0 %515
    %521 = vrot.lane.b32.xlu0 %v505, 64
    %v522 = vpop.permute.xlu0 %521
    %523 = vrot.lane.b32.xlu0 %v508, 64
    %v524 = vpop.permute.xlu0 %523
    %v527 = vsel %vm164, %v125, %v514
    %v528 = vsel %vm164, %v126, %v516
    %vm529 = vcmask 523264
    %v530 = vsel %vm529, %v527, %v522
    %v531 = vsel %vm529, %v528, %v524
    %vm532 = vcmask 785408
    %v533 = vsel %vm532, %v530, 0.0
    %v534 = vsel %vm532, %v531, 0.0
    %535 = vst [vmem:[%s12] sm:$0xff] %v533
    %536 = vst [vmem:[%s12 + $0x8] sm:$0xff] %v534
  $region57: #{gadnr_forward.7} parent=0 // pred_fallthru
    _
  // Predicated region
  $region58: #{gadnr_forward.7} parent=0 // pred_check
    _
  $region59: #{gadnr_forward.7} parent=0 // pred_check_branch
    %538 = sbr.rel (0) target = $region61
  $region60: #{gadnr_forward.7} parent=0 // pred_region
    _
  $region61: #{gadnr_forward.7} parent=0 // pred_fallthru
    _
  // Predicated region
  $region62: #{gadnr_forward.7} parent=0 // pred_check
    _
  $region63: #{gadnr_forward.7} parent=0 // pred_check_branch
    %540 = sbr.rel (0) target = $region65
  $region64: #{gadnr_forward.7} parent=0 // pred_region
    _
  $region65: #{gadnr_forward.7} parent=0 // pred_fallthru
    _

// kernel: gadnr_forward.11
$region0: #{gadnr_forward.11}
  #allocation0 [shape = 'u32[]', space=smem, size = 0x4, offset = 0x4, fixed_abs, tag = 'smem constant byte address 0x4 - core index']
  #allocation1 [shape = 'u32[144,128]{1,0:T(1,128)}', space=vmem, size = 0x12000, scoped, tag = 'internal scratch']
  %s0 = inlined_call_operand.vmem [shape: f32[16,32], index: 0, kind: input, shape index: {}]
  %s1 = inlined_call_operand.vmem [shape: f32[16,32], index: 1, kind: input, shape index: {}]
  %s2 = inlined_call_operand.vmem [shape: f32[3,16,32], index: 2, kind: input, shape index: {}]
  %s3 = inlined_call_operand.vmem [shape: f32[3,16,32], index: 3, kind: input, shape index: {}]
  %s4 = inlined_call_operand.vmem [shape: f32[3,16], index: 4, kind: output, shape index: {}]
  %s5 = sld [smem:[#allocation0]]
  $region26: #{gadnr_forward.11} parent=0
    _
  %s7 = ssub.s32 1, %s5
  %s8 = scalar_select 0, %s7, %s5
  // Predicated region
  $region2: #{gadnr_forward.11} parent=0 // pred_check
    _
  $region3: #{gadnr_forward.11} parent=0 // pred_check_branch
    %10 = sbr.rel (0) target = $region5
  $region4: #{gadnr_forward.11} parent=0 // pred_region
    _
  $region5: #{gadnr_forward.11} parent=0 // pred_fallthru
    _
  // Predicated region
  $region6: #{gadnr_forward.11} parent=0 // pred_check
    _
  $region7: #{gadnr_forward.11} parent=0 // pred_check_branch
    %12 = sbr.rel (0) target = $region9
  $region8: #{gadnr_forward.11} parent=0 // pred_region
    _
  $region9: #{gadnr_forward.11} parent=0 // pred_fallthru
    _
  // Predicated region
  $region10: #{gadnr_forward.11} parent=0 // pred_check
    _
  $region11: #{gadnr_forward.11} parent=0 // pred_check_branch
    %14 = sbr.rel (0) target = $region13
  $region12: #{gadnr_forward.11} parent=0 // pred_region
    _
  $region13: #{gadnr_forward.11} parent=0 // pred_fallthru
    _
  // Predicated region
  $region14: #{gadnr_forward.11} parent=0 // pred_check
    _
  $region15: #{gadnr_forward.11} parent=0 // pred_check_branch
    %16 = sbr.rel (0) target = $region17
  $region16: #{gadnr_forward.11} parent=0 // pred_region
    _
  $region17: #{gadnr_forward.11} parent=0 // pred_fallthru
    _
  %v17 = vld [vmem:[%s1] sm:$0xff]
  %v18 = vld [vmem:[%s1 + $0x8] sm:$0xff]
  %v19 = vld [vmem:[%s0] sm:$0xff]
  %v20 = vld [vmem:[%s0 + $0x8] sm:$0xff]
  %v21 = vld [vmem:[%s2] sm:$0xff]
  %v22 = vld [vmem:[%s2 + $0x8] sm:$0xff]
  %v23 = vld [vmem:[%s2 + $0x10] sm:$0xff]
  %v24 = vld [vmem:[%s2 + $0x18] sm:$0xff]
  %v25 = vld [vmem:[%s2 + $0x20] sm:$0xff]
  %v26 = vld [vmem:[%s2 + $0x28] sm:$0xff]
  %v27 = vld [vmem:[%s3] sm:$0xff]
  %v28 = vld [vmem:[%s3 + $0x8] sm:$0xff]
  %v29 = vld [vmem:[%s3 + $0x10] sm:$0xff]
  %v30 = vld [vmem:[%s3 + $0x18] sm:$0xff]
  %v31 = vld [vmem:[%s3 + $0x20] sm:$0xff]
  %v32 = vld [vmem:[%s3 + $0x28] sm:$0xff]
  %v33 = vmul.f32 %v17, %v17
  %v34 = vmul.f32 %v18, %v18
  %vm35 = vcmask 261120
  %v36 = vsel %vm35, %v33, 0.0
  %37 = vadd.xlane.f32.xlu0 %v36
  %v38 = vpop.xlane.xlu0 %37
  %v39 = vsel %vm35, %v34, 0.0
  %40 = vadd.xlane.f32.xlu0 %v39
  %v41 = vpop.xlane.xlu0 %40
  %v42 = vmul.f32 %v27, %v27
  %v43 = vmul.f32 %v28, %v28
  %v44 = vmul.f32 %v29, %v29
  %v45 = vmul.f32 %v30, %v30
  %v46 = vmul.f32 %v31, %v31
  %v47 = vmul.f32 %v32, %v32
  %v48 = vsel %vm35, %v42, 0.0
  %49 = vadd.xlane.f32.xlu0 %v48
  %v50 = vpop.xlane.xlu0 %49
  %v51 = vsel %vm35, %v43, 0.0
  %52 = vadd.xlane.f32.xlu0 %v51
  %v53 = vpop.xlane.xlu0 %52
  %v54 = vsel %vm35, %v44, 0.0
  %55 = vadd.xlane.f32.xlu0 %v54
  %v56 = vpop.xlane.xlu0 %55
  %v57 = vsel %vm35, %v45, 0.0
  %58 = vadd.xlane.f32.xlu0 %v57
  %v59 = vpop.xlane.xlu0 %58
  %v60 = vsel %vm35, %v46, 0.0
  %61 = vadd.xlane.f32.xlu0 %v60
  %v62 = vpop.xlane.xlu0 %61
  %v63 = vsel %vm35, %v47, 0.0
  %64 = vadd.xlane.f32.xlu0 %v63
  %v65 = vpop.xlane.xlu0 %64
  %v66 = vmul.f32 %v27, %v17
  %v67 = vmul.f32 %v28, %v18
  %v68 = vmul.f32 %v29, %v17
  %v69 = vmul.f32 %v30, %v18
  %v70 = vmul.f32 %v31, %v17
  %v71 = vmul.f32 %v32, %v18
  %v72 = vsel %vm35, %v66, 0.0
  %73 = vadd.xlane.f32.xlu0 %v72
  %v74 = vpop.xlane.xlu0 %73
  %v75 = vsel %vm35, %v67, 0.0
  %76 = vadd.xlane.f32.xlu0 %v75
  %v77 = vpop.xlane.xlu0 %76
  %v78 = vsel %vm35, %v68, 0.0
  %79 = vadd.xlane.f32.xlu0 %v78
  %v80 = vpop.xlane.xlu0 %79
  %v81 = vsel %vm35, %v69, 0.0
  %82 = vadd.xlane.f32.xlu0 %v81
  %v83 = vpop.xlane.xlu0 %82
  %v84 = vsel %vm35, %v70, 0.0
  %85 = vadd.xlane.f32.xlu0 %v84
  %v86 = vpop.xlane.xlu0 %85
  %v87 = vsel %vm35, %v71, 0.0
  %88 = vadd.xlane.f32.xlu0 %v87
  %v89 = vpop.xlane.xlu0 %88
  %v90 = vsub.f32 %v21, %v19
  %v91 = vsub.f32 %v22, %v20
  %v92 = vsub.f32 %v23, %v19
  %v93 = vsub.f32 %v24, %v20
  %v94 = vsub.f32 %v25, %v19
  %v95 = vsub.f32 %v26, %v20
  %v96 = vmul.f32 %v90, %v90
  %v97 = vmul.f32 %v91, %v91
  %v98 = vmul.f32 %v92, %v92
  %v99 = vmul.f32 %v93, %v93
  %v100 = vmul.f32 %v94, %v94
  %v101 = vmul.f32 %v95, %v95
  %v102 = vsel %vm35, %v96, 0.0
  %103 = vadd.xlane.f32.xlu0 %v102
  %v104 = vpop.xlane.xlu0 %103
  %v105 = vsel %vm35, %v97, 0.0
  %106 = vadd.xlane.f32.xlu0 %v105
  %v107 = vpop.xlane.xlu0 %106
  %v108 = vsel %vm35, %v98, 0.0
  %109 = vadd.xlane.f32.xlu0 %v108
  %v110 = vpop.xlane.xlu0 %109
  %v111 = vsel %vm35, %v99, 0.0
  %112 = vadd.xlane.f32.xlu0 %v111
  %v113 = vpop.xlane.xlu0 %112
  %v114 = vsel %vm35, %v100, 0.0
  %115 = vadd.xlane.f32.xlu0 %v114
  %v116 = vpop.xlane.xlu0 %115
  %v117 = vsel %vm35, %v101, 0.0
  %118 = vadd.xlane.f32.xlu0 %v117
  %v119 = vpop.xlane.xlu0 %118
  %v120 = vmul.f32 %v27, %v90
  %v121 = vmul.f32 %v28, %v91
  %v122 = vmul.f32 %v29, %v92
  %v123 = vmul.f32 %v30, %v93
  %v124 = vmul.f32 %v31, %v94
  %v125 = vmul.f32 %v32, %v95
  %v126 = vsel %vm35, %v120, 0.0
  %127 = vadd.xlane.f32.xlu0 %v126
  %v128 = vpop.xlane.xlu0 %127
  %v129 = vsel %vm35, %v121, 0.0
  %130 = vadd.xlane.f32.xlu0 %v129
  %v131 = vpop.xlane.xlu0 %130
  %v132 = vsel %vm35, %v122, 0.0
  %133 = vadd.xlane.f32.xlu0 %v132
  %v134 = vpop.xlane.xlu0 %133
  %v135 = vsel %vm35, %v123, 0.0
  %136 = vadd.xlane.f32.xlu0 %v135
  %v137 = vpop.xlane.xlu0 %136
  %v138 = vsel %vm35, %v124, 0.0
  %139 = vadd.xlane.f32.xlu0 %v138
  %v140 = vpop.xlane.xlu0 %139
  %v141 = vsel %vm35, %v125, 0.0
  %142 = vadd.xlane.f32.xlu0 %v141
  %v143 = vpop.xlane.xlu0 %142
  %v144 = vadd.f32 %v50, 4.0
  %v145 = vadd.f32 %v53, 4.0
  %v146 = vadd.f32 %v56, 4.0
  %v147 = vadd.f32 %v59, 4.0
  %v148 = vadd.f32 %v62, 4.0
  %v149 = vadd.f32 %v65, 4.0
  %v150 = vadd.f32 %v38, 1.0
  %v151 = vadd.f32 %v41, 1.0
  %v152 = vrcp.pop 4.0
  %v153 = vmul.f32 %v50, %v152
  %v154 = vmul.f32 %v53, %v152
  %v155 = vmul.f32 %v56, %v152
  %v156 = vmul.f32 %v59, %v152
  %v157 = vmul.f32 %v62, %v152
  %v158 = vmul.f32 %v65, %v152
  %v159 = vadd.f32 %v153, 1.0
  %v160 = vadd.f32 %v154, 1.0
  %v161 = vadd.f32 %v155, 1.0
  %v162 = vadd.f32 %v156, 1.0
  %v163 = vadd.f32 %v157, 1.0
  %v164 = vadd.f32 %v158, 1.0
  %v165 = vrcp.pop %v159
  %v166 = vmul.f32 %v150, %v165
  %v167 = vrcp.pop %v160
  %v168 = vmul.f32 %v151, %v167
  %v169 = vrcp.pop %v161
  %v170 = vmul.f32 %v150, %v169
  %v171 = vrcp.pop %v162
  %v172 = vmul.f32 %v151, %v171
  %v173 = vrcp.pop %v163
  %v174 = vmul.f32 %v150, %v173
  %v175 = vrcp.pop %v164
  %v176 = vmul.f32 %v151, %v175
  %v177 = vlog2.pop %v166
  %v178 = vmul.f32 %v177, 0.6931472
  %v179 = vlog2.pop %v168
  %v180 = vmul.f32 %v179, 0.6931472
  %v181 = vlog2.pop %v170
  %v182 = vmul.f32 %v181, 0.6931472
  %v183 = vlog2.pop %v172
  %v184 = vmul.f32 %v183, 0.6931472
  %v185 = vlog2.pop %v174
  %v186 = vmul.f32 %v185, 0.6931472
  %v187 = vlog2.pop %v176
  %v188 = vmul.f32 %v187, 0.6931472
  %v189 = vadd.f32 %v38, 32.0
  %v190 = vadd.f32 %v41, 32.0
  %v191 = vmul.f32 %v74, %v74
  %v192 = vmul.f32 %v77, %v77
  %v193 = vmul.f32 %v80, %v80
  %v194 = vmul.f32 %v83, %v83
  %v195 = vmul.f32 %v86, %v86
  %v196 = vmul.f32 %v89, %v89
  %v197 = vadd.f32 %v50, %v191
  %v198 = vadd.f32 %v53, %v192
  %v199 = vadd.f32 %v56, %v193
  %v200 = vadd.f32 %v59, %v194
  %v201 = vadd.f32 %v62, %v195
  %v202 = vadd.f32 %v65, %v196
  %v203 = vrcp.pop %v144
  %v204 = vmul.f32 %v197, %v203
  %v205 = vrcp.pop %v145
  %v206 = vmul.f32 %v198, %v205
  %v207 = vrcp.pop %v146
  %v208 = vmul.f32 %v199, %v207
  %v209 = vrcp.pop %v147
  %v210 = vmul.f32 %v200, %v209
  %v211 = vrcp.pop %v148
  %v212 = vmul.f32 %v201, %v211
  %v213 = vrcp.pop %v149
  %v214 = vmul.f32 %v202, %v213
  %v215 = vsub.f32 %v189, %v204
  %v216 = vsub.f32 %v190, %v206
  %v217 = vsub.f32 %v189, %v208
  %v218 = vsub.f32 %v190, %v210
  %v219 = vsub.f32 %v189, %v212
  %v220 = vsub.f32 %v190, %v214
  %v221 = vmul.f32 %v128, %v128
  %v222 = vmul.f32 %v131, %v131
  %v223 = vmul.f32 %v134, %v134
  %v224 = vmul.f32 %v137, %v137
  %v225 = vmul.f32 %v140, %v140
  %v226 = vmul.f32 %v143, %v143
  %v227 = vmul.f32 %v221, %v203
  %v228 = vmul.f32 %v222, %v205
  %v229 = vmul.f32 %v223, %v207
  %v230 = vmul.f32 %v224, %v209
  %v231 = vmul.f32 %v225, %v211
  %v232 = vmul.f32 %v226, %v213
  %v233 = vsub.f32 %v104, %v227
  %v234 = vsub.f32 %v107, %v228
  %v235 = vsub.f32 %v110, %v229
  %v236 = vsub.f32 %v113, %v230
  %v237 = vsub.f32 %v116, %v231
  %v238 = vsub.f32 %v119, %v232
  %v239 = vsub.f32 %v178, 32.0
  %v240 = vsub.f32 %v180, 32.0
  %v241 = vsub.f32 %v182, 32.0
  %v242 = vsub.f32 %v184, 32.0
  %v243 = vsub.f32 %v186, 32.0
  %v244 = vsub.f32 %v188, 32.0
  %v245 = vadd.f32 %v239, %v215
  %v246 = vadd.f32 %v240, %v216
  %v247 = vadd.f32 %v241, %v217
  %v248 = vadd.f32 %v242, %v218
  %v249 = vadd.f32 %v243, %v219
  %v250 = vadd.f32 %v244, %v220
  %v251 = vadd.f32 %v245, %v233
  %v252 = vadd.f32 %v246, %v234
  %v253 = vadd.f32 %v247, %v235
  %v254 = vadd.f32 %v248, %v236
  %v255 = vadd.f32 %v249, %v237
  %v256 = vadd.f32 %v250, %v238
  %v257 = vmul.f32 %v251, 0.5
  %v258 = vmul.f32 %v252, 0.5
  %v259 = vmul.f32 %v253, 0.5
  %v260 = vmul.f32 %v254, 0.5
  %v261 = vmul.f32 %v255, 0.5
  %v262 = vmul.f32 %v256, 0.5
  %v269 = vlaneseq
  %v270 = vand.u32 %v269, 127
  %v271 = vlaneseq
  %v272 = vshrl.u32 %v271, 7
  %v273 = vsub.s32 %v270, %v272
  %v274 = vrot.slane %v257, %v273
  %v275 = vadd.s32 %v270, 4294967288
  %v276 = vlaneseq
  %v277 = vshrl.u32 %v276, 7
  %v278 = vsub.s32 %v275, %v277
  %v279 = vrot.slane %v258, %v278
  %vm280 = vcmask 130112
  %v281 = vsel %vm280, %v279, %v274
  %v282 = vlaneseq
  %v283 = vshrl.u32 %v282, 7
  %v284 = vsub.s32 %v270, %v283
  %v285 = vrot.slane %v259, %v284
  %v286 = vlaneseq
  %v287 = vshrl.u32 %v286, 7
  %v288 = vsub.s32 %v275, %v287
  %v289 = vrot.slane %v260, %v288
  %v290 = vsel %vm280, %v289, %v285
  %v291 = vlaneseq
  %v292 = vshrl.u32 %v291, 7
  %v293 = vsub.s32 %v270, %v292
  %v294 = vrot.slane %v261, %v293
  %v295 = vlaneseq
  %v296 = vshrl.u32 %v295, 7
  %v297 = vsub.s32 %v275, %v296
  %v298 = vrot.slane %v262, %v297
  %v299 = vsel %vm280, %v298, %v294
  %vm300 = vcmask 1041409
  %v301 = vsel %vm300, %v290, %v281
  %vm302 = vcmask 1042434
  %v303 = vsel %vm302, %v299, %v301
  %vm305 = vcmask 124928
  %306 = vst.msk [vmem:[%s4] sm:$0x7] %vm305, %v303
  // Predicated region
  $region18: #{gadnr_forward.11} parent=0 // pred_check
    _
  $region19: #{gadnr_forward.11} parent=0 // pred_check_branch
    %308 = sbr.rel (0) target = $region21
  $region20: #{gadnr_forward.11} parent=0 // pred_region
    _
  $region21: #{gadnr_forward.11} parent=0 // pred_fallthru
    _
  // Predicated region
  $region22: #{gadnr_forward.11} parent=0 // pred_check
    _
  $region23: #{gadnr_forward.11} parent=0 // pred_check_branch
    %310 = sbr.rel (0) target = $region25
  $region24: #{gadnr_forward.11} parent=0 // pred_region
    _
  $region25: #{gadnr_forward.11} parent=0 // pred_fallthru
    _

// kernel: gadnr_forward.10
$region0: #{gadnr_forward.10}
  #allocation0 [shape = 'u32[]', space=smem, size = 0x4, offset = 0x4, fixed_abs, tag = 'smem constant byte address 0x4 - core index']
  #allocation1 [shape = 'u32[144,128]{1,0:T(1,128)}', space=vmem, size = 0x12000, scoped, tag = 'internal scratch']
  #allocation2 [shape = 'f32[8,32]{1,0:T(8,128)}', space=vmem, size = 0x1000, scoped, tag = 'scratch operand']
  #allocation3 [shape = 'f32[8,32]{1,0:T(8,128)}', space=vmem, size = 0x1000, scoped, tag = 'scratch operand']
  %s0 = inlined_call_operand.vmem [shape: f32[16,32], index: 0, kind: input, shape index: {}]
  %s1 = inlined_call_operand.vmem [shape: f32[16,32], index: 1, kind: input, shape index: {}]
  %s2 = inlined_call_operand.vmem [shape: f32[3,4,16,32], index: 2, kind: input, shape index: {}]
  %s3 = inlined_call_operand.vmem [shape: bf16[32,32], index: 3, kind: input, shape index: {}]
  %s4 = inlined_call_operand.vmem [shape: f32[1,32], index: 4, kind: input, shape index: {}]
  %s5 = inlined_call_operand.vmem [shape: bf16[32,32], index: 5, kind: input, shape index: {}]
  %s6 = inlined_call_operand.vmem [shape: f32[1,32], index: 6, kind: input, shape index: {}]
  %s7 = inlined_call_operand.vmem [shape: bf16[32,32], index: 7, kind: input, shape index: {}]
  %s8 = inlined_call_operand.vmem [shape: f32[1,32], index: 8, kind: input, shape index: {}]
  %s9 = inlined_call_operand.vmem [shape: bf16[32,32], index: 9, kind: input, shape index: {}]
  %s10 = inlined_call_operand.vmem [shape: f32[1,32], index: 10, kind: input, shape index: {}]
  %s11 = inlined_call_operand.vmem [shape: f32[3,16,32], index: 11, kind: output, shape index: {0}]
  %s12 = inlined_call_operand.vmem [shape: f32[3,16,32], index: 12, kind: output, shape index: {1}]
  %13 = xla_tuple %s11, %s12
  %s14 = sld [smem:[#allocation0]]
  $region131: #{gadnr_forward.10} parent=0
    _
  %s16 = ssub.s32 1, %s14
  %s17 = scalar_select 0, %s16, %s14
  $region1: #{gadnr_forward.10} parent=0
    #allocation4 [shape = 'u8[32768]{0}', space=vmem, size = 0x8000, scoped, tag = 'input window, operand 2']
    loop: start=0, step=1, limit=8
    $region2: #{gadnr_forward.10} parent=1 // loop_pre_header
      _
    $region3: #{gadnr_forward.10} parent=1 // loop_header
      %s19 = sphi 0, %s23
      %p20 = scmp.ge.s32.totalorder %s19, 8
      %s26 = sphi 0, %s45
      %s27 = sphi 0, %s41
      %s28 = sphi 0, %s37
      %s29 = sphi 0, %s26
      %s30 = sphi 0, %s27
      %s31 = sphi 0, %s28
      %s32 = sphi 0, %s29
      %s33 = sphi 0, %s30
      %s34 = sphi 0, %s31
      %s48 = sphi 0, %s50
      %s51 = sphi 0, %s48
      %s52 = sphi 0, %s51
      %s68 = sphi 0, %s52
      %s74 = sphi 0, %s76
      %s77 = sphi 0, %s74
      %s78 = sphi 0, %s77
      %s94 = sphi 0, %s78
      %s104 = sphi 0, %s106
      %s107 = sphi 0, %s104
      %s108 = sphi 0, %s107
      %s124 = sphi 0, %s108
      %s128 = sphi 0, %s128
      %s130 = sphi 0, %s128
      %s131 = sphi 0, %s130
      %s145 = sphi 0, %s131
      %s149 = sphi 0, %s149
      %s151 = sphi 0, %s149
      %s152 = sphi 0, %s151
      %s166 = sphi 0, %s152
      %s170 = sphi 0, %s170
      %s172 = sphi 0, %s170
      %s173 = sphi 0, %s172
      %s187 = sphi 0, %s173
      %s191 = sphi 0, %s191
      %s193 = sphi 0, %s191
      %s194 = sphi 0, %s193
      %s208 = sphi 0, %s194
      %s212 = sphi 0, %s212
      %s214 = sphi 0, %s212
      %s215 = sphi 0, %s214
      %s229 = sphi 0, %s215
      %s233 = sphi 0, %s233
      %s235 = sphi 0, %s233
      %s236 = sphi 0, %s235
      %s250 = sphi 0, %s236
      %s254 = sphi 0, %s254
      %s256 = sphi 0, %s254
      %s257 = sphi 0, %s256
      %s271 = sphi 0, %s257
      %s275 = sphi 0, %s275
      %s277 = sphi 0, %s275
      %s278 = sphi 0, %s277
      %s292 = sphi 0, %s278
      %s300 = sphi 0, %s302
      %s303 = sphi 0, %s300
      %s304 = sphi 0, %s303
      %s320 = sphi 0, %s304
      %s328 = sphi 0, %s330
      %s331 = sphi 0, %s328
      %s332 = sphi 0, %s331
      %s348 = sphi 0, %s332
    $region4: #{gadnr_forward.10} parent=1 // loop_header_branch
      %22 = sbr.rel (%p20) target = $region8
    $region5: #{gadnr_forward.10} parent=1 // loop_body
      %s24 = ssub.s32 %s19, 1
      %s25 = ssub.s32 %s19, 2
      %s35 = sadd.s32 1, %s28
      %p36 = scmp.ge.s32.totalorder %s35, 1
      %s37 = scalar_select %p36, 0, %s35
      %s38 = sadd.s32 1, %s27
      %s39 = scalar_select %p36, %s38, %s27
      %p40 = scmp.ge.s32.totalorder %s39, 2
      %s41 = scalar_select %p40, 0, %s39
      %s42 = sadd.s32 1, %s26
      %s43 = scalar_select %p40, %s42, %s26
      %p44 = scmp.ge.s32.totalorder %s43, 3
      %s45 = scalar_select %p44, 0, %s43
      %s46 = ssub.s32 %s27, %s41
      %p47 = scmp.eq.s32.totalorder %s46, 0
      %s49 = sadd.s32 %s48, 1
      %s50 = scalar_select %p47, %s48, %s49
      %p53 = pneg %p47
      %p54 = scmp.eq.s32.totalorder %s19, 5
      %p55 = por %p53, %p54
      %p56 = scmp.ne.s32.totalorder %s48, %s51
      %p57 = scmp.eq.s32.totalorder %s19, 0
      %p58 = por %p56, %p57
      %p59 = scmp.ne.s32.totalorder %s48, %s51
      %p60 = scmp.eq.s32.totalorder %s24, 5
      %p61 = por %p59, %p60
      %p62 = scmp.ne.s32.totalorder %s51, %s52
      %p63 = scmp.eq.s32.totalorder %s24, 0
      %p64 = por %p62, %p63
      %p65 = scmp.ne.s32.totalorder %s51, %s52
      %p66 = scmp.eq.s32.totalorder %s25, 5
      %p67 = por %p65, %p66
      %p69 = scmp.ne.s32.totalorder %s52, %s68
      %p70 = scmp.eq.s32.totalorder %s25, 0
      %p71 = por %p69, %p70
      %s72 = ssub.s32 %s27, %s41
      %p73 = scmp.eq.s32.totalorder %s72, 0
      %s75 = sadd.s32 %s74, 1
      %s76 = scalar_select %p73, %s74, %s75
      %p79 = pneg %p73
      %p80 = scmp.eq.s32.totalorder %s19, 5
      %p81 = por %p79, %p80
      %p82 = scmp.ne.s32.totalorder %s74, %s77
      %p83 = scmp.eq.s32.totalorder %s19, 0
      %p84 = por %p82, %p83
      %p85 = scmp.ne.s32.totalorder %s74, %s77
      %p86 = scmp.eq.s32.totalorder %s24, 5
      %p87 = por %p85, %p86
      %p88 = scmp.ne.s32.totalorder %s77, %s78
      %p89 = scmp.eq.s32.totalorder %s24, 0
      %p90 = por %p88, %p89
      %p91 = scmp.ne.s32.totalorder %s77, %s78
      %p92 = scmp.eq.s32.totalorder %s25, 5
      %p93 = por %p91, %p92
      %p95 = scmp.ne.s32.totalorder %s78, %s94
      %p96 = scmp.eq.s32.totalorder %s25, 0
      %p97 = por %p95, %p96
      %s98 = ssub.s32 %s26, %s45
      %s99 = ssub.s32 %s28, %s37
      %s100 = sor.u32 %s98, %s99
      %s101 = ssub.s32 %s27, %s41
      %s102 = sor.u32 %s100, %s101
      %p103 = scmp.eq.s32.totalorder %s102, 0
      %s105 = sadd.s32 %s104, 1
      %s106 = scalar_select %p103, %s104, %s105
      %p109 = pneg %p103
      %p110 = scmp.eq.s32.totalorder %s19, 5
      %p111 = por %p109, %p110
      %p112 = scmp.ne.s32.totalorder %s104, %s107
      %p113 = scmp.eq.s32.totalorder %s19, 0
      %p114 = por %p112, %p113
      %p115 = scmp.ne.s32.totalorder %s104, %s107
      %p116 = scmp.eq.s32.totalorder %s24, 5
      %p117 = por %p115, %p116
      %p118 = scmp.ne.s32.totalorder %s107, %s108
      %p119 = scmp.eq.s32.totalorder %s24, 0
      %p120 = por %p118, %p119
      %p121 = scmp.ne.s32.totalorder %s107, %s108
      %p122 = scmp.eq.s32.totalorder %s25, 5
      %p123 = por %p121, %p122
      %p125 = scmp.ne.s32.totalorder %s108, %s124
      %p126 = scmp.eq.s32.totalorder %s25, 0
      %p127 = por %p125, %p126
      %s129 = sadd.s32 %s128, 1
      %p132 = scmp.eq.s32.totalorder %s19, 5
      %p133 = scmp.ne.s32.totalorder %s128, %s130
      %p134 = scmp.eq.s32.totalorder %s19, 0
      %p135 = por %p133, %p134
      %p136 = scmp.ne.s32.totalorder %s128, %s130
      %p137 = scmp.eq.s32.totalorder %s24, 5
      %p138 = por %p136, %p137
      %p139 = scmp.ne.s32.totalorder %s130, %s131
      %p140 = scmp.eq.s32.totalorder %s24, 0
      %p141 = por %p139, %p140
      %p142 = scmp.ne.s32.totalorder %s130, %s131
      %p143 = scmp.eq.s32.totalorder %s25, 5
      %p144 = por %p142, %p143
      %p146 = scmp.ne.s32.totalorder %s131, %s145
      %p147 = scmp.eq.s32.totalorder %s25, 0
      %p148 = por %p146, %p147
      %s150 = sadd.s32 %s149, 1
      %p153 = scmp.eq.s32.totalorder %s19, 5
      %p154 = scmp.ne.s32.totalorder %s149, %s151
      %p155 = scmp.eq.s32.totalorder %s19, 0
      %p156 = por %p154, %p155
      %p157 = scmp.ne.s32.totalorder %s149, %s151
      %p158 = scmp.eq.s32.totalorder %s24, 5
      %p159 = por %p157, %p158
      %p160 = scmp.ne.s32.totalorder %s151, %s152
      %p161 = scmp.eq.s32.totalorder %s24, 0
      %p162 = por %p160, %p161
      %p163 = scmp.ne.s32.totalorder %s151, %s152
      %p164 = scmp.eq.s32.totalorder %s25, 5
      %p165 = por %p163, %p164
      %p167 = scmp.ne.s32.totalorder %s152, %s166
      %p168 = scmp.eq.s32.totalorder %s25, 0
      %p169 = por %p167, %p168
      %s171 = sadd.s32 %s170, 1
      %p174 = scmp.eq.s32.totalorder %s19, 5
      %p175 = scmp.ne.s32.totalorder %s170, %s172
      %p176 = scmp.eq.s32.totalorder %s19, 0
      %p177 = por %p175, %p176
      %p178 = scmp.ne.s32.totalorder %s170, %s172
      %p179 = scmp.eq.s32.totalorder %s24, 5
      %p180 = por %p178, %p179
      %p181 = scmp.ne.s32.totalorder %s172, %s173
      %p182 = scmp.eq.s32.totalorder %s24, 0
      %p183 = por %p181, %p182
      %p184 = scmp.ne.s32.totalorder %s172, %s173
      %p185 = scmp.eq.s32.totalorder %s25, 5
      %p186 = por %p184, %p185
      %p188 = scmp.ne.s32.totalorder %s173, %s187
      %p189 = scmp.eq.s32.totalorder %s25, 0
      %p190 = por %p188, %p189
      %s192 = sadd.s32 %s191, 1
      %p195 = scmp.eq.s32.totalorder %s19, 5
      %p196 = scmp.ne.s32.totalorder %s191, %s193
      %p197 = scmp.eq.s32.totalorder %s19, 0
      %p198 = por %p196, %p197
      %p199 = scmp.ne.s32.totalorder %s191, %s193
      %p200 = scmp.eq.s32.totalorder %s24, 5
      %p201 = por %p199, %p200
      %p202 = scmp.ne.s32.totalorder %s193, %s194
      %p203 = scmp.eq.s32.totalorder %s24, 0
      %p204 = por %p202, %p203
      %p205 = scmp.ne.s32.totalorder %s193, %s194
      %p206 = scmp.eq.s32.totalorder %s25, 5
      %p207 = por %p205, %p206
      %p209 = scmp.ne.s32.totalorder %s194, %s208
      %p210 = scmp.eq.s32.totalorder %s25, 0
      %p211 = por %p209, %p210
      %s213 = sadd.s32 %s212, 1
      %p216 = scmp.eq.s32.totalorder %s19, 5
      %p217 = scmp.ne.s32.totalorder %s212, %s214
      %p218 = scmp.eq.s32.totalorder %s19, 0
      %p219 = por %p217, %p218
      %p220 = scmp.ne.s32.totalorder %s212, %s214
      %p221 = scmp.eq.s32.totalorder %s24, 5
      %p222 = por %p220, %p221
      %p223 = scmp.ne.s32.totalorder %s214, %s215
      %p224 = scmp.eq.s32.totalorder %s24, 0
      %p225 = por %p223, %p224
      %p226 = scmp.ne.s32.totalorder %s214, %s215
      %p227 = scmp.eq.s32.totalorder %s25, 5
      %p228 = por %p226, %p227
      %p230 = scmp.ne.s32.totalorder %s215, %s229
      %p231 = scmp.eq.s32.totalorder %s25, 0
      %p232 = por %p230, %p231
      %s234 = sadd.s32 %s233, 1
      %p237 = scmp.eq.s32.totalorder %s19, 5
      %p238 = scmp.ne.s32.totalorder %s233, %s235
      %p239 = scmp.eq.s32.totalorder %s19, 0
      %p240 = por %p238, %p239
      %p241 = scmp.ne.s32.totalorder %s233, %s235
      %p242 = scmp.eq.s32.totalorder %s24, 5
      %p243 = por %p241, %p242
      %p244 = scmp.ne.s32.totalorder %s235, %s236
      %p245 = scmp.eq.s32.totalorder %s24, 0
      %p246 = por %p244, %p245
      %p247 = scmp.ne.s32.totalorder %s235, %s236
      %p248 = scmp.eq.s32.totalorder %s25, 5
      %p249 = por %p247, %p248
      %p251 = scmp.ne.s32.totalorder %s236, %s250
      %p252 = scmp.eq.s32.totalorder %s25, 0
      %p253 = por %p251, %p252
      %s255 = sadd.s32 %s254, 1
      %p258 = scmp.eq.s32.totalorder %s19, 5
      %p259 = scmp.ne.s32.totalorder %s254, %s256
      %p260 = scmp.eq.s32.totalorder %s19, 0
      %p261 = por %p259, %p260
      %p262 = scmp.ne.s32.totalorder %s254, %s256
      %p263 = scmp.eq.s32.totalorder %s24, 5
      %p264 = por %p262, %p263
      %p265 = scmp.ne.s32.totalorder %s256, %s257
      %p266 = scmp.eq.s32.totalorder %s24, 0
      %p267 = por %p265, %p266
      %p268 = scmp.ne.s32.totalorder %s256, %s257
      %p269 = scmp.eq.s32.totalorder %s25, 5
      %p270 = por %p268, %p269
      %p272 = scmp.ne.s32.totalorder %s257, %s271
      %p273 = scmp.eq.s32.totalorder %s25, 0
      %p274 = por %p272, %p273
      %s276 = sadd.s32 %s275, 1
      %p279 = scmp.eq.s32.totalorder %s19, 5
      %p280 = scmp.ne.s32.totalorder %s275, %s277
      %p281 = scmp.eq.s32.totalorder %s19, 0
      %p282 = por %p280, %p281
      %p283 = scmp.ne.s32.totalorder %s275, %s277
      %p284 = scmp.eq.s32.totalorder %s24, 5
      %p285 = por %p283, %p284
      %p286 = scmp.ne.s32.totalorder %s277, %s278
      %p287 = scmp.eq.s32.totalorder %s24, 0
      %p288 = por %p286, %p287
      %p289 = scmp.ne.s32.totalorder %s277, %s278
      %p290 = scmp.eq.s32.totalorder %s25, 5
      %p291 = por %p289, %p290
      %p293 = scmp.ne.s32.totalorder %s278, %s292
      %p294 = scmp.eq.s32.totalorder %s25, 0
      %p295 = por %p293, %p294
      %s296 = ssub.s32 %s26, %s45
      %s297 = ssub.s32 %s27, %s41
      %s298 = sor.u32 %s296, %s297
      %p299 = scmp.eq.s32.totalorder %s298, 0
      %s301 = sadd.s32 %s300, 1
      %s302 = scalar_select %p299, %s300, %s301
      %p305 = pneg %p299
      %p306 = scmp.eq.s32.totalorder %s19, 5
      %p307 = por %p305, %p306
      %p308 = scmp.ne.s32.totalorder %s300, %s303
      %p309 = scmp.eq.s32.totalorder %s19, 0
      %p310 = por %p308, %p309
      %p311 = scmp.ne.s32.totalorder %s300, %s303
      %p312 = scmp.eq.s32.totalorder %s24, 5
      %p313 = por %p311, %p312
      %p314 = scmp.ne.s32.totalorder %s303, %s304
      %p315 = scmp.eq.s32.totalorder %s24, 0
      %p316 = por %p314, %p315
      %p317 = scmp.ne.s32.totalorder %s303, %s304
      %p318 = scmp.eq.s32.totalorder %s25, 5
      %p319 = por %p317, %p318
      %p321 = scmp.ne.s32.totalorder %s304, %s320
      %p322 = scmp.eq.s32.totalorder %s25, 0
      %p323 = por %p321, %p322
      %s324 = ssub.s32 %s26, %s45
      %s325 = ssub.s32 %s27, %s41
      %s326 = sor.u32 %s324, %s325
      %p327 = scmp.eq.s32.totalorder %s326, 0
      %s329 = sadd.s32 %s328, 1
      %s330 = scalar_select %p327, %s328, %s329
      %p333 = pneg %p327
      %p334 = scmp.eq.s32.totalorder %s19, 5
      %p335 = por %p333, %p334
      %p336 = scmp.ne.s32.totalorder %s328, %s331
      %p337 = scmp.eq.s32.totalorder %s19, 0
      %p338 = por %p336, %p337
      %p339 = scmp.ne.s32.totalorder %s328, %s331
      %p340 = scmp.eq.s32.totalorder %s24, 5
      %p341 = por %p339, %p340
      %p342 = scmp.ne.s32.totalorder %s331, %s332
      %p343 = scmp.eq.s32.totalorder %s24, 0
      %p344 = por %p342, %p343
      %p345 = scmp.ne.s32.totalorder %s331, %s332
      %p346 = scmp.eq.s32.totalorder %s25, 5
      %p347 = por %p345, %p346
      %p349 = scmp.ne.s32.totalorder %s332, %s348
      %p350 = scmp.eq.s32.totalorder %s25, 0
      %p351 = por %p349, %p350
      %p352 = scmp.le.s32.totalorder 1, %s19
      %p353 = scmp.lt.s32.totalorder %s19, 7
      %p354 = pnand %p352, %p353
      %p355 = pneg %p354
      // Predicated region
      $region9: #{gadnr_forward.10} parent=5 // pred_check
        _
      $region10: #{gadnr_forward.10} parent=5 // pred_check_branch
        %357 = sbr.rel (%p354) target = $region12
      $region11: #{gadnr_forward.10} parent=5 // pred_region
        %s358 = ssub.s32 %s19, 1
        // Predicated region
        $region13: #{gadnr_forward.10} parent=11 // pred_check
          %p359 = pneg %p141
        $region14: #{gadnr_forward.10} parent=11 // pred_check_branch
          %361 = sbr.rel (%p359) target = $region16
        $region15: #{gadnr_forward.10} parent=11 // pred_region
          _
        $region16: #{gadnr_forward.10} parent=11 // pred_fallthru
          _
        // Predicated region
        $region17: #{gadnr_forward.10} parent=11 // pred_check
          %p362 = pneg %p162
        $region18: #{gadnr_forward.10} parent=11 // pred_check_branch
          %364 = sbr.rel (%p362) target = $region20
        $region19: #{gadnr_forward.10} parent=11 // pred_region
          _
        $region20: #{gadnr_forward.10} parent=11 // pred_fallthru
          _
        // Predicated region
        $region21: #{gadnr_forward.10} parent=11 // pred_check
          %p365 = pneg %p183
        $region22: #{gadnr_forward.10} parent=11 // pred_check_branch
          %367 = sbr.rel (%p365) target = $region24
        $region23: #{gadnr_forward.10} parent=11 // pred_region
          _
        $region24: #{gadnr_forward.10} parent=11 // pred_fallthru
          _
        // Predicated region
        $region25: #{gadnr_forward.10} parent=11 // pred_check
          %p368 = pneg %p204
        $region26: #{gadnr_forward.10} parent=11 // pred_check_branch
          %370 = sbr.rel (%p368) target = $region28
        $region27: #{gadnr_forward.10} parent=11 // pred_region
          _
        $region28: #{gadnr_forward.10} parent=11 // pred_fallthru
          _
        // Predicated region
        $region29: #{gadnr_forward.10} parent=11 // pred_check
          %p371 = pneg %p225
        $region30: #{gadnr_forward.10} parent=11 // pred_check_branch
          %373 = sbr.rel (%p371) target = $region32
        $region31: #{gadnr_forward.10} parent=11 // pred_region
          _
        $region32: #{gadnr_forward.10} parent=11 // pred_fallthru
          _
        // Predicated region
        $region33: #{gadnr_forward.10} parent=11 // pred_check
          %p374 = pneg %p246
        $region34: #{gadnr_forward.10} parent=11 // pred_check_branch
          %376 = sbr.rel (%p374) target = $region36
        $region35: #{gadnr_forward.10} parent=11 // pred_region
          _
        $region36: #{gadnr_forward.10} parent=11 // pred_fallthru
          _
        // Predicated region
        $region37: #{gadnr_forward.10} parent=11 // pred_check
          %p377 = pneg %p267
        $region38: #{gadnr_forward.10} parent=11 // pred_check_branch
          %379 = sbr.rel (%p377) target = $region40
        $region39: #{gadnr_forward.10} parent=11 // pred_region
          _
        $region40: #{gadnr_forward.10} parent=11 // pred_fallthru
          _
        // Predicated region
        $region41: #{gadnr_forward.10} parent=11 // pred_check
          %p380 = pneg %p288
        $region42: #{gadnr_forward.10} parent=11 // pred_check_branch
          %382 = sbr.rel (%p380) target = $region44
        $region43: #{gadnr_forward.10} parent=11 // pred_region
          _
        $region44: #{gadnr_forward.10} parent=11 // pred_fallthru
          _
      $region12: #{gadnr_forward.10} parent=5 // pred_fallthru
        _
      %p383 = scmp.lt.s32.totalorder %s19, 6
      // Predicated region
      $region45: #{gadnr_forward.10} parent=5 // pred_check
        %p384 = pneg %p383
      $region46: #{gadnr_forward.10} parent=5 // pred_check_branch
        %386 = sbr.rel (%p384) target = $region48
      $region47: #{gadnr_forward.10} parent=5 // pred_region
        // Predicated region
        $region49: #{gadnr_forward.10} parent=47 // pred_check
          %p387 = pneg %p58
        $region50: #{gadnr_forward.10} parent=47 // pred_check_branch
          %389 = sbr.rel (%p387) target = $region52
        $region51: #{gadnr_forward.10} parent=47 // pred_region
          %p390 = scmp.lt.s32.totalorder %s27, 1
          %s391 = scalar_select %p390, %s27, 1
          %s392 = smul.addr %s391, 8
          %s393 = scalar_lea.vmem %s0, %s392
        $region52: #{gadnr_forward.10} parent=47 // pred_fallthru
          _
        // Predicated region
        $region53: #{gadnr_forward.10} parent=47 // pred_check
          %p394 = pneg %p84
        $region54: #{gadnr_forward.10} parent=47 // pred_check_branch
          %396 = sbr.rel (%p394) target = $region56
        $region55: #{gadnr_forward.10} parent=47 // pred_region
          %p397 = scmp.lt.s32.totalorder %s27, 1
          %s398 = scalar_select %p397, %s27, 1
          %s399 = smul.addr %s398, 8
          %s400 = scalar_lea.vmem %s1, %s399
        $region56: #{gadnr_forward.10} parent=47 // pred_fallthru
          _
        // Predicated region
        $region57: #{gadnr_forward.10} parent=47 // pred_check
          %p401 = pneg %p114
        $region58: #{gadnr_forward.10} parent=47 // pred_check_branch
          %403 = sbr.rel (%p401) target = $region60
        $region59: #{gadnr_forward.10} parent=47 // pred_region
          %s404 = sand.u32 %s104, 1
          %s405 = sand.u32 %s104, 1
          %s406 = smul.addr %s405, 32
          %s407 = scalar_lea.vmem [#allocation4], %s406
          %s408 = smul.u32 4, %s28
          %s409 = smul.addr %s408, 2
          %s410 = sadd.s32 %s27, %s409
          %s411 = smul.addr %s26, 8
          %s412 = sadd.s32 %s410, %s411
          %s413 = smul.addr %s412, 8
          %s414 = scalar_lea.vmem %s2, %s413
          // Predicated region
          $region61: #{gadnr_forward.10} parent=59 // pred_check
            _
          $region62: #{gadnr_forward.10} parent=59 // pred_check_branch
            %416 = sbr.rel (0) target = $region64
          $region63: #{gadnr_forward.10} parent=59 // pred_region
            // Predicated region
            $region65: #{gadnr_forward.10} parent=63 // pred_check
              _
            $region66: #{gadnr_forward.10} parent=63 // pred_check_branch
              %418 = sbr.rel (0) target = $region68
            $region67: #{gadnr_forward.10} parent=63 // pred_region
              // Predicated region
              $region80: #{gadnr_forward.10} parent=67 // pred_check
                _
              $region81: #{gadnr_forward.10} parent=67 // pred_check_branch
                %439 = sbr.rel (0) target = $region83
              $region82: #{gadnr_forward.10} parent=67 // pred_region
                loop: start=0, step=1, limit=1
                $region84: #{gadnr_forward.10} parent=82 // loop_pre_header
                  _
                $region85: #{gadnr_forward.10} parent=82 // loop_header
                  %s441 = sphi 0, %s445
                  %p442 = scmp.ge.s32.totalorder %s441, 1
                  %s446 = sphi %s414, %s414
                  %s447 = sphi %s407, %s407
                $region86: #{gadnr_forward.10} parent=82 // loop_header_branch
                  %444 = sbr.rel (%p442) target = $region90
                $region87: #{gadnr_forward.10} parent=82 // loop_body
                  %v448 = vld [vmem:[%s446] sm:$0xff]
                  %449 = vst [vmem:[%s447] sm:$0xff] %v448
                  %v450 = vld [vmem:[%s446 + $0x10] sm:$0xff]
                  %451 = vst [vmem:[%s447 + $0x8] sm:$0xff] %v450
                  %v452 = vld [vmem:[%s446 + $0x20] sm:$0xff]
                  %453 = vst [vmem:[%s447 + $0x10] sm:$0xff] %v452
                  %v454 = vld [vmem:[%s446 + $0x30] sm:$0xff]
                  %455 = vst [vmem:[%s447 + $0x18] sm:$0xff] %v454
                $region88: #{gadnr_forward.10} parent=82 // loop_footer
                  %s445 = sadd.s32 1, %s441
                $region89: #{gadnr_forward.10} parent=82 // loop_footer_branch
                  %440 = sbr.rel target = $region85
                $region90: #{gadnr_forward.10} parent=82 // loop_exit
                  _
              $region83: #{gadnr_forward.10} parent=67 // pred_fallthru
                _
              // Predicated region
              $region91: #{gadnr_forward.10} parent=67 // pred_check
                _
              $region92: #{gadnr_forward.10} parent=67 // pred_check_branch
                %457 = sbr.rel target = $region94
              $region93: #{gadnr_forward.10} parent=67 // pred_region
                _
              $region94: #{gadnr_forward.10} parent=67 // pred_fallthru
                _
            $region68: #{gadnr_forward.10} parent=63 // pred_fallthru
              _
            // Predicated region
            $region69: #{gadnr_forward.10} parent=63 // pred_check
              _
            $region70: #{gadnr_forward.10} parent=63 // pred_check_branch
              %420 = sbr.rel target = $region72
            $region71: #{gadnr_forward.10} parent=63 // pred_region
              loop: start=0, step=1, limit=1
              $region73: #{gadnr_forward.10} parent=71 // loop_pre_header
                _
              $region74: #{gadnr_forward.10} parent=71 // loop_header
                %s423 = sphi 0, %s427
                %p424 = scmp.ge.s32.totalorder %s423, 1
                %s428 = sphi %s414, %s414
                %s429 = sphi %s407, %s407
              $region75: #{gadnr_forward.10} parent=71 // loop_header_branch
                %426 = sbr.rel (%p424) target = $region79
              $region76: #{gadnr_forward.10} parent=71 // loop_body
                %v430 = vld [vmem:[%s428] sm:$0xff]
                %431 = vst [vmem:[%s429] sm:$0xff] %v430
                %v432 = vld [vmem:[%s428 + $0x10] sm:$0xff]
                %433 = vst [vmem:[%s429 + $0x8] sm:$0xff] %v432
                %v434 = vld [vmem:[%s428 + $0x20] sm:$0xff]
                %435 = vst [vmem:[%s429 + $0x10] sm:$0xff] %v434
                %v436 = vld [vmem:[%s428 + $0x30] sm:$0xff]
                %437 = vst [vmem:[%s429 + $0x18] sm:$0xff] %v436
              $region77: #{gadnr_forward.10} parent=71 // loop_footer
                %s427 = sadd.s32 1, %s423
              $region78: #{gadnr_forward.10} parent=71 // loop_footer_branch
                %422 = sbr.rel target = $region74
              $region79: #{gadnr_forward.10} parent=71 // loop_exit
                _
            $region72: #{gadnr_forward.10} parent=63 // pred_fallthru
              _
          $region64: #{gadnr_forward.10} parent=59 // pred_fallthru
            _
          %458 = vnop
        $region60: #{gadnr_forward.10} parent=47 // pred_fallthru
          _
      $region48: #{gadnr_forward.10} parent=5 // pred_fallthru
        _
      %p459 = scmp.le.s32.totalorder 1, %s19
      %p460 = scmp.lt.s32.totalorder %s19, 7
      %p461 = pnand %p459, %p460
      %p462 = pneg %p461
      // Predicated region
      $region95: #{gadnr_forward.10} parent=5 // pred_check
        _
      $region96: #{gadnr_forward.10} parent=5 // pred_check_branch
        %464 = sbr.rel (%p461) target = $region98
      $region97: #{gadnr_forward.10} parent=5 // pred_region
        %s465 = ssub.s32 %s19, 1
        %s466 = sand.u32 %s107, 1
        %s467 = sand.u32 %s107, 1
        %s468 = smul.addr %s467, 32
        %s469 = scalar_lea.vmem [#allocation4], %s468
        // Predicated region
        $region99: #{gadnr_forward.10} parent=97 // pred_check
          %p470 = pneg %p120
        $region100: #{gadnr_forward.10} parent=97 // pred_check_branch
          %472 = sbr.rel (%p470) target = $region102
        $region101: #{gadnr_forward.10} parent=97 // pred_region
          _
        $region102: #{gadnr_forward.10} parent=97 // pred_fallthru
          _
        %p473 = scmp.lt.s32.totalorder %s30, 1
        %s474 = scalar_select %p473, %s30, 1
        %s475 = smul.addr %s474, 8
        %s476 = scalar_lea.vmem %s0, %s475
        %p477 = pneg %p64
        %p478 = pneg %p61
        %p479 = scmp.lt.s32.totalorder %s30, 1
        %s480 = scalar_select %p479, %s30, 1
        %s481 = smul.addr %s480, 8
        %s482 = scalar_lea.vmem %s1, %s481
        %p483 = pneg %p90
        %p484 = pneg %p87
        %s485 = sand.u32 %s107, 1
        %s486 = sand.u32 %s107, 1
        %s487 = smul.addr %s486, 32
        %s488 = scalar_lea.vmem [#allocation4], %s487
        %p489 = pneg %p120
        %p490 = pneg %p117
        %p491 = pneg %p141
        %p492 = pneg %p138
        %p493 = pneg %p162
        %p494 = pneg %p159
        %p495 = pneg %p183
        %p496 = pneg %p180
        %p497 = pneg %p204
        %p498 = pneg %p201
        %p499 = pneg %p225
        %p500 = pneg %p222
        %p501 = pneg %p246
        %p502 = pneg %p243
        %p503 = pneg %p267
        %p504 = pneg %p264
        %p505 = pneg %p288
        %p506 = pneg %p285
        %p507 = pneg %p316
        %p508 = pneg %p313
        %p509 = scmp.lt.s32.totalorder %s29, 2
        %s510 = scalar_select %p509, %s29, 2
        %p511 = scmp.lt.s32.totalorder %s30, 1
        %s512 = scalar_select %p511, %s30, 1
        %s513 = smul.addr %s510, 2
        %s514 = sadd.s32 %s512, %s513
        %s515 = smul.addr %s514, 8
        %s516 = scalar_lea.vmem %s11, %s515
        %p517 = pneg %p344
        %p518 = pneg %p341
        %p519 = scmp.lt.s32.totalorder %s29, 2
        %s520 = scalar_select %p519, %s29, 2
        %p521 = scmp.lt.s32.totalorder %s30, 1
        %s522 = scalar_select %p521, %s30, 1
        %s523 = smul.addr %s520, 2
        %s524 = sadd.s32 %s522, %s523
        %s525 = smul.addr %s524, 8
        %s526 = scalar_lea.vmem %s12, %s525
        %p527 = scmp.lt.s32.totalorder %s30, 1
        %s528 = scalar_select %p527, %s30, 1
        %s529 = smul.addr %s528, 8
        %s530 = scalar_lea.vmem %s0, %s529
        %p531 = scmp.lt.s32.totalorder %s30, 1
        %s532 = scalar_select %p531, %s30, 1
        %s533 = smul.addr %s532, 8
        %s534 = scalar_lea.vmem %s1, %s533
        %s535 = smul.u32 4, %s31
        %p536 = scmp.lt.s32.totalorder %s29, 2
        %s537 = scalar_select %p536, %s29, 2
        %p538 = scmp.lt.s32.totalorder %s30, 1
        %s539 = scalar_select %p538, %s30, 1
        %s540 = smul.addr %s537, 2
        %s541 = sadd.s32 %s539, %s540
        %s542 = smul.addr %s541, 8
        %s543 = scalar_lea.vmem %s11, %s542
        %p544 = scmp.lt.s32.totalorder %s29, 2
        %s545 = scalar_select %p544, %s29, 2
        %p546 = scmp.lt.s32.totalorder %s30, 1
        %s547 = scalar_select %p546, %s30, 1
        %s548 = smul.addr %s545, 2
        %s549 = sadd.s32 %s547, %s548
        %s550 = smul.addr %s549, 8
        %s551 = scalar_lea.vmem %s12, %s550
        %p553 = scmp.eq.s32.totalorder %s31, 0
        // Predicated region
        $region103: #{gadnr_forward.10} parent=97 // pred_check
          %p554 = pneg %p553
        $region104: #{gadnr_forward.10} parent=97 // pred_check_branch
          %556 = sbr.rel (%p554) target = $region106
        $region105: #{gadnr_forward.10} parent=97 // pred_region
          %vm557 = vcmask 261120
          %558 = vst.msk [vmem:[#allocation2] sm:$0xff] %vm557, 0.0
          %559 = vst.msk [vmem:[#allocation3] sm:$0xff] %vm557, 0.0
        $region106: #{gadnr_forward.10} parent=97 // pred_fallthru
          _
        %v560 = vld [vmem:[%s530] sm:$0xff]
        %v561 = vld [vmem:[%s534] sm:$0xff]
        %v562 = vmul.f32 %v561, 1.442695
        %v563 = vpow.pop %v562
        %v564 = vld [vmem:[%s469] sm:$0xff]
        %v565 = vld [vmem:[%s469 + $0x8] sm:$0xff]
        %v566 = vld [vmem:[%s469 + $0x10] sm:$0xff]
        %v567 = vld [vmem:[%s469 + $0x18] sm:$0xff]
        %v568 = vmul.f32 %v563, %v564
        %v569 = vmul.f32 %v563, %v565
        %v570 = vmul.f32 %v563, %v566
        %v571 = vmul.f32 %v563, %v567
        %v572 = vadd.f32 %v560, %v568
        %v573 = vadd.f32 %v560, %v569
        %v574 = vadd.f32 %v560, %v570
        %v575 = vadd.f32 %v560, %v571
        %v576 = vpack.c.bf16 %v573, %v572
        %v577 = vpack.c.bf16 %v575, %v574
        %v578 = vld [vmem:[%s3] sm:$0xf]
        %v579 = vld [vmem:[%s3 + $0x4] sm:$0xf]
        %v580 = vld [vmem:[%s3 + $0x8] sm:$0xf]
        %v581 = vld [vmem:[%s3 + $0xc] sm:$0xf]
        %v582 = vld [vmem:[%s4] sm:$0x1]
        %v584 = vlaneseq
        %v585 = vshrl.u32 %v584, 7
        %v586 = vsub.s32 0, %v585
        %v587 = vrot.slane %v582, %v586
        %v593 = vunpack.c.l.b16 %v578
        %v594 = vunpack.c.l.b16 %v579
        %v595 = vunpack.c.l.b16 %v580
        %v596 = vunpack.c.l.b16 %v581
        %v597 = vpack.c.b16 %v594, %v593
        %v598 = vpack.c.b16 %v596, %v595
        %vm601 = vcmask 261120
        %v603 = vsel %vm601, %v576, 0
        %v606 = vsel %vm601, %v577, 0
        %608 = vmatprep.subr.bf16.mxu0 0
        %609 = vmatpush1.bf16.msra.mxu0 %v597
        %610 = vmatprep.subr.bf16.mxu0 0
        %611 = vmatpush1.bf16.msra.mxu0 %v598
        %612 = vmatprep.subr.bf16.mxu0 0
        %613 = vmatpush1.bf16.msra.mxu0 0
        %614 = vmatprep.subr.bf16.mxu0 0
        %615 = vmatpush1.bf16.msra.mxu0 0
        %616 = vmatprep.subr.bf16.mxu0 0
        %617 = vmatpush1.bf16.msra.mxu0 0
        %618 = vmatprep.subr.bf16.mxu0 0
        %619 = vmatpush1.bf16.msra.mxu0 0
        %620 = vmatprep.subr.bf16.mxu0 0
        %621 = vmatpush1.bf16.msra.mxu0 0
        %622 = vmatprep.subr.bf16.mxu0 0
        %623 = vmatpush1.bf16.msra.mxu0 0
        %624 = vmatprep.subr.bf16.mxu0 0
        %625 = vmatpush1.bf16.msra.mxu0 0
        %626 = vmatprep.subr.bf16.mxu0 0
        %627 = vmatpush1.bf16.msra.mxu0 0
        %628 = vmatprep.subr.bf16.mxu0 0
        %629 = vmatpush1.bf16.msra.mxu0 0
        %630 = vmatprep.subr.bf16.mxu0 0
        %631 = vmatpush1.bf16.msra.mxu0 0
        %632 = vmatprep.subr.bf16.mxu0 0
        %633 = vmatpush1.bf16.msra.mxu0 0
        %634 = vmatprep.subr.bf16.mxu0 0
        %635 = vmatpush1.bf16.msra.mxu0 0
        %636 = vmatprep.subr.bf16.mxu0 0
        %637 = vmatpush1.bf16.msra.mxu0 0
        %638 = vmatprep.subr.bf16.mxu0 0
        %639 = vmatpush1.bf16.msra.mxu0 0
        %640 = vmatprep.mubr.bf16.mxu0 0
        %641 = vmatmul.mubr.bf16.gmra.mrb[0].mxu0 %v603
        %v642 = vpop.f32.mrb[0].mxu0
        %v643 = vadd.f32 %v587, %v642
        %v644 = vpop.f32.mrb[0].mxu0
        %v645 = vpop.f32.mrb[0].mxu0
        %v646 = vadd.f32 %v587, %v645
        %v647 = vpop.f32.mrb[0].mxu0
        %648 = vmatprep.mubr.bf16.mxu0 0
        %649 = vmatmul.mubr.bf16.gmra.mrb[0].mxu0 %v606
        %v650 = vpop.f32.mrb[0].mxu0
        %v651 = vadd.f32 %v587, %v650
        %v652 = vpop.f32.mrb[0].mxu0
        %v653 = vpop.f32.mrb[0].mxu0
        %v654 = vadd.f32 %v587, %v653
        %v655 = vpop.f32.mrb[0].mxu0
        %656 = vdwg.mxu0
        %v657 = vmax.f32 %v643, 0.0
        %v658 = vmax.f32 %v646, 0.0
        %v659 = vmax.f32 %v651, 0.0
        %v660 = vmax.f32 %v654, 0.0
        %v661 = vpack.c.bf16 %v658, %v657
        %v662 = vpack.c.bf16 %v660, %v659
        %v663 = vld [vmem:[%s5] sm:$0xf]
        %v664 = vld [vmem:[%s5 + $0x4] sm:$0xf]
        %v665 = vld [vmem:[%s5 + $0x8] sm:$0xf]
        %v666 = vld [vmem:[%s5 + $0xc] sm:$0xf]
        %v667 = vld [vmem:[%s6] sm:$0x1]
        %v669 = vlaneseq
        %v670 = vshrl.u32 %v669, 7
        %v671 = vsub.s32 0, %v670
        %v672 = vrot.slane %v667, %v671
        %v678 = vunpack.c.l.b16 %v663
        %v679 = vunpack.c.l.b16 %v664
        %v680 = vunpack.c.l.b16 %v665
        %v681 = vunpack.c.l.b16 %v666
        %v682 = vpack.c.b16 %v679, %v678
        %v683 = vpack.c.b16 %v681, %v680
        %v687 = vsel %vm601, %v661, 0
        %v690 = vsel %vm601, %v662, 0
        %692 = vmatprep.subr.bf16.mxu0 0
        %693 = vmatpush1.bf16.msra.mxu0 %v682
        %694 = vmatprep.subr.bf16.mxu0 0
        %695 = vmatpush1.bf16.msra.mxu0 %v683
        %696 = vmatprep.subr.bf16.mxu0 0
        %697 = vmatpush1.bf16.msra.mxu0 0
        %698 = vmatprep.subr.bf16.mxu0 0
        %699 = vmatpush1.bf16.msra.mxu0 0
        %700 = vmatprep.subr.bf16.mxu0 0
        %701 = vmatpush1.bf16.msra.mxu0 0
        %702 = vmatprep.subr.bf16.mxu0 0
        %703 = vmatpush1.bf16.msra.mxu0 0
        %704 = vmatprep.subr.bf16.mxu0 0
        %705 = vmatpush1.bf16.msra.mxu0 0
        %706 = vmatprep.subr.bf16.mxu0 0
        %707 = vmatpush1.bf16.msra.mxu0 0
        %708 = vmatprep.subr.bf16.mxu0 0
        %709 = vmatpush1.bf16.msra.mxu0 0
        %710 = vmatprep.subr.bf16.mxu0 0
        %711 = vmatpush1.bf16.msra.mxu0 0
        %712 = vmatprep.subr.bf16.mxu0 0
        %713 = vmatpush1.bf16.msra.mxu0 0
        %714 = vmatprep.subr.bf16.mxu0 0
        %715 = vmatpush1.bf16.msra.mxu0 0
        %716 = vmatprep.subr.bf16.mxu0 0
        %717 = vmatpush1.bf16.msra.mxu0 0
        %718 = vmatprep.subr.bf16.mxu0 0
        %719 = vmatpush1.bf16.msra.mxu0 0
        %720 = vmatprep.subr.bf16.mxu0 0
        %721 = vmatpush1.bf16.msra.mxu0 0
        %722 = vmatprep.subr.bf16.mxu0 0
        %723 = vmatpush1.bf16.msra.mxu0 0
        %724 = vmatprep.mubr.bf16.mxu0 0
        %725 = vmatmul.mubr.bf16.gmra.mrb[0].mxu0 %v687
        %v726 = vpop.f32.mrb[0].mxu0
        %v727 = vadd.f32 %v672, %v726
        %v728 = vpop.f32.mrb[0].mxu0
        %v729 = vpop.f32.mrb[0].mxu0
        %v730 = vadd.f32 %v672, %v729
        %v731 = vpop.f32.mrb[0].mxu0
        %732 = vmatprep.mubr.bf16.mxu0 0
        %733 = vmatmul.mubr.bf16.gmra.mrb[0].mxu0 %v690
        %v734 = vpop.f32.mrb[0].mxu0
        %v735 = vadd.f32 %v672, %v734
        %v736 = vpop.f32.mrb[0].mxu0
        %v737 = vpop.f32.mrb[0].mxu0
        %v738 = vadd.f32 %v672, %v737
        %v739 = vpop.f32.mrb[0].mxu0
        %740 = vdwg.mxu0
        %v741 = vmax.f32 %v727, 0.0
        %v742 = vmax.f32 %v730, 0.0
        %v743 = vmax.f32 %v735, 0.0
        %v744 = vmax.f32 %v738, 0.0
        %v745 = vpack.c.bf16 %v742, %v741
        %v746 = vpack.c.bf16 %v744, %v743
        %v747 = vld [vmem:[%s7] sm:$0xf]
        %v748 = vld [vmem:[%s7 + $0x4] sm:$0xf]
        %v749 = vld [vmem:[%s7 + $0x8] sm:$0xf]
        %v750 = vld [vmem:[%s7 + $0xc] sm:$0xf]
        %v751 = vld [vmem:[%s8] sm:$0x1]
        %v753 = vlaneseq
        %v754 = vshrl.u32 %v753, 7
        %v755 = vsub.s32 0, %v754
        %v756 = vrot.slane %v751, %v755
        %v762 = vunpack.c.l.b16 %v747
        %v763 = vunpack.c.l.b16 %v748
        %v764 = vunpack.c.l.b16 %v749
        %v765 = vunpack.c.l.b16 %v750
        %v766 = vpack.c.b16 %v763, %v762
        %v767 = vpack.c.b16 %v765, %v764
        %v771 = vsel %vm601, %v745, 0
        %v774 = vsel %vm601, %v746, 0
        %776 = vmatprep.subr.bf16.mxu0 0
        %777 = vmatpush1.bf16.msra.mxu0 %v766
        %778 = vmatprep.subr.bf16.mxu0 0
        %779 = vmatpush1.bf16.msra.mxu0 %v767
        %780 = vmatprep.subr.bf16.mxu0 0
        %781 = vmatpush1.bf16.msra.mxu0 0
        %782 = vmatprep.subr.bf16.mxu0 0
        %783 = vmatpush1.bf16.msra.mxu0 0
        %784 = vmatprep.subr.bf16.mxu0 0
        %785 = vmatpush1.bf16.msra.mxu0 0
        %786 = vmatprep.subr.bf16.mxu0 0
        %787 = vmatpush1.bf16.msra.mxu0 0
        %788 = vmatprep.subr.bf16.mxu0 0
        %789 = vmatpush1.bf16.msra.mxu0 0
        %790 = vmatprep.subr.bf16.mxu0 0
        %791 = vmatpush1.bf16.msra.mxu0 0
        %792 = vmatprep.subr.bf16.mxu0 0
        %793 = vmatpush1.bf16.msra.mxu0 0
        %794 = vmatprep.subr.bf16.mxu0 0
        %795 = vmatpush1.bf16.msra.mxu0 0
        %796 = vmatprep.subr.bf16.mxu0 0
        %797 = vmatpush1.bf16.msra.mxu0 0
        %798 = vmatprep.subr.bf16.mxu0 0
        %799 = vmatpush1.bf16.msra.mxu0 0
        %800 = vmatprep.subr.bf16.mxu0 0
        %801 = vmatpush1.bf16.msra.mxu0 0
        %802 = vmatprep.subr.bf16.mxu0 0
        %803 = vmatpush1.bf16.msra.mxu0 0
        %804 = vmatprep.subr.bf16.mxu0 0
        %805 = vmatpush1.bf16.msra.mxu0 0
        %806 = vmatprep.subr.bf16.mxu0 0
        %807 = vmatpush1.bf16.msra.mxu0 0
        %808 = vmatprep.mubr.bf16.mxu0 0
        %809 = vmatmul.mubr.bf16.gmra.mrb[0].mxu0 %v771
        %v810 = vpop.f32.mrb[0].mxu0
        %v811 = vadd.f32 %v756, %v810
        %v812 = vpop.f32.mrb[0].mxu0
        %v813 = vpop.f32.mrb[0].mxu0
        %v814 = vadd.f32 %v756, %v813
        %v815 = vpop.f32.mrb[0].mxu0
        %816 = vmatprep.mubr.bf16.mxu0 0
        %817 = vmatmul.mubr.bf16.gmra.mrb[0].mxu0 %v774
        %v818 = vpop.f32.mrb[0].mxu0
        %v819 = vadd.f32 %v756, %v818
        %v820 = vpop.f32.mrb[0].mxu0
        %v821 = vpop.f32.mrb[0].mxu0
        %v822 = vadd.f32 %v756, %v821
        %v823 = vpop.f32.mrb[0].mxu0
        %824 = vdwg.mxu0
        %v825 = vmax.f32 %v811, 0.0
        %v826 = vmax.f32 %v814, 0.0
        %v827 = vmax.f32 %v819, 0.0
        %v828 = vmax.f32 %v822, 0.0
        %v829 = vpack.c.bf16 %v826, %v825
        %v830 = vpack.c.bf16 %v828, %v827
        %v831 = vld [vmem:[%s9] sm:$0xf]
        %v832 = vld [vmem:[%s9 + $0x4] sm:$0xf]
        %v833 = vld [vmem:[%s9 + $0x8] sm:$0xf]
        %v834 = vld [vmem:[%s9 + $0xc] sm:$0xf]
        %v835 = vld [vmem:[%s10] sm:$0x1]
        %v837 = vlaneseq
        %v838 = vshrl.u32 %v837, 7
        %v839 = vsub.s32 0, %v838
        %v840 = vrot.slane %v835, %v839
        %v846 = vunpack.c.l.b16 %v831
        %v847 = vunpack.c.l.b16 %v832
        %v848 = vunpack.c.l.b16 %v833
        %v849 = vunpack.c.l.b16 %v834
        %v850 = vpack.c.b16 %v847, %v846
        %v851 = vpack.c.b16 %v849, %v848
        %v855 = vsel %vm601, %v829, 0
        %v858 = vsel %vm601, %v830, 0
        %860 = vmatprep.subr.bf16.mxu0 0
        %861 = vmatpush1.bf16.msra.mxu0 %v850
        %862 = vmatprep.subr.bf16.mxu0 0
        %863 = vmatpush1.bf16.msra.mxu0 %v851
        %864 = vmatprep.subr.bf16.mxu0 0
        %865 = vmatpush1.bf16.msra.mxu0 0
        %866 = vmatprep.subr.bf16.mxu0 0
        %867 = vmatpush1.bf16.msra.mxu0 0
        %868 = vmatprep.subr.bf16.mxu0 0
        %869 = vmatpush1.bf16.msra.mxu0 0
        %870 = vmatprep.subr.bf16.mxu0 0
        %871 = vmatpush1.bf16.msra.mxu0 0
        %872 = vmatprep.subr.bf16.mxu0 0
        %873 = vmatpush1.bf16.msra.mxu0 0
        %874 = vmatprep.subr.bf16.mxu0 0
        %875 = vmatpush1.bf16.msra.mxu0 0
        %876 = vmatprep.subr.bf16.mxu0 0
        %877 = vmatpush1.bf16.msra.mxu0 0
        %878 = vmatprep.subr.bf16.mxu0 0
        %879 = vmatpush1.bf16.msra.mxu0 0
        %880 = vmatprep.subr.bf16.mxu0 0
        %881 = vmatpush1.bf16.msra.mxu0 0
        %882 = vmatprep.subr.bf16.mxu0 0
        %883 = vmatpush1.bf16.msra.mxu0 0
        %884 = vmatprep.subr.bf16.mxu0 0
        %885 = vmatpush1.bf16.msra.mxu0 0
        %886 = vmatprep.subr.bf16.mxu0 0
        %887 = vmatpush1.bf16.msra.mxu0 0
        %888 = vmatprep.subr.bf16.mxu0 0
        %889 = vmatpush1.bf16.msra.mxu0 0
        %890 = vmatprep.subr.bf16.mxu0 0
        %891 = vmatpush1.bf16.msra.mxu0 0
        %892 = vmatprep.mubr.bf16.mxu0 0
        %893 = vmatmul.mubr.bf16.gmra.mrb[0].mxu0 %v855
        %v894 = vpop.f32.mrb[0].mxu0
        %v895 = vadd.f32 %v840, %v894
        %v896 = vpop.f32.mrb[0].mxu0
        %v897 = vpop.f32.mrb[0].mxu0
        %v898 = vadd.f32 %v840, %v897
        %v899 = vpop.f32.mrb[0].mxu0
        %900 = vmatprep.mubr.bf16.mxu0 0
        %901 = vmatmul.mubr.bf16.gmra.mrb[0].mxu0 %v858
        %v902 = vpop.f32.mrb[0].mxu0
        %v903 = vadd.f32 %v840, %v902
        %v904 = vpop.f32.mrb[0].mxu0
        %v905 = vpop.f32.mrb[0].mxu0
        %v906 = vadd.f32 %v840, %v905
        %v907 = vpop.f32.mrb[0].mxu0
        %908 = vdwg.mxu0
        %v909 = vld [vmem:[#allocation2] sm:$0xff]
        %v910 = vsel %vm601, %v895, 0.0
        %v911 = vsel %vm601, %v898, 0.0
        %v912 = vadd.f32 %v910, %v911
        %v913 = vsel %vm601, %v903, 0.0
        %v914 = vadd.f32 %v912, %v913
        %v915 = vsel %vm601, %v906, 0.0
        %v916 = vadd.f32 %v914, %v915
        %v917 = vadd.f32 %v909, %v916
        %918 = vst.msk [vmem:[#allocation2] sm:$0xff] %vm601, %v917
        %v919 = vld [vmem:[#allocation3] sm:$0xff]
        %v920 = vmul.f32 %v895, %v895
        %v921 = vmul.f32 %v898, %v898
        %v922 = vmul.f32 %v903, %v903
        %v923 = vmul.f32 %v906, %v906
        %v924 = vsel %vm601, %v920, 0.0
        %v925 = vsel %vm601, %v921, 0.0
        %v926 = vadd.f32 %v924, %v925
        %v927 = vsel %vm601, %v922, 0.0
        %v928 = vadd.f32 %v926, %v927
        %v929 = vsel %vm601, %v923, 0.0
        %v930 = vadd.f32 %v928, %v929
        %v931 = vadd.f32 %v919, %v930
        %932 = vst.msk [vmem:[#allocation3] sm:$0xff] %vm601, %v931
        // Predicated region
        $region107: #{gadnr_forward.10} parent=97 // pred_check
          %p933 = pneg %p553
        $region108: #{gadnr_forward.10} parent=97 // pred_check_branch
          %935 = sbr.rel (%p933) target = $region110
        $region109: #{gadnr_forward.10} parent=97 // pred_region
          %v936 = vld [vmem:[#allocation2] sm:$0xff]
          %v937 = vrcp.pop 4.0
          %v938 = vmul.f32 %v936, %v937
          %v939 = vld [vmem:[#allocation3] sm:$0xff]
          %v940 = vmul.f32 %v938, 4.0
          %v941 = vmul.f32 %v940, %v938
          %v942 = vsub.f32 %v939, %v941
          %v943 = vmax.f32 %v942, 0.0
          %v944 = vrcp.pop 3.0
          %v945 = vmul.f32 %v943, %v944
          %946 = vst.msk [vmem:[%s543] sm:$0xff] %vm601, %v938
          %v947 = vrsqrt.pop %v945
          %v948 = vmul.f32 %v945, %v947
          %vm949 = vcmp.eq.f32.partialorder %v945, inf
          %v950 = vsel %vm949, %v945, %v948
          %vm951 = vcmp.eq.f32.partialorder %v945, 0.0
          %v952 = vand.u32 %v945, 2147483648
          %v953 = vsel %vm951, %v952, %v950
          %954 = vst.msk [vmem:[%s551] sm:$0xff] %vm601, %v953
        $region110: #{gadnr_forward.10} parent=97 // pred_fallthru
          _
        %p955 = scmp.lt.s32.totalorder %s29, 2
        %s956 = scalar_select %p955, %s29, 2
        %p957 = scmp.lt.s32.totalorder %s30, 1
        %s958 = scalar_select %p957, %s30, 1
        %s959 = smul.addr %s956, 2
        %s960 = sadd.s32 %s958, %s959
        %s961 = smul.addr %s960, 8
        %s962 = scalar_lea.vmem %s11, %s961
        %p963 = scmp.lt.s32.totalorder %s29, 2
        %s964 = scalar_select %p963, %s29, 2
        %p965 = scmp.lt.s32.totalorder %s30, 1
        %s966 = scalar_select %p965, %s30, 1
        %s967 = smul.addr %s964, 2
        %s968 = sadd.s32 %s966, %s967
        %s969 = smul.addr %s968, 8
        %s970 = scalar_lea.vmem %s12, %s969
        // Predicated region
        $region111: #{gadnr_forward.10} parent=97 // pred_check
          %p971 = pneg %p313
        $region112: #{gadnr_forward.10} parent=97 // pred_check_branch
          %973 = sbr.rel (%p971) target = $region114
        $region113: #{gadnr_forward.10} parent=97 // pred_region
          _
        $region114: #{gadnr_forward.10} parent=97 // pred_fallthru
          _
        // Predicated region
        $region115: #{gadnr_forward.10} parent=97 // pred_check
          %p974 = pneg %p341
        $region116: #{gadnr_forward.10} parent=97 // pred_check_branch
          %976 = sbr.rel (%p974) target = $region118
        $region117: #{gadnr_forward.10} parent=97 // pred_region
          _
        $region118: #{gadnr_forward.10} parent=97 // pred_fallthru
          _
      $region98: #{gadnr_forward.10} parent=5 // pred_fallthru
        _
      %p977 = scmp.le.s32.totalorder 2, %s19
      // Predicated region
      $region119: #{gadnr_forward.10} parent=5 // pred_check
        %p978 = pneg %p977
      $region120: #{gadnr_forward.10} parent=5 // pred_check_branch
        %980 = sbr.rel (%p978) target = $region122
      $region121: #{gadnr_forward.10} parent=5 // pred_region
        %s981 = ssub.s32 %s19, 2
        // Predicated region
        $region123: #{gadnr_forward.10} parent=121 // pred_check
          %p982 = pneg %p319
        $region124: #{gadnr_forward.10} parent=121 // pred_check_branch
          %984 = sbr.rel (%p982) target = $region126
        $region125: #{gadnr_forward.10} parent=121 // pred_region
          %p985 = scmp.lt.s32.totalorder %s32, 2
          %s986 = scalar_select %p985, %s32, 2
          %p987 = scmp.lt.s32.totalorder %s33, 1
          %s988 = scalar_select %p987, %s33, 1
          %s989 = smul.addr %s986, 2
          %s990 = sadd.s32 %s988, %s989
          %s991 = smul.addr %s990, 8
          %s992 = scalar_lea.vmem %s11, %s991
        $region126: #{gadnr_forward.10} parent=121 // pred_fallthru
          _
        // Predicated region
        $region127: #{gadnr_forward.10} parent=121 // pred_check
          %p993 = pneg %p347
        $region128: #{gadnr_forward.10} parent=121 // pred_check_branch
          %995 = sbr.rel (%p993) target = $region130
        $region129: #{gadnr_forward.10} parent=121 // pred_region
          %p996 = scmp.lt.s32.totalorder %s32, 2
          %s997 = scalar_select %p996, %s32, 2
          %p998 = scmp.lt.s32.totalorder %s33, 1
          %s999 = scalar_select %p998, %s33, 1
          %s1000 = smul.addr %s997, 2
          %s1001 = sadd.s32 %s999, %s1000
          %s1002 = smul.addr %s1001, 8
          %s1003 = scalar_lea.vmem %s12, %s1002
        $region130: #{gadnr_forward.10} parent=121 // pred_fallthru
          _
      $region122: #{gadnr_forward.10} parent=5 // pred_fallthru
        _
    $region6: #{gadnr_forward.10} parent=1 // loop_footer
      %s23 = sadd.s32 1, %s19
    $region7: #{gadnr_forward.10} parent=1 // loop_footer_branch
      %18 = sbr.rel target = $region3
    $region8: #{gadnr_forward.10} parent=1 // loop_exit
      _

// kernel: gadnr_forward.9
$region0: #{gadnr_forward.9}
  #allocation0 [shape = 'u32[]', space=smem, size = 0x4, offset = 0x4, fixed_abs, tag = 'smem constant byte address 0x4 - core index']
  #allocation1 [shape = 'u32[144,128]{1,0:T(1,128)}', space=vmem, size = 0x12000, scoped, tag = 'internal scratch']
  #allocation2 [shape = 'f32[1,1]{1,0:T(1,128)S(1)}', space=vmem, size = 0x200, scoped, tag = 'scoped memory for gadnr_forward.9']
  #allocation3 [shape = 'bf16[1,1]{1,0:T(2,128)S(1)}', space=vmem, size = 0x200, scoped, tag = 'scoped memory for gadnr_forward.9']
  #allocation4 [shape = 'f32[1,1]{1,0:T(1,128)S(1)}', space=vmem, size = 0x200, scoped, tag = 'scoped memory for gadnr_forward.9']
  %s0 = inlined_call_operand.smem [shape: u32[58], index: -1, kind: input, shape index: {}]
  %s1 = sld [smem:[%s0]]
  %s2 = scalar_lea.smem %s0, 1
  %s3 = sld [smem:[%s2]]
  %s4 = scalar_lea.smem %s0, 2
  %s5 = sld [smem:[%s4]]
  %s6 = scalar_lea.smem %s0, 3
  %s7 = sld [smem:[%s6]]
  %s8 = scalar_lea.smem %s0, 4
  %s9 = sld [smem:[%s8]]
  %s10 = scalar_lea.smem %s0, 5
  %s11 = sld [smem:[%s10]]
  %s12 = scalar_lea.smem %s0, 6
  %s13 = sld [smem:[%s12]]
  %s14 = scalar_lea.smem %s0, 7
  %s15 = sld [smem:[%s14]]
  %s16 = scalar_lea.smem %s0, 8
  %s17 = sld [smem:[%s16]]
  %s18 = scalar_lea.smem %s0, 9
  %s19 = sld [smem:[%s18]]
  %s20 = scalar_lea.smem %s0, 10
  %s21 = sld [smem:[%s20]]
  %s22 = scalar_lea.smem %s0, 11
  %s23 = sld [smem:[%s22]]
  %s24 = scalar_lea.smem %s0, 12
  %s25 = sld [smem:[%s24]]
  %s26 = scalar_lea.smem %s0, 13
  %s27 = sld [smem:[%s26]]
  %s28 = scalar_lea.smem %s0, 14
  %s29 = sld [smem:[%s28]]
  %s30 = scalar_lea.smem %s0, 15
  %s31 = sld [smem:[%s30]]
  %s32 = scalar_lea.smem %s0, 16
  %s33 = sld [smem:[%s32]]
  %s34 = scalar_lea.smem %s0, 17
  %s35 = sld [smem:[%s34]]
  %s36 = scalar_lea.smem %s0, 18
  %s37 = sld [smem:[%s36]]
  %s38 = scalar_lea.smem %s0, 19
  %s39 = sld [smem:[%s38]]
  %s40 = scalar_lea.smem %s0, 20
  %s41 = sld [smem:[%s40]]
  %s42 = scalar_lea.smem %s0, 21
  %s43 = sld [smem:[%s42]]
  %s44 = scalar_lea.smem %s0, 22
  %s45 = sld [smem:[%s44]]
  %s46 = scalar_lea.smem %s0, 23
  %s47 = sld [smem:[%s46]]
  %s48 = scalar_lea.smem %s0, 24
  %s49 = sld [smem:[%s48]]
  %s50 = scalar_lea.smem %s0, 25
  %s51 = sld [smem:[%s50]]
  %s52 = scalar_lea.smem %s0, 26
  %s53 = sld [smem:[%s52]]
  %s54 = scalar_lea.smem %s0, 27
  %s55 = sld [smem:[%s54]]
  %s56 = scalar_lea.smem %s0, 28
  %s57 = sld [smem:[%s56]]
  %s58 = scalar_lea.smem %s0, 29
  %s59 = sld [smem:[%s58]]
  %s60 = scalar_lea.smem %s0, 30
  %s61 = sld [smem:[%s60]]
  %s62 = scalar_lea.smem %s0, 31
  %s63 = sld [smem:[%s62]]
  %s64 = scalar_lea.smem %s0, 32
  %s65 = sld [smem:[%s64]]
  %s66 = scalar_lea.smem %s0, 33
  %s67 = sld [smem:[%s66]]
  %s68 = scalar_lea.smem %s0, 34
  %s69 = sld [smem:[%s68]]
  %s70 = scalar_lea.smem %s0, 35
  %s71 = sld [smem:[%s70]]
  %s72 = scalar_lea.smem %s0, 36
  %s73 = sld [smem:[%s72]]
  %s74 = scalar_lea.smem %s0, 37
  %s75 = sld [smem:[%s74]]
  %s76 = scalar_lea.smem %s0, 38
  %s77 = sld [smem:[%s76]]
  %s78 = scalar_lea.smem %s0, 39
  %s79 = sld [smem:[%s78]]
  %s80 = scalar_lea.smem %s0, 40
  %s81 = sld [smem:[%s80]]
  %s82 = scalar_lea.smem %s0, 41
  %s83 = sld [smem:[%s82]]
  %s84 = scalar_lea.smem %s0, 42
  %s85 = sld [smem:[%s84]]
  %s86 = scalar_lea.smem %s0, 43
  %s87 = sld [smem:[%s86]]
  %s88 = scalar_lea.smem %s0, 44
  %s89 = sld [smem:[%s88]]
  %s90 = scalar_lea.smem %s0, 45
  %s91 = sld [smem:[%s90]]
  %s92 = scalar_lea.smem %s0, 46
  %s93 = sld [smem:[%s92]]
  %s94 = scalar_lea.smem %s0, 47
  %s95 = sld [smem:[%s94]]
  %s96 = scalar_lea.smem %s0, 48
  %s97 = sld [smem:[%s96]]
  %s98 = scalar_lea.smem %s0, 49
  %s99 = sld [smem:[%s98]]
  %s100 = scalar_lea.smem %s0, 50
  %s101 = sld [smem:[%s100]]
  %s102 = scalar_lea.smem %s0, 51
  %s103 = sld [smem:[%s102]]
  %s104 = scalar_lea.smem %s0, 52
  %s105 = sld [smem:[%s104]]
  %s106 = scalar_lea.smem %s0, 53
  %s107 = sld [smem:[%s106]]
  %s108 = scalar_lea.smem %s0, 54
  %s109 = sld [smem:[%s108]]
  %s110 = scalar_lea.smem %s0, 55
  %s111 = sld [smem:[%s110]]
  %s112 = scalar_lea.smem %s0, 56
  %s113 = sld [smem:[%s112]]
  %s114 = scalar_lea.smem %s0, 57
  %s115 = sld [smem:[%s114]]
  %116 = xla_tuple %s109, %s111, %s113, %s115
  %s117 = sld [smem:[#allocation0]]
  $region370: #{gadnr_forward.9} parent=0
    _
  %s119 = ssub.s32 1, %s117
  %s120 = scalar_select 0, %s119, %s117
  %v121 = vstv %s31
  %122 = vst [vmem:[#allocation2] sm:$0x1] %v121
  %v123 = vstv %s33
  %124 = vst [vmem:[#allocation3] sm:$0x1] %v123
  %v125 = vstv %s35
  %126 = vst [vmem:[#allocation4] sm:$0x1] %v125
  $region1: #{gadnr_forward.9} parent=0
    #allocation5 [shape = 'u8[512]{0}', space=vmem, size = 0x400, scoped, tag = 'input window, operand 7, single buffered']
    #allocation6 [shape = 's32[1]{0}', space=sflag, size = 0x4, scoped, tag = 'scoped memory for gadnr_forward.9']
    #allocation7 [shape = 'u8[512]{0}', space=vmem, size = 0x400, scoped, tag = 'input window, operand 8, single buffered']
    #allocation8 [shape = 's32[1]{0}', space=sflag, size = 0x4, scoped, tag = 'scoped memory for gadnr_forward.9']
    #allocation9 [shape = 'u8[512]{0}', space=vmem, size = 0x400, scoped, tag = 'input window, operand 9, single buffered']
    #allocation10 [shape = 'u8[512]{0}', space=vmem, size = 0x400, scoped, tag = 'input window, operand 11, single buffered']
    #allocation11 [shape = 's32[1]{0}', space=sflag, size = 0x4, scoped, tag = 'scoped memory for gadnr_forward.9']
    #allocation12 [shape = 'u8[512]{0}', space=vmem, size = 0x400, scoped, tag = 'input window, operand 12, single buffered']
    #allocation13 [shape = 'u8[512]{0}', space=vmem, size = 0x400, scoped, tag = 'input window, operand 13, single buffered']
    #allocation14 [shape = 's32[1]{0}', space=sflag, size = 0x4, scoped, tag = 'scoped memory for gadnr_forward.9']
    #allocation15 [shape = 'u8[512]{0}', space=vmem, size = 0x400, scoped, tag = 'input window, operand 19, single buffered']
    #allocation16 [shape = 'u8[512]{0}', space=vmem, size = 0x400, scoped, tag = 'input window, operand 20, single buffered']
    #allocation17 [shape = 's32[1]{0}', space=sflag, size = 0x4, scoped, tag = 'scoped memory for gadnr_forward.9']
    #allocation18 [shape = 'u8[512]{0}', space=vmem, size = 0x400, scoped, tag = 'input window, operand 21, single buffered']
    #allocation19 [shape = 'u8[512]{0}', space=vmem, size = 0x400, scoped, tag = 'input window, operand 23, single buffered']
    #allocation20 [shape = 's32[1]{0}', space=sflag, size = 0x4, scoped, tag = 'scoped memory for gadnr_forward.9']
    #allocation21 [shape = 'u8[512]{0}', space=vmem, size = 0x400, scoped, tag = 'input window, operand 24, single buffered']
    #allocation22 [shape = 'u8[512]{0}', space=vmem, size = 0x400, scoped, tag = 'input window, operand 25, single buffered']
    #allocation23 [shape = 's32[1]{0}', space=sflag, size = 0x4, scoped, tag = 'scoped memory for gadnr_forward.9']
    #allocation24 [shape = 'u8[512]{0}', space=vmem, size = 0x400, scoped, tag = 'input window, operand 27, single buffered']
    #allocation25 [shape = 'u8[512]{0}', space=vmem, size = 0x400, scoped, tag = 'input window, operand 29, single buffered']
    #allocation26 [shape = 's32[1]{0}', space=sflag, size = 0x4, scoped, tag = 'scoped memory for gadnr_forward.9']
    #allocation27 [shape = 'u8[512]{0}', space=vmem, size = 0x400, scoped, tag = 'input window, operand 31, single buffered']
    #allocation28 [shape = 'u8[512]{0}', space=vmem, size = 0x400, scoped, tag = 'input window, operand 32, single buffered']
    #allocation29 [shape = 's32[1]{0}', space=sflag, size = 0x4, scoped, tag = 'scoped memory for gadnr_forward.9']
    #allocation30 [shape = 'u8[512]{0}', space=vmem, size = 0x400, scoped, tag = 'input window, operand 33, single buffered']
    #allocation31 [shape = 'u8[512]{0}', space=vmem, size = 0x400, scoped, tag = 'input window, operand 35, single buffered']
    #allocation32 [shape = 's32[1]{0}', space=sflag, size = 0x4, scoped, tag = 'scoped memory for gadnr_forward.9']
    #allocation33 [shape = 'u8[512]{0}', space=vmem, size = 0x400, scoped, tag = 'input window, operand 36, single buffered']
    #allocation34 [shape = 'u8[512]{0}', space=vmem, size = 0x400, scoped, tag = 'input window, operand 37, single buffered']
    #allocation35 [shape = 's32[1]{0}', space=sflag, size = 0x4, scoped, tag = 'scoped memory for gadnr_forward.9']
    #allocation36 [shape = 'u8[512]{0}', space=vmem, size = 0x400, scoped, tag = 'input window, operand 39, single buffered']
    #allocation37 [shape = 'u8[512]{0}', space=vmem, size = 0x400, scoped, tag = 'input window, operand 41, single buffered']
    #allocation38 [shape = 's32[1]{0}', space=sflag, size = 0x4, scoped, tag = 'scoped memory for gadnr_forward.9']
    #allocation39 [shape = 'u8[512]{0}', space=vmem, size = 0x400, scoped, tag = 'input window, operand 43, single buffered']
    #allocation40 [shape = 'u8[512]{0}', space=vmem, size = 0x400, scoped, tag = 'input window, operand 44, single buffered']
    #allocation41 [shape = 's32[1]{0}', space=sflag, size = 0x4, scoped, tag = 'scoped memory for gadnr_forward.9']
    #allocation42 [shape = 'u8[512]{0}', space=vmem, size = 0x400, scoped, tag = 'input window, operand 45, single buffered']
    #allocation43 [shape = 'u8[512]{0}', space=vmem, size = 0x400, scoped, tag = 'input window, operand 47, single buffered']
    #allocation44 [shape = 's32[1]{0}', space=sflag, size = 0x4, scoped, tag = 'scoped memory for gadnr_forward.9']
    #allocation45 [shape = 'u8[512]{0}', space=vmem, size = 0x400, scoped, tag = 'input window, operand 48, single buffered']
    #allocation46 [shape = 'u8[512]{0}', space=vmem, size = 0x400, scoped, tag = 'input window, operand 49, single buffered']
    #allocation47 [shape = 's32[1]{0}', space=sflag, size = 0x4, scoped, tag = 'scoped memory for gadnr_forward.9']
    #allocation48 [shape = 'u8[512]{0}', space=vmem, size = 0x400, scoped, tag = 'input window, operand 51, single buffered']
    #allocation49 [shape = 'u8[512]{0}', space=vmem, size = 0x400, scoped, tag = 'input window, operand 53, single buffered']
    #allocation50 [shape = 's32[1]{0}', space=sflag, size = 0x4, scoped, tag = 'scoped memory for gadnr_forward.9']
    %127 = vsyncpa [#allocation6], 0
    %128 = vsyncpa [#allocation8], 0
    %129 = vsyncpa [#allocation11], 0
    %130 = vsyncpa [#allocation14], 0
    %131 = vsyncpa [#allocation17], 0
    %132 = vsyncpa [#allocation20], 0
    %133 = vsyncpa [#allocation23], 0
    %134 = vsyncpa [#allocation26], 0
    %135 = vsyncpa [#allocation29], 0
    %136 = vsyncpa [#allocation32], 0
    %137 = vsyncpa [#allocation35], 0
    %138 = vsyncpa [#allocation38], 0
    %139 = vsyncpa [#allocation41], 0
    %140 = vsyncpa [#allocation44], 0
    %141 = vsyncpa [#allocation47], 0
    %142 = vsyncpa [#allocation50], 0
    // Predicated region
    $region2: #{gadnr_forward.9} parent=1 // pred_check
      _
    $region3: #{gadnr_forward.9} parent=1 // pred_check_branch
      %144 = sbr.rel (0) target = $region5
    $region4: #{gadnr_forward.9} parent=1 // pred_region
      _
    $region5: #{gadnr_forward.9} parent=1 // pred_fallthru
      _
    // Predicated region
    $region6: #{gadnr_forward.9} parent=1 // pred_check
      _
    $region7: #{gadnr_forward.9} parent=1 // pred_check_branch
      %146 = sbr.rel (0) target = $region9
    $region8: #{gadnr_forward.9} parent=1 // pred_region
      _
    $region9: #{gadnr_forward.9} parent=1 // pred_fallthru
      _
    // Predicated region
    $region10: #{gadnr_forward.9} parent=1 // pred_check
      _
    $region11: #{gadnr_forward.9} parent=1 // pred_check_branch
      %148 = sbr.rel (0) target = $region13
    $region12: #{gadnr_forward.9} parent=1 // pred_region
      _
    $region13: #{gadnr_forward.9} parent=1 // pred_fallthru
      _
    // Predicated region
    $region14: #{gadnr_forward.9} parent=1 // pred_check
      _
    $region15: #{gadnr_forward.9} parent=1 // pred_check_branch
      %150 = sbr.rel (0) target = $region17
    $region16: #{gadnr_forward.9} parent=1 // pred_region
      _
    $region17: #{gadnr_forward.9} parent=1 // pred_fallthru
      _
    // Predicated region
    $region18: #{gadnr_forward.9} parent=1 // pred_check
      _
    $region19: #{gadnr_forward.9} parent=1 // pred_check_branch
      %152 = sbr.rel (0) target = $region21
    $region20: #{gadnr_forward.9} parent=1 // pred_region
      _
    $region21: #{gadnr_forward.9} parent=1 // pred_fallthru
      _
    // Predicated region
    $region22: #{gadnr_forward.9} parent=1 // pred_check
      _
    $region23: #{gadnr_forward.9} parent=1 // pred_check_branch
      %154 = sbr.rel (0) target = $region25
    $region24: #{gadnr_forward.9} parent=1 // pred_region
      _
    $region25: #{gadnr_forward.9} parent=1 // pred_fallthru
      _
    // Predicated region
    $region26: #{gadnr_forward.9} parent=1 // pred_check
      _
    $region27: #{gadnr_forward.9} parent=1 // pred_check_branch
      %156 = sbr.rel (0) target = $region29
    $region28: #{gadnr_forward.9} parent=1 // pred_region
      _
    $region29: #{gadnr_forward.9} parent=1 // pred_fallthru
      _
    // Predicated region
    $region30: #{gadnr_forward.9} parent=1 // pred_check
      _
    $region31: #{gadnr_forward.9} parent=1 // pred_check_branch
      %158 = sbr.rel (0) target = $region33
    $region32: #{gadnr_forward.9} parent=1 // pred_region
      %s160 = ssub.s32 16, 16
      %161 = vsyncadd [#allocation6], %s160
      %s163 = sshll.u32 [#allocation5], 4
      %s164 = int_to_ptr.vmem [resolvable:$true] %s163
      %166 = dma.hbm_to_vmem [thread:$0]  %s15, 16, %s164, [#allocation6]
    $region33: #{gadnr_forward.9} parent=1 // pred_fallthru
      _
    // Predicated region
    $region34: #{gadnr_forward.9} parent=1 // pred_check
      _
    $region35: #{gadnr_forward.9} parent=1 // pred_check_branch
      %168 = sbr.rel (0) target = $region37
    $region36: #{gadnr_forward.9} parent=1 // pred_region
      %s170 = ssub.s32 16, 16
      %171 = vsyncadd [#allocation8], %s170
      %s173 = sshll.u32 [#allocation7], 4
      %s174 = int_to_ptr.vmem [resolvable:$true] %s173
      %176 = dma.hbm_to_vmem [thread:$0]  %s17, 16, %s174, [#allocation8]
    $region37: #{gadnr_forward.9} parent=1 // pred_fallthru
      _
    // Predicated region
    $region38: #{gadnr_forward.9} parent=1 // pred_check
      _
    $region39: #{gadnr_forward.9} parent=1 // pred_check_branch
      %178 = sbr.rel (0) target = $region41
    $region40: #{gadnr_forward.9} parent=1 // pred_region
      %s180 = ssub.s32 16, 16
      %181 = vsyncadd [#allocation8], %s180
      %s183 = sshll.u32 [#allocation9], 4
      %s184 = int_to_ptr.vmem [resolvable:$true] %s183
      %186 = dma.hbm_to_vmem [thread:$0]  %s19, 16, %s184, [#allocation8]
    $region41: #{gadnr_forward.9} parent=1 // pred_fallthru
      _
    // Predicated region
    $region42: #{gadnr_forward.9} parent=1 // pred_check
      _
    $region43: #{gadnr_forward.9} parent=1 // pred_check_branch
      %188 = sbr.rel (0) target = $region45
    $region44: #{gadnr_forward.9} parent=1 // pred_region
      _
    $region45: #{gadnr_forward.9} parent=1 // pred_fallthru
      _
    // Predicated region
    $region46: #{gadnr_forward.9} parent=1 // pred_check
      _
    $region47: #{gadnr_forward.9} parent=1 // pred_check_branch
      %190 = sbr.rel (0) target = $region49
    $region48: #{gadnr_forward.9} parent=1 // pred_region
      %s192 = ssub.s32 16, 16
      %193 = vsyncadd [#allocation11], %s192
      %s195 = sshll.u32 [#allocation10], 4
      %s196 = int_to_ptr.vmem [resolvable:$true] %s195
      %198 = dma.hbm_to_vmem [thread:$0]  %s23, 16, %s196, [#allocation11]
    $region49: #{gadnr_forward.9} parent=1 // pred_fallthru
      _
    // Predicated region
    $region50: #{gadnr_forward.9} parent=1 // pred_check
      _
    $region51: #{gadnr_forward.9} parent=1 // pred_check_branch
      %200 = sbr.rel (0) target = $region53
    $region52: #{gadnr_forward.9} parent=1 // pred_region
      %s202 = ssub.s32 16, 16
      %203 = vsyncadd [#allocation11], %s202
      %s205 = sshll.u32 [#allocation12], 4
      %s206 = int_to_ptr.vmem [resolvable:$true] %s205
      %208 = dma.hbm_to_vmem [thread:$0]  %s25, 16, %s206, [#allocation11]
    $region53: #{gadnr_forward.9} parent=1 // pred_fallthru
      _
    // Predicated region
    $region54: #{gadnr_forward.9} parent=1 // pred_check
      _
    $region55: #{gadnr_forward.9} parent=1 // pred_check_branch
      %210 = sbr.rel (0) target = $region57
    $region56: #{gadnr_forward.9} parent=1 // pred_region
      %s212 = ssub.s32 16, 16
      %213 = vsyncadd [#allocation14], %s212
      %s215 = sshll.u32 [#allocation13], 4
      %s216 = int_to_ptr.vmem [resolvable:$true] %s215
      %218 = dma.hbm_to_vmem [thread:$0]  %s27, 16, %s216, [#allocation14]
    $region57: #{gadnr_forward.9} parent=1 // pred_fallthru
      _
    // Predicated region
    $region58: #{gadnr_forward.9} parent=1 // pred_check
      _
    $region59: #{gadnr_forward.9} parent=1 // pred_check_branch
      %220 = sbr.rel (0) target = $region61
    $region60: #{gadnr_forward.9} parent=1 // pred_region
      _
    $region61: #{gadnr_forward.9} parent=1 // pred_fallthru
      _
    // Predicated region
    $region62: #{gadnr_forward.9} parent=1 // pred_check
      _
    $region63: #{gadnr_forward.9} parent=1 // pred_check_branch
      %222 = sbr.rel (0) target = $region65
    $region64: #{gadnr_forward.9} parent=1 // pred_region
      _
    $region65: #{gadnr_forward.9} parent=1 // pred_fallthru
      _
    // Predicated region
    $region66: #{gadnr_forward.9} parent=1 // pred_check
      _
    $region67: #{gadnr_forward.9} parent=1 // pred_check_branch
      %224 = sbr.rel (0) target = $region69
    $region68: #{gadnr_forward.9} parent=1 // pred_region
      _
    $region69: #{gadnr_forward.9} parent=1 // pred_fallthru
      _
    // Predicated region
    $region70: #{gadnr_forward.9} parent=1 // pred_check
      _
    $region71: #{gadnr_forward.9} parent=1 // pred_check_branch
      %226 = sbr.rel (0) target = $region73
    $region72: #{gadnr_forward.9} parent=1 // pred_region
      _
    $region73: #{gadnr_forward.9} parent=1 // pred_fallthru
      _
    // Predicated region
    $region74: #{gadnr_forward.9} parent=1 // pred_check
      _
    $region75: #{gadnr_forward.9} parent=1 // pred_check_branch
      %228 = sbr.rel (0) target = $region77
    $region76: #{gadnr_forward.9} parent=1 // pred_region
      _
    $region77: #{gadnr_forward.9} parent=1 // pred_fallthru
      _
    // Predicated region
    $region78: #{gadnr_forward.9} parent=1 // pred_check
      _
    $region79: #{gadnr_forward.9} parent=1 // pred_check_branch
      %230 = sbr.rel (0) target = $region81
    $region80: #{gadnr_forward.9} parent=1 // pred_region
      %s232 = ssub.s32 16, 16
      %233 = vsyncadd [#allocation14], %s232
      %s235 = sshll.u32 [#allocation15], 4
      %s236 = int_to_ptr.vmem [resolvable:$true] %s235
      %238 = dma.hbm_to_vmem [thread:$0]  %s39, 16, %s236, [#allocation14]
    $region81: #{gadnr_forward.9} parent=1 // pred_fallthru
      _
    // Predicated region
    $region82: #{gadnr_forward.9} parent=1 // pred_check
      _
    $region83: #{gadnr_forward.9} parent=1 // pred_check_branch
      %240 = sbr.rel (0) target = $region85
    $region84: #{gadnr_forward.9} parent=1 // pred_region
      %s242 = ssub.s32 16, 16
      %243 = vsyncadd [#allocation17], %s242
      %s245 = sshll.u32 [#allocation16], 4
      %s246 = int_to_ptr.vmem [resolvable:$true] %s245
      %248 = dma.hbm_to_vmem [thread:$0]  %s41, 16, %s246, [#allocation17]
    $region85: #{gadnr_forward.9} parent=1 // pred_fallthru
      _
    // Predicated region
    $region86: #{gadnr_forward.9} parent=1 // pred_check
      _
    $region87: #{gadnr_forward.9} parent=1 // pred_check_branch
      %250 = sbr.rel (0) target = $region89
    $region88: #{gadnr_forward.9} parent=1 // pred_region
      %s252 = ssub.s32 16, 16
      %253 = vsyncadd [#allocation17], %s252
      %s255 = sshll.u32 [#allocation18], 4
      %s256 = int_to_ptr.vmem [resolvable:$true] %s255
      %258 = dma.hbm_to_vmem [thread:$0]  %s43, 16, %s256, [#allocation17]
    $region89: #{gadnr_forward.9} parent=1 // pred_fallthru
      _
    // Predicated region
    $region90: #{gadnr_forward.9} parent=1 // pred_check
      _
    $region91: #{gadnr_forward.9} parent=1 // pred_check_branch
      %260 = sbr.rel (0) target = $region93
    $region92: #{gadnr_forward.9} parent=1 // pred_region
      _
    $region93: #{gadnr_forward.9} parent=1 // pred_fallthru
      _
    // Predicated region
    $region94: #{gadnr_forward.9} parent=1 // pred_check
      _
    $region95: #{gadnr_forward.9} parent=1 // pred_check_branch
      %262 = sbr.rel (0) target = $region97
    $region96: #{gadnr_forward.9} parent=1 // pred_region
      %s264 = ssub.s32 16, 16
      %265 = vsyncadd [#allocation20], %s264
      %s267 = sshll.u32 [#allocation19], 4
      %s268 = int_to_ptr.vmem [resolvable:$true] %s267
      %270 = dma.hbm_to_vmem [thread:$0]  %s47, 16, %s268, [#allocation20]
    $region97: #{gadnr_forward.9} parent=1 // pred_fallthru
      _
    // Predicated region
    $region98: #{gadnr_forward.9} parent=1 // pred_check
      _
    $region99: #{gadnr_forward.9} parent=1 // pred_check_branch
      %272 = sbr.rel (0) target = $region101
    $region100: #{gadnr_forward.9} parent=1 // pred_region
      %s274 = ssub.s32 16, 16
      %275 = vsyncadd [#allocation20], %s274
      %s277 = sshll.u32 [#allocation21], 4
      %s278 = int_to_ptr.vmem [resolvable:$true] %s277
      %280 = dma.hbm_to_vmem [thread:$0]  %s49, 16, %s278, [#allocation20]
    $region101: #{gadnr_forward.9} parent=1 // pred_fallthru
      _
    // Predicated region
    $region102: #{gadnr_forward.9} parent=1 // pred_check
      _
    $region103: #{gadnr_forward.9} parent=1 // pred_check_branch
      %282 = sbr.rel (0) target = $region105
    $region104: #{gadnr_forward.9} parent=1 // pred_region
      %s284 = ssub.s32 16, 16
      %285 = vsyncadd [#allocation23], %s284
      %s287 = sshll.u32 [#allocation22], 4
      %s288 = int_to_ptr.vmem [resolvable:$true] %s287
      %290 = dma.hbm_to_vmem [thread:$0]  %s51, 16, %s288, [#allocation23]
    $region105: #{gadnr_forward.9} parent=1 // pred_fallthru
      _
    // Predicated region
    $region106: #{gadnr_forward.9} parent=1 // pred_check
      _
    $region107: #{gadnr_forward.9} parent=1 // pred_check_branch
      %292 = sbr.rel (0) target = $region109
    $region108: #{gadnr_forward.9} parent=1 // pred_region
      _
    $region109: #{gadnr_forward.9} parent=1 // pred_fallthru
      _
    // Predicated region
    $region110: #{gadnr_forward.9} parent=1 // pred_check
      _
    $region111: #{gadnr_forward.9} parent=1 // pred_check_branch
      %294 = sbr.rel (0) target = $region113
    $region112: #{gadnr_forward.9} parent=1 // pred_region
      %s296 = ssub.s32 16, 16
      %297 = vsyncadd [#allocation23], %s296
      %s299 = sshll.u32 [#allocation24], 4
      %s300 = int_to_ptr.vmem [resolvable:$true] %s299
      %302 = dma.hbm_to_vmem [thread:$0]  %s55, 16, %s300, [#allocation23]
    $region113: #{gadnr_forward.9} parent=1 // pred_fallthru
      _
    // Predicated region
    $region114: #{gadnr_forward.9} parent=1 // pred_check
      _
    $region115: #{gadnr_forward.9} parent=1 // pred_check_branch
      %304 = sbr.rel (0) target = $region117
    $region116: #{gadnr_forward.9} parent=1 // pred_region
      _
    $region117: #{gadnr_forward.9} parent=1 // pred_fallthru
      _
    // Predicated region
    $region118: #{gadnr_forward.9} parent=1 // pred_check
      _
    $region119: #{gadnr_forward.9} parent=1 // pred_check_branch
      %306 = sbr.rel (0) target = $region121
    $region120: #{gadnr_forward.9} parent=1 // pred_region
      %s308 = ssub.s32 16, 16
      %309 = vsyncadd [#allocation26], %s308
      %s311 = sshll.u32 [#allocation25], 4
      %s312 = int_to_ptr.vmem [resolvable:$true] %s311
      %314 = dma.hbm_to_vmem [thread:$0]  %s59, 16, %s312, [#allocation26]
    $region121: #{gadnr_forward.9} parent=1 // pred_fallthru
      _
    // Predicated region
    $region122: #{gadnr_forward.9} parent=1 // pred_check
      _
    $region123: #{gadnr_forward.9} parent=1 // pred_check_branch
      %316 = sbr.rel (0) target = $region125
    $region124: #{gadnr_forward.9} parent=1 // pred_region
      _
    $region125: #{gadnr_forward.9} parent=1 // pred_fallthru
      _
    // Predicated region
    $region126: #{gadnr_forward.9} parent=1 // pred_check
      _
    $region127: #{gadnr_forward.9} parent=1 // pred_check_branch
      %318 = sbr.rel (0) target = $region129
    $region128: #{gadnr_forward.9} parent=1 // pred_region
      %s320 = ssub.s32 16, 16
      %321 = vsyncadd [#allocation26], %s320
      %s323 = sshll.u32 [#allocation27], 4
      %s324 = int_to_ptr.vmem [resolvable:$true] %s323
      %326 = dma.hbm_to_vmem [thread:$0]  %s63, 16, %s324, [#allocation26]
    $region129: #{gadnr_forward.9} parent=1 // pred_fallthru
      _
    // Predicated region
    $region130: #{gadnr_forward.9} parent=1 // pred_check
      _
    $region131: #{gadnr_forward.9} parent=1 // pred_check_branch
      %328 = sbr.rel (0) target = $region133
    $region132: #{gadnr_forward.9} parent=1 // pred_region
      %s330 = ssub.s32 16, 16
      %331 = vsyncadd [#allocation29], %s330
      %s333 = sshll.u32 [#allocation28], 4
      %s334 = int_to_ptr.vmem [resolvable:$true] %s333
      %336 = dma.hbm_to_vmem [thread:$0]  %s65, 16, %s334, [#allocation29]
    $region133: #{gadnr_forward.9} parent=1 // pred_fallthru
      _
    // Predicated region
    $region134: #{gadnr_forward.9} parent=1 // pred_check
      _
    $region135: #{gadnr_forward.9} parent=1 // pred_check_branch
      %338 = sbr.rel (0) target = $region137
    $region136: #{gadnr_forward.9} parent=1 // pred_region
      %s340 = ssub.s32 16, 16
      %341 = vsyncadd [#allocation29], %s340
      %s343 = sshll.u32 [#allocation30], 4
      %s344 = int_to_ptr.vmem [resolvable:$true] %s343
      %346 = dma.hbm_to_vmem [thread:$0]  %s67, 16, %s344, [#allocation29]
    $region137: #{gadnr_forward.9} parent=1 // pred_fallthru
      _
    // Predicated region
    $region138: #{gadnr_forward.9} parent=1 // pred_check
      _
    $region139: #{gadnr_forward.9} parent=1 // pred_check_branch
      %348 = sbr.rel (0) target = $region141
    $region140: #{gadnr_forward.9} parent=1 // pred_region
      _
    $region141: #{gadnr_forward.9} parent=1 // pred_fallthru
      _
    // Predicated region
    $region142: #{gadnr_forward.9} parent=1 // pred_check
      _
    $region143: #{gadnr_forward.9} parent=1 // pred_check_branch
      %350 = sbr.rel (0) target = $region145
    $region144: #{gadnr_forward.9} parent=1 // pred_region
      %s352 = ssub.s32 16, 16
      %353 = vsyncadd [#allocation32], %s352
      %s355 = sshll.u32 [#allocation31], 4
      %s356 = int_to_ptr.vmem [resolvable:$true] %s355
      %358 = dma.hbm_to_vmem [thread:$0]  %s71, 16, %s356, [#allocation32]
    $region145: #{gadnr_forward.9} parent=1 // pred_fallthru
      _
    // Predicated region
    $region146: #{gadnr_forward.9} parent=1 // pred_check
      _
    $region147: #{gadnr_forward.9} parent=1 // pred_check_branch
      %360 = sbr.rel (0) target = $region149
    $region148: #{gadnr_forward.9} parent=1 // pred_region
      %s362 = ssub.s32 16, 16
      %363 = vsyncadd [#allocation32], %s362
      %s365 = sshll.u32 [#allocation33], 4
      %s366 = int_to_ptr.vmem [resolvable:$true] %s365
      %368 = dma.hbm_to_vmem [thread:$0]  %s73, 16, %s366, [#allocation32]
    $region149: #{gadnr_forward.9} parent=1 // pred_fallthru
      _
    // Predicated region
    $region150: #{gadnr_forward.9} parent=1 // pred_check
      _
    $region151: #{gadnr_forward.9} parent=1 // pred_check_branch
      %370 = sbr.rel (0) target = $region153
    $region152: #{gadnr_forward.9} parent=1 // pred_region
      %s372 = ssub.s32 16, 16
      %373 = vsyncadd [#allocation35], %s372
      %s375 = sshll.u32 [#allocation34], 4
      %s376 = int_to_ptr.vmem [resolvable:$true] %s375
      %378 = dma.hbm_to_vmem [thread:$0]  %s75, 16, %s376, [#allocation35]
    $region153: #{gadnr_forward.9} parent=1 // pred_fallthru
      _
    // Predicated region
    $region154: #{gadnr_forward.9} parent=1 // pred_check
      _
    $region155: #{gadnr_forward.9} parent=1 // pred_check_branch
      %380 = sbr.rel (0) target = $region157
    $region156: #{gadnr_forward.9} parent=1 // pred_region
      _
    $region157: #{gadnr_forward.9} parent=1 // pred_fallthru
      _
    // Predicated region
    $region158: #{gadnr_forward.9} parent=1 // pred_check
      _
    $region159: #{gadnr_forward.9} parent=1 // pred_check_branch
      %382 = sbr.rel (0) target = $region161
    $region160: #{gadnr_forward.9} parent=1 // pred_region
      %s384 = ssub.s32 16, 16
      %385 = vsyncadd [#allocation35], %s384
      %s387 = sshll.u32 [#allocation36], 4
      %s388 = int_to_ptr.vmem [resolvable:$true] %s387
      %390 = dma.hbm_to_vmem [thread:$0]  %s79, 16, %s388, [#allocation35]
    $region161: #{gadnr_forward.9} parent=1 // pred_fallthru
      _
    // Predicated region
    $region162: #{gadnr_forward.9} parent=1 // pred_check
      _
    $region163: #{gadnr_forward.9} parent=1 // pred_check_branch
      %392 = sbr.rel (0) target = $region165
    $region164: #{gadnr_forward.9} parent=1 // pred_region
      _
    $region165: #{gadnr_forward.9} parent=1 // pred_fallthru
      _
    // Predicated region
    $region166: #{gadnr_forward.9} parent=1 // pred_check
      _
    $region167: #{gadnr_forward.9} parent=1 // pred_check_branch
      %394 = sbr.rel (0) target = $region169
    $region168: #{gadnr_forward.9} parent=1 // pred_region
      %s396 = ssub.s32 16, 16
      %397 = vsyncadd [#allocation38], %s396
      %s399 = sshll.u32 [#allocation37], 4
      %s400 = int_to_ptr.vmem [resolvable:$true] %s399
      %402 = dma.hbm_to_vmem [thread:$0]  %s83, 16, %s400, [#allocation38]
    $region169: #{gadnr_forward.9} parent=1 // pred_fallthru
      _
    // Predicated region
    $region170: #{gadnr_forward.9} parent=1 // pred_check
      _
    $region171: #{gadnr_forward.9} parent=1 // pred_check_branch
      %404 = sbr.rel (0) target = $region173
    $region172: #{gadnr_forward.9} parent=1 // pred_region
      _
    $region173: #{gadnr_forward.9} parent=1 // pred_fallthru
      _
    // Predicated region
    $region174: #{gadnr_forward.9} parent=1 // pred_check
      _
    $region175: #{gadnr_forward.9} parent=1 // pred_check_branch
      %406 = sbr.rel (0) target = $region177
    $region176: #{gadnr_forward.9} parent=1 // pred_region
      %s408 = ssub.s32 16, 16
      %409 = vsyncadd [#allocation38], %s408
      %s411 = sshll.u32 [#allocation39], 4
      %s412 = int_to_ptr.vmem [resolvable:$true] %s411
      %414 = dma.hbm_to_vmem [thread:$0]  %s87, 16, %s412, [#allocation38]
    $region177: #{gadnr_forward.9} parent=1 // pred_fallthru
      _
    // Predicated region
    $region178: #{gadnr_forward.9} parent=1 // pred_check
      _
    $region179: #{gadnr_forward.9} parent=1 // pred_check_branch
      %416 = sbr.rel (0) target = $region181
    $region180: #{gadnr_forward.9} parent=1 // pred_region
      %s418 = ssub.s32 16, 16
      %419 = vsyncadd [#allocation41], %s418
      %s421 = sshll.u32 [#allocation40], 4
      %s422 = int_to_ptr.vmem [resolvable:$true] %s421
      %424 = dma.hbm_to_vmem [thread:$0]  %s89, 16, %s422, [#allocation41]
    $region181: #{gadnr_forward.9} parent=1 // pred_fallthru
      _
    // Predicated region
    $region182: #{gadnr_forward.9} parent=1 // pred_check
      _
    $region183: #{gadnr_forward.9} parent=1 // pred_check_branch
      %426 = sbr.rel (0) target = $region185
    $region184: #{gadnr_forward.9} parent=1 // pred_region
      %s428 = ssub.s32 16, 16
      %429 = vsyncadd [#allocation41], %s428
      %s431 = sshll.u32 [#allocation42], 4
      %s432 = int_to_ptr.vmem [resolvable:$true] %s431
      %434 = dma.hbm_to_vmem [thread:$0]  %s91, 16, %s432, [#allocation41]
    $region185: #{gadnr_forward.9} parent=1 // pred_fallthru
      _
    // Predicated region
    $region186: #{gadnr_forward.9} parent=1 // pred_check
      _
    $region187: #{gadnr_forward.9} parent=1 // pred_check_branch
      %436 = sbr.rel (0) target = $region189
    $region188: #{gadnr_forward.9} parent=1 // pred_region
      _
    $region189: #{gadnr_forward.9} parent=1 // pred_fallthru
      _
    // Predicated region
    $region190: #{gadnr_forward.9} parent=1 // pred_check
      _
    $region191: #{gadnr_forward.9} parent=1 // pred_check_branch
      %438 = sbr.rel (0) target = $region193
    $region192: #{gadnr_forward.9} parent=1 // pred_region
      %s440 = ssub.s32 16, 16
      %441 = vsyncadd [#allocation44], %s440
      %s443 = sshll.u32 [#allocation43], 4
      %s444 = int_to_ptr.vmem [resolvable:$true] %s443
      %446 = dma.hbm_to_vmem [thread:$0]  %s95, 16, %s444, [#allocation44]
    $region193: #{gadnr_forward.9} parent=1 // pred_fallthru
      _
    // Predicated region
    $region194: #{gadnr_forward.9} parent=1 // pred_check
      _
    $region195: #{gadnr_forward.9} parent=1 // pred_check_branch
      %448 = sbr.rel (0) target = $region197
    $region196: #{gadnr_forward.9} parent=1 // pred_region
      %s450 = ssub.s32 16, 16
      %451 = vsyncadd [#allocation44], %s450
      %s453 = sshll.u32 [#allocation45], 4
      %s454 = int_to_ptr.vmem [resolvable:$true] %s453
      %456 = dma.hbm_to_vmem [thread:$0]  %s97, 16, %s454, [#allocation44]
    $region197: #{gadnr_forward.9} parent=1 // pred_fallthru
      _
    // Predicated region
    $region198: #{gadnr_forward.9} parent=1 // pred_check
      _
    $region199: #{gadnr_forward.9} parent=1 // pred_check_branch
      %458 = sbr.rel (0) target = $region201
    $region200: #{gadnr_forward.9} parent=1 // pred_region
      %s460 = ssub.s32 16, 16
      %461 = vsyncadd [#allocation47], %s460
      %s463 = sshll.u32 [#allocation46], 4
      %s464 = int_to_ptr.vmem [resolvable:$true] %s463
      %466 = dma.hbm_to_vmem [thread:$0]  %s99, 16, %s464, [#allocation47]
    $region201: #{gadnr_forward.9} parent=1 // pred_fallthru
      _
    // Predicated region
    $region202: #{gadnr_forward.9} parent=1 // pred_check
      _
    $region203: #{gadnr_forward.9} parent=1 // pred_check_branch
      %468 = sbr.rel (0) target = $region205
    $region204: #{gadnr_forward.9} parent=1 // pred_region
      _
    $region205: #{gadnr_forward.9} parent=1 // pred_fallthru
      _
    // Predicated region
    $region206: #{gadnr_forward.9} parent=1 // pred_check
      _
    $region207: #{gadnr_forward.9} parent=1 // pred_check_branch
      %470 = sbr.rel (0) target = $region209
    $region208: #{gadnr_forward.9} parent=1 // pred_region
      %s472 = ssub.s32 16, 16
      %473 = vsyncadd [#allocation47], %s472
      %s475 = sshll.u32 [#allocation48], 4
      %s476 = int_to_ptr.vmem [resolvable:$true] %s475
      %478 = dma.hbm_to_vmem [thread:$0]  %s103, 16, %s476, [#allocation47]
    $region209: #{gadnr_forward.9} parent=1 // pred_fallthru
      _
    // Predicated region
    $region210: #{gadnr_forward.9} parent=1 // pred_check
      _
    $region211: #{gadnr_forward.9} parent=1 // pred_check_branch
      %480 = sbr.rel (0) target = $region213
    $region212: #{gadnr_forward.9} parent=1 // pred_region
      _
    $region213: #{gadnr_forward.9} parent=1 // pred_fallthru
      _
    // Predicated region
    $region214: #{gadnr_forward.9} parent=1 // pred_check
      _
    $region215: #{gadnr_forward.9} parent=1 // pred_check_branch
      %482 = sbr.rel (0) target = $region217
    $region216: #{gadnr_forward.9} parent=1 // pred_region
      %s484 = ssub.s32 16, 16
      %485 = vsyncadd [#allocation50], %s484
      %s487 = sshll.u32 [#allocation49], 4
      %s488 = int_to_ptr.vmem [resolvable:$true] %s487
      %490 = dma.hbm_to_vmem [thread:$0]  %s107, 16, %s488, [#allocation50]
    $region217: #{gadnr_forward.9} parent=1 // pred_fallthru
      _
    // Predicated region
    $region218: #{gadnr_forward.9} parent=1 // pred_check
      _
    $region219: #{gadnr_forward.9} parent=1 // pred_check_branch
      %492 = sbr.rel (0) target = $region221
    $region220: #{gadnr_forward.9} parent=1 // pred_region
      %493 = dma.done [#allocation6], 16
    $region221: #{gadnr_forward.9} parent=1 // pred_fallthru
      _
    // Predicated region
    $region222: #{gadnr_forward.9} parent=1 // pred_check
      _
    $region223: #{gadnr_forward.9} parent=1 // pred_check_branch
      %495 = sbr.rel (0) target = $region225
    $region224: #{gadnr_forward.9} parent=1 // pred_region
      %496 = dma.done [#allocation8], 16
    $region225: #{gadnr_forward.9} parent=1 // pred_fallthru
      _
    // Predicated region
    $region226: #{gadnr_forward.9} parent=1 // pred_check
      _
    $region227: #{gadnr_forward.9} parent=1 // pred_check_branch
      %498 = sbr.rel (0) target = $region229
    $region228: #{gadnr_forward.9} parent=1 // pred_region
      %499 = dma.done [#allocation8], 16
    $region229: #{gadnr_forward.9} parent=1 // pred_fallthru
      _
    // Predicated region
    $region230: #{gadnr_forward.9} parent=1 // pred_check
      _
    $region231: #{gadnr_forward.9} parent=1 // pred_check_branch
      %501 = sbr.rel (0) target = $region233
    $region232: #{gadnr_forward.9} parent=1 // pred_region
      %502 = dma.done [#allocation11], 16
    $region233: #{gadnr_forward.9} parent=1 // pred_fallthru
      _
    // Predicated region
    $region234: #{gadnr_forward.9} parent=1 // pred_check
      _
    $region235: #{gadnr_forward.9} parent=1 // pred_check_branch
      %504 = sbr.rel (0) target = $region237
    $region236: #{gadnr_forward.9} parent=1 // pred_region
      %505 = dma.done [#allocation11], 16
    $region237: #{gadnr_forward.9} parent=1 // pred_fallthru
      _
    // Predicated region
    $region238: #{gadnr_forward.9} parent=1 // pred_check
      _
    $region239: #{gadnr_forward.9} parent=1 // pred_check_branch
      %507 = sbr.rel (0) target = $region241
    $region240: #{gadnr_forward.9} parent=1 // pred_region
      %508 = dma.done [#allocation14], 16
    $region241: #{gadnr_forward.9} parent=1 // pred_fallthru
      _
    // Predicated region
    $region242: #{gadnr_forward.9} parent=1 // pred_check
      _
    $region243: #{gadnr_forward.9} parent=1 // pred_check_branch
      %510 = sbr.rel (0) target = $region245
    $region244: #{gadnr_forward.9} parent=1 // pred_region
      %511 = dma.done [#allocation14], 16
    $region245: #{gadnr_forward.9} parent=1 // pred_fallthru
      _
    // Predicated region
    $region246: #{gadnr_forward.9} parent=1 // pred_check
      _
    $region247: #{gadnr_forward.9} parent=1 // pred_check_branch
      %513 = sbr.rel (0) target = $region249
    $region248: #{gadnr_forward.9} parent=1 // pred_region
      %514 = dma.done [#allocation17], 16
    $region249: #{gadnr_forward.9} parent=1 // pred_fallthru
      _
    // Predicated region
    $region250: #{gadnr_forward.9} parent=1 // pred_check
      _
    $region251: #{gadnr_forward.9} parent=1 // pred_check_branch
      %516 = sbr.rel (0) target = $region253
    $region252: #{gadnr_forward.9} parent=1 // pred_region
      %517 = dma.done [#allocation17], 16
    $region253: #{gadnr_forward.9} parent=1 // pred_fallthru
      _
    // Predicated region
    $region254: #{gadnr_forward.9} parent=1 // pred_check
      _
    $region255: #{gadnr_forward.9} parent=1 // pred_check_branch
      %519 = sbr.rel (0) target = $region257
    $region256: #{gadnr_forward.9} parent=1 // pred_region
      %520 = dma.done [#allocation20], 16
    $region257: #{gadnr_forward.9} parent=1 // pred_fallthru
      _
    // Predicated region
    $region258: #{gadnr_forward.9} parent=1 // pred_check
      _
    $region259: #{gadnr_forward.9} parent=1 // pred_check_branch
      %522 = sbr.rel (0) target = $region261
    $region260: #{gadnr_forward.9} parent=1 // pred_region
      %523 = dma.done [#allocation20], 16
    $region261: #{gadnr_forward.9} parent=1 // pred_fallthru
      _
    // Predicated region
    $region262: #{gadnr_forward.9} parent=1 // pred_check
      _
    $region263: #{gadnr_forward.9} parent=1 // pred_check_branch
      %525 = sbr.rel (0) target = $region265
    $region264: #{gadnr_forward.9} parent=1 // pred_region
      %526 = dma.done [#allocation23], 16
    $region265: #{gadnr_forward.9} parent=1 // pred_fallthru
      _
    // Predicated region
    $region266: #{gadnr_forward.9} parent=1 // pred_check
      _
    $region267: #{gadnr_forward.9} parent=1 // pred_check_branch
      %528 = sbr.rel (0) target = $region269
    $region268: #{gadnr_forward.9} parent=1 // pred_region
      %529 = dma.done [#allocation23], 16
    $region269: #{gadnr_forward.9} parent=1 // pred_fallthru
      _
    // Predicated region
    $region270: #{gadnr_forward.9} parent=1 // pred_check
      _
    $region271: #{gadnr_forward.9} parent=1 // pred_check_branch
      %531 = sbr.rel (0) target = $region273
    $region272: #{gadnr_forward.9} parent=1 // pred_region
      %532 = dma.done [#allocation26], 16
    $region273: #{gadnr_forward.9} parent=1 // pred_fallthru
      _
    // Predicated region
    $region274: #{gadnr_forward.9} parent=1 // pred_check
      _
    $region275: #{gadnr_forward.9} parent=1 // pred_check_branch
      %534 = sbr.rel (0) target = $region277
    $region276: #{gadnr_forward.9} parent=1 // pred_region
      %535 = dma.done [#allocation26], 16
    $region277: #{gadnr_forward.9} parent=1 // pred_fallthru
      _
    // Predicated region
    $region278: #{gadnr_forward.9} parent=1 // pred_check
      _
    $region279: #{gadnr_forward.9} parent=1 // pred_check_branch
      %537 = sbr.rel (0) target = $region281
    $region280: #{gadnr_forward.9} parent=1 // pred_region
      %538 = dma.done [#allocation29], 16
    $region281: #{gadnr_forward.9} parent=1 // pred_fallthru
      _
    // Predicated region
    $region282: #{gadnr_forward.9} parent=1 // pred_check
      _
    $region283: #{gadnr_forward.9} parent=1 // pred_check_branch
      %540 = sbr.rel (0) target = $region285
    $region284: #{gadnr_forward.9} parent=1 // pred_region
      %541 = dma.done [#allocation29], 16
    $region285: #{gadnr_forward.9} parent=1 // pred_fallthru
      _
    // Predicated region
    $region286: #{gadnr_forward.9} parent=1 // pred_check
      _
    $region287: #{gadnr_forward.9} parent=1 // pred_check_branch
      %543 = sbr.rel (0) target = $region289
    $region288: #{gadnr_forward.9} parent=1 // pred_region
      %544 = dma.done [#allocation32], 16
    $region289: #{gadnr_forward.9} parent=1 // pred_fallthru
      _
    // Predicated region
    $region290: #{gadnr_forward.9} parent=1 // pred_check
      _
    $region291: #{gadnr_forward.9} parent=1 // pred_check_branch
      %546 = sbr.rel (0) target = $region293
    $region292: #{gadnr_forward.9} parent=1 // pred_region
      %547 = dma.done [#allocation32], 16
    $region293: #{gadnr_forward.9} parent=1 // pred_fallthru
      _
    // Predicated region
    $region294: #{gadnr_forward.9} parent=1 // pred_check
      _
    $region295: #{gadnr_forward.9} parent=1 // pred_check_branch
      %549 = sbr.rel (0) target = $region297
    $region296: #{gadnr_forward.9} parent=1 // pred_region
      %550 = dma.done [#allocation35], 16
    $region297: #{gadnr_forward.9} parent=1 // pred_fallthru
      _
    // Predicated region
    $region298: #{gadnr_forward.9} parent=1 // pred_check
      _
    $region299: #{gadnr_forward.9} parent=1 // pred_check_branch
      %552 = sbr.rel (0) target = $region301
    $region300: #{gadnr_forward.9} parent=1 // pred_region
      %553 = dma.done [#allocation35], 16
    $region301: #{gadnr_forward.9} parent=1 // pred_fallthru
      _
    // Predicated region
    $region302: #{gadnr_forward.9} parent=1 // pred_check
      _
    $region303: #{gadnr_forward.9} parent=1 // pred_check_branch
      %555 = sbr.rel (0) target = $region305
    $region304: #{gadnr_forward.9} parent=1 // pred_region
      %556 = dma.done [#allocation38], 16
    $region305: #{gadnr_forward.9} parent=1 // pred_fallthru
      _
    // Predicated region
    $region306: #{gadnr_forward.9} parent=1 // pred_check
      _
    $region307: #{gadnr_forward.9} parent=1 // pred_check_branch
      %558 = sbr.rel (0) target = $region309
    $region308: #{gadnr_forward.9} parent=1 // pred_region
      %559 = dma.done [#allocation38], 16
    $region309: #{gadnr_forward.9} parent=1 // pred_fallthru
      _
    // Predicated region
    $region310: #{gadnr_forward.9} parent=1 // pred_check
      _
    $region311: #{gadnr_forward.9} parent=1 // pred_check_branch
      %561 = sbr.rel (0) target = $region313
    $region312: #{gadnr_forward.9} parent=1 // pred_region
      %562 = dma.done [#allocation41], 16
    $region313: #{gadnr_forward.9} parent=1 // pred_fallthru
      _
    // Predicated region
    $region314: #{gadnr_forward.9} parent=1 // pred_check
      _
    $region315: #{gadnr_forward.9} parent=1 // pred_check_branch
      %564 = sbr.rel (0) target = $region317
    $region316: #{gadnr_forward.9} parent=1 // pred_region
      %565 = dma.done [#allocation41], 16
    $region317: #{gadnr_forward.9} parent=1 // pred_fallthru
      _
    // Predicated region
    $region318: #{gadnr_forward.9} parent=1 // pred_check
      _
    $region319: #{gadnr_forward.9} parent=1 // pred_check_branch
      %567 = sbr.rel (0) target = $region321
    $region320: #{gadnr_forward.9} parent=1 // pred_region
      %568 = dma.done [#allocation44], 16
    $region321: #{gadnr_forward.9} parent=1 // pred_fallthru
      _
    // Predicated region
    $region322: #{gadnr_forward.9} parent=1 // pred_check
      _
    $region323: #{gadnr_forward.9} parent=1 // pred_check_branch
      %570 = sbr.rel (0) target = $region325
    $region324: #{gadnr_forward.9} parent=1 // pred_region
      %571 = dma.done [#allocation44], 16
    $region325: #{gadnr_forward.9} parent=1 // pred_fallthru
      _
    // Predicated region
    $region326: #{gadnr_forward.9} parent=1 // pred_check
      _
    $region327: #{gadnr_forward.9} parent=1 // pred_check_branch
      %573 = sbr.rel (0) target = $region329
    $region328: #{gadnr_forward.9} parent=1 // pred_region
      %574 = dma.done [#allocation47], 16
    $region329: #{gadnr_forward.9} parent=1 // pred_fallthru
      _
    // Predicated region
    $region330: #{gadnr_forward.9} parent=1 // pred_check
      _
    $region331: #{gadnr_forward.9} parent=1 // pred_check_branch
      %576 = sbr.rel (0) target = $region333
    $region332: #{gadnr_forward.9} parent=1 // pred_region
      %577 = dma.done [#allocation47], 16
    $region333: #{gadnr_forward.9} parent=1 // pred_fallthru
      _
    // Predicated region
    $region334: #{gadnr_forward.9} parent=1 // pred_check
      _
    $region335: #{gadnr_forward.9} parent=1 // pred_check_branch
      %579 = sbr.rel (0) target = $region337
    $region336: #{gadnr_forward.9} parent=1 // pred_region
      %580 = dma.done [#allocation50], 16
    $region337: #{gadnr_forward.9} parent=1 // pred_fallthru
      _
    %v582 = vld [vmem:[%s1] sm:$0xff]
    %v583 = vld [vmem:[%s1 + $0x8] sm:$0xff]
    %v584 = vld [vmem:[%s3] sm:$0xff]
    %v585 = vld [vmem:[%s3 + $0x8] sm:$0xff]
    %v586 = vpack.c.bf16 %v583, %v582
    %v587 = vld [vmem:[%s5] sm:$0xf]
    %v588 = vld [vmem:[%s5 + $0x4] sm:$0xf]
    %v589 = vld [vmem:[%s5 + $0x8] sm:$0xf]
    %v590 = vld [vmem:[%s5 + $0xc] sm:$0xf]
    %v591 = vld [vmem:[%s7] sm:$0x1]
    %v593 = vlaneseq
    %v594 = vshrl.u32 %v593, 7
    %v595 = vsub.s32 0, %v594
    %v596 = vrot.slane %v591, %v595
    %v602 = vunpack.c.l.b16 %v587
    %v603 = vunpack.c.l.b16 %v588
    %v604 = vunpack.c.l.b16 %v589
    %v605 = vunpack.c.l.b16 %v590
    %v606 = vpack.c.b16 %v603, %v602
    %v607 = vpack.c.b16 %v605, %v604
    %vm610 = vcmask 261120
    %v612 = vsel %vm610, %v586, 0
    %614 = vmatprep.subr.bf16.mxu0 0
    %615 = vmatpush1.bf16.msra.mxu0 %v606
    %616 = vmatprep.subr.bf16.mxu0 0
    %617 = vmatpush1.bf16.msra.mxu0 %v607
    %618 = vmatprep.subr.bf16.mxu0 0
    %619 = vmatpush1.bf16.msra.mxu0 0
    %620 = vmatprep.subr.bf16.mxu0 0
    %621 = vmatpush1.bf16.msra.mxu0 0
    %622 = vmatprep.subr.bf16.mxu0 0
    %623 = vmatpush1.bf16.msra.mxu0 0
    %624 = vmatprep.subr.bf16.mxu0 0
    %625 = vmatpush1.bf16.msra.mxu0 0
    %626 = vmatprep.subr.bf16.mxu0 0
    %627 = vmatpush1.bf16.msra.mxu0 0
    %628 = vmatprep.subr.bf16.mxu0 0
    %629 = vmatpush1.bf16.msra.mxu0 0
    %630 = vmatprep.subr.bf16.mxu0 0
    %631 = vmatpush1.bf16.msra.mxu0 0
    %632 = vmatprep.subr.bf16.mxu0 0
    %633 = vmatpush1.bf16.msra.mxu0 0
    %634 = vmatprep.subr.bf16.mxu0 0
    %635 = vmatpush1.bf16.msra.mxu0 0
    %636 = vmatprep.subr.bf16.mxu0 0
    %637 = vmatpush1.bf16.msra.mxu0 0
    %638 = vmatprep.subr.bf16.mxu0 0
    %639 = vmatpush1.bf16.msra.mxu0 0
    %640 = vmatprep.subr.bf16.mxu0 0
    %641 = vmatpush1.bf16.msra.mxu0 0
    %642 = vmatprep.subr.bf16.mxu0 0
    %643 = vmatpush1.bf16.msra.mxu0 0
    %644 = vmatprep.subr.bf16.mxu0 0
    %645 = vmatpush1.bf16.msra.mxu0 0
    %646 = vmatprep.mubr.bf16.mxu0 0
    %647 = vmatmul.mubr.bf16.gmra.mrb[0].mxu0 %v612
    %v648 = vpop.f32.mrb[0].mxu0
    %v649 = vadd.f32 %v596, %v648
    %v650 = vpop.f32.mrb[0].mxu0
    %v651 = vpop.f32.mrb[0].mxu0
    %v652 = vadd.f32 %v596, %v651
    %v653 = vpop.f32.mrb[0].mxu0
    %654 = vdwg.mxu0
    %v655 = vsel %vm610, %v649, 0.0
    %v656 = vsel %vm610, %v652, 0.0
    %v657 = vadd.f32 %v655, %v656
    %v658 = vrot.slane %v657, 4
    %v659 = vadd.f32 %v657, %v658
    %v660 = vrot.slane %v659, 2
    %v661 = vadd.f32 %v659, %v660
    %v662 = vrot.slane %v661, 1
    %v663 = vadd.f32 %v661, %v662
    %v664 = vrcp.pop 16.0
    %v665 = vmul.f32 %v663, %v664
    %v666 = vsub.f32 %v649, %v665
    %v667 = vsub.f32 %v652, %v665
    %v668 = vmul.f32 %v666, %v666
    %v669 = vmul.f32 %v667, %v667
    %v670 = vsel %vm610, %v668, 0.0
    %v671 = vsel %vm610, %v669, 0.0
    %v672 = vadd.f32 %v670, %v671
    %v673 = vrot.slane %v672, 4
    %v674 = vadd.f32 %v672, %v673
    %v675 = vrot.slane %v674, 2
    %v676 = vadd.f32 %v674, %v675
    %v677 = vrot.slane %v676, 1
    %v678 = vadd.f32 %v676, %v677
    %v679 = vmul.f32 %v678, %v664
    %v680 = vadd.f32 %v679, 1e-05
    %v681 = vrsqrt.pop %v680
    %v682 = vmul.f32 %v666, %v681
    %v683 = vmul.f32 %v667, %v681
    %v684 = vld [vmem:[%s9] sm:$0x1]
    %v686 = vlaneseq
    %v687 = vshrl.u32 %v686, 7
    %v688 = vsub.s32 0, %v687
    %v689 = vrot.slane %v684, %v688
    %v691 = vmul.f32 %v682, %v689
    %v692 = vmul.f32 %v683, %v689
    %v693 = vld [vmem:[%s11] sm:$0x1]
    %v695 = vlaneseq
    %v696 = vshrl.u32 %v695, 7
    %v697 = vsub.s32 0, %v696
    %v698 = vrot.slane %v693, %v697
    %v700 = vadd.f32 %v691, %v698
    %v701 = vadd.f32 %v692, %v698
    %v702 = vmax.f32 %v700, 0.0
    %v703 = vmax.f32 %v701, 0.0
    %v704 = vpack.c.bf16 %v703, %v702
    %v705 = vld [vmem:[%s13] sm:$0xf]
    %v706 = vld [vmem:[%s13 + $0x4] sm:$0xf]
    %v707 = vld [vmem:[%s13 + $0x8] sm:$0xf]
    %v708 = vld [vmem:[%s13 + $0xc] sm:$0xf]
    %v709 = vld [vmem:[#allocation5] sm:$0x1]
    %v711 = vlaneseq
    %v712 = vshrl.u32 %v711, 7
    %v713 = vsub.s32 0, %v712
    %v714 = vrot.slane %v709, %v713
    %v720 = vunpack.c.l.b16 %v705
    %v721 = vunpack.c.l.b16 %v706
    %v722 = vunpack.c.l.b16 %v707
    %v723 = vunpack.c.l.b16 %v708
    %v724 = vpack.c.b16 %v721, %v720
    %v725 = vpack.c.b16 %v723, %v722
    %v729 = vsel %vm610, %v704, 0
    %731 = vmatprep.subr.bf16.mxu0 0
    %732 = vmatpush1.bf16.msra.mxu0 %v724
    %733 = vmatprep.subr.bf16.mxu0 0
    %734 = vmatpush1.bf16.msra.mxu0 %v725
    %735 = vmatprep.subr.bf16.mxu0 0
    %736 = vmatpush1.bf16.msra.mxu0 0
    %737 = vmatprep.subr.bf16.mxu0 0
    %738 = vmatpush1.bf16.msra.mxu0 0
    %739 = vmatprep.subr.bf16.mxu0 0
    %740 = vmatpush1.bf16.msra.mxu0 0
    %741 = vmatprep.subr.bf16.mxu0 0
    %742 = vmatpush1.bf16.msra.mxu0 0
    %743 = vmatprep.subr.bf16.mxu0 0
    %744 = vmatpush1.bf16.msra.mxu0 0
    %745 = vmatprep.subr.bf16.mxu0 0
    %746 = vmatpush1.bf16.msra.mxu0 0
    %747 = vmatprep.subr.bf16.mxu0 0
    %748 = vmatpush1.bf16.msra.mxu0 0
    %749 = vmatprep.subr.bf16.mxu0 0
    %750 = vmatpush1.bf16.msra.mxu0 0
    %751 = vmatprep.subr.bf16.mxu0 0
    %752 = vmatpush1.bf16.msra.mxu0 0
    %753 = vmatprep.subr.bf16.mxu0 0
    %754 = vmatpush1.bf16.msra.mxu0 0
    %755 = vmatprep.subr.bf16.mxu0 0
    %756 = vmatpush1.bf16.msra.mxu0 0
    %757 = vmatprep.subr.bf16.mxu0 0
    %758 = vmatpush1.bf16.msra.mxu0 0
    %759 = vmatprep.subr.bf16.mxu0 0
    %760 = vmatpush1.bf16.msra.mxu0 0
    %761 = vmatprep.subr.bf16.mxu0 0
    %762 = vmatpush1.bf16.msra.mxu0 0
    %763 = vmatprep.mubr.bf16.mxu0 0
    %764 = vmatmul.mubr.bf16.gmra.mrb[0].mxu0 %v729
    %v765 = vpop.f32.mrb[0].mxu0
    %v766 = vadd.f32 %v714, %v765
    %v767 = vpop.f32.mrb[0].mxu0
    %v768 = vpop.f32.mrb[0].mxu0
    %v769 = vadd.f32 %v714, %v768
    %v770 = vpop.f32.mrb[0].mxu0
    %771 = vdwg.mxu0
    %v772 = vsel %vm610, %v766, 0.0
    %v773 = vsel %vm610, %v769, 0.0
    %v774 = vadd.f32 %v772, %v773
    %v775 = vrot.slane %v774, 4
    %v776 = vadd.f32 %v774, %v775
    %v777 = vrot.slane %v776, 2
    %v778 = vadd.f32 %v776, %v777
    %v779 = vrot.slane %v778, 1
    %v780 = vadd.f32 %v778, %v779
    %v781 = vmul.f32 %v780, %v664
    %v782 = vsub.f32 %v766, %v781
    %v783 = vsub.f32 %v769, %v781
    %v784 = vmul.f32 %v782, %v782
    %v785 = vmul.f32 %v783, %v783
    %v786 = vsel %vm610, %v784, 0.0
    %v787 = vsel %vm610, %v785, 0.0
    %v788 = vadd.f32 %v786, %v787
    %v789 = vrot.slane %v788, 4
    %v790 = vadd.f32 %v788, %v789
    %v791 = vrot.slane %v790, 2
    %v792 = vadd.f32 %v790, %v791
    %v793 = vrot.slane %v792, 1
    %v794 = vadd.f32 %v792, %v793
    %v795 = vmul.f32 %v794, %v664
    %v796 = vadd.f32 %v795, 1e-05
    %v797 = vrsqrt.pop %v796
    %v798 = vmul.f32 %v782, %v797
    %v799 = vmul.f32 %v783, %v797
    %v800 = vld [vmem:[#allocation7] sm:$0x1]
    %v802 = vlaneseq
    %v803 = vshrl.u32 %v802, 7
    %v804 = vsub.s32 0, %v803
    %v805 = vrot.slane %v800, %v804
    %v807 = vmul.f32 %v798, %v805
    %v808 = vmul.f32 %v799, %v805
    %v809 = vld [vmem:[#allocation9] sm:$0x1]
    %v811 = vlaneseq
    %v812 = vshrl.u32 %v811, 7
    %v813 = vsub.s32 0, %v812
    %v814 = vrot.slane %v809, %v813
    %v816 = vadd.f32 %v807, %v814
    %v817 = vadd.f32 %v808, %v814
    %v818 = vmax.f32 %v816, 0.0
    %v819 = vmax.f32 %v817, 0.0
    %v820 = vpack.c.bf16 %v819, %v818
    %v821 = vld [vmem:[%s21] sm:$0xf]
    %v822 = vld [vmem:[%s21 + $0x4] sm:$0xf]
    %v823 = vld [vmem:[%s21 + $0x8] sm:$0xf]
    %v824 = vld [vmem:[%s21 + $0xc] sm:$0xf]
    %v825 = vld [vmem:[#allocation10] sm:$0x1]
    %v827 = vlaneseq
    %v828 = vshrl.u32 %v827, 7
    %v829 = vsub.s32 0, %v828
    %v830 = vrot.slane %v825, %v829
    %v836 = vunpack.c.l.b16 %v821
    %v837 = vunpack.c.l.b16 %v822
    %v838 = vunpack.c.l.b16 %v823
    %v839 = vunpack.c.l.b16 %v824
    %v840 = vpack.c.b16 %v837, %v836
    %v841 = vpack.c.b16 %v839, %v838
    %v845 = vsel %vm610, %v820, 0
    %847 = vmatprep.subr.bf16.mxu0 0
    %848 = vmatpush1.bf16.msra.mxu0 %v840
    %849 = vmatprep.subr.bf16.mxu0 0
    %850 = vmatpush1.bf16.msra.mxu0 %v841
    %851 = vmatprep.subr.bf16.mxu0 0
    %852 = vmatpush1.bf16.msra.mxu0 0
    %853 = vmatprep.subr.bf16.mxu0 0
    %854 = vmatpush1.bf16.msra.mxu0 0
    %855 = vmatprep.subr.bf16.mxu0 0
    %856 = vmatpush1.bf16.msra.mxu0 0
    %857 = vmatprep.subr.bf16.mxu0 0
    %858 = vmatpush1.bf16.msra.mxu0 0
    %859 = vmatprep.subr.bf16.mxu0 0
    %860 = vmatpush1.bf16.msra.mxu0 0
    %861 = vmatprep.subr.bf16.mxu0 0
    %862 = vmatpush1.bf16.msra.mxu0 0
    %863 = vmatprep.subr.bf16.mxu0 0
    %864 = vmatpush1.bf16.msra.mxu0 0
    %865 = vmatprep.subr.bf16.mxu0 0
    %866 = vmatpush1.bf16.msra.mxu0 0
    %867 = vmatprep.subr.bf16.mxu0 0
    %868 = vmatpush1.bf16.msra.mxu0 0
    %869 = vmatprep.subr.bf16.mxu0 0
    %870 = vmatpush1.bf16.msra.mxu0 0
    %871 = vmatprep.subr.bf16.mxu0 0
    %872 = vmatpush1.bf16.msra.mxu0 0
    %873 = vmatprep.subr.bf16.mxu0 0
    %874 = vmatpush1.bf16.msra.mxu0 0
    %875 = vmatprep.subr.bf16.mxu0 0
    %876 = vmatpush1.bf16.msra.mxu0 0
    %877 = vmatprep.subr.bf16.mxu0 0
    %878 = vmatpush1.bf16.msra.mxu0 0
    %879 = vmatprep.mubr.bf16.mxu0 0
    %880 = vmatmul.mubr.bf16.gmra.mrb[0].mxu0 %v845
    %v881 = vpop.f32.mrb[0].mxu0
    %v882 = vadd.f32 %v830, %v881
    %v883 = vpop.f32.mrb[0].mxu0
    %v884 = vpop.f32.mrb[0].mxu0
    %v885 = vadd.f32 %v830, %v884
    %v886 = vpop.f32.mrb[0].mxu0
    %887 = vdwg.mxu0
    %v888 = vsel %vm610, %v882, 0.0
    %v889 = vsel %vm610, %v885, 0.0
    %v890 = vadd.f32 %v888, %v889
    %v891 = vrot.slane %v890, 4
    %v892 = vadd.f32 %v890, %v891
    %v893 = vrot.slane %v892, 2
    %v894 = vadd.f32 %v892, %v893
    %v895 = vrot.slane %v894, 1
    %v896 = vadd.f32 %v894, %v895
    %v897 = vmul.f32 %v896, %v664
    %v898 = vsub.f32 %v882, %v897
    %v899 = vsub.f32 %v885, %v897
    %v900 = vmul.f32 %v898, %v898
    %v901 = vmul.f32 %v899, %v899
    %v902 = vsel %vm610, %v900, 0.0
    %v903 = vsel %vm610, %v901, 0.0
    %v904 = vadd.f32 %v902, %v903
    %v905 = vrot.slane %v904, 4
    %v906 = vadd.f32 %v904, %v905
    %v907 = vrot.slane %v906, 2
    %v908 = vadd.f32 %v906, %v907
    %v909 = vrot.slane %v908, 1
    %v910 = vadd.f32 %v908, %v909
    %v911 = vmul.f32 %v910, %v664
    %v912 = vadd.f32 %v911, 1e-05
    %v913 = vrsqrt.pop %v912
    %v914 = vmul.f32 %v898, %v913
    %v915 = vmul.f32 %v899, %v913
    %v916 = vld [vmem:[#allocation12] sm:$0x1]
    %v918 = vlaneseq
    %v919 = vshrl.u32 %v918, 7
    %v920 = vsub.s32 0, %v919
    %v921 = vrot.slane %v916, %v920
    %v923 = vmul.f32 %v914, %v921
    %v924 = vmul.f32 %v915, %v921
    %v925 = vld [vmem:[#allocation13] sm:$0x1]
    %v927 = vlaneseq
    %v928 = vshrl.u32 %v927, 7
    %v929 = vsub.s32 0, %v928
    %v930 = vrot.slane %v925, %v929
    %v932 = vadd.f32 %v923, %v930
    %v933 = vadd.f32 %v924, %v930
    %v934 = vmax.f32 %v932, 0.0
    %v935 = vmax.f32 %v933, 0.0
    %v936 = vpack.c.bf16 %v935, %v934
    %v937 = vld [vmem:[%s29] sm:$0xf]
    %v938 = vld [vmem:[%s29 + $0x4] sm:$0xf]
    %v939 = vld [vmem:[%s29 + $0x8] sm:$0xf]
    %v940 = vld [vmem:[%s29 + $0xc] sm:$0xf]
    %v941 = vld [vmem:[#allocation2] sm:$0x1]
    %v943 = vlaneseq
    %v944 = vshrl.u32 %v943, 7
    %v945 = vsub.s32 0, %v944
    %v946 = vrot.slane %v941, %v945
    %v952 = vunpack.c.l.b16 %v937
    %v953 = vunpack.c.l.b16 %v938
    %v954 = vunpack.c.l.b16 %v939
    %v955 = vunpack.c.l.b16 %v940
    %v956 = vpack.c.b16 %v953, %v952
    %v957 = vpack.c.b16 %v955, %v954
    %v961 = vsel %vm610, %v936, 0
    %963 = vmatprep.subr.bf16.mxu0 0
    %964 = vmatpush1.bf16.msra.mxu0 %v956
    %965 = vmatprep.subr.bf16.mxu0 0
    %966 = vmatpush1.bf16.msra.mxu0 %v957
    %967 = vmatprep.subr.bf16.mxu0 0
    %968 = vmatpush1.bf16.msra.mxu0 0
    %969 = vmatprep.subr.bf16.mxu0 0
    %970 = vmatpush1.bf16.msra.mxu0 0
    %971 = vmatprep.subr.bf16.mxu0 0
    %972 = vmatpush1.bf16.msra.mxu0 0
    %973 = vmatprep.subr.bf16.mxu0 0
    %974 = vmatpush1.bf16.msra.mxu0 0
    %975 = vmatprep.subr.bf16.mxu0 0
    %976 = vmatpush1.bf16.msra.mxu0 0
    %977 = vmatprep.subr.bf16.mxu0 0
    %978 = vmatpush1.bf16.msra.mxu0 0
    %979 = vmatprep.subr.bf16.mxu0 0
    %980 = vmatpush1.bf16.msra.mxu0 0
    %981 = vmatprep.subr.bf16.mxu0 0
    %982 = vmatpush1.bf16.msra.mxu0 0
    %983 = vmatprep.subr.bf16.mxu0 0
    %984 = vmatpush1.bf16.msra.mxu0 0
    %985 = vmatprep.subr.bf16.mxu0 0
    %986 = vmatpush1.bf16.msra.mxu0 0
    %987 = vmatprep.subr.bf16.mxu0 0
    %988 = vmatpush1.bf16.msra.mxu0 0
    %989 = vmatprep.subr.bf16.mxu0 0
    %990 = vmatpush1.bf16.msra.mxu0 0
    %991 = vmatprep.subr.bf16.mxu0 0
    %992 = vmatpush1.bf16.msra.mxu0 0
    %993 = vmatprep.subr.bf16.mxu0 0
    %994 = vmatpush1.bf16.msra.mxu0 0
    %995 = vmatprep.mubr.bf16.mxu0 0
    %996 = vmatmul.mubr.bf16.gmra.mrb[0].mxu0 %v961
    %v997 = vpop.f32.mrb[0].mxu0
    %v998 = vadd.f32 %v946, %v997
    %v999 = vpop.f32.mrb[0].mxu0
    %v1000 = vpop.f32.mrb[0].mxu0
    %v1001 = vadd.f32 %v946, %v1000
    %v1002 = vpop.f32.mrb[0].mxu0
    %1003 = vdwg.mxu0
    %v1004 = vmax.f32 %v998, 0.0
    %v1005 = vmax.f32 %v1001, 0.0
    %v1006 = vpack.c.bf16 %v1005, %v1004
    %v1007 = vld [vmem:[#allocation3] sm:$0x1]
    %v1008 = vld [vmem:[#allocation4] sm:$0x1]
    %v1010 = vlaneseq
    %v1011 = vshrl.u32 %v1010, 7
    %v1012 = vsub.s32 0, %v1011
    %v1013 = vrot.slane %v1008, %v1012
    %vm1015 = vcmask 7168
    %v1017 = vsel %vm1015, %v1006, 0
    %vm1019 = vcmask 1040384
    %v1020 = vsel 0, 4294967295, 65535
    %v1021 = vsel %vm1019, %v1020, 0
    %v1023 = vand.u32 %v1007, %v1021
    %1025 = vmatprep.subr.bf16.mxu0 0
    %1026 = vmatpush1.bf16.msra.mxu0 %v1023
    %1027 = vmatprep.subr.bf16.mxu0 0
    %1028 = vmatpush1.bf16.msra.mxu0 0
    %1029 = vmatprep.subr.bf16.mxu0 0
    %1030 = vmatpush1.bf16.msra.mxu0 0
    %1031 = vmatprep.subr.bf16.mxu0 0
    %1032 = vmatpush1.bf16.msra.mxu0 0
    %1033 = vmatprep.subr.bf16.mxu0 0
    %1034 = vmatpush1.bf16.msra.mxu0 0
    %1035 = vmatprep.subr.bf16.mxu0 0
    %1036 = vmatpush1.bf16.msra.mxu0 0
    %1037 = vmatprep.subr.bf16.mxu0 0
    %1038 = vmatpush1.bf16.msra.mxu0 0
    %1039 = vmatprep.subr.bf16.mxu0 0
    %1040 = vmatpush1.bf16.msra.mxu0 0
    %1041 = vmatprep.subr.bf16.mxu0 0
    %1042 = vmatpush1.bf16.msra.mxu0 0
    %1043 = vmatprep.subr.bf16.mxu0 0
    %1044 = vmatpush1.bf16.msra.mxu0 0
    %1045 = vmatprep.subr.bf16.mxu0 0
    %1046 = vmatpush1.bf16.msra.mxu0 0
    %1047 = vmatprep.subr.bf16.mxu0 0
    %1048 = vmatpush1.bf16.msra.mxu0 0
    %1049 = vmatprep.subr.bf16.mxu0 0
    %1050 = vmatpush1.bf16.msra.mxu0 0
    %1051 = vmatprep.subr.bf16.mxu0 0
    %1052 = vmatpush1.bf16.msra.mxu0 0
    %1053 = vmatprep.subr.bf16.mxu0 0
    %1054 = vmatpush1.bf16.msra.mxu0 0
    %1055 = vmatprep.subr.bf16.mxu0 0
    %1056 = vmatpush1.bf16.msra.mxu0 0
    %1057 = vmatprep.mubr.bf16.mxu0 0
    %1058 = vmatmul.mubr.bf16.gmra.mrb[0].mxu0 %v1017
    %v1059 = vpop.f32.mrb[0].mxu0
    %v1060 = vadd.f32 %v1013, %v1059
    %v1061 = vpop.f32.mrb[0].mxu0
    %v1062 = vpop.f32.mrb[0].mxu0
    %v1063 = vadd.f32 %v1013, %v1062
    %v1064 = vpop.f32.mrb[0].mxu0
    %1065 = vdwg.mxu0
    %v1066 = vmax.f32 %v1060, 0.0
    %v1067 = vmax.f32 %v1063, 0.0
    %1068 = vst.msk [vmem:[%s109] sm:$0xff] %vm1015, %v1066
    %1069 = vst.msk [vmem:[%s109 + $0x8] sm:$0xff] %vm1015, %v1067
    %v1070 = vld [vmem:[%s37] sm:$0xf]
    %v1071 = vld [vmem:[%s37 + $0x4] sm:$0xf]
    %v1072 = vld [vmem:[%s37 + $0x8] sm:$0xf]
    %v1073 = vld [vmem:[%s37 + $0xc] sm:$0xf]
    %v1074 = vld [vmem:[#allocation15] sm:$0x1]
    %v1076 = vlaneseq
    %v1077 = vshrl.u32 %v1076, 7
    %v1078 = vsub.s32 0, %v1077
    %v1079 = vrot.slane %v1074, %v1078
    %v1085 = vunpack.c.l.b16 %v1070
    %v1086 = vunpack.c.l.b16 %v1071
    %v1087 = vunpack.c.l.b16 %v1072
    %v1088 = vunpack.c.l.b16 %v1073
    %v1089 = vpack.c.b16 %v1086, %v1085
    %v1090 = vpack.c.b16 %v1088, %v1087
    %1093 = vmatprep.subr.bf16.mxu0 0
    %1094 = vmatpush1.bf16.msra.mxu0 %v1089
    %1095 = vmatprep.subr.bf16.mxu0 0
    %1096 = vmatpush1.bf16.msra.mxu0 %v1090
    %1097 = vmatprep.subr.bf16.mxu0 0
    %1098 = vmatpush1.bf16.msra.mxu0 0
    %1099 = vmatprep.subr.bf16.mxu0 0
    %1100 = vmatpush1.bf16.msra.mxu0 0
    %1101 = vmatprep.subr.bf16.mxu0 0
    %1102 = vmatpush1.bf16.msra.mxu0 0
    %1103 = vmatprep.subr.bf16.mxu0 0
    %1104 = vmatpush1.bf16.msra.mxu0 0
    %1105 = vmatprep.subr.bf16.mxu0 0
    %1106 = vmatpush1.bf16.msra.mxu0 0
    %1107 = vmatprep.subr.bf16.mxu0 0
    %1108 = vmatpush1.bf16.msra.mxu0 0
    %1109 = vmatprep.subr.bf16.mxu0 0
    %1110 = vmatpush1.bf16.msra.mxu0 0
    %1111 = vmatprep.subr.bf16.mxu0 0
    %1112 = vmatpush1.bf16.msra.mxu0 0
    %1113 = vmatprep.subr.bf16.mxu0 0
    %1114 = vmatpush1.bf16.msra.mxu0 0
    %1115 = vmatprep.subr.bf16.mxu0 0
    %1116 = vmatpush1.bf16.msra.mxu0 0
    %1117 = vmatprep.subr.bf16.mxu0 0
    %1118 = vmatpush1.bf16.msra.mxu0 0
    %1119 = vmatprep.subr.bf16.mxu0 0
    %1120 = vmatpush1.bf16.msra.mxu0 0
    %1121 = vmatprep.subr.bf16.mxu0 0
    %1122 = vmatpush1.bf16.msra.mxu0 0
    %1123 = vmatprep.subr.bf16.mxu0 0
    %1124 = vmatpush1.bf16.msra.mxu0 0
    %1125 = vmatprep.mubr.bf16.mxu0 0
    %1126 = vmatmul.mubr.bf16.gmra.mrb[0].mxu0 %v612
    %v1127 = vpop.f32.mrb[0].mxu0
    %v1128 = vadd.f32 %v1079, %v1127
    %v1129 = vpop.f32.mrb[0].mxu0
    %v1130 = vpop.f32.mrb[0].mxu0
    %v1131 = vadd.f32 %v1079, %v1130
    %v1132 = vpop.f32.mrb[0].mxu0
    %1133 = vdwg.mxu0
    %v1134 = vsel %vm610, %v1128, 0.0
    %v1135 = vsel %vm610, %v1131, 0.0
    %v1136 = vadd.f32 %v1134, %v1135
    %v1137 = vrot.slane %v1136, 4
    %v1138 = vadd.f32 %v1136, %v1137
    %v1139 = vrot.slane %v1138, 2
    %v1140 = vadd.f32 %v1138, %v1139
    %v1141 = vrot.slane %v1140, 1
    %v1142 = vadd.f32 %v1140, %v1141
    %v1143 = vmul.f32 %v1142, %v664
    %v1144 = vsub.f32 %v1128, %v1143
    %v1145 = vsub.f32 %v1131, %v1143
    %v1146 = vmul.f32 %v1144, %v1144
    %v1147 = vmul.f32 %v1145, %v1145
    %v1148 = vsel %vm610, %v1146, 0.0
    %v1149 = vsel %vm610, %v1147, 0.0
    %v1150 = vadd.f32 %v1148, %v1149
    %v1151 = vrot.slane %v1150, 4
    %v1152 = vadd.f32 %v1150, %v1151
    %v1153 = vrot.slane %v1152, 2
    %v1154 = vadd.f32 %v1152, %v1153
    %v1155 = vrot.slane %v1154, 1
    %v1156 = vadd.f32 %v1154, %v1155
    %v1157 = vmul.f32 %v1156, %v664
    %v1158 = vadd.f32 %v1157, 1e-05
    %v1159 = vrsqrt.pop %v1158
    %v1160 = vmul.f32 %v1144, %v1159
    %v1161 = vmul.f32 %v1145, %v1159
    %v1162 = vld [vmem:[#allocation16] sm:$0x1]
    %v1164 = vlaneseq
    %v1165 = vshrl.u32 %v1164, 7
    %v1166 = vsub.s32 0, %v1165
    %v1167 = vrot.slane %v1162, %v1166
    %v1169 = vmul.f32 %v1160, %v1167
    %v1170 = vmul.f32 %v1161, %v1167
    %v1171 = vld [vmem:[#allocation18] sm:$0x1]
    %v1173 = vlaneseq
    %v1174 = vshrl.u32 %v1173, 7
    %v1175 = vsub.s32 0, %v1174
    %v1176 = vrot.slane %v1171, %v1175
    %v1178 = vadd.f32 %v1169, %v1176
    %v1179 = vadd.f32 %v1170, %v1176
    %v1180 = vmax.f32 %v1178, 0.0
    %v1181 = vmax.f32 %v1179, 0.0
    %v1182 = vpack.c.bf16 %v1181, %v1180
    %v1183 = vld [vmem:[%s45] sm:$0xf]
    %v1184 = vld [vmem:[%s45 + $0x4] sm:$0xf]
    %v1185 = vld [vmem:[%s45 + $0x8] sm:$0xf]
    %v1186 = vld [vmem:[%s45 + $0xc] sm:$0xf]
    %v1187 = vld [vmem:[#allocation19] sm:$0x1]
    %v1189 = vlaneseq
    %v1190 = vshrl.u32 %v1189, 7
    %v1191 = vsub.s32 0, %v1190
    %v1192 = vrot.slane %v1187, %v1191
    %v1198 = vunpack.c.l.b16 %v1183
    %v1199 = vunpack.c.l.b16 %v1184
    %v1200 = vunpack.c.l.b16 %v1185
    %v1201 = vunpack.c.l.b16 %v1186
    %v1202 = vpack.c.b16 %v1199, %v1198
    %v1203 = vpack.c.b16 %v1201, %v1200
    %v1207 = vsel %vm610, %v1182, 0
    %1209 = vmatprep.subr.bf16.mxu0 0
    %1210 = vmatpush1.bf16.msra.mxu0 %v1202
    %1211 = vmatprep.subr.bf16.mxu0 0
    %1212 = vmatpush1.bf16.msra.mxu0 %v1203
    %1213 = vmatprep.subr.bf16.mxu0 0
    %1214 = vmatpush1.bf16.msra.mxu0 0
    %1215 = vmatprep.subr.bf16.mxu0 0
    %1216 = vmatpush1.bf16.msra.mxu0 0
    %1217 = vmatprep.subr.bf16.mxu0 0
    %1218 = vmatpush1.bf16.msra.mxu0 0
    %1219 = vmatprep.subr.bf16.mxu0 0
    %1220 = vmatpush1.bf16.msra.mxu0 0
    %1221 = vmatprep.subr.bf16.mxu0 0
    %1222 = vmatpush1.bf16.msra.mxu0 0
    %1223 = vmatprep.subr.bf16.mxu0 0
    %1224 = vmatpush1.bf16.msra.mxu0 0
    %1225 = vmatprep.subr.bf16.mxu0 0
    %1226 = vmatpush1.bf16.msra.mxu0 0
    %1227 = vmatprep.subr.bf16.mxu0 0
    %1228 = vmatpush1.bf16.msra.mxu0 0
    %1229 = vmatprep.subr.bf16.mxu0 0
    %1230 = vmatpush1.bf16.msra.mxu0 0
    %1231 = vmatprep.subr.bf16.mxu0 0
    %1232 = vmatpush1.bf16.msra.mxu0 0
    %1233 = vmatprep.subr.bf16.mxu0 0
    %1234 = vmatpush1.bf16.msra.mxu0 0
    %1235 = vmatprep.subr.bf16.mxu0 0
    %1236 = vmatpush1.bf16.msra.mxu0 0
    %1237 = vmatprep.subr.bf16.mxu0 0
    %1238 = vmatpush1.bf16.msra.mxu0 0
    %1239 = vmatprep.subr.bf16.mxu0 0
    %1240 = vmatpush1.bf16.msra.mxu0 0
    %1241 = vmatprep.mubr.bf16.mxu0 0
    %1242 = vmatmul.mubr.bf16.gmra.mrb[0].mxu0 %v1207
    %v1243 = vpop.f32.mrb[0].mxu0
    %v1244 = vadd.f32 %v1192, %v1243
    %v1245 = vpop.f32.mrb[0].mxu0
    %v1246 = vpop.f32.mrb[0].mxu0
    %v1247 = vadd.f32 %v1192, %v1246
    %v1248 = vpop.f32.mrb[0].mxu0
    %1249 = vdwg.mxu0
    %v1250 = vsel %vm610, %v1244, 0.0
    %v1251 = vsel %vm610, %v1247, 0.0
    %v1252 = vadd.f32 %v1250, %v1251
    %v1253 = vrot.slane %v1252, 4
    %v1254 = vadd.f32 %v1252, %v1253
    %v1255 = vrot.slane %v1254, 2
    %v1256 = vadd.f32 %v1254, %v1255
    %v1257 = vrot.slane %v1256, 1
    %v1258 = vadd.f32 %v1256, %v1257
    %v1259 = vmul.f32 %v1258, %v664
    %v1260 = vsub.f32 %v1244, %v1259
    %v1261 = vsub.f32 %v1247, %v1259
    %v1262 = vmul.f32 %v1260, %v1260
    %v1263 = vmul.f32 %v1261, %v1261
    %v1264 = vsel %vm610, %v1262, 0.0
    %v1265 = vsel %vm610, %v1263, 0.0
    %v1266 = vadd.f32 %v1264, %v1265
    %v1267 = vrot.slane %v1266, 4
    %v1268 = vadd.f32 %v1266, %v1267
    %v1269 = vrot.slane %v1268, 2
    %v1270 = vadd.f32 %v1268, %v1269
    %v1271 = vrot.slane %v1270, 1
    %v1272 = vadd.f32 %v1270, %v1271
    %v1273 = vmul.f32 %v1272, %v664
    %v1274 = vadd.f32 %v1273, 1e-05
    %v1275 = vrsqrt.pop %v1274
    %v1276 = vmul.f32 %v1260, %v1275
    %v1277 = vmul.f32 %v1261, %v1275
    %v1278 = vld [vmem:[#allocation21] sm:$0x1]
    %v1280 = vlaneseq
    %v1281 = vshrl.u32 %v1280, 7
    %v1282 = vsub.s32 0, %v1281
    %v1283 = vrot.slane %v1278, %v1282
    %v1285 = vmul.f32 %v1276, %v1283
    %v1286 = vmul.f32 %v1277, %v1283
    %v1287 = vld [vmem:[#allocation22] sm:$0x1]
    %v1289 = vlaneseq
    %v1290 = vshrl.u32 %v1289, 7
    %v1291 = vsub.s32 0, %v1290
    %v1292 = vrot.slane %v1287, %v1291
    %v1294 = vadd.f32 %v1285, %v1292
    %v1295 = vadd.f32 %v1286, %v1292
    %v1296 = vmax.f32 %v1294, 0.0
    %v1297 = vmax.f32 %v1295, 0.0
    %v1298 = vpack.c.bf16 %v1297, %v1296
    %v1299 = vld [vmem:[%s53] sm:$0xf]
    %v1300 = vld [vmem:[%s53 + $0x4] sm:$0xf]
    %v1301 = vld [vmem:[%s53 + $0x8] sm:$0xf]
    %v1302 = vld [vmem:[%s53 + $0xc] sm:$0xf]
    %v1303 = vld [vmem:[#allocation24] sm:$0x1]
    %v1305 = vlaneseq
    %v1306 = vshrl.u32 %v1305, 7
    %v1307 = vsub.s32 0, %v1306
    %v1308 = vrot.slane %v1303, %v1307
    %v1314 = vunpack.c.l.b16 %v1299
    %v1315 = vunpack.c.l.b16 %v1300
    %v1316 = vunpack.c.l.b16 %v1301
    %v1317 = vunpack.c.l.b16 %v1302
    %v1318 = vpack.c.b16 %v1315, %v1314
    %v1319 = vpack.c.b16 %v1317, %v1316
    %v1323 = vsel %vm610, %v1298, 0
    %1325 = vmatprep.subr.bf16.mxu0 0
    %1326 = vmatpush1.bf16.msra.mxu0 %v1318
    %1327 = vmatprep.subr.bf16.mxu0 0
    %1328 = vmatpush1.bf16.msra.mxu0 %v1319
    %1329 = vmatprep.subr.bf16.mxu0 0
    %1330 = vmatpush1.bf16.msra.mxu0 0
    %1331 = vmatprep.subr.bf16.mxu0 0
    %1332 = vmatpush1.bf16.msra.mxu0 0
    %1333 = vmatprep.subr.bf16.mxu0 0
    %1334 = vmatpush1.bf16.msra.mxu0 0
    %1335 = vmatprep.subr.bf16.mxu0 0
    %1336 = vmatpush1.bf16.msra.mxu0 0
    %1337 = vmatprep.subr.bf16.mxu0 0
    %1338 = vmatpush1.bf16.msra.mxu0 0
    %1339 = vmatprep.subr.bf16.mxu0 0
    %1340 = vmatpush1.bf16.msra.mxu0 0
    %1341 = vmatprep.subr.bf16.mxu0 0
    %1342 = vmatpush1.bf16.msra.mxu0 0
    %1343 = vmatprep.subr.bf16.mxu0 0
    %1344 = vmatpush1.bf16.msra.mxu0 0
    %1345 = vmatprep.subr.bf16.mxu0 0
    %1346 = vmatpush1.bf16.msra.mxu0 0
    %1347 = vmatprep.subr.bf16.mxu0 0
    %1348 = vmatpush1.bf16.msra.mxu0 0
    %1349 = vmatprep.subr.bf16.mxu0 0
    %1350 = vmatpush1.bf16.msra.mxu0 0
    %1351 = vmatprep.subr.bf16.mxu0 0
    %1352 = vmatpush1.bf16.msra.mxu0 0
    %1353 = vmatprep.subr.bf16.mxu0 0
    %1354 = vmatpush1.bf16.msra.mxu0 0
    %1355 = vmatprep.subr.bf16.mxu0 0
    %1356 = vmatpush1.bf16.msra.mxu0 0
    %1357 = vmatprep.mubr.bf16.mxu0 0
    %1358 = vmatmul.mubr.bf16.gmra.mrb[0].mxu0 %v1323
    %v1359 = vpop.f32.mrb[0].mxu0
    %v1360 = vadd.f32 %v1308, %v1359
    %v1361 = vpop.f32.mrb[0].mxu0
    %v1362 = vpop.f32.mrb[0].mxu0
    %v1363 = vadd.f32 %v1308, %v1362
    %v1364 = vpop.f32.mrb[0].mxu0
    %1365 = vdwg.mxu0
    %v1366 = vmax.f32 %v1360, 0.0
    %v1367 = vmax.f32 %v1363, 0.0
    %v1368 = vpack.c.bf16 %v1367, %v1366
    %v1369 = vld [vmem:[%s57] sm:$0xf]
    %v1370 = vld [vmem:[%s57 + $0x4] sm:$0xf]
    %v1371 = vld [vmem:[%s57 + $0x8] sm:$0xf]
    %v1372 = vld [vmem:[%s57 + $0xc] sm:$0xf]
    %v1373 = vld [vmem:[#allocation25] sm:$0x1]
    %v1375 = vlaneseq
    %v1376 = vshrl.u32 %v1375, 7
    %v1377 = vsub.s32 0, %v1376
    %v1378 = vrot.slane %v1373, %v1377
    %v1384 = vunpack.c.l.b16 %v1369
    %v1385 = vunpack.c.l.b16 %v1370
    %v1386 = vunpack.c.l.b16 %v1371
    %v1387 = vunpack.c.l.b16 %v1372
    %v1388 = vpack.c.b16 %v1385, %v1384
    %v1389 = vpack.c.b16 %v1387, %v1386
    %v1393 = vsel %vm610, %v1368, 0
    %1395 = vmatprep.subr.bf16.mxu0 0
    %1396 = vmatpush1.bf16.msra.mxu0 %v1388
    %1397 = vmatprep.subr.bf16.mxu0 0
    %1398 = vmatpush1.bf16.msra.mxu0 %v1389
    %1399 = vmatprep.subr.bf16.mxu0 0
    %1400 = vmatpush1.bf16.msra.mxu0 0
    %1401 = vmatprep.subr.bf16.mxu0 0
    %1402 = vmatpush1.bf16.msra.mxu0 0
    %1403 = vmatprep.subr.bf16.mxu0 0
    %1404 = vmatpush1.bf16.msra.mxu0 0
    %1405 = vmatprep.subr.bf16.mxu0 0
    %1406 = vmatpush1.bf16.msra.mxu0 0
    %1407 = vmatprep.subr.bf16.mxu0 0
    %1408 = vmatpush1.bf16.msra.mxu0 0
    %1409 = vmatprep.subr.bf16.mxu0 0
    %1410 = vmatpush1.bf16.msra.mxu0 0
    %1411 = vmatprep.subr.bf16.mxu0 0
    %1412 = vmatpush1.bf16.msra.mxu0 0
    %1413 = vmatprep.subr.bf16.mxu0 0
    %1414 = vmatpush1.bf16.msra.mxu0 0
    %1415 = vmatprep.subr.bf16.mxu0 0
    %1416 = vmatpush1.bf16.msra.mxu0 0
    %1417 = vmatprep.subr.bf16.mxu0 0
    %1418 = vmatpush1.bf16.msra.mxu0 0
    %1419 = vmatprep.subr.bf16.mxu0 0
    %1420 = vmatpush1.bf16.msra.mxu0 0
    %1421 = vmatprep.subr.bf16.mxu0 0
    %1422 = vmatpush1.bf16.msra.mxu0 0
    %1423 = vmatprep.subr.bf16.mxu0 0
    %1424 = vmatpush1.bf16.msra.mxu0 0
    %1425 = vmatprep.subr.bf16.mxu0 0
    %1426 = vmatpush1.bf16.msra.mxu0 0
    %1427 = vmatprep.mubr.bf16.mxu0 0
    %1428 = vmatmul.mubr.bf16.gmra.mrb[0].mxu0 %v1393
    %v1429 = vpop.f32.mrb[0].mxu0
    %v1430 = vadd.f32 %v1378, %v1429
    %v1431 = vpop.f32.mrb[0].mxu0
    %v1432 = vpop.f32.mrb[0].mxu0
    %v1433 = vadd.f32 %v1378, %v1432
    %v1434 = vpop.f32.mrb[0].mxu0
    %1435 = vdwg.mxu0
    %v1436 = vmax.f32 %v1430, 0.0
    %v1437 = vmax.f32 %v1433, 0.0
    %v1438 = vsub.f32 %v1436, %v584
    %v1439 = vsub.f32 %v1437, %v585
    %v1440 = vmul.f32 %v1438, %v1438
    %v1441 = vmul.f32 %v1439, %v1439
    %v1442 = vsel %vm610, %v1440, 0.0
    %1443 = vadd.xlane.f32.xlu0 %v1442
    %v1444 = vpop.xlane.xlu0 %1443
    %v1445 = vsel %vm610, %v1441, 0.0
    %1446 = vadd.xlane.f32.xlu0 %v1445
    %v1447 = vpop.xlane.xlu0 %1446
    %v1448 = vrcp.pop 32.0
    %v1449 = vmul.f32 %v1444, %v1448
    %v1450 = vmul.f32 %v1447, %v1448
    %1451 = vst.msk [vmem:[%s111] sm:$0xff] %vm1015, %v1449
    %1452 = vst.msk [vmem:[%s111 + $0x8] sm:$0xff] %vm1015, %v1450
    %v1453 = vld [vmem:[%s61] sm:$0xf]
    %v1454 = vld [vmem:[%s61 + $0x4] sm:$0xf]
    %v1455 = vld [vmem:[%s61 + $0x8] sm:$0xf]
    %v1456 = vld [vmem:[%s61 + $0xc] sm:$0xf]
    %v1457 = vld [vmem:[#allocation27] sm:$0x1]
    %v1459 = vlaneseq
    %v1460 = vshrl.u32 %v1459, 7
    %v1461 = vsub.s32 0, %v1460
    %v1462 = vrot.slane %v1457, %v1461
    %v1468 = vunpack.c.l.b16 %v1453
    %v1469 = vunpack.c.l.b16 %v1454
    %v1470 = vunpack.c.l.b16 %v1455
    %v1471 = vunpack.c.l.b16 %v1456
    %v1472 = vpack.c.b16 %v1469, %v1468
    %v1473 = vpack.c.b16 %v1471, %v1470
    %1476 = vmatprep.subr.bf16.mxu0 0
    %1477 = vmatpush1.bf16.msra.mxu0 %v1472
    %1478 = vmatprep.subr.bf16.mxu0 0
    %1479 = vmatpush1.bf16.msra.mxu0 %v1473
    %1480 = vmatprep.subr.bf16.mxu0 0
    %1481 = vmatpush1.bf16.msra.mxu0 0
    %1482 = vmatprep.subr.bf16.mxu0 0
    %1483 = vmatpush1.bf16.msra.mxu0 0
    %1484 = vmatprep.subr.bf16.mxu0 0
    %1485 = vmatpush1.bf16.msra.mxu0 0
    %1486 = vmatprep.subr.bf16.mxu0 0
    %1487 = vmatpush1.bf16.msra.mxu0 0
    %1488 = vmatprep.subr.bf16.mxu0 0
    %1489 = vmatpush1.bf16.msra.mxu0 0
    %1490 = vmatprep.subr.bf16.mxu0 0
    %1491 = vmatpush1.bf16.msra.mxu0 0
    %1492 = vmatprep.subr.bf16.mxu0 0
    %1493 = vmatpush1.bf16.msra.mxu0 0
    %1494 = vmatprep.subr.bf16.mxu0 0
    %1495 = vmatpush1.bf16.msra.mxu0 0
    %1496 = vmatprep.subr.bf16.mxu0 0
    %1497 = vmatpush1.bf16.msra.mxu0 0
    %1498 = vmatprep.subr.bf16.mxu0 0
    %1499 = vmatpush1.bf16.msra.mxu0 0
    %1500 = vmatprep.subr.bf16.mxu0 0
    %1501 = vmatpush1.bf16.msra.mxu0 0
    %1502 = vmatprep.subr.bf16.mxu0 0
    %1503 = vmatpush1.bf16.msra.mxu0 0
    %1504 = vmatprep.subr.bf16.mxu0 0
    %1505 = vmatpush1.bf16.msra.mxu0 0
    %1506 = vmatprep.subr.bf16.mxu0 0
    %1507 = vmatpush1.bf16.msra.mxu0 0
    %1508 = vmatprep.mubr.bf16.mxu0 0
    %1509 = vmatmul.mubr.bf16.gmra.mrb[0].mxu0 %v612
    %v1510 = vpop.f32.mrb[0].mxu0
    %v1511 = vadd.f32 %v1462, %v1510
    %v1512 = vpop.f32.mrb[0].mxu0
    %v1513 = vpop.f32.mrb[0].mxu0
    %v1514 = vadd.f32 %v1462, %v1513
    %v1515 = vpop.f32.mrb[0].mxu0
    %1516 = vdwg.mxu0
    %v1517 = vsel %vm610, %v1511, 0.0
    %v1518 = vsel %vm610, %v1514, 0.0
    %v1519 = vadd.f32 %v1517, %v1518
    %v1520 = vrot.slane %v1519, 4
    %v1521 = vadd.f32 %v1519, %v1520
    %v1522 = vrot.slane %v1521, 2
    %v1523 = vadd.f32 %v1521, %v1522
    %v1524 = vrot.slane %v1523, 1
    %v1525 = vadd.f32 %v1523, %v1524
    %v1526 = vmul.f32 %v1525, %v664
    %v1527 = vsub.f32 %v1511, %v1526
    %v1528 = vsub.f32 %v1514, %v1526
    %v1529 = vmul.f32 %v1527, %v1527
    %v1530 = vmul.f32 %v1528, %v1528
    %v1531 = vsel %vm610, %v1529, 0.0
    %v1532 = vsel %vm610, %v1530, 0.0
    %v1533 = vadd.f32 %v1531, %v1532
    %v1534 = vrot.slane %v1533, 4
    %v1535 = vadd.f32 %v1533, %v1534
    %v1536 = vrot.slane %v1535, 2
    %v1537 = vadd.f32 %v1535, %v1536
    %v1538 = vrot.slane %v1537, 1
    %v1539 = vadd.f32 %v1537, %v1538
    %v1540 = vmul.f32 %v1539, %v664
    %v1541 = vadd.f32 %v1540, 1e-05
    %v1542 = vrsqrt.pop %v1541
    %v1543 = vmul.f32 %v1527, %v1542
    %v1544 = vmul.f32 %v1528, %v1542
    %v1545 = vld [vmem:[#allocation28] sm:$0x1]
    %v1547 = vlaneseq
    %v1548 = vshrl.u32 %v1547, 7
    %v1549 = vsub.s32 0, %v1548
    %v1550 = vrot.slane %v1545, %v1549
    %v1552 = vmul.f32 %v1543, %v1550
    %v1553 = vmul.f32 %v1544, %v1550
    %v1554 = vld [vmem:[#allocation30] sm:$0x1]
    %v1556 = vlaneseq
    %v1557 = vshrl.u32 %v1556, 7
    %v1558 = vsub.s32 0, %v1557
    %v1559 = vrot.slane %v1554, %v1558
    %v1561 = vadd.f32 %v1552, %v1559
    %v1562 = vadd.f32 %v1553, %v1559
    %v1563 = vmax.f32 %v1561, 0.0
    %v1564 = vmax.f32 %v1562, 0.0
    %v1565 = vpack.c.bf16 %v1564, %v1563
    %v1566 = vld [vmem:[%s69] sm:$0xf]
    %v1567 = vld [vmem:[%s69 + $0x4] sm:$0xf]
    %v1568 = vld [vmem:[%s69 + $0x8] sm:$0xf]
    %v1569 = vld [vmem:[%s69 + $0xc] sm:$0xf]
    %v1570 = vld [vmem:[#allocation31] sm:$0x1]
    %v1572 = vlaneseq
    %v1573 = vshrl.u32 %v1572, 7
    %v1574 = vsub.s32 0, %v1573
    %v1575 = vrot.slane %v1570, %v1574
    %v1581 = vunpack.c.l.b16 %v1566
    %v1582 = vunpack.c.l.b16 %v1567
    %v1583 = vunpack.c.l.b16 %v1568
    %v1584 = vunpack.c.l.b16 %v1569
    %v1585 = vpack.c.b16 %v1582, %v1581
    %v1586 = vpack.c.b16 %v1584, %v1583
    %v1590 = vsel %vm610, %v1565, 0
    %1592 = vmatprep.subr.bf16.mxu0 0
    %1593 = vmatpush1.bf16.msra.mxu0 %v1585
    %1594 = vmatprep.subr.bf16.mxu0 0
    %1595 = vmatpush1.bf16.msra.mxu0 %v1586
    %1596 = vmatprep.subr.bf16.mxu0 0
    %1597 = vmatpush1.bf16.msra.mxu0 0
    %1598 = vmatprep.subr.bf16.mxu0 0
    %1599 = vmatpush1.bf16.msra.mxu0 0
    %1600 = vmatprep.subr.bf16.mxu0 0
    %1601 = vmatpush1.bf16.msra.mxu0 0
    %1602 = vmatprep.subr.bf16.mxu0 0
    %1603 = vmatpush1.bf16.msra.mxu0 0
    %1604 = vmatprep.subr.bf16.mxu0 0
    %1605 = vmatpush1.bf16.msra.mxu0 0
    %1606 = vmatprep.subr.bf16.mxu0 0
    %1607 = vmatpush1.bf16.msra.mxu0 0
    %1608 = vmatprep.subr.bf16.mxu0 0
    %1609 = vmatpush1.bf16.msra.mxu0 0
    %1610 = vmatprep.subr.bf16.mxu0 0
    %1611 = vmatpush1.bf16.msra.mxu0 0
    %1612 = vmatprep.subr.bf16.mxu0 0
    %1613 = vmatpush1.bf16.msra.mxu0 0
    %1614 = vmatprep.subr.bf16.mxu0 0
    %1615 = vmatpush1.bf16.msra.mxu0 0
    %1616 = vmatprep.subr.bf16.mxu0 0
    %1617 = vmatpush1.bf16.msra.mxu0 0
    %1618 = vmatprep.subr.bf16.mxu0 0
    %1619 = vmatpush1.bf16.msra.mxu0 0
    %1620 = vmatprep.subr.bf16.mxu0 0
    %1621 = vmatpush1.bf16.msra.mxu0 0
    %1622 = vmatprep.subr.bf16.mxu0 0
    %1623 = vmatpush1.bf16.msra.mxu0 0
    %1624 = vmatprep.mubr.bf16.mxu0 0
    %1625 = vmatmul.mubr.bf16.gmra.mrb[0].mxu0 %v1590
    %v1626 = vpop.f32.mrb[0].mxu0
    %v1627 = vadd.f32 %v1575, %v1626
    %v1628 = vpop.f32.mrb[0].mxu0
    %v1629 = vpop.f32.mrb[0].mxu0
    %v1630 = vadd.f32 %v1575, %v1629
    %v1631 = vpop.f32.mrb[0].mxu0
    %1632 = vdwg.mxu0
    %v1633 = vsel %vm610, %v1627, 0.0
    %v1634 = vsel %vm610, %v1630, 0.0
    %v1635 = vadd.f32 %v1633, %v1634
    %v1636 = vrot.slane %v1635, 4
    %v1637 = vadd.f32 %v1635, %v1636
    %v1638 = vrot.slane %v1637, 2
    %v1639 = vadd.f32 %v1637, %v1638
    %v1640 = vrot.slane %v1639, 1
    %v1641 = vadd.f32 %v1639, %v1640
    %v1642 = vmul.f32 %v1641, %v664
    %v1643 = vsub.f32 %v1627, %v1642
    %v1644 = vsub.f32 %v1630, %v1642
    %v1645 = vmul.f32 %v1643, %v1643
    %v1646 = vmul.f32 %v1644, %v1644
    %v1647 = vsel %vm610, %v1645, 0.0
    %v1648 = vsel %vm610, %v1646, 0.0
    %v1649 = vadd.f32 %v1647, %v1648
    %v1650 = vrot.slane %v1649, 4
    %v1651 = vadd.f32 %v1649, %v1650
    %v1652 = vrot.slane %v1651, 2
    %v1653 = vadd.f32 %v1651, %v1652
    %v1654 = vrot.slane %v1653, 1
    %v1655 = vadd.f32 %v1653, %v1654
    %v1656 = vmul.f32 %v1655, %v664
    %v1657 = vadd.f32 %v1656, 1e-05
    %v1658 = vrsqrt.pop %v1657
    %v1659 = vmul.f32 %v1643, %v1658
    %v1660 = vmul.f32 %v1644, %v1658
    %v1661 = vld [vmem:[#allocation33] sm:$0x1]
    %v1663 = vlaneseq
    %v1664 = vshrl.u32 %v1663, 7
    %v1665 = vsub.s32 0, %v1664
    %v1666 = vrot.slane %v1661, %v1665
    %v1668 = vmul.f32 %v1659, %v1666
    %v1669 = vmul.f32 %v1660, %v1666
    %v1670 = vld [vmem:[#allocation34] sm:$0x1]
    %v1672 = vlaneseq
    %v1673 = vshrl.u32 %v1672, 7
    %v1674 = vsub.s32 0, %v1673
    %v1675 = vrot.slane %v1670, %v1674
    %v1677 = vadd.f32 %v1668, %v1675
    %v1678 = vadd.f32 %v1669, %v1675
    %v1679 = vmax.f32 %v1677, 0.0
    %v1680 = vmax.f32 %v1678, 0.0
    %v1681 = vpack.c.bf16 %v1680, %v1679
    %v1682 = vld [vmem:[%s77] sm:$0xf]
    %v1683 = vld [vmem:[%s77 + $0x4] sm:$0xf]
    %v1684 = vld [vmem:[%s77 + $0x8] sm:$0xf]
    %v1685 = vld [vmem:[%s77 + $0xc] sm:$0xf]
    %v1686 = vld [vmem:[#allocation36] sm:$0x1]
    %v1688 = vlaneseq
    %v1689 = vshrl.u32 %v1688, 7
    %v1690 = vsub.s32 0, %v1689
    %v1691 = vrot.slane %v1686, %v1690
    %v1697 = vunpack.c.l.b16 %v1682
    %v1698 = vunpack.c.l.b16 %v1683
    %v1699 = vunpack.c.l.b16 %v1684
    %v1700 = vunpack.c.l.b16 %v1685
    %v1701 = vpack.c.b16 %v1698, %v1697
    %v1702 = vpack.c.b16 %v1700, %v1699
    %v1706 = vsel %vm610, %v1681, 0
    %1708 = vmatprep.subr.bf16.mxu0 0
    %1709 = vmatpush1.bf16.msra.mxu0 %v1701
    %1710 = vmatprep.subr.bf16.mxu0 0
    %1711 = vmatpush1.bf16.msra.mxu0 %v1702
    %1712 = vmatprep.subr.bf16.mxu0 0
    %1713 = vmatpush1.bf16.msra.mxu0 0
    %1714 = vmatprep.subr.bf16.mxu0 0
    %1715 = vmatpush1.bf16.msra.mxu0 0
    %1716 = vmatprep.subr.bf16.mxu0 0
    %1717 = vmatpush1.bf16.msra.mxu0 0
    %1718 = vmatprep.subr.bf16.mxu0 0
    %1719 = vmatpush1.bf16.msra.mxu0 0
    %1720 = vmatprep.subr.bf16.mxu0 0
    %1721 = vmatpush1.bf16.msra.mxu0 0
    %1722 = vmatprep.subr.bf16.mxu0 0
    %1723 = vmatpush1.bf16.msra.mxu0 0
    %1724 = vmatprep.subr.bf16.mxu0 0
    %1725 = vmatpush1.bf16.msra.mxu0 0
    %1726 = vmatprep.subr.bf16.mxu0 0
    %1727 = vmatpush1.bf16.msra.mxu0 0
    %1728 = vmatprep.subr.bf16.mxu0 0
    %1729 = vmatpush1.bf16.msra.mxu0 0
    %1730 = vmatprep.subr.bf16.mxu0 0
    %1731 = vmatpush1.bf16.msra.mxu0 0
    %1732 = vmatprep.subr.bf16.mxu0 0
    %1733 = vmatpush1.bf16.msra.mxu0 0
    %1734 = vmatprep.subr.bf16.mxu0 0
    %1735 = vmatpush1.bf16.msra.mxu0 0
    %1736 = vmatprep.subr.bf16.mxu0 0
    %1737 = vmatpush1.bf16.msra.mxu0 0
    %1738 = vmatprep.subr.bf16.mxu0 0
    %1739 = vmatpush1.bf16.msra.mxu0 0
    %1740 = vmatprep.mubr.bf16.mxu0 0
    %1741 = vmatmul.mubr.bf16.gmra.mrb[0].mxu0 %v1706
    %v1742 = vpop.f32.mrb[0].mxu0
    %v1743 = vadd.f32 %v1691, %v1742
    %v1744 = vpop.f32.mrb[0].mxu0
    %v1745 = vpop.f32.mrb[0].mxu0
    %v1746 = vadd.f32 %v1691, %v1745
    %v1747 = vpop.f32.mrb[0].mxu0
    %1748 = vdwg.mxu0
    %v1749 = vmax.f32 %v1743, 0.0
    %v1750 = vmax.f32 %v1746, 0.0
    %v1751 = vpack.c.bf16 %v1750, %v1749
    %v1752 = vld [vmem:[%s81] sm:$0xf]
    %v1753 = vld [vmem:[%s81 + $0x4] sm:$0xf]
    %v1754 = vld [vmem:[%s81 + $0x8] sm:$0xf]
    %v1755 = vld [vmem:[%s81 + $0xc] sm:$0xf]
    %v1756 = vld [vmem:[#allocation37] sm:$0x1]
    %v1758 = vlaneseq
    %v1759 = vshrl.u32 %v1758, 7
    %v1760 = vsub.s32 0, %v1759
    %v1761 = vrot.slane %v1756, %v1760
    %v1767 = vunpack.c.l.b16 %v1752
    %v1768 = vunpack.c.l.b16 %v1753
    %v1769 = vunpack.c.l.b16 %v1754
    %v1770 = vunpack.c.l.b16 %v1755
    %v1771 = vpack.c.b16 %v1768, %v1767
    %v1772 = vpack.c.b16 %v1770, %v1769
    %v1776 = vsel %vm610, %v1751, 0
    %1778 = vmatprep.subr.bf16.mxu0 0
    %1779 = vmatpush1.bf16.msra.mxu0 %v1771
    %1780 = vmatprep.subr.bf16.mxu0 0
    %1781 = vmatpush1.bf16.msra.mxu0 %v1772
    %1782 = vmatprep.subr.bf16.mxu0 0
    %1783 = vmatpush1.bf16.msra.mxu0 0
    %1784 = vmatprep.subr.bf16.mxu0 0
    %1785 = vmatpush1.bf16.msra.mxu0 0
    %1786 = vmatprep.subr.bf16.mxu0 0
    %1787 = vmatpush1.bf16.msra.mxu0 0
    %1788 = vmatprep.subr.bf16.mxu0 0
    %1789 = vmatpush1.bf16.msra.mxu0 0
    %1790 = vmatprep.subr.bf16.mxu0 0
    %1791 = vmatpush1.bf16.msra.mxu0 0
    %1792 = vmatprep.subr.bf16.mxu0 0
    %1793 = vmatpush1.bf16.msra.mxu0 0
    %1794 = vmatprep.subr.bf16.mxu0 0
    %1795 = vmatpush1.bf16.msra.mxu0 0
    %1796 = vmatprep.subr.bf16.mxu0 0
    %1797 = vmatpush1.bf16.msra.mxu0 0
    %1798 = vmatprep.subr.bf16.mxu0 0
    %1799 = vmatpush1.bf16.msra.mxu0 0
    %1800 = vmatprep.subr.bf16.mxu0 0
    %1801 = vmatpush1.bf16.msra.mxu0 0
    %1802 = vmatprep.subr.bf16.mxu0 0
    %1803 = vmatpush1.bf16.msra.mxu0 0
    %1804 = vmatprep.subr.bf16.mxu0 0
    %1805 = vmatpush1.bf16.msra.mxu0 0
    %1806 = vmatprep.subr.bf16.mxu0 0
    %1807 = vmatpush1.bf16.msra.mxu0 0
    %1808 = vmatprep.subr.bf16.mxu0 0
    %1809 = vmatpush1.bf16.msra.mxu0 0
    %1810 = vmatprep.mubr.bf16.mxu0 0
    %1811 = vmatmul.mubr.bf16.gmra.mrb[0].mxu0 %v1776
    %v1812 = vpop.f32.mrb[0].mxu0
    %v1813 = vadd.f32 %v1761, %v1812
    %v1814 = vpop.f32.mrb[0].mxu0
    %v1815 = vpop.f32.mrb[0].mxu0
    %v1816 = vadd.f32 %v1761, %v1815
    %v1817 = vpop.f32.mrb[0].mxu0
    %1818 = vdwg.mxu0
    %v1819 = vmax.f32 %v1813, 0.0
    %v1820 = vmax.f32 %v1816, 0.0
    %1821 = vst.msk [vmem:[%s113] sm:$0xff] %vm610, %v1819
    %1822 = vst.msk [vmem:[%s113 + $0x8] sm:$0xff] %vm610, %v1820
    %v1823 = vld [vmem:[%s85] sm:$0xf]
    %v1824 = vld [vmem:[%s85 + $0x4] sm:$0xf]
    %v1825 = vld [vmem:[%s85 + $0x8] sm:$0xf]
    %v1826 = vld [vmem:[%s85 + $0xc] sm:$0xf]
    %v1827 = vld [vmem:[#allocation39] sm:$0x1]
    %v1829 = vlaneseq
    %v1830 = vshrl.u32 %v1829, 7
    %v1831 = vsub.s32 0, %v1830
    %v1832 = vrot.slane %v1827, %v1831
    %v1838 = vunpack.c.l.b16 %v1823
    %v1839 = vunpack.c.l.b16 %v1824
    %v1840 = vunpack.c.l.b16 %v1825
    %v1841 = vunpack.c.l.b16 %v1826
    %v1842 = vpack.c.b16 %v1839, %v1838
    %v1843 = vpack.c.b16 %v1841, %v1840
    %1846 = vmatprep.subr.bf16.mxu0 0
    %1847 = vmatpush1.bf16.msra.mxu0 %v1842
    %1848 = vmatprep.subr.bf16.mxu0 0
    %1849 = vmatpush1.bf16.msra.mxu0 %v1843
    %1850 = vmatprep.subr.bf16.mxu0 0
    %1851 = vmatpush1.bf16.msra.mxu0 0
    %1852 = vmatprep.subr.bf16.mxu0 0
    %1853 = vmatpush1.bf16.msra.mxu0 0
    %1854 = vmatprep.subr.bf16.mxu0 0
    %1855 = vmatpush1.bf16.msra.mxu0 0
    %1856 = vmatprep.subr.bf16.mxu0 0
    %1857 = vmatpush1.bf16.msra.mxu0 0
    %1858 = vmatprep.subr.bf16.mxu0 0
    %1859 = vmatpush1.bf16.msra.mxu0 0
    %1860 = vmatprep.subr.bf16.mxu0 0
    %1861 = vmatpush1.bf16.msra.mxu0 0
    %1862 = vmatprep.subr.bf16.mxu0 0
    %1863 = vmatpush1.bf16.msra.mxu0 0
    %1864 = vmatprep.subr.bf16.mxu0 0
    %1865 = vmatpush1.bf16.msra.mxu0 0
    %1866 = vmatprep.subr.bf16.mxu0 0
    %1867 = vmatpush1.bf16.msra.mxu0 0
    %1868 = vmatprep.subr.bf16.mxu0 0
    %1869 = vmatpush1.bf16.msra.mxu0 0
    %1870 = vmatprep.subr.bf16.mxu0 0
    %1871 = vmatpush1.bf16.msra.mxu0 0
    %1872 = vmatprep.subr.bf16.mxu0 0
    %1873 = vmatpush1.bf16.msra.mxu0 0
    %1874 = vmatprep.subr.bf16.mxu0 0
    %1875 = vmatpush1.bf16.msra.mxu0 0
    %1876 = vmatprep.subr.bf16.mxu0 0
    %1877 = vmatpush1.bf16.msra.mxu0 0
    %1878 = vmatprep.mubr.bf16.mxu0 0
    %1879 = vmatmul.mubr.bf16.gmra.mrb[0].mxu0 %v612
    %v1880 = vpop.f32.mrb[0].mxu0
    %v1881 = vadd.f32 %v1832, %v1880
    %v1882 = vpop.f32.mrb[0].mxu0
    %v1883 = vpop.f32.mrb[0].mxu0
    %v1884 = vadd.f32 %v1832, %v1883
    %v1885 = vpop.f32.mrb[0].mxu0
    %1886 = vdwg.mxu0
    %v1887 = vsel %vm610, %v1881, 0.0
    %v1888 = vsel %vm610, %v1884, 0.0
    %v1889 = vadd.f32 %v1887, %v1888
    %v1890 = vrot.slane %v1889, 4
    %v1891 = vadd.f32 %v1889, %v1890
    %v1892 = vrot.slane %v1891, 2
    %v1893 = vadd.f32 %v1891, %v1892
    %v1894 = vrot.slane %v1893, 1
    %v1895 = vadd.f32 %v1893, %v1894
    %v1896 = vmul.f32 %v1895, %v664
    %v1897 = vsub.f32 %v1881, %v1896
    %v1898 = vsub.f32 %v1884, %v1896
    %v1899 = vmul.f32 %v1897, %v1897
    %v1900 = vmul.f32 %v1898, %v1898
    %v1901 = vsel %vm610, %v1899, 0.0
    %v1902 = vsel %vm610, %v1900, 0.0
    %v1903 = vadd.f32 %v1901, %v1902
    %v1904 = vrot.slane %v1903, 4
    %v1905 = vadd.f32 %v1903, %v1904
    %v1906 = vrot.slane %v1905, 2
    %v1907 = vadd.f32 %v1905, %v1906
    %v1908 = vrot.slane %v1907, 1
    %v1909 = vadd.f32 %v1907, %v1908
    %v1910 = vmul.f32 %v1909, %v664
    %v1911 = vadd.f32 %v1910, 1e-05
    %v1912 = vrsqrt.pop %v1911
    %v1913 = vmul.f32 %v1897, %v1912
    %v1914 = vmul.f32 %v1898, %v1912
    %v1915 = vld [vmem:[#allocation40] sm:$0x1]
    %v1917 = vlaneseq
    %v1918 = vshrl.u32 %v1917, 7
    %v1919 = vsub.s32 0, %v1918
    %v1920 = vrot.slane %v1915, %v1919
    %v1922 = vmul.f32 %v1913, %v1920
    %v1923 = vmul.f32 %v1914, %v1920
    %v1924 = vld [vmem:[#allocation42] sm:$0x1]
    %v1926 = vlaneseq
    %v1927 = vshrl.u32 %v1926, 7
    %v1928 = vsub.s32 0, %v1927
    %v1929 = vrot.slane %v1924, %v1928
    %v1931 = vadd.f32 %v1922, %v1929
    %v1932 = vadd.f32 %v1923, %v1929
    %v1933 = vmax.f32 %v1931, 0.0
    %v1934 = vmax.f32 %v1932, 0.0
    %v1935 = vpack.c.bf16 %v1934, %v1933
    %v1936 = vld [vmem:[%s93] sm:$0xf]
    %v1937 = vld [vmem:[%s93 + $0x4] sm:$0xf]
    %v1938 = vld [vmem:[%s93 + $0x8] sm:$0xf]
    %v1939 = vld [vmem:[%s93 + $0xc] sm:$0xf]
    %v1940 = vld [vmem:[#allocation43] sm:$0x1]
    %v1942 = vlaneseq
    %v1943 = vshrl.u32 %v1942, 7
    %v1944 = vsub.s32 0, %v1943
    %v1945 = vrot.slane %v1940, %v1944
    %v1951 = vunpack.c.l.b16 %v1936
    %v1952 = vunpack.c.l.b16 %v1937
    %v1953 = vunpack.c.l.b16 %v1938
    %v1954 = vunpack.c.l.b16 %v1939
    %v1955 = vpack.c.b16 %v1952, %v1951
    %v1956 = vpack.c.b16 %v1954, %v1953
    %v1960 = vsel %vm610, %v1935, 0
    %1962 = vmatprep.subr.bf16.mxu0 0
    %1963 = vmatpush1.bf16.msra.mxu0 %v1955
    %1964 = vmatprep.subr.bf16.mxu0 0
    %1965 = vmatpush1.bf16.msra.mxu0 %v1956
    %1966 = vmatprep.subr.bf16.mxu0 0
    %1967 = vmatpush1.bf16.msra.mxu0 0
    %1968 = vmatprep.subr.bf16.mxu0 0
    %1969 = vmatpush1.bf16.msra.mxu0 0
    %1970 = vmatprep.subr.bf16.mxu0 0
    %1971 = vmatpush1.bf16.msra.mxu0 0
    %1972 = vmatprep.subr.bf16.mxu0 0
    %1973 = vmatpush1.bf16.msra.mxu0 0
    %1974 = vmatprep.subr.bf16.mxu0 0
    %1975 = vmatpush1.bf16.msra.mxu0 0
    %1976 = vmatprep.subr.bf16.mxu0 0
    %1977 = vmatpush1.bf16.msra.mxu0 0
    %1978 = vmatprep.subr.bf16.mxu0 0
    %1979 = vmatpush1.bf16.msra.mxu0 0
    %1980 = vmatprep.subr.bf16.mxu0 0
    %1981 = vmatpush1.bf16.msra.mxu0 0
    %1982 = vmatprep.subr.bf16.mxu0 0
    %1983 = vmatpush1.bf16.msra.mxu0 0
    %1984 = vmatprep.subr.bf16.mxu0 0
    %1985 = vmatpush1.bf16.msra.mxu0 0
    %1986 = vmatprep.subr.bf16.mxu0 0
    %1987 = vmatpush1.bf16.msra.mxu0 0
    %1988 = vmatprep.subr.bf16.mxu0 0
    %1989 = vmatpush1.bf16.msra.mxu0 0
    %1990 = vmatprep.subr.bf16.mxu0 0
    %1991 = vmatpush1.bf16.msra.mxu0 0
    %1992 = vmatprep.subr.bf16.mxu0 0
    %1993 = vmatpush1.bf16.msra.mxu0 0
    %1994 = vmatprep.mubr.bf16.mxu0 0
    %1995 = vmatmul.mubr.bf16.gmra.mrb[0].mxu0 %v1960
    %v1996 = vpop.f32.mrb[0].mxu0
    %v1997 = vadd.f32 %v1945, %v1996
    %v1998 = vpop.f32.mrb[0].mxu0
    %v1999 = vpop.f32.mrb[0].mxu0
    %v2000 = vadd.f32 %v1945, %v1999
    %v2001 = vpop.f32.mrb[0].mxu0
    %2002 = vdwg.mxu0
    %v2003 = vsel %vm610, %v1997, 0.0
    %v2004 = vsel %vm610, %v2000, 0.0
    %v2005 = vadd.f32 %v2003, %v2004
    %v2006 = vrot.slane %v2005, 4
    %v2007 = vadd.f32 %v2005, %v2006
    %v2008 = vrot.slane %v2007, 2
    %v2009 = vadd.f32 %v2007, %v2008
    %v2010 = vrot.slane %v2009, 1
    %v2011 = vadd.f32 %v2009, %v2010
    %v2012 = vmul.f32 %v2011, %v664
    %v2013 = vsub.f32 %v1997, %v2012
    %v2014 = vsub.f32 %v2000, %v2012
    %v2015 = vmul.f32 %v2013, %v2013
    %v2016 = vmul.f32 %v2014, %v2014
    %v2017 = vsel %vm610, %v2015, 0.0
    %v2018 = vsel %vm610, %v2016, 0.0
    %v2019 = vadd.f32 %v2017, %v2018
    %v2020 = vrot.slane %v2019, 4
    %v2021 = vadd.f32 %v2019, %v2020
    %v2022 = vrot.slane %v2021, 2
    %v2023 = vadd.f32 %v2021, %v2022
    %v2024 = vrot.slane %v2023, 1
    %v2025 = vadd.f32 %v2023, %v2024
    %v2026 = vmul.f32 %v2025, %v664
    %v2027 = vadd.f32 %v2026, 1e-05
    %v2028 = vrsqrt.pop %v2027
    %v2029 = vmul.f32 %v2013, %v2028
    %v2030 = vmul.f32 %v2014, %v2028
    %v2031 = vld [vmem:[#allocation45] sm:$0x1]
    %v2033 = vlaneseq
    %v2034 = vshrl.u32 %v2033, 7
    %v2035 = vsub.s32 0, %v2034
    %v2036 = vrot.slane %v2031, %v2035
    %v2038 = vmul.f32 %v2029, %v2036
    %v2039 = vmul.f32 %v2030, %v2036
    %v2040 = vld [vmem:[#allocation46] sm:$0x1]
    %v2042 = vlaneseq
    %v2043 = vshrl.u32 %v2042, 7
    %v2044 = vsub.s32 0, %v2043
    %v2045 = vrot.slane %v2040, %v2044
    %v2047 = vadd.f32 %v2038, %v2045
    %v2048 = vadd.f32 %v2039, %v2045
    %v2049 = vmax.f32 %v2047, 0.0
    %v2050 = vmax.f32 %v2048, 0.0
    %v2051 = vpack.c.bf16 %v2050, %v2049
    %v2052 = vld [vmem:[%s101] sm:$0xf]
    %v2053 = vld [vmem:[%s101 + $0x4] sm:$0xf]
    %v2054 = vld [vmem:[%s101 + $0x8] sm:$0xf]
    %v2055 = vld [vmem:[%s101 + $0xc] sm:$0xf]
    %v2056 = vld [vmem:[#allocation48] sm:$0x1]
    %v2058 = vlaneseq
    %v2059 = vshrl.u32 %v2058, 7
    %v2060 = vsub.s32 0, %v2059
    %v2061 = vrot.slane %v2056, %v2060
    %v2067 = vunpack.c.l.b16 %v2052
    %v2068 = vunpack.c.l.b16 %v2053
    %v2069 = vunpack.c.l.b16 %v2054
    %v2070 = vunpack.c.l.b16 %v2055
    %v2071 = vpack.c.b16 %v2068, %v2067
    %v2072 = vpack.c.b16 %v2070, %v2069
    %v2076 = vsel %vm610, %v2051, 0
    %2078 = vmatprep.subr.bf16.mxu0 0
    %2079 = vmatpush1.bf16.msra.mxu0 %v2071
    %2080 = vmatprep.subr.bf16.mxu0 0
    %2081 = vmatpush1.bf16.msra.mxu0 %v2072
    %2082 = vmatprep.subr.bf16.mxu0 0
    %2083 = vmatpush1.bf16.msra.mxu0 0
    %2084 = vmatprep.subr.bf16.mxu0 0
    %2085 = vmatpush1.bf16.msra.mxu0 0
    %2086 = vmatprep.subr.bf16.mxu0 0
    %2087 = vmatpush1.bf16.msra.mxu0 0
    %2088 = vmatprep.subr.bf16.mxu0 0
    %2089 = vmatpush1.bf16.msra.mxu0 0
    %2090 = vmatprep.subr.bf16.mxu0 0
    %2091 = vmatpush1.bf16.msra.mxu0 0
    %2092 = vmatprep.subr.bf16.mxu0 0
    %2093 = vmatpush1.bf16.msra.mxu0 0
    %2094 = vmatprep.subr.bf16.mxu0 0
    %2095 = vmatpush1.bf16.msra.mxu0 0
    %2096 = vmatprep.subr.bf16.mxu0 0
    %2097 = vmatpush1.bf16.msra.mxu0 0
    %2098 = vmatprep.subr.bf16.mxu0 0
    %2099 = vmatpush1.bf16.msra.mxu0 0
    %2100 = vmatprep.subr.bf16.mxu0 0
    %2101 = vmatpush1.bf16.msra.mxu0 0
    %2102 = vmatprep.subr.bf16.mxu0 0
    %2103 = vmatpush1.bf16.msra.mxu0 0
    %2104 = vmatprep.subr.bf16.mxu0 0
    %2105 = vmatpush1.bf16.msra.mxu0 0
    %2106 = vmatprep.subr.bf16.mxu0 0
    %2107 = vmatpush1.bf16.msra.mxu0 0
    %2108 = vmatprep.subr.bf16.mxu0 0
    %2109 = vmatpush1.bf16.msra.mxu0 0
    %2110 = vmatprep.mubr.bf16.mxu0 0
    %2111 = vmatmul.mubr.bf16.gmra.mrb[0].mxu0 %v2076
    %v2112 = vpop.f32.mrb[0].mxu0
    %v2113 = vadd.f32 %v2061, %v2112
    %v2114 = vpop.f32.mrb[0].mxu0
    %v2115 = vpop.f32.mrb[0].mxu0
    %v2116 = vadd.f32 %v2061, %v2115
    %v2117 = vpop.f32.mrb[0].mxu0
    %2118 = vdwg.mxu0
    %v2119 = vmax.f32 %v2113, 0.0
    %v2120 = vmax.f32 %v2116, 0.0
    %v2121 = vpack.c.bf16 %v2120, %v2119
    %v2122 = vld [vmem:[%s105] sm:$0xf]
    %v2123 = vld [vmem:[%s105 + $0x4] sm:$0xf]
    %v2124 = vld [vmem:[%s105 + $0x8] sm:$0xf]
    %v2125 = vld [vmem:[%s105 + $0xc] sm:$0xf]
    %v2126 = vld [vmem:[#allocation49] sm:$0x1]
    %v2128 = vlaneseq
    %v2129 = vshrl.u32 %v2128, 7
    %v2130 = vsub.s32 0, %v2129
    %v2131 = vrot.slane %v2126, %v2130
    %v2137 = vunpack.c.l.b16 %v2122
    %v2138 = vunpack.c.l.b16 %v2123
    %v2139 = vunpack.c.l.b16 %v2124
    %v2140 = vunpack.c.l.b16 %v2125
    %v2141 = vpack.c.b16 %v2138, %v2137
    %v2142 = vpack.c.b16 %v2140, %v2139
    %v2146 = vsel %vm610, %v2121, 0
    %2148 = vmatprep.subr.bf16.mxu0 0
    %2149 = vmatpush1.bf16.msra.mxu0 %v2141
    %2150 = vmatprep.subr.bf16.mxu0 0
    %2151 = vmatpush1.bf16.msra.mxu0 %v2142
    %2152 = vmatprep.subr.bf16.mxu0 0
    %2153 = vmatpush1.bf16.msra.mxu0 0
    %2154 = vmatprep.subr.bf16.mxu0 0
    %2155 = vmatpush1.bf16.msra.mxu0 0
    %2156 = vmatprep.subr.bf16.mxu0 0
    %2157 = vmatpush1.bf16.msra.mxu0 0
    %2158 = vmatprep.subr.bf16.mxu0 0
    %2159 = vmatpush1.bf16.msra.mxu0 0
    %2160 = vmatprep.subr.bf16.mxu0 0
    %2161 = vmatpush1.bf16.msra.mxu0 0
    %2162 = vmatprep.subr.bf16.mxu0 0
    %2163 = vmatpush1.bf16.msra.mxu0 0
    %2164 = vmatprep.subr.bf16.mxu0 0
    %2165 = vmatpush1.bf16.msra.mxu0 0
    %2166 = vmatprep.subr.bf16.mxu0 0
    %2167 = vmatpush1.bf16.msra.mxu0 0
    %2168 = vmatprep.subr.bf16.mxu0 0
    %2169 = vmatpush1.bf16.msra.mxu0 0
    %2170 = vmatprep.subr.bf16.mxu0 0
    %2171 = vmatpush1.bf16.msra.mxu0 0
    %2172 = vmatprep.subr.bf16.mxu0 0
    %2173 = vmatpush1.bf16.msra.mxu0 0
    %2174 = vmatprep.subr.bf16.mxu0 0
    %2175 = vmatpush1.bf16.msra.mxu0 0
    %2176 = vmatprep.subr.bf16.mxu0 0
    %2177 = vmatpush1.bf16.msra.mxu0 0
    %2178 = vmatprep.subr.bf16.mxu0 0
    %2179 = vmatpush1.bf16.msra.mxu0 0
    %2180 = vmatprep.mubr.bf16.mxu0 0
    %2181 = vmatmul.mubr.bf16.gmra.mrb[0].mxu0 %v2146
    %v2182 = vpop.f32.mrb[0].mxu0
    %v2183 = vadd.f32 %v2131, %v2182
    %v2184 = vpop.f32.mrb[0].mxu0
    %v2185 = vpop.f32.mrb[0].mxu0
    %v2186 = vadd.f32 %v2131, %v2185
    %v2187 = vpop.f32.mrb[0].mxu0
    %2188 = vdwg.mxu0
    %v2189 = vmax.f32 %v2183, 0.0
    %v2190 = vmax.f32 %v2186, 0.0
    %2191 = vst.msk [vmem:[%s115] sm:$0xff] %vm610, %v2189
    %2192 = vst.msk [vmem:[%s115 + $0x8] sm:$0xff] %vm610, %v2190
    // Predicated region
    $region338: #{gadnr_forward.9} parent=1 // pred_check
      _
    $region339: #{gadnr_forward.9} parent=1 // pred_check_branch
      %2194 = sbr.rel (0) target = $region341
    $region340: #{gadnr_forward.9} parent=1 // pred_region
      _
    $region341: #{gadnr_forward.9} parent=1 // pred_fallthru
      _
    // Predicated region
    $region342: #{gadnr_forward.9} parent=1 // pred_check
      _
    $region343: #{gadnr_forward.9} parent=1 // pred_check_branch
      %2196 = sbr.rel (0) target = $region345
    $region344: #{gadnr_forward.9} parent=1 // pred_region
      _
    $region345: #{gadnr_forward.9} parent=1 // pred_fallthru
      _
    // Predicated region
    $region346: #{gadnr_forward.9} parent=1 // pred_check
      _
    $region347: #{gadnr_forward.9} parent=1 // pred_check_branch
      %2198 = sbr.rel (0) target = $region349
    $region348: #{gadnr_forward.9} parent=1 // pred_region
      _
    $region349: #{gadnr_forward.9} parent=1 // pred_fallthru
      _
    // Predicated region
    $region350: #{gadnr_forward.9} parent=1 // pred_check
      _
    $region351: #{gadnr_forward.9} parent=1 // pred_check_branch
      %2200 = sbr.rel (0) target = $region353
    $region352: #{gadnr_forward.9} parent=1 // pred_region
      _
    $region353: #{gadnr_forward.9} parent=1 // pred_fallthru
      _
    // Predicated region
    $region354: #{gadnr_forward.9} parent=1 // pred_check
      _
    $region355: #{gadnr_forward.9} parent=1 // pred_check_branch
      %2202 = sbr.rel (0) target = $region357
    $region356: #{gadnr_forward.9} parent=1 // pred_region
      _
    $region357: #{gadnr_forward.9} parent=1 // pred_fallthru
      _
    // Predicated region
    $region358: #{gadnr_forward.9} parent=1 // pred_check
      _
    $region359: #{gadnr_forward.9} parent=1 // pred_check_branch
      %2204 = sbr.rel (0) target = $region361
    $region360: #{gadnr_forward.9} parent=1 // pred_region
      _
    $region361: #{gadnr_forward.9} parent=1 // pred_fallthru
      _
    // Predicated region
    $region362: #{gadnr_forward.9} parent=1 // pred_check
      _
    $region363: #{gadnr_forward.9} parent=1 // pred_check_branch
      %2206 = sbr.rel (0) target = $region365
    $region364: #{gadnr_forward.9} parent=1 // pred_region
      _
    $region365: #{gadnr_forward.9} parent=1 // pred_fallthru
      _
    // Predicated region
    $region366: #{gadnr_forward.9} parent=1 // pred_check
      _
    $region367: #{gadnr_forward.9} parent=1 // pred_check_branch
      %2208 = sbr.rel (0) target = $region369
    $region368: #{gadnr_forward.9} parent=1 // pred_region
      _
    $region369: #{gadnr_forward.9} parent=1 // pred_fallthru
      _
    %2209 = vsyncpa [#allocation6], 1
    %2210 = vsyncpa [#allocation8], 1
    %2211 = vsyncpa [#allocation11], 1
    %2212 = vsyncpa [#allocation14], 1
    %2213 = vsyncpa [#allocation17], 1
    %2214 = vsyncpa [#allocation20], 1
    %2215 = vsyncpa [#allocation23], 1
    %2216 = vsyncpa [#allocation26], 1
    %2217 = vsyncpa [#allocation29], 1
    %2218 = vsyncpa [#allocation32], 1
    %2219 = vsyncpa [#allocation35], 1
    %2220 = vsyncpa [#allocation38], 1
    %2221 = vsyncpa [#allocation41], 1
    %2222 = vsyncpa [#allocation44], 1
    %2223 = vsyncpa [#allocation47], 1
    %2224 = vsyncpa [#allocation50], 1

</llo_original>
